<compile_context>
chip_gen: v6e
topology: v6e:2x2x1
jax: 0.10.0
libtpu: 0.0.40
codegen_flags: <defaults>
</compile_context>

<pallas_src>
import jax
import jax.numpy as jnp
from jax.experimental import pallas as pl
from jax.experimental.pallas import tpu as pltpu


# -----------------------------------------------------------------------------
# Fused kernel: two stacked-LSTM paths + fused Linear epilogues + cross-path add
# -----------------------------------------------------------------------------
def _make_fused_kernel(T, Bp, L, H0, H1):
    """Ref order:
      inputs : x (T*Bp, D),
               path0: per layer (W_ih, W_hh, b), then W_mlp0 (H0,out), b_mlp0 (1,out),
               path1: per layer (W_ih, W_hh, b) [lane-packed wide],
                      then W_mlp1 (H1,out), b_mlp1 (1,1)
      outputs: out (T*Bp,out), hn0/cn0 (L,Bp,H0), hn1/cn1 (L,Bp,H1)
      scratch: gbuf0 (T*Bp,4H0), ybuf0 (T*Bp,H0), gbuf1 (T*Bp,4H1), ybuf1 (T*Bp,H1)
    """
    f32 = jnp.float32

    def lstm_cell(gates, c, H):
        # Trimmed EUP work: sigmoid only on i|f and o, tanh only on g.
        i_f = jax.nn.sigmoid(gates[:, :2 * H])
        g_g = jnp.tanh(gates[:, 2 * H:3 * H])
        o_g = jax.nn.sigmoid(gates[:, 3 * H:])
        c_new = i_f[:, H:] * c + i_f[:, :H] * g_g
        h_new = o_g * jnp.tanh(c_new)
        return h_new, c_new

    def kernel(*refs):
        x_ref = refs[0]
        p0 = refs[1:1 + 3 * L]
        w_mlp0_ref = refs[1 + 3 * L]
        b_mlp0_ref = refs[2 + 3 * L]
        p1 = refs[3 + 3 * L:3 + 6 * L]
        w_mlp1_ref = refs[3 + 6 * L]
        b_mlp1_ref = refs[4 + 6 * L]
        out_ref, hn0_ref, cn0_ref, hn1_ref, cn1_ref = refs[5 + 6 * L:10 + 6 * L]
        gbuf0, ybuf0, gbuf1, ybuf1 = refs[10 + 6 * L:]

        x = x_ref[...]

        for l in range(L):
            w_ih0, w_hh0, b0 = p0[3 * l][...], p0[3 * l + 1][...], p0[3 * l + 2][...]
            w_ih1, w_hh1, b1 = p1[3 * l][...], p1[3 * l + 1][...], p1[3 * l + 2][...]

            # Batched (off-chain) input projections for ALL timesteps: one matmul each.
            src0 = x if l == 0 else ybuf0[...]
            src1 = x if l == 0 else ybuf1[...]
            gbuf0[...] = jnp.dot(src0, w_ih0, preferred_element_type=f32) + b0
            gbuf1[...] = jnp.dot(src1, w_ih1, preferred_element_type=f32) + b1

            h0 = jnp.zeros((Bp, H0), f32)
            c0 = jnp.zeros((Bp, H0), f32)
            h1 = jnp.zeros((Bp, H1), f32)
            c1 = jnp.zeros((Bp, H1), f32)

            # Interleaved time recurrences: two independent dependency chains per step.
            for t in range(T):
                rows = pl.ds(t * Bp, Bp)
                g0 = gbuf0[rows, :] + jnp.dot(h0, w_hh0, preferred_element_type=f32)
                g1 = gbuf1[rows, :] + jnp.dot(h1, w_hh1, preferred_element_type=f32)
                h0, c0 = lstm_cell(g0, c0, H0)
                h1, c1 = lstm_cell(g1, c1, H1)
                ybuf0[rows, :] = h0
                ybuf1[rows, :] = h1

            hn0_ref[l] = h0
            cn0_ref[l] = c0
            hn1_ref[l] = h1
            cn1_ref[l] = c1

        # Fused Linear epilogues + cross-path add: single lane-packed output store.
        out_ref[...] = (
            jnp.dot(ybuf0[...], w_mlp0_ref[...], preferred_element_type=f32)
            + jnp.dot(ybuf1[...], w_mlp1_ref[...], preferred_element_type=f32)
            + b_mlp0_ref[...] + b_mlp1_ref[...])

    return kernel


# -----------------------------------------------------------------------------
# pallas_call wrapper
# -----------------------------------------------------------------------------
def _fused_forward_pallas(x_flat, path0, mlp0, path1, mlp1, T, Bp):
    H0 = path0[0][1].shape[0]
    H1 = path1[0][1].shape[0]
    L = len(path0)
    out_dim = mlp0[0].shape[1]

    operands = [x_flat]
    in_specs = [pl.BlockSpec(x_flat.shape, lambda i: (0, 0))]

    def add_operand(w):
        operands.append(w)
        in_specs.append(pl.BlockSpec(w.shape, lambda i: (0, 0)))

    for (w_ih, w_hh, b) in path0:
        add_operand(w_ih); add_operand(w_hh); add_operand(b)
    add_operand(mlp0[0]); add_operand(mlp0[1])
    for (w_ih, w_hh, b) in path1:
        add_operand(w_ih); add_operand(w_hh); add_operand(b)
    add_operand(mlp1[0]); add_operand(mlp1[1])

    # Whole-sequence VMEM scratch (tiny here); guard before scaling (see TODO).
    scratch_bytes = 4 * T * Bp * (5 * H0 + 5 * H1)
    assert scratch_bytes < 16 * 1024 * 1024, "time-chunk the sequence before scaling"

    return pl.pallas_call(
        _make_fused_kernel(T, Bp, L, H0, H1),
        grid=(1,),
        in_specs=in_specs,
        out_specs=(
            pl.BlockSpec((T * Bp, out_dim), lambda i: (0, 0)),
            pl.BlockSpec((L, Bp, H0), lambda i: (0, 0, 0)),
            pl.BlockSpec((L, Bp, H0), lambda i: (0, 0, 0)),
            pl.BlockSpec((L, Bp, H1), lambda i: (0, 0, 0)),
            pl.BlockSpec((L, Bp, H1), lambda i: (0, 0, 0)),
        ),
        out_shape=(
            jax.ShapeDtypeStruct((T * Bp, out_dim), jnp.float32),
            jax.ShapeDtypeStruct((L, Bp, H0), jnp.float32),
            jax.ShapeDtypeStruct((L, Bp, H0), jnp.float32),
            jax.ShapeDtypeStruct((L, Bp, H1), jnp.float32),
            jax.ShapeDtypeStruct((L, Bp, H1), jnp.float32),
        ),
        scratch_shapes=[
            pltpu.VMEM((T * Bp, 4 * H0), jnp.float32),   # path0 input projections
            pltpu.VMEM((T * Bp, H0), jnp.float32),       # path0 hidden sequence
            pltpu.VMEM((T * Bp, 4 * H1), jnp.float32),   # path1 (wide) projections
            pltpu.VMEM((T * Bp, H1), jnp.float32),       # path1 (wide) hidden sequence
        ],
        compiler_params=pltpu.CompilerParams(
            dimension_semantics=("arbitrary",)),
    )(*operands)


# -----------------------------------------------------------------------------
# Host-side weight packing for the lane-wide rnn1 path
# -----------------------------------------------------------------------------
def _widen_rnn1_layer(w_ih, w_hh, b, D):
    """Pack D independent small LSTMs (hidden H1) into one lane-wide LSTM.

    Wide hidden lane order is (feature d, unit j); gate blocks i|f|g|o are each
    D*H1 lanes wide.  Weights become block-diagonal over d.
    """
    H1 = w_hh.shape[0]
    eye = jnp.eye(D, dtype=w_hh.dtype)
    w3 = w_hh.reshape(H1, 4, H1)                                       # (j, g, k)
    w_hh_w = jnp.einsum('de,jgk->djgek', eye, w3).reshape(D * H1, 4 * D * H1)
    if w_ih.shape[0] == 1:                                             # layer 0: input size 1
        w3i = w_ih.reshape(4, H1)                                      # (g, k)
        w_ih_w = jnp.einsum('de,gk->dgek', eye, w3i).reshape(D, 4 * D * H1)
    else:                                                              # layer >= 1: input H1
        w3i = w_ih.reshape(H1, 4, H1)
        w_ih_w = jnp.einsum('de,jgk->djgek', eye, w3i).reshape(D * H1, 4 * D * H1)
    b_w = jnp.broadcast_to(b.reshape(4, 1, H1), (4, D, H1)).reshape(1, 4 * D * H1)
    return w_ih_w, w_hh_w, b_w


def _widen_mlp1(w, b, D):
    """(H1,1) Linear -> (D*H1, D) block-diagonal Linear (output lane d <- feature d)."""
    H1 = w.shape[0]
    w_w = jnp.einsum('de,j->dje', jnp.eye(D, dtype=w.dtype), w[:, 0]).reshape(D * H1, D)
    return w_w, b


# -----------------------------------------------------------------------------
# Parameter construction (deterministic, mimics PyTorch init scale)
# -----------------------------------------------------------------------------
def init_lstm_params(key, inp_dim, hidden_dim, num_layers):
    params = []
    bound = 1.0 / (hidden_dim ** 0.5)
    for layer in range(num_layers):
        d_in = inp_dim if layer == 0 else hidden_dim
        key, k1, k2, k3 = jax.random.split(key, 4)
        w_ih = jax.random.uniform(k1, (d_in, 4 * hidden_dim), jnp.float32, -bound, bound)
        w_hh = jax.random.uniform(k2, (hidden_dim, 4 * hidden_dim), jnp.float32, -bound, bound)
        b = jax.random.uniform(k3, (1, 4 * hidden_dim), jnp.float32, -bound, bound)  # b_ih+b_hh
        params.append((w_ih, w_hh, b))
    return key, params


def init_linear_params(key, d_in, d_out):
    bound = 1.0 / (d_in ** 0.5)
    key, k1, k2 = jax.random.split(key, 3)
    w = jax.random.uniform(k1, (d_in, d_out), jnp.float32, -bound, bound)
    b = jax.random.uniform(k2, (1, d_out), jnp.float32, -bound, bound)
    return key, (w, b)


def init_optimizer_opti_params(key, inp_dim, mid_dim, out_dim, num_layers):
    key, rnn0 = init_lstm_params(key, inp_dim, mid_dim, num_layers)
    key, (mlp0_w, mlp0_b) = init_linear_params(key, mid_dim, out_dim)
    key, rnn1 = init_lstm_params(key, 1, 8, num_layers)
    key, (mlp1_w, mlp1_b) = init_linear_params(key, 8, 1)
    return {
        "rnn0": rnn0, "mlp0_w": mlp0_w, "mlp0_b": mlp0_b,
        "rnn1": rnn1, "mlp1_w": mlp1_w, "mlp1_b": mlp1_b,
    }


# -----------------------------------------------------------------------------
# Forward pass (matches OptimizerOpti.forward with hid0=None, hid1=None)
# -----------------------------------------------------------------------------
@jax.jit
def optimizer_opti_forward(params, inp):
    T, B, D = inp.shape
    out_dim = params["mlp0_w"].shape[1]
    # out0 + out1.reshape(T,B,inp_dim) requires out_dim == inp_dim (as in the module's use).
    assert out_dim == D
    H1 = params["rnn1"][0][1].shape[0]
    L = len(params["rnn0"])

    Bp = ((B + 7) // 8) * 8                          # pad batch to a sublane multiple
    x = inp if Bp == B else jnp.pad(inp, ((0, 0), (0, Bp - B), (0, 0)))
    x_flat = x.reshape(T * Bp, D)

    # Lane-packed rnn1/mlp1 weights (block-diagonal over the D per-feature LSTMs).
    path1 = [_widen_rnn1_layer(w_ih, w_hh, b, D) for (w_ih, w_hh, b) in params["rnn1"]]
    mlp1 = _widen_mlp1(params["mlp1_w"], params["mlp1_b"], D)

    out_flat, hn0, cn0, hn1w, cn1w = _fused_forward_pallas(
        x_flat,
        params["rnn0"], (params["mlp0_w"], params["mlp0_b"]),
        path1, mlp1, T, Bp)

    out = out_flat.reshape(T, Bp, out_dim)[:, :B, :]
    hid0 = (hn0[:, :B, :], cn0[:, :B, :])
    hid1 = (hn1w[:, :B, :].reshape(L, B * D, H1),
            cn1w[:, :B, :].reshape(L, B * D, H1))
    return out, hid0, hid1


# -----------------------------------------------------------------------------
# Pure-JAX reference (same math, no Pallas) for correctness check
# -----------------------------------------------------------------------------
def _lstm_reference(x, layers):
    T = x.shape[0]
    hs, cs = [], []
    seq = x
    for (w_ih, w_hh, b) in layers:
        H = w_hh.shape[0]
        N = seq.shape[1]
        h = jnp.zeros((N, H), jnp.float32)
        c = jnp.zeros((N, H), jnp.float32)
        ys = []
        for t in range(T):
            g = seq[t] @ w_ih + h @ w_hh + b
            i = jax.nn.sigmoid(g[:, :H])
            f = jax.nn.sigmoid(g[:, H:2 * H])
            gg = jnp.tanh(g[:, 2 * H:3 * H])
            o = jax.nn.sigmoid(g[:, 3 * H:])
            c = f * c + i * gg
            h = o * jnp.tanh(c)
            ys.append(h)
        seq = jnp.stack(ys)
        hs.append(h)
        cs.append(c)
    return seq, jnp.stack(hs), jnp.stack(cs)


def optimizer_opti_reference(params, inp):
    T, B, D = inp.shape
    y0, h0, c0 = _lstm_reference(inp, params["rnn0"])
    out0 = y0 @ params["mlp0_w"] + params["mlp0_b"]
    x1 = inp.reshape(T, B * D, 1)
    y1, h1, c1 = _lstm_reference(x1, params["rnn1"])
    out1 = (y1 @ params["mlp1_w"] + params["mlp1_b"]).reshape(T, B, D)
    return out0 + out1, (h0, c0), (h1, c1)


# -----------------------------------------------------------------------------
if __name__ == "__main__":
    seq, batch, inp_dim = 8, 4, 16
    mid_dim, out_dim, num_layers = 32, 16, 2

    key = jax.random.PRNGKey(0)
    key, kx = jax.random.split(key)
    inp = jax.random.normal(kx, (seq, batch, inp_dim), jnp.float32)
    params = init_optimizer_opti_params(key, inp_dim, mid_dim, out_dim, num_layers)

    out, hid0, hid1 = optimizer_opti_forward(params, inp)
    jax.block_until_ready(out)
    jax.block_until_ready(hid0)
    jax.block_until_ready(hid1)

    assert out.shape == (seq, batch, inp_dim)
    assert hid0[0].shape == (num_layers, batch, mid_dim)
    assert hid0[1].shape == (num_layers, batch, mid_dim)
    assert hid1[0].shape == (num_layers, batch * inp_dim, 8)
    assert hid1[1].shape == (num_layers, batch * inp_dim, 8)
    assert bool(jnp.all(jnp.isfinite(out)))

    # Numerical check against the pure-JAX reference.
    ref_out, ref_hid0, ref_hid1 = jax.jit(optimizer_opti_reference)(params, inp)
    assert bool(jnp.allclose(out, ref_out, atol=2e-3, rtol=1e-2))
    assert bool(jnp.allclose(hid0[0], ref_hid0[0], atol=2e-3, rtol=1e-2))
    assert bool(jnp.allclose(hid0[1], ref_hid0[1], atol=2e-3, rtol=1e-2))
    assert bool(jnp.allclose(hid1[0], ref_hid1[0], atol=2e-3, rtol=1e-2))
    assert bool(jnp.allclose(hid1[1], ref_hid1[1], atol=2e-3, rtol=1e-2))

    print("KERNEL_OK")
</pallas_src>

<mosaic_0001>
module attributes {stable_mosaic.version = 11 : i64} {
  func.func @kernel(%arg0: i32, %arg1: memref<64x16xf32, #tpu.memory_space<vmem>>, %arg2: memref<16x128xf32, #tpu.memory_space<vmem>>, %arg3: memref<32x128xf32, #tpu.memory_space<vmem>>, %arg4: memref<1x128xf32, #tpu.memory_space<vmem>>, %arg5: memref<32x128xf32, #tpu.memory_space<vmem>>, %arg6: memref<32x128xf32, #tpu.memory_space<vmem>>, %arg7: memref<1x128xf32, #tpu.memory_space<vmem>>, %arg8: memref<32x16xf32, #tpu.memory_space<vmem>>, %arg9: memref<1x16xf32, #tpu.memory_space<vmem>>, %arg10: memref<16x512xf32, #tpu.memory_space<vmem>>, %arg11: memref<128x512xf32, #tpu.memory_space<vmem>>, %arg12: memref<1x512xf32, #tpu.memory_space<vmem>>, %arg13: memref<128x512xf32, #tpu.memory_space<vmem>>, %arg14: memref<128x512xf32, #tpu.memory_space<vmem>>, %arg15: memref<1x512xf32, #tpu.memory_space<vmem>>, %arg16: memref<128x16xf32, #tpu.memory_space<vmem>>, %arg17: memref<1x1xf32, #tpu.memory_space<vmem>>, %arg18: memref<64x16xf32, #tpu.memory_space<vmem>>, %arg19: memref<2x8x32xf32, #tpu.memory_space<vmem>>, %arg20: memref<2x8x32xf32, #tpu.memory_space<vmem>>, %arg21: memref<2x8x128xf32, #tpu.memory_space<vmem>>, %arg22: memref<2x8x128xf32, #tpu.memory_space<vmem>>, %arg23: memref<64x128xf32, #tpu.memory_space<vmem>>, %arg24: memref<64x32xf32, #tpu.memory_space<vmem>>, %arg25: memref<64x512xf32, #tpu.memory_space<vmem>>, %arg26: memref<64x128xf32, #tpu.memory_space<vmem>>) attributes {dimension_semantics = [#tpu.dimension_semantics<arbitrary>], iteration_bounds = array<i64: 1>, scalar_prefetch = 0 : i64, scratch_operands = 4 : i64, tpu.core_type = #tpu.core_type<tc>, window_params = [{pipeline_mode = #tpu.pipeline_mode<synchronous>, transform_indices = @transform_0, window_bounds = array<i64: 64, 16>}, {pipeline_mode = #tpu.pipeline_mode<synchronous>, transform_indices = @transform_1, window_bounds = array<i64: 16, 128>}, {pipeline_mode = #tpu.pipeline_mode<synchronous>, transform_indices = @transform_2, window_bounds = array<i64: 32, 128>}, {pipeline_mode = #tpu.pipeline_mode<synchronous>, transform_indices = @transform_3, window_bounds = array<i64: 1, 128>}, {pipeline_mode = #tpu.pipeline_mode<synchronous>, transform_indices = @transform_4, window_bounds = array<i64: 32, 128>}, {pipeline_mode = #tpu.pipeline_mode<synchronous>, transform_indices = @transform_5, window_bounds = array<i64: 32, 128>}, {pipeline_mode = #tpu.pipeline_mode<synchronous>, transform_indices = @transform_6, window_bounds = array<i64: 1, 128>}, {pipeline_mode = #tpu.pipeline_mode<synchronous>, transform_indices = @transform_7, window_bounds = array<i64: 32, 16>}, {pipeline_mode = #tpu.pipeline_mode<synchronous>, transform_indices = @transform_8, window_bounds = array<i64: 1, 16>}, {pipeline_mode = #tpu.pipeline_mode<synchronous>, transform_indices = @transform_9, window_bounds = array<i64: 16, 512>}, {pipeline_mode = #tpu.pipeline_mode<synchronous>, transform_indices = @transform_10, window_bounds = array<i64: 128, 512>}, {pipeline_mode = #tpu.pipeline_mode<synchronous>, transform_indices = @transform_11, window_bounds = array<i64: 1, 512>}, {pipeline_mode = #tpu.pipeline_mode<synchronous>, transform_indices = @transform_12, window_bounds = array<i64: 128, 512>}, {pipeline_mode = #tpu.pipeline_mode<synchronous>, transform_indices = @transform_13, window_bounds = array<i64: 128, 512>}, {pipeline_mode = #tpu.pipeline_mode<synchronous>, transform_indices = @transform_14, window_bounds = array<i64: 1, 512>}, {pipeline_mode = #tpu.pipeline_mode<synchronous>, transform_indices = @transform_15, window_bounds = array<i64: 128, 16>}, {pipeline_mode = #tpu.pipeline_mode<synchronous>, transform_indices = @transform_16, window_bounds = array<i64: 1, 1>}, {pipeline_mode = #tpu.pipeline_mode<synchronous>, transform_indices = @transform_17, window_bounds = array<i64: 64, 16>}, {pipeline_mode = #tpu.pipeline_mode<synchronous>, transform_indices = @transform_18, window_bounds = array<i64: 2, 8, 32>}, {pipeline_mode = #tpu.pipeline_mode<synchronous>, transform_indices = @transform_19, window_bounds = array<i64: 2, 8, 32>}, {pipeline_mode = #tpu.pipeline_mode<synchronous>, transform_indices = @transform_20, window_bounds = array<i64: 2, 8, 128>}, {pipeline_mode = #tpu.pipeline_mode<synchronous>, transform_indices = @transform_21, window_bounds = array<i64: 2, 8, 128>}]} {
    %c0 = arith.constant 0 : index
    %c0_0 = arith.constant 0 : index
    %0 = vector.load %arg1[%c0, %c0_0] : memref<64x16xf32, #tpu.memory_space<vmem>>, vector<64x16xf32>
    %c0_1 = arith.constant 0 : index
    %c0_2 = arith.constant 0 : index
    %1 = vector.load %arg2[%c0_1, %c0_2] : memref<16x128xf32, #tpu.memory_space<vmem>>, vector<16x128xf32>
    %c0_3 = arith.constant 0 : index
    %c0_4 = arith.constant 0 : index
    %2 = vector.load %arg3[%c0_3, %c0_4] : memref<32x128xf32, #tpu.memory_space<vmem>>, vector<32x128xf32>
    %c0_5 = arith.constant 0 : index
    %c0_6 = arith.constant 0 : index
    %3 = vector.load %arg4[%c0_5, %c0_6] : memref<1x128xf32, #tpu.memory_space<vmem>>, vector<1x128xf32>
    %c0_7 = arith.constant 0 : index
    %c0_8 = arith.constant 0 : index
    %4 = vector.load %arg10[%c0_7, %c0_8] : memref<16x512xf32, #tpu.memory_space<vmem>>, vector<16x512xf32>
    %c0_9 = arith.constant 0 : index
    %c0_10 = arith.constant 0 : index
    %5 = vector.load %arg11[%c0_9, %c0_10] : memref<128x512xf32, #tpu.memory_space<vmem>>, vector<128x512xf32>
    %c0_11 = arith.constant 0 : index
    %c0_12 = arith.constant 0 : index
    %6 = vector.load %arg12[%c0_11, %c0_12] : memref<1x512xf32, #tpu.memory_space<vmem>>, vector<1x512xf32>
    %cst = arith.constant dense<0.000000e+00> : vector<64x128xf32>
    %7 = tpu.matmul %0, %1, %cst {dimension_numbers = #tpu.dot_dimension_numbers<[1], [0], [0], [1], [0, 0, 1, 1], [], []>} : vector<64x16xf32>, vector<16x128xf32>, vector<64x128xf32> -> vector<64x128xf32>
    %8 = vector.broadcast %3 : vector<1x128xf32> to vector<64x128xf32>
    %9 = arith.addf %7, %8 : vector<64x128xf32>
    %c0_13 = arith.constant 0 : index
    %c0_14 = arith.constant 0 : index
    %10 = vector.load %arg23[%c0_13, %c0_14] : memref<64x128xf32, #tpu.memory_space<vmem>>, vector<64x128xf32>
    tpu.vector_store %arg23[%c0_13, %c0_14], %9 {strides = array<i32>} : memref<64x128xf32, #tpu.memory_space<vmem>>, vector<64x128xf32>,
    %cst_15 = arith.constant dense<0.000000e+00> : vector<64x512xf32>
    %11 = tpu.matmul %0, %4, %cst_15 {dimension_numbers = #tpu.dot_dimension_numbers<[1], [0], [0], [1], [0, 0, 1, 1], [], []>} : vector<64x16xf32>, vector<16x512xf32>, vector<64x512xf32> -> vector<64x512xf32>
    %12 = vector.broadcast %6 : vector<1x512xf32> to vector<64x512xf32>
    %13 = arith.addf %11, %12 : vector<64x512xf32>
    %c0_16 = arith.constant 0 : index
    %c0_17 = arith.constant 0 : index
    %14 = vector.load %arg25[%c0_16, %c0_17] : memref<64x512xf32, #tpu.memory_space<vmem>>, vector<64x512xf32>
    tpu.vector_store %arg25[%c0_16, %c0_17], %13 {strides = array<i32>} : memref<64x512xf32, #tpu.memory_space<vmem>>, vector<64x512xf32>,
    %cst_18 = arith.constant 0.000000e+00 : f32
    %15 = vector.broadcast %cst_18 : f32 to vector<8x32xf32>
    %cst_19 = arith.constant 0.000000e+00 : f32
    %16 = vector.broadcast %cst_19 : f32 to vector<8x32xf32>
    %cst_20 = arith.constant 0.000000e+00 : f32
    %17 = vector.broadcast %cst_20 : f32 to vector<8x128xf32>
    %cst_21 = arith.constant 0.000000e+00 : f32
    %18 = vector.broadcast %cst_21 : f32 to vector<8x128xf32>
    %c0_22 = arith.constant 0 : index
    %c0_23 = arith.constant 0 : index
    %19 = vector.load %arg23[%c0_22, %c0_23] : memref<64x128xf32, #tpu.memory_space<vmem>>, vector<8x128xf32>
    %cst_24 = arith.constant dense<0.000000e+00> : vector<8x128xf32>
    %20 = tpu.matmul %15, %2, %cst_24 {dimension_numbers = #tpu.dot_dimension_numbers<[1], [0], [0], [1], [0, 0, 1, 1], [], []>} : vector<8x32xf32>, vector<32x128xf32>, vector<8x128xf32> -> vector<8x128xf32>
    %21 = arith.addf %19, %20 : vector<8x128xf32>
    %c0_25 = arith.constant 0 : index
    %c0_26 = arith.constant 0 : index
    %22 = vector.load %arg25[%c0_25, %c0_26] : memref<64x512xf32, #tpu.memory_space<vmem>>, vector<8x512xf32>
    %cst_27 = arith.constant dense<0.000000e+00> : vector<8x512xf32>
    %23 = tpu.matmul %17, %5, %cst_27 {dimension_numbers = #tpu.dot_dimension_numbers<[1], [0], [0], [1], [0, 0, 1, 1], [], []>} : vector<8x128xf32>, vector<128x512xf32>, vector<8x512xf32> -> vector<8x512xf32>
    %24 = arith.addf %22, %23 : vector<8x512xf32>
    %25 = vector.extract_strided_slice %21 {offsets = [0, 0], sizes = [8, 64], strides = [1, 1]} : vector<8x128xf32> to vector<8x64xf32>
    %26 = arith.negf %25 : vector<8x64xf32>
    %27 = math.exp %26 : vector<8x64xf32>
    %cst_28 = arith.constant 1.000000e+00 : f32
    %28 = vector.broadcast %cst_28 : f32 to vector<8x64xf32>
    %29 = arith.addf %28, %27 : vector<8x64xf32>
    %30 = arith.divf %28, %29 : vector<8x64xf32>
    %31 = vector.extract_strided_slice %21 {offsets = [0, 64], sizes = [8, 32], strides = [1, 1]} : vector<8x128xf32> to vector<8x32xf32>
    %32 = math.tanh %31 : vector<8x32xf32>
    %33 = vector.extract_strided_slice %21 {offsets = [0, 96], sizes = [8, 32], strides = [1, 1]} : vector<8x128xf32> to vector<8x32xf32>
    %34 = arith.negf %33 : vector<8x32xf32>
    %35 = math.exp %34 : vector<8x32xf32>
    %cst_29 = arith.constant 1.000000e+00 : f32
    %36 = vector.broadcast %cst_29 : f32 to vector<8x32xf32>
    %37 = arith.addf %36, %35 : vector<8x32xf32>
    %38 = arith.divf %36, %37 : vector<8x32xf32>
    %39 = vector.extract_strided_slice %30 {offsets = [0, 32], sizes = [8, 32], strides = [1, 1]} : vector<8x64xf32> to vector<8x32xf32>
    %40 = arith.mulf %39, %16 : vector<8x32xf32>
    %41 = vector.extract_strided_slice %30 {offsets = [0, 0], sizes = [8, 32], strides = [1, 1]} : vector<8x64xf32> to vector<8x32xf32>
    %42 = arith.mulf %41, %32 : vector<8x32xf32>
    %43 = arith.addf %40, %42 : vector<8x32xf32>
    %44 = math.tanh %43 : vector<8x32xf32>
    %45 = arith.mulf %38, %44 : vector<8x32xf32>
    %46 = vector.extract_strided_slice %24 {offsets = [0, 0], sizes = [8, 256], strides = [1, 1]} : vector<8x512xf32> to vector<8x256xf32>
    %47 = arith.negf %46 : vector<8x256xf32>
    %48 = math.exp %47 : vector<8x256xf32>
    %cst_30 = arith.constant 1.000000e+00 : f32
    %49 = vector.broadcast %cst_30 : f32 to vector<8x256xf32>
    %50 = arith.addf %49, %48 : vector<8x256xf32>
    %51 = arith.divf %49, %50 : vector<8x256xf32>
    %52 = vector.extract_strided_slice %24 {offsets = [0, 256], sizes = [8, 128], strides = [1, 1]} : vector<8x512xf32> to vector<8x128xf32>
    %53 = math.tanh %52 : vector<8x128xf32>
    %54 = vector.extract_strided_slice %24 {offsets = [0, 384], sizes = [8, 128], strides = [1, 1]} : vector<8x512xf32> to vector<8x128xf32>
    %55 = arith.negf %54 : vector<8x128xf32>
    %56 = math.exp %55 : vector<8x128xf32>
    %cst_31 = arith.constant 1.000000e+00 : f32
    %57 = vector.broadcast %cst_31 : f32 to vector<8x128xf32>
    %58 = arith.addf %57, %56 : vector<8x128xf32>
    %59 = arith.divf %57, %58 : vector<8x128xf32>
    %60 = vector.extract_strided_slice %51 {offsets = [0, 128], sizes = [8, 128], strides = [1, 1]} : vector<8x256xf32> to vector<8x128xf32>
    %61 = arith.mulf %60, %18 : vector<8x128xf32>
    %62 = vector.extract_strided_slice %51 {offsets = [0, 0], sizes = [8, 128], strides = [1, 1]} : vector<8x256xf32> to vector<8x128xf32>
    %63 = arith.mulf %62, %53 : vector<8x128xf32>
    %64 = arith.addf %61, %63 : vector<8x128xf32>
    %65 = math.tanh %64 : vector<8x128xf32>
    %66 = arith.mulf %59, %65 : vector<8x128xf32>
    %c0_32 = arith.constant 0 : index
    %c0_33 = arith.constant 0 : index
    %67 = vector.load %arg24[%c0_32, %c0_33] : memref<64x32xf32, #tpu.memory_space<vmem>>, vector<8x32xf32>
    tpu.vector_store %arg24[%c0_32, %c0_33], %45 {strides = array<i32>} : memref<64x32xf32, #tpu.memory_space<vmem>>, vector<8x32xf32>,
    %c0_34 = arith.constant 0 : index
    %c0_35 = arith.constant 0 : index
    %68 = vector.load %arg26[%c0_34, %c0_35] : memref<64x128xf32, #tpu.memory_space<vmem>>, vector<8x128xf32>
    tpu.vector_store %arg26[%c0_34, %c0_35], %66 {strides = array<i32>} : memref<64x128xf32, #tpu.memory_space<vmem>>, vector<8x128xf32>,
    %c8 = arith.constant 8 : index
    %c0_36 = arith.constant 0 : index
    %69 = vector.load %arg23[%c8, %c0_36] : memref<64x128xf32, #tpu.memory_space<vmem>>, vector<8x128xf32>
    %cst_37 = arith.constant dense<0.000000e+00> : vector<8x128xf32>
    %70 = tpu.matmul %45, %2, %cst_37 {dimension_numbers = #tpu.dot_dimension_numbers<[1], [0], [0], [1], [0, 0, 1, 1], [], []>} : vector<8x32xf32>, vector<32x128xf32>, vector<8x128xf32> -> vector<8x128xf32>
    %71 = arith.addf %69, %70 : vector<8x128xf32>
    %c8_38 = arith.constant 8 : index
    %c0_39 = arith.constant 0 : index
    %72 = vector.load %arg25[%c8_38, %c0_39] : memref<64x512xf32, #tpu.memory_space<vmem>>, vector<8x512xf32>
    %cst_40 = arith.constant dense<0.000000e+00> : vector<8x512xf32>
    %73 = tpu.matmul %66, %5, %cst_40 {dimension_numbers = #tpu.dot_dimension_numbers<[1], [0], [0], [1], [0, 0, 1, 1], [], []>} : vector<8x128xf32>, vector<128x512xf32>, vector<8x512xf32> -> vector<8x512xf32>
    %74 = arith.addf %72, %73 : vector<8x512xf32>
    %75 = vector.extract_strided_slice %71 {offsets = [0, 0], sizes = [8, 64], strides = [1, 1]} : vector<8x128xf32> to vector<8x64xf32>
    %76 = arith.negf %75 : vector<8x64xf32>
    %77 = math.exp %76 : vector<8x64xf32>
    %cst_41 = arith.constant 1.000000e+00 : f32
    %78 = vector.broadcast %cst_41 : f32 to vector<8x64xf32>
    %79 = arith.addf %78, %77 : vector<8x64xf32>
    %80 = arith.divf %78, %79 : vector<8x64xf32>
    %81 = vector.extract_strided_slice %71 {offsets = [0, 64], sizes = [8, 32], strides = [1, 1]} : vector<8x128xf32> to vector<8x32xf32>
    %82 = math.tanh %81 : vector<8x32xf32>
    %83 = vector.extract_strided_slice %71 {offsets = [0, 96], sizes = [8, 32], strides = [1, 1]} : vector<8x128xf32> to vector<8x32xf32>
    %84 = arith.negf %83 : vector<8x32xf32>
    %85 = math.exp %84 : vector<8x32xf32>
    %cst_42 = arith.constant 1.000000e+00 : f32
    %86 = vector.broadcast %cst_42 : f32 to vector<8x32xf32>
    %87 = arith.addf %86, %85 : vector<8x32xf32>
    %88 = arith.divf %86, %87 : vector<8x32xf32>
    %89 = vector.extract_strided_slice %80 {offsets = [0, 32], sizes = [8, 32], strides = [1, 1]} : vector<8x64xf32> to vector<8x32xf32>
    %90 = arith.mulf %89, %43 : vector<8x32xf32>
    %91 = vector.extract_strided_slice %80 {offsets = [0, 0], sizes = [8, 32], strides = [1, 1]} : vector<8x64xf32> to vector<8x32xf32>
    %92 = arith.mulf %91, %82 : vector<8x32xf32>
    %93 = arith.addf %90, %92 : vector<8x32xf32>
    %94 = math.tanh %93 : vector<8x32xf32>
    %95 = arith.mulf %88, %94 : vector<8x32xf32>
    %96 = vector.extract_strided_slice %74 {offsets = [0, 0], sizes = [8, 256], strides = [1, 1]} : vector<8x512xf32> to vector<8x256xf32>
    %97 = arith.negf %96 : vector<8x256xf32>
    %98 = math.exp %97 : vector<8x256xf32>
    %cst_43 = arith.constant 1.000000e+00 : f32
    %99 = vector.broadcast %cst_43 : f32 to vector<8x256xf32>
    %100 = arith.addf %99, %98 : vector<8x256xf32>
    %101 = arith.divf %99, %100 : vector<8x256xf32>
    %102 = vector.extract_strided_slice %74 {offsets = [0, 256], sizes = [8, 128], strides = [1, 1]} : vector<8x512xf32> to vector<8x128xf32>
    %103 = math.tanh %102 : vector<8x128xf32>
    %104 = vector.extract_strided_slice %74 {offsets = [0, 384], sizes = [8, 128], strides = [1, 1]} : vector<8x512xf32> to vector<8x128xf32>
    %105 = arith.negf %104 : vector<8x128xf32>
    %106 = math.exp %105 : vector<8x128xf32>
    %cst_44 = arith.constant 1.000000e+00 : f32
    %107 = vector.broadcast %cst_44 : f32 to vector<8x128xf32>
    %108 = arith.addf %107, %106 : vector<8x128xf32>
    %109 = arith.divf %107, %108 : vector<8x128xf32>
    %110 = vector.extract_strided_slice %101 {offsets = [0, 128], sizes = [8, 128], strides = [1, 1]} : vector<8x256xf32> to vector<8x128xf32>
    %111 = arith.mulf %110, %64 : vector<8x128xf32>
    %112 = vector.extract_strided_slice %101 {offsets = [0, 0], sizes = [8, 128], strides = [1, 1]} : vector<8x256xf32> to vector<8x128xf32>
    %113 = arith.mulf %112, %103 : vector<8x128xf32>
    %114 = arith.addf %111, %113 : vector<8x128xf32>
    %115 = math.tanh %114 : vector<8x128xf32>
    %116 = arith.mulf %109, %115 : vector<8x128xf32>
    %c8_45 = arith.constant 8 : index
    %c0_46 = arith.constant 0 : index
    %117 = vector.load %arg24[%c8_45, %c0_46] : memref<64x32xf32, #tpu.memory_space<vmem>>, vector<8x32xf32>
    tpu.vector_store %arg24[%c8_45, %c0_46], %95 {strides = array<i32>} : memref<64x32xf32, #tpu.memory_space<vmem>>, vector<8x32xf32>,
    %c8_47 = arith.constant 8 : index
    %c0_48 = arith.constant 0 : index
    %118 = vector.load %arg26[%c8_47, %c0_48] : memref<64x128xf32, #tpu.memory_space<vmem>>, vector<8x128xf32>
    tpu.vector_store %arg26[%c8_47, %c0_48], %116 {strides = array<i32>} : memref<64x128xf32, #tpu.memory_space<vmem>>, vector<8x128xf32>,
    %c16 = arith.constant 16 : index
    %c0_49 = arith.constant 0 : index
    %119 = vector.load %arg23[%c16, %c0_49] : memref<64x128xf32, #tpu.memory_space<vmem>>, vector<8x128xf32>
    %cst_50 = arith.constant dense<0.000000e+00> : vector<8x128xf32>
    %120 = tpu.matmul %95, %2, %cst_50 {dimension_numbers = #tpu.dot_dimension_numbers<[1], [0], [0], [1], [0, 0, 1, 1], [], []>} : vector<8x32xf32>, vector<32x128xf32>, vector<8x128xf32> -> vector<8x128xf32>
    %121 = arith.addf %119, %120 : vector<8x128xf32>
    %c16_51 = arith.constant 16 : index
    %c0_52 = arith.constant 0 : index
    %122 = vector.load %arg25[%c16_51, %c0_52] : memref<64x512xf32, #tpu.memory_space<vmem>>, vector<8x512xf32>
    %cst_53 = arith.constant dense<0.000000e+00> : vector<8x512xf32>
    %123 = tpu.matmul %116, %5, %cst_53 {dimension_numbers = #tpu.dot_dimension_numbers<[1], [0], [0], [1], [0, 0, 1, 1], [], []>} : vector<8x128xf32>, vector<128x512xf32>, vector<8x512xf32> -> vector<8x512xf32>
    %124 = arith.addf %122, %123 : vector<8x512xf32>
    %125 = vector.extract_strided_slice %121 {offsets = [0, 0], sizes = [8, 64], strides = [1, 1]} : vector<8x128xf32> to vector<8x64xf32>
    %126 = arith.negf %125 : vector<8x64xf32>
    %127 = math.exp %126 : vector<8x64xf32>
    %cst_54 = arith.constant 1.000000e+00 : f32
    %128 = vector.broadcast %cst_54 : f32 to vector<8x64xf32>
    %129 = arith.addf %128, %127 : vector<8x64xf32>
    %130 = arith.divf %128, %129 : vector<8x64xf32>
    %131 = vector.extract_strided_slice %121 {offsets = [0, 64], sizes = [8, 32], strides = [1, 1]} : vector<8x128xf32> to vector<8x32xf32>
    %132 = math.tanh %131 : vector<8x32xf32>
    %133 = vector.extract_strided_slice %121 {offsets = [0, 96], sizes = [8, 32], strides = [1, 1]} : vector<8x128xf32> to vector<8x32xf32>
    %134 = arith.negf %133 : vector<8x32xf32>
    %135 = math.exp %134 : vector<8x32xf32>
    %cst_55 = arith.constant 1.000000e+00 : f32
    %136 = vector.broadcast %cst_55 : f32 to vector<8x32xf32>
    %137 = arith.addf %136, %135 : vector<8x32xf32>
    %138 = arith.divf %136, %137 : vector<8x32xf32>
    %139 = vector.extract_strided_slice %130 {offsets = [0, 32], sizes = [8, 32], strides = [1, 1]} : vector<8x64xf32> to vector<8x32xf32>
    %140 = arith.mulf %139, %93 : vector<8x32xf32>
    %141 = vector.extract_strided_slice %130 {offsets = [0, 0], sizes = [8, 32], strides = [1, 1]} : vector<8x64xf32> to vector<8x32xf32>
    %142 = arith.mulf %141, %132 : vector<8x32xf32>
    %143 = arith.addf %140, %142 : vector<8x32xf32>
    %144 = math.tanh %143 : vector<8x32xf32>
    %145 = arith.mulf %138, %144 : vector<8x32xf32>
    %146 = vector.extract_strided_slice %124 {offsets = [0, 0], sizes = [8, 256], strides = [1, 1]} : vector<8x512xf32> to vector<8x256xf32>
    %147 = arith.negf %146 : vector<8x256xf32>
    %148 = math.exp %147 : vector<8x256xf32>
    %cst_56 = arith.constant 1.000000e+00 : f32
    %149 = vector.broadcast %cst_56 : f32 to vector<8x256xf32>
    %150 = arith.addf %149, %148 : vector<8x256xf32>
    %151 = arith.divf %149, %150 : vector<8x256xf32>
    %152 = vector.extract_strided_slice %124 {offsets = [0, 256], sizes = [8, 128], strides = [1, 1]} : vector<8x512xf32> to vector<8x128xf32>
    %153 = math.tanh %152 : vector<8x128xf32>
    %154 = vector.extract_strided_slice %124 {offsets = [0, 384], sizes = [8, 128], strides = [1, 1]} : vector<8x512xf32> to vector<8x128xf32>
    %155 = arith.negf %154 : vector<8x128xf32>
    %156 = math.exp %155 : vector<8x128xf32>
    %cst_57 = arith.constant 1.000000e+00 : f32
    %157 = vector.broadcast %cst_57 : f32 to vector<8x128xf32>
    %158 = arith.addf %157, %156 : vector<8x128xf32>
    %159 = arith.divf %157, %158 : vector<8x128xf32>
    %160 = vector.extract_strided_slice %151 {offsets = [0, 128], sizes = [8, 128], strides = [1, 1]} : vector<8x256xf32> to vector<8x128xf32>
    %161 = arith.mulf %160, %114 : vector<8x128xf32>
    %162 = vector.extract_strided_slice %151 {offsets = [0, 0], sizes = [8, 128], strides = [1, 1]} : vector<8x256xf32> to vector<8x128xf32>
    %163 = arith.mulf %162, %153 : vector<8x128xf32>
    %164 = arith.addf %161, %163 : vector<8x128xf32>
    %165 = math.tanh %164 : vector<8x128xf32>
    %166 = arith.mulf %159, %165 : vector<8x128xf32>
    %c16_58 = arith.constant 16 : index
    %c0_59 = arith.constant 0 : index
    %167 = vector.load %arg24[%c16_58, %c0_59] : memref<64x32xf32, #tpu.memory_space<vmem>>, vector<8x32xf32>
    tpu.vector_store %arg24[%c16_58, %c0_59], %145 {strides = array<i32>} : memref<64x32xf32, #tpu.memory_space<vmem>>, vector<8x32xf32>,
    %c16_60 = arith.constant 16 : index
    %c0_61 = arith.constant 0 : index
    %168 = vector.load %arg26[%c16_60, %c0_61] : memref<64x128xf32, #tpu.memory_space<vmem>>, vector<8x128xf32>
    tpu.vector_store %arg26[%c16_60, %c0_61], %166 {strides = array<i32>} : memref<64x128xf32, #tpu.memory_space<vmem>>, vector<8x128xf32>,
    %c24 = arith.constant 24 : index
    %c0_62 = arith.constant 0 : index
    %169 = vector.load %arg23[%c24, %c0_62] : memref<64x128xf32, #tpu.memory_space<vmem>>, vector<8x128xf32>
    %cst_63 = arith.constant dense<0.000000e+00> : vector<8x128xf32>
    %170 = tpu.matmul %145, %2, %cst_63 {dimension_numbers = #tpu.dot_dimension_numbers<[1], [0], [0], [1], [0, 0, 1, 1], [], []>} : vector<8x32xf32>, vector<32x128xf32>, vector<8x128xf32> -> vector<8x128xf32>
    %171 = arith.addf %169, %170 : vector<8x128xf32>
    %c24_64 = arith.constant 24 : index
    %c0_65 = arith.constant 0 : index
    %172 = vector.load %arg25[%c24_64, %c0_65] : memref<64x512xf32, #tpu.memory_space<vmem>>, vector<8x512xf32>
    %cst_66 = arith.constant dense<0.000000e+00> : vector<8x512xf32>
    %173 = tpu.matmul %166, %5, %cst_66 {dimension_numbers = #tpu.dot_dimension_numbers<[1], [0], [0], [1], [0, 0, 1, 1], [], []>} : vector<8x128xf32>, vector<128x512xf32>, vector<8x512xf32> -> vector<8x512xf32>
    %174 = arith.addf %172, %173 : vector<8x512xf32>
    %175 = vector.extract_strided_slice %171 {offsets = [0, 0], sizes = [8, 64], strides = [1, 1]} : vector<8x128xf32> to vector<8x64xf32>
    %176 = arith.negf %175 : vector<8x64xf32>
    %177 = math.exp %176 : vector<8x64xf32>
    %cst_67 = arith.constant 1.000000e+00 : f32
    %178 = vector.broadcast %cst_67 : f32 to vector<8x64xf32>
    %179 = arith.addf %178, %177 : vector<8x64xf32>
    %180 = arith.divf %178, %179 : vector<8x64xf32>
    %181 = vector.extract_strided_slice %171 {offsets = [0, 64], sizes = [8, 32], strides = [1, 1]} : vector<8x128xf32> to vector<8x32xf32>
    %182 = math.tanh %181 : vector<8x32xf32>
    %183 = vector.extract_strided_slice %171 {offsets = [0, 96], sizes = [8, 32], strides = [1, 1]} : vector<8x128xf32> to vector<8x32xf32>
    %184 = arith.negf %183 : vector<8x32xf32>
    %185 = math.exp %184 : vector<8x32xf32>
    %cst_68 = arith.constant 1.000000e+00 : f32
    %186 = vector.broadcast %cst_68 : f32 to vector<8x32xf32>
    %187 = arith.addf %186, %185 : vector<8x32xf32>
    %188 = arith.divf %186, %187 : vector<8x32xf32>
    %189 = vector.extract_strided_slice %180 {offsets = [0, 32], sizes = [8, 32], strides = [1, 1]} : vector<8x64xf32> to vector<8x32xf32>
    %190 = arith.mulf %189, %143 : vector<8x32xf32>
    %191 = vector.extract_strided_slice %180 {offsets = [0, 0], sizes = [8, 32], strides = [1, 1]} : vector<8x64xf32> to vector<8x32xf32>
    %192 = arith.mulf %191, %182 : vector<8x32xf32>
    %193 = arith.addf %190, %192 : vector<8x32xf32>
    %194 = math.tanh %193 : vector<8x32xf32>
    %195 = arith.mulf %188, %194 : vector<8x32xf32>
    %196 = vector.extract_strided_slice %174 {offsets = [0, 0], sizes = [8, 256], strides = [1, 1]} : vector<8x512xf32> to vector<8x256xf32>
    %197 = arith.negf %196 : vector<8x256xf32>
    %198 = math.exp %197 : vector<8x256xf32>
    %cst_69 = arith.constant 1.000000e+00 : f32
    %199 = vector.broadcast %cst_69 : f32 to vector<8x256xf32>
    %200 = arith.addf %199, %198 : vector<8x256xf32>
    %201 = arith.divf %199, %200 : vector<8x256xf32>
    %202 = vector.extract_strided_slice %174 {offsets = [0, 256], sizes = [8, 128], strides = [1, 1]} : vector<8x512xf32> to vector<8x128xf32>
    %203 = math.tanh %202 : vector<8x128xf32>
    %204 = vector.extract_strided_slice %174 {offsets = [0, 384], sizes = [8, 128], strides = [1, 1]} : vector<8x512xf32> to vector<8x128xf32>
    %205 = arith.negf %204 : vector<8x128xf32>
    %206 = math.exp %205 : vector<8x128xf32>
    %cst_70 = arith.constant 1.000000e+00 : f32
    %207 = vector.broadcast %cst_70 : f32 to vector<8x128xf32>
    %208 = arith.addf %207, %206 : vector<8x128xf32>
    %209 = arith.divf %207, %208 : vector<8x128xf32>
    %210 = vector.extract_strided_slice %201 {offsets = [0, 128], sizes = [8, 128], strides = [1, 1]} : vector<8x256xf32> to vector<8x128xf32>
    %211 = arith.mulf %210, %164 : vector<8x128xf32>
    %212 = vector.extract_strided_slice %201 {offsets = [0, 0], sizes = [8, 128], strides = [1, 1]} : vector<8x256xf32> to vector<8x128xf32>
    %213 = arith.mulf %212, %203 : vector<8x128xf32>
    %214 = arith.addf %211, %213 : vector<8x128xf32>
    %215 = math.tanh %214 : vector<8x128xf32>
    %216 = arith.mulf %209, %215 : vector<8x128xf32>
    %c24_71 = arith.constant 24 : index
    %c0_72 = arith.constant 0 : index
    %217 = vector.load %arg24[%c24_71, %c0_72] : memref<64x32xf32, #tpu.memory_space<vmem>>, vector<8x32xf32>
    tpu.vector_store %arg24[%c24_71, %c0_72], %195 {strides = array<i32>} : memref<64x32xf32, #tpu.memory_space<vmem>>, vector<8x32xf32>,
    %c24_73 = arith.constant 24 : index
    %c0_74 = arith.constant 0 : index
    %218 = vector.load %arg26[%c24_73, %c0_74] : memref<64x128xf32, #tpu.memory_space<vmem>>, vector<8x128xf32>
    tpu.vector_store %arg26[%c24_73, %c0_74], %216 {strides = array<i32>} : memref<64x128xf32, #tpu.memory_space<vmem>>, vector<8x128xf32>,
    %c32 = arith.constant 32 : index
    %c0_75 = arith.constant 0 : index
    %219 = vector.load %arg23[%c32, %c0_75] : memref<64x128xf32, #tpu.memory_space<vmem>>, vector<8x128xf32>
    %cst_76 = arith.constant dense<0.000000e+00> : vector<8x128xf32>
    %220 = tpu.matmul %195, %2, %cst_76 {dimension_numbers = #tpu.dot_dimension_numbers<[1], [0], [0], [1], [0, 0, 1, 1], [], []>} : vector<8x32xf32>, vector<32x128xf32>, vector<8x128xf32> -> vector<8x128xf32>
    %221 = arith.addf %219, %220 : vector<8x128xf32>
    %c32_77 = arith.constant 32 : index
    %c0_78 = arith.constant 0 : index
    %222 = vector.load %arg25[%c32_77, %c0_78] : memref<64x512xf32, #tpu.memory_space<vmem>>, vector<8x512xf32>
    %cst_79 = arith.constant dense<0.000000e+00> : vector<8x512xf32>
    %223 = tpu.matmul %216, %5, %cst_79 {dimension_numbers = #tpu.dot_dimension_numbers<[1], [0], [0], [1], [0, 0, 1, 1], [], []>} : vector<8x128xf32>, vector<128x512xf32>, vector<8x512xf32> -> vector<8x512xf32>
    %224 = arith.addf %222, %223 : vector<8x512xf32>
    %225 = vector.extract_strided_slice %221 {offsets = [0, 0], sizes = [8, 64], strides = [1, 1]} : vector<8x128xf32> to vector<8x64xf32>
    %226 = arith.negf %225 : vector<8x64xf32>
    %227 = math.exp %226 : vector<8x64xf32>
    %cst_80 = arith.constant 1.000000e+00 : f32
    %228 = vector.broadcast %cst_80 : f32 to vector<8x64xf32>
    %229 = arith.addf %228, %227 : vector<8x64xf32>
    %230 = arith.divf %228, %229 : vector<8x64xf32>
    %231 = vector.extract_strided_slice %221 {offsets = [0, 64], sizes = [8, 32], strides = [1, 1]} : vector<8x128xf32> to vector<8x32xf32>
    %232 = math.tanh %231 : vector<8x32xf32>
    %233 = vector.extract_strided_slice %221 {offsets = [0, 96], sizes = [8, 32], strides = [1, 1]} : vector<8x128xf32> to vector<8x32xf32>
    %234 = arith.negf %233 : vector<8x32xf32>
    %235 = math.exp %234 : vector<8x32xf32>
    %cst_81 = arith.constant 1.000000e+00 : f32
    %236 = vector.broadcast %cst_81 : f32 to vector<8x32xf32>
    %237 = arith.addf %236, %235 : vector<8x32xf32>
    %238 = arith.divf %236, %237 : vector<8x32xf32>
    %239 = vector.extract_strided_slice %230 {offsets = [0, 32], sizes = [8, 32], strides = [1, 1]} : vector<8x64xf32> to vector<8x32xf32>
    %240 = arith.mulf %239, %193 : vector<8x32xf32>
    %241 = vector.extract_strided_slice %230 {offsets = [0, 0], sizes = [8, 32], strides = [1, 1]} : vector<8x64xf32> to vector<8x32xf32>
    %242 = arith.mulf %241, %232 : vector<8x32xf32>
    %243 = arith.addf %240, %242 : vector<8x32xf32>
    %244 = math.tanh %243 : vector<8x32xf32>
    %245 = arith.mulf %238, %244 : vector<8x32xf32>
    %246 = vector.extract_strided_slice %224 {offsets = [0, 0], sizes = [8, 256], strides = [1, 1]} : vector<8x512xf32> to vector<8x256xf32>
    %247 = arith.negf %246 : vector<8x256xf32>
    %248 = math.exp %247 : vector<8x256xf32>
    %cst_82 = arith.constant 1.000000e+00 : f32
    %249 = vector.broadcast %cst_82 : f32 to vector<8x256xf32>
    %250 = arith.addf %249, %248 : vector<8x256xf32>
    %251 = arith.divf %249, %250 : vector<8x256xf32>
    %252 = vector.extract_strided_slice %224 {offsets = [0, 256], sizes = [8, 128], strides = [1, 1]} : vector<8x512xf32> to vector<8x128xf32>
    %253 = math.tanh %252 : vector<8x128xf32>
    %254 = vector.extract_strided_slice %224 {offsets = [0, 384], sizes = [8, 128], strides = [1, 1]} : vector<8x512xf32> to vector<8x128xf32>
    %255 = arith.negf %254 : vector<8x128xf32>
    %256 = math.exp %255 : vector<8x128xf32>
    %cst_83 = arith.constant 1.000000e+00 : f32
    %257 = vector.broadcast %cst_83 : f32 to vector<8x128xf32>
    %258 = arith.addf %257, %256 : vector<8x128xf32>
    %259 = arith.divf %257, %258 : vector<8x128xf32>
    %260 = vector.extract_strided_slice %251 {offsets = [0, 128], sizes = [8, 128], strides = [1, 1]} : vector<8x256xf32> to vector<8x128xf32>
    %261 = arith.mulf %260, %214 : vector<8x128xf32>
    %262 = vector.extract_strided_slice %251 {offsets = [0, 0], sizes = [8, 128], strides = [1, 1]} : vector<8x256xf32> to vector<8x128xf32>
    %263 = arith.mulf %262, %253 : vector<8x128xf32>
    %264 = arith.addf %261, %263 : vector<8x128xf32>
    %265 = math.tanh %264 : vector<8x128xf32>
    %266 = arith.mulf %259, %265 : vector<8x128xf32>
    %c32_84 = arith.constant 32 : index
    %c0_85 = arith.constant 0 : index
    %267 = vector.load %arg24[%c32_84, %c0_85] : memref<64x32xf32, #tpu.memory_space<vmem>>, vector<8x32xf32>
    tpu.vector_store %arg24[%c32_84, %c0_85], %245 {strides = array<i32>} : memref<64x32xf32, #tpu.memory_space<vmem>>, vector<8x32xf32>,
    %c32_86 = arith.constant 32 : index
    %c0_87 = arith.constant 0 : index
    %268 = vector.load %arg26[%c32_86, %c0_87] : memref<64x128xf32, #tpu.memory_space<vmem>>, vector<8x128xf32>
    tpu.vector_store %arg26[%c32_86, %c0_87], %266 {strides = array<i32>} : memref<64x128xf32, #tpu.memory_space<vmem>>, vector<8x128xf32>,
    %c40 = arith.constant 40 : index
    %c0_88 = arith.constant 0 : index
    %269 = vector.load %arg23[%c40, %c0_88] : memref<64x128xf32, #tpu.memory_space<vmem>>, vector<8x128xf32>
    %cst_89 = arith.constant dense<0.000000e+00> : vector<8x128xf32>
    %270 = tpu.matmul %245, %2, %cst_89 {dimension_numbers = #tpu.dot_dimension_numbers<[1], [0], [0], [1], [0, 0, 1, 1], [], []>} : vector<8x32xf32>, vector<32x128xf32>, vector<8x128xf32> -> vector<8x128xf32>
    %271 = arith.addf %269, %270 : vector<8x128xf32>
    %c40_90 = arith.constant 40 : index
    %c0_91 = arith.constant 0 : index
    %272 = vector.load %arg25[%c40_90, %c0_91] : memref<64x512xf32, #tpu.memory_space<vmem>>, vector<8x512xf32>
    %cst_92 = arith.constant dense<0.000000e+00> : vector<8x512xf32>
    %273 = tpu.matmul %266, %5, %cst_92 {dimension_numbers = #tpu.dot_dimension_numbers<[1], [0], [0], [1], [0, 0, 1, 1], [], []>} : vector<8x128xf32>, vector<128x512xf32>, vector<8x512xf32> -> vector<8x512xf32>
    %274 = arith.addf %272, %273 : vector<8x512xf32>
    %275 = vector.extract_strided_slice %271 {offsets = [0, 0], sizes = [8, 64], strides = [1, 1]} : vector<8x128xf32> to vector<8x64xf32>
    %276 = arith.negf %275 : vector<8x64xf32>
    %277 = math.exp %276 : vector<8x64xf32>
    %cst_93 = arith.constant 1.000000e+00 : f32
    %278 = vector.broadcast %cst_93 : f32 to vector<8x64xf32>
    %279 = arith.addf %278, %277 : vector<8x64xf32>
    %280 = arith.divf %278, %279 : vector<8x64xf32>
    %281 = vector.extract_strided_slice %271 {offsets = [0, 64], sizes = [8, 32], strides = [1, 1]} : vector<8x128xf32> to vector<8x32xf32>
    %282 = math.tanh %281 : vector<8x32xf32>
    %283 = vector.extract_strided_slice %271 {offsets = [0, 96], sizes = [8, 32], strides = [1, 1]} : vector<8x128xf32> to vector<8x32xf32>
    %284 = arith.negf %283 : vector<8x32xf32>
    %285 = math.exp %284 : vector<8x32xf32>
    %cst_94 = arith.constant 1.000000e+00 : f32
    %286 = vector.broadcast %cst_94 : f32 to vector<8x32xf32>
    %287 = arith.addf %286, %285 : vector<8x32xf32>
    %288 = arith.divf %286, %287 : vector<8x32xf32>
    %289 = vector.extract_strided_slice %280 {offsets = [0, 32], sizes = [8, 32], strides = [1, 1]} : vector<8x64xf32> to vector<8x32xf32>
    %290 = arith.mulf %289, %243 : vector<8x32xf32>
    %291 = vector.extract_strided_slice %280 {offsets = [0, 0], sizes = [8, 32], strides = [1, 1]} : vector<8x64xf32> to vector<8x32xf32>
    %292 = arith.mulf %291, %282 : vector<8x32xf32>
    %293 = arith.addf %290, %292 : vector<8x32xf32>
    %294 = math.tanh %293 : vector<8x32xf32>
    %295 = arith.mulf %288, %294 : vector<8x32xf32>
    %296 = vector.extract_strided_slice %274 {offsets = [0, 0], sizes = [8, 256], strides = [1, 1]} : vector<8x512xf32> to vector<8x256xf32>
    %297 = arith.negf %296 : vector<8x256xf32>
    %298 = math.exp %297 : vector<8x256xf32>
    %cst_95 = arith.constant 1.000000e+00 : f32
    %299 = vector.broadcast %cst_95 : f32 to vector<8x256xf32>
    %300 = arith.addf %299, %298 : vector<8x256xf32>
    %301 = arith.divf %299, %300 : vector<8x256xf32>
    %302 = vector.extract_strided_slice %274 {offsets = [0, 256], sizes = [8, 128], strides = [1, 1]} : vector<8x512xf32> to vector<8x128xf32>
    %303 = math.tanh %302 : vector<8x128xf32>
    %304 = vector.extract_strided_slice %274 {offsets = [0, 384], sizes = [8, 128], strides = [1, 1]} : vector<8x512xf32> to vector<8x128xf32>
    %305 = arith.negf %304 : vector<8x128xf32>
    %306 = math.exp %305 : vector<8x128xf32>
    %cst_96 = arith.constant 1.000000e+00 : f32
    %307 = vector.broadcast %cst_96 : f32 to vector<8x128xf32>
    %308 = arith.addf %307, %306 : vector<8x128xf32>
    %309 = arith.divf %307, %308 : vector<8x128xf32>
    %310 = vector.extract_strided_slice %301 {offsets = [0, 128], sizes = [8, 128], strides = [1, 1]} : vector<8x256xf32> to vector<8x128xf32>
    %311 = arith.mulf %310, %264 : vector<8x128xf32>
    %312 = vector.extract_strided_slice %301 {offsets = [0, 0], sizes = [8, 128], strides = [1, 1]} : vector<8x256xf32> to vector<8x128xf32>
    %313 = arith.mulf %312, %303 : vector<8x128xf32>
    %314 = arith.addf %311, %313 : vector<8x128xf32>
    %315 = math.tanh %314 : vector<8x128xf32>
    %316 = arith.mulf %309, %315 : vector<8x128xf32>
    %c40_97 = arith.constant 40 : index
    %c0_98 = arith.constant 0 : index
    %317 = vector.load %arg24[%c40_97, %c0_98] : memref<64x32xf32, #tpu.memory_space<vmem>>, vector<8x32xf32>
    tpu.vector_store %arg24[%c40_97, %c0_98], %295 {strides = array<i32>} : memref<64x32xf32, #tpu.memory_space<vmem>>, vector<8x32xf32>,
    %c40_99 = arith.constant 40 : index
    %c0_100 = arith.constant 0 : index
    %318 = vector.load %arg26[%c40_99, %c0_100] : memref<64x128xf32, #tpu.memory_space<vmem>>, vector<8x128xf32>
    tpu.vector_store %arg26[%c40_99, %c0_100], %316 {strides = array<i32>} : memref<64x128xf32, #tpu.memory_space<vmem>>, vector<8x128xf32>,
    %c48 = arith.constant 48 : index
    %c0_101 = arith.constant 0 : index
    %319 = vector.load %arg23[%c48, %c0_101] : memref<64x128xf32, #tpu.memory_space<vmem>>, vector<8x128xf32>
    %cst_102 = arith.constant dense<0.000000e+00> : vector<8x128xf32>
    %320 = tpu.matmul %295, %2, %cst_102 {dimension_numbers = #tpu.dot_dimension_numbers<[1], [0], [0], [1], [0, 0, 1, 1], [], []>} : vector<8x32xf32>, vector<32x128xf32>, vector<8x128xf32> -> vector<8x128xf32>
    %321 = arith.addf %319, %320 : vector<8x128xf32>
    %c48_103 = arith.constant 48 : index
    %c0_104 = arith.constant 0 : index
    %322 = vector.load %arg25[%c48_103, %c0_104] : memref<64x512xf32, #tpu.memory_space<vmem>>, vector<8x512xf32>
    %cst_105 = arith.constant dense<0.000000e+00> : vector<8x512xf32>
    %323 = tpu.matmul %316, %5, %cst_105 {dimension_numbers = #tpu.dot_dimension_numbers<[1], [0], [0], [1], [0, 0, 1, 1], [], []>} : vector<8x128xf32>, vector<128x512xf32>, vector<8x512xf32> -> vector<8x512xf32>
    %324 = arith.addf %322, %323 : vector<8x512xf32>
    %325 = vector.extract_strided_slice %321 {offsets = [0, 0], sizes = [8, 64], strides = [1, 1]} : vector<8x128xf32> to vector<8x64xf32>
    %326 = arith.negf %325 : vector<8x64xf32>
    %327 = math.exp %326 : vector<8x64xf32>
    %cst_106 = arith.constant 1.000000e+00 : f32
    %328 = vector.broadcast %cst_106 : f32 to vector<8x64xf32>
    %329 = arith.addf %328, %327 : vector<8x64xf32>
    %330 = arith.divf %328, %329 : vector<8x64xf32>
    %331 = vector.extract_strided_slice %321 {offsets = [0, 64], sizes = [8, 32], strides = [1, 1]} : vector<8x128xf32> to vector<8x32xf32>
    %332 = math.tanh %331 : vector<8x32xf32>
    %333 = vector.extract_strided_slice %321 {offsets = [0, 96], sizes = [8, 32], strides = [1, 1]} : vector<8x128xf32> to vector<8x32xf32>
    %334 = arith.negf %333 : vector<8x32xf32>
    %335 = math.exp %334 : vector<8x32xf32>
    %cst_107 = arith.constant 1.000000e+00 : f32
    %336 = vector.broadcast %cst_107 : f32 to vector<8x32xf32>
    %337 = arith.addf %336, %335 : vector<8x32xf32>
    %338 = arith.divf %336, %337 : vector<8x32xf32>
    %339 = vector.extract_strided_slice %330 {offsets = [0, 32], sizes = [8, 32], strides = [1, 1]} : vector<8x64xf32> to vector<8x32xf32>
    %340 = arith.mulf %339, %293 : vector<8x32xf32>
    %341 = vector.extract_strided_slice %330 {offsets = [0, 0], sizes = [8, 32], strides = [1, 1]} : vector<8x64xf32> to vector<8x32xf32>
    %342 = arith.mulf %341, %332 : vector<8x32xf32>
    %343 = arith.addf %340, %342 : vector<8x32xf32>
    %344 = math.tanh %343 : vector<8x32xf32>
    %345 = arith.mulf %338, %344 : vector<8x32xf32>
    %346 = vector.extract_strided_slice %324 {offsets = [0, 0], sizes = [8, 256], strides = [1, 1]} : vector<8x512xf32> to vector<8x256xf32>
    %347 = arith.negf %346 : vector<8x256xf32>
    %348 = math.exp %347 : vector<8x256xf32>
    %cst_108 = arith.constant 1.000000e+00 : f32
    %349 = vector.broadcast %cst_108 : f32 to vector<8x256xf32>
    %350 = arith.addf %349, %348 : vector<8x256xf32>
    %351 = arith.divf %349, %350 : vector<8x256xf32>
    %352 = vector.extract_strided_slice %324 {offsets = [0, 256], sizes = [8, 128], strides = [1, 1]} : vector<8x512xf32> to vector<8x128xf32>
    %353 = math.tanh %352 : vector<8x128xf32>
    %354 = vector.extract_strided_slice %324 {offsets = [0, 384], sizes = [8, 128], strides = [1, 1]} : vector<8x512xf32> to vector<8x128xf32>
    %355 = arith.negf %354 : vector<8x128xf32>
    %356 = math.exp %355 : vector<8x128xf32>
    %cst_109 = arith.constant 1.000000e+00 : f32
    %357 = vector.broadcast %cst_109 : f32 to vector<8x128xf32>
    %358 = arith.addf %357, %356 : vector<8x128xf32>
    %359 = arith.divf %357, %358 : vector<8x128xf32>
    %360 = vector.extract_strided_slice %351 {offsets = [0, 128], sizes = [8, 128], strides = [1, 1]} : vector<8x256xf32> to vector<8x128xf32>
    %361 = arith.mulf %360, %314 : vector<8x128xf32>
    %362 = vector.extract_strided_slice %351 {offsets = [0, 0], sizes = [8, 128], strides = [1, 1]} : vector<8x256xf32> to vector<8x128xf32>
    %363 = arith.mulf %362, %353 : vector<8x128xf32>
    %364 = arith.addf %361, %363 : vector<8x128xf32>
    %365 = math.tanh %364 : vector<8x128xf32>
    %366 = arith.mulf %359, %365 : vector<8x128xf32>
    %c48_110 = arith.constant 48 : index
    %c0_111 = arith.constant 0 : index
    %367 = vector.load %arg24[%c48_110, %c0_111] : memref<64x32xf32, #tpu.memory_space<vmem>>, vector<8x32xf32>
    tpu.vector_store %arg24[%c48_110, %c0_111], %345 {strides = array<i32>} : memref<64x32xf32, #tpu.memory_space<vmem>>, vector<8x32xf32>,
    %c48_112 = arith.constant 48 : index
    %c0_113 = arith.constant 0 : index
    %368 = vector.load %arg26[%c48_112, %c0_113] : memref<64x128xf32, #tpu.memory_space<vmem>>, vector<8x128xf32>
    tpu.vector_store %arg26[%c48_112, %c0_113], %366 {strides = array<i32>} : memref<64x128xf32, #tpu.memory_space<vmem>>, vector<8x128xf32>,
    %c56 = arith.constant 56 : index
    %c0_114 = arith.constant 0 : index
    %369 = vector.load %arg23[%c56, %c0_114] : memref<64x128xf32, #tpu.memory_space<vmem>>, vector<8x128xf32>
    %cst_115 = arith.constant dense<0.000000e+00> : vector<8x128xf32>
    %370 = tpu.matmul %345, %2, %cst_115 {dimension_numbers = #tpu.dot_dimension_numbers<[1], [0], [0], [1], [0, 0, 1, 1], [], []>} : vector<8x32xf32>, vector<32x128xf32>, vector<8x128xf32> -> vector<8x128xf32>
    %371 = arith.addf %369, %370 : vector<8x128xf32>
    %c56_116 = arith.constant 56 : index
    %c0_117 = arith.constant 0 : index
    %372 = vector.load %arg25[%c56_116, %c0_117] : memref<64x512xf32, #tpu.memory_space<vmem>>, vector<8x512xf32>
    %cst_118 = arith.constant dense<0.000000e+00> : vector<8x512xf32>
    %373 = tpu.matmul %366, %5, %cst_118 {dimension_numbers = #tpu.dot_dimension_numbers<[1], [0], [0], [1], [0, 0, 1, 1], [], []>} : vector<8x128xf32>, vector<128x512xf32>, vector<8x512xf32> -> vector<8x512xf32>
    %374 = arith.addf %372, %373 : vector<8x512xf32>
    %375 = vector.extract_strided_slice %371 {offsets = [0, 0], sizes = [8, 64], strides = [1, 1]} : vector<8x128xf32> to vector<8x64xf32>
    %376 = arith.negf %375 : vector<8x64xf32>
    %377 = math.exp %376 : vector<8x64xf32>
    %cst_119 = arith.constant 1.000000e+00 : f32
    %378 = vector.broadcast %cst_119 : f32 to vector<8x64xf32>
    %379 = arith.addf %378, %377 : vector<8x64xf32>
    %380 = arith.divf %378, %379 : vector<8x64xf32>
    %381 = vector.extract_strided_slice %371 {offsets = [0, 64], sizes = [8, 32], strides = [1, 1]} : vector<8x128xf32> to vector<8x32xf32>
    %382 = math.tanh %381 : vector<8x32xf32>
    %383 = vector.extract_strided_slice %371 {offsets = [0, 96], sizes = [8, 32], strides = [1, 1]} : vector<8x128xf32> to vector<8x32xf32>
    %384 = arith.negf %383 : vector<8x32xf32>
    %385 = math.exp %384 : vector<8x32xf32>
    %cst_120 = arith.constant 1.000000e+00 : f32
    %386 = vector.broadcast %cst_120 : f32 to vector<8x32xf32>
    %387 = arith.addf %386, %385 : vector<8x32xf32>
    %388 = arith.divf %386, %387 : vector<8x32xf32>
    %389 = vector.extract_strided_slice %380 {offsets = [0, 32], sizes = [8, 32], strides = [1, 1]} : vector<8x64xf32> to vector<8x32xf32>
    %390 = arith.mulf %389, %343 : vector<8x32xf32>
    %391 = vector.extract_strided_slice %380 {offsets = [0, 0], sizes = [8, 32], strides = [1, 1]} : vector<8x64xf32> to vector<8x32xf32>
    %392 = arith.mulf %391, %382 : vector<8x32xf32>
    %393 = arith.addf %390, %392 : vector<8x32xf32>
    %394 = math.tanh %393 : vector<8x32xf32>
    %395 = arith.mulf %388, %394 : vector<8x32xf32>
    %396 = vector.extract_strided_slice %374 {offsets = [0, 0], sizes = [8, 256], strides = [1, 1]} : vector<8x512xf32> to vector<8x256xf32>
    %397 = arith.negf %396 : vector<8x256xf32>
    %398 = math.exp %397 : vector<8x256xf32>
    %cst_121 = arith.constant 1.000000e+00 : f32
    %399 = vector.broadcast %cst_121 : f32 to vector<8x256xf32>
    %400 = arith.addf %399, %398 : vector<8x256xf32>
    %401 = arith.divf %399, %400 : vector<8x256xf32>
    %402 = vector.extract_strided_slice %374 {offsets = [0, 256], sizes = [8, 128], strides = [1, 1]} : vector<8x512xf32> to vector<8x128xf32>
    %403 = math.tanh %402 : vector<8x128xf32>
    %404 = vector.extract_strided_slice %374 {offsets = [0, 384], sizes = [8, 128], strides = [1, 1]} : vector<8x512xf32> to vector<8x128xf32>
    %405 = arith.negf %404 : vector<8x128xf32>
    %406 = math.exp %405 : vector<8x128xf32>
    %cst_122 = arith.constant 1.000000e+00 : f32
    %407 = vector.broadcast %cst_122 : f32 to vector<8x128xf32>
    %408 = arith.addf %407, %406 : vector<8x128xf32>
    %409 = arith.divf %407, %408 : vector<8x128xf32>
    %410 = vector.extract_strided_slice %401 {offsets = [0, 128], sizes = [8, 128], strides = [1, 1]} : vector<8x256xf32> to vector<8x128xf32>
    %411 = arith.mulf %410, %364 : vector<8x128xf32>
    %412 = vector.extract_strided_slice %401 {offsets = [0, 0], sizes = [8, 128], strides = [1, 1]} : vector<8x256xf32> to vector<8x128xf32>
    %413 = arith.mulf %412, %403 : vector<8x128xf32>
    %414 = arith.addf %411, %413 : vector<8x128xf32>
    %415 = math.tanh %414 : vector<8x128xf32>
    %416 = arith.mulf %409, %415 : vector<8x128xf32>
    %c56_123 = arith.constant 56 : index
    %c0_124 = arith.constant 0 : index
    %417 = vector.load %arg24[%c56_123, %c0_124] : memref<64x32xf32, #tpu.memory_space<vmem>>, vector<8x32xf32>
    tpu.vector_store %arg24[%c56_123, %c0_124], %395 {strides = array<i32>} : memref<64x32xf32, #tpu.memory_space<vmem>>, vector<8x32xf32>,
    %c56_125 = arith.constant 56 : index
    %c0_126 = arith.constant 0 : index
    %418 = vector.load %arg26[%c56_125, %c0_126] : memref<64x128xf32, #tpu.memory_space<vmem>>, vector<8x128xf32>
    tpu.vector_store %arg26[%c56_125, %c0_126], %416 {strides = array<i32>} : memref<64x128xf32, #tpu.memory_space<vmem>>, vector<8x128xf32>,
    %c0_127 = arith.constant 0 : index
    %c0_128 = arith.constant 0 : index
    %c0_129 = arith.constant 0 : index
    %419 = vector.load %arg19[%c0_127, %c0_128, %c0_129] : memref<2x8x32xf32, #tpu.memory_space<vmem>>, vector<1x8x32xf32>
    %420 = vector.shape_cast %419 : vector<1x8x32xf32> to vector<8x32xf32>
    %421 = vector.shape_cast %395 : vector<8x32xf32> to vector<1x8x32xf32>
    tpu.vector_store %arg19[%c0_127, %c0_128, %c0_129], %421 {strides = array<i32>} : memref<2x8x32xf32, #tpu.memory_space<vmem>>, vector<1x8x32xf32>,
    %c0_130 = arith.constant 0 : index
    %c0_131 = arith.constant 0 : index
    %c0_132 = arith.constant 0 : index
    %422 = vector.load %arg20[%c0_130, %c0_131, %c0_132] : memref<2x8x32xf32, #tpu.memory_space<vmem>>, vector<1x8x32xf32>
    %423 = vector.shape_cast %422 : vector<1x8x32xf32> to vector<8x32xf32>
    %424 = vector.shape_cast %393 : vector<8x32xf32> to vector<1x8x32xf32>
    tpu.vector_store %arg20[%c0_130, %c0_131, %c0_132], %424 {strides = array<i32>} : memref<2x8x32xf32, #tpu.memory_space<vmem>>, vector<1x8x32xf32>,
    %c0_133 = arith.constant 0 : index
    %c0_134 = arith.constant 0 : index
    %c0_135 = arith.constant 0 : index
    %425 = vector.load %arg21[%c0_133, %c0_134, %c0_135] : memref<2x8x128xf32, #tpu.memory_space<vmem>>, vector<1x8x128xf32>
    %426 = vector.shape_cast %425 : vector<1x8x128xf32> to vector<8x128xf32>
    %427 = vector.shape_cast %416 : vector<8x128xf32> to vector<1x8x128xf32>
    tpu.vector_store %arg21[%c0_133, %c0_134, %c0_135], %427 {strides = array<i32>} : memref<2x8x128xf32, #tpu.memory_space<vmem>>, vector<1x8x128xf32>,
    %c0_136 = arith.constant 0 : index
    %c0_137 = arith.constant 0 : index
    %c0_138 = arith.constant 0 : index
    %428 = vector.load %arg22[%c0_136, %c0_137, %c0_138] : memref<2x8x128xf32, #tpu.memory_space<vmem>>, vector<1x8x128xf32>
    %429 = vector.shape_cast %428 : vector<1x8x128xf32> to vector<8x128xf32>
    %430 = vector.shape_cast %414 : vector<8x128xf32> to vector<1x8x128xf32>
    tpu.vector_store %arg22[%c0_136, %c0_137, %c0_138], %430 {strides = array<i32>} : memref<2x8x128xf32, #tpu.memory_space<vmem>>, vector<1x8x128xf32>,
    %c0_139 = arith.constant 0 : index
    %c0_140 = arith.constant 0 : index
    %431 = vector.load %arg5[%c0_139, %c0_140] : memref<32x128xf32, #tpu.memory_space<vmem>>, vector<32x128xf32>
    %c0_141 = arith.constant 0 : index
    %c0_142 = arith.constant 0 : index
    %432 = vector.load %arg6[%c0_141, %c0_142] : memref<32x128xf32, #tpu.memory_space<vmem>>, vector<32x128xf32>
    %c0_143 = arith.constant 0 : index
    %c0_144 = arith.constant 0 : index
    %433 = vector.load %arg7[%c0_143, %c0_144] : memref<1x128xf32, #tpu.memory_space<vmem>>, vector<1x128xf32>
    %c0_145 = arith.constant 0 : index
    %c0_146 = arith.constant 0 : index
    %434 = vector.load %arg13[%c0_145, %c0_146] : memref<128x512xf32, #tpu.memory_space<vmem>>, vector<128x512xf32>
    %c0_147 = arith.constant 0 : index
    %c0_148 = arith.constant 0 : index
    %435 = vector.load %arg14[%c0_147, %c0_148] : memref<128x512xf32, #tpu.memory_space<vmem>>, vector<128x512xf32>
    %c0_149 = arith.constant 0 : index
    %c0_150 = arith.constant 0 : index
    %436 = vector.load %arg15[%c0_149, %c0_150] : memref<1x512xf32, #tpu.memory_space<vmem>>, vector<1x512xf32>
    %c0_151 = arith.constant 0 : index
    %c0_152 = arith.constant 0 : index
    %437 = vector.load %arg24[%c0_151, %c0_152] : memref<64x32xf32, #tpu.memory_space<vmem>>, vector<64x32xf32>
    %c0_153 = arith.constant 0 : index
    %c0_154 = arith.constant 0 : index
    %438 = vector.load %arg26[%c0_153, %c0_154] : memref<64x128xf32, #tpu.memory_space<vmem>>, vector<64x128xf32>
    %cst_155 = arith.constant dense<0.000000e+00> : vector<64x128xf32>
    %439 = tpu.matmul %437, %431, %cst_155 {dimension_numbers = #tpu.dot_dimension_numbers<[1], [0], [0], [1], [0, 0, 1, 1], [], []>} : vector<64x32xf32>, vector<32x128xf32>, vector<64x128xf32> -> vector<64x128xf32>
    %440 = vector.broadcast %433 : vector<1x128xf32> to vector<64x128xf32>
    %441 = arith.addf %439, %440 : vector<64x128xf32>
    %c0_156 = arith.constant 0 : index
    %c0_157 = arith.constant 0 : index
    %442 = vector.load %arg23[%c0_156, %c0_157] : memref<64x128xf32, #tpu.memory_space<vmem>>, vector<64x128xf32>
    tpu.vector_store %arg23[%c0_156, %c0_157], %441 {strides = array<i32>} : memref<64x128xf32, #tpu.memory_space<vmem>>, vector<64x128xf32>,
    %cst_158 = arith.constant dense<0.000000e+00> : vector<64x512xf32>
    %443 = tpu.matmul %438, %434, %cst_158 {dimension_numbers = #tpu.dot_dimension_numbers<[1], [0], [0], [1], [0, 0, 1, 1], [], []>} : vector<64x128xf32>, vector<128x512xf32>, vector<64x512xf32> -> vector<64x512xf32>
    %444 = vector.broadcast %436 : vector<1x512xf32> to vector<64x512xf32>
    %445 = arith.addf %443, %444 : vector<64x512xf32>
    %c0_159 = arith.constant 0 : index
    %c0_160 = arith.constant 0 : index
    %446 = vector.load %arg25[%c0_159, %c0_160] : memref<64x512xf32, #tpu.memory_space<vmem>>, vector<64x512xf32>
    tpu.vector_store %arg25[%c0_159, %c0_160], %445 {strides = array<i32>} : memref<64x512xf32, #tpu.memory_space<vmem>>, vector<64x512xf32>,
    %cst_161 = arith.constant 0.000000e+00 : f32
    %447 = vector.broadcast %cst_161 : f32 to vector<8x32xf32>
    %cst_162 = arith.constant 0.000000e+00 : f32
    %448 = vector.broadcast %cst_162 : f32 to vector<8x32xf32>
    %cst_163 = arith.constant 0.000000e+00 : f32
    %449 = vector.broadcast %cst_163 : f32 to vector<8x128xf32>
    %cst_164 = arith.constant 0.000000e+00 : f32
    %450 = vector.broadcast %cst_164 : f32 to vector<8x128xf32>
    %c0_165 = arith.constant 0 : index
    %c0_166 = arith.constant 0 : index
    %451 = vector.load %arg23[%c0_165, %c0_166] : memref<64x128xf32, #tpu.memory_space<vmem>>, vector<8x128xf32>
    %cst_167 = arith.constant dense<0.000000e+00> : vector<8x128xf32>
    %452 = tpu.matmul %447, %432, %cst_167 {dimension_numbers = #tpu.dot_dimension_numbers<[1], [0], [0], [1], [0, 0, 1, 1], [], []>} : vector<8x32xf32>, vector<32x128xf32>, vector<8x128xf32> -> vector<8x128xf32>
    %453 = arith.addf %451, %452 : vector<8x128xf32>
    %c0_168 = arith.constant 0 : index
    %c0_169 = arith.constant 0 : index
    %454 = vector.load %arg25[%c0_168, %c0_169] : memref<64x512xf32, #tpu.memory_space<vmem>>, vector<8x512xf32>
    %cst_170 = arith.constant dense<0.000000e+00> : vector<8x512xf32>
    %455 = tpu.matmul %449, %435, %cst_170 {dimension_numbers = #tpu.dot_dimension_numbers<[1], [0], [0], [1], [0, 0, 1, 1], [], []>} : vector<8x128xf32>, vector<128x512xf32>, vector<8x512xf32> -> vector<8x512xf32>
    %456 = arith.addf %454, %455 : vector<8x512xf32>
    %457 = vector.extract_strided_slice %453 {offsets = [0, 0], sizes = [8, 64], strides = [1, 1]} : vector<8x128xf32> to vector<8x64xf32>
    %458 = arith.negf %457 : vector<8x64xf32>
    %459 = math.exp %458 : vector<8x64xf32>
    %cst_171 = arith.constant 1.000000e+00 : f32
    %460 = vector.broadcast %cst_171 : f32 to vector<8x64xf32>
    %461 = arith.addf %460, %459 : vector<8x64xf32>
    %462 = arith.divf %460, %461 : vector<8x64xf32>
    %463 = vector.extract_strided_slice %453 {offsets = [0, 64], sizes = [8, 32], strides = [1, 1]} : vector<8x128xf32> to vector<8x32xf32>
    %464 = math.tanh %463 : vector<8x32xf32>
    %465 = vector.extract_strided_slice %453 {offsets = [0, 96], sizes = [8, 32], strides = [1, 1]} : vector<8x128xf32> to vector<8x32xf32>
    %466 = arith.negf %465 : vector<8x32xf32>
    %467 = math.exp %466 : vector<8x32xf32>
    %cst_172 = arith.constant 1.000000e+00 : f32
    %468 = vector.broadcast %cst_172 : f32 to vector<8x32xf32>
    %469 = arith.addf %468, %467 : vector<8x32xf32>
    %470 = arith.divf %468, %469 : vector<8x32xf32>
    %471 = vector.extract_strided_slice %462 {offsets = [0, 32], sizes = [8, 32], strides = [1, 1]} : vector<8x64xf32> to vector<8x32xf32>
    %472 = arith.mulf %471, %448 : vector<8x32xf32>
    %473 = vector.extract_strided_slice %462 {offsets = [0, 0], sizes = [8, 32], strides = [1, 1]} : vector<8x64xf32> to vector<8x32xf32>
    %474 = arith.mulf %473, %464 : vector<8x32xf32>
    %475 = arith.addf %472, %474 : vector<8x32xf32>
    %476 = math.tanh %475 : vector<8x32xf32>
    %477 = arith.mulf %470, %476 : vector<8x32xf32>
    %478 = vector.extract_strided_slice %456 {offsets = [0, 0], sizes = [8, 256], strides = [1, 1]} : vector<8x512xf32> to vector<8x256xf32>
    %479 = arith.negf %478 : vector<8x256xf32>
    %480 = math.exp %479 : vector<8x256xf32>
    %cst_173 = arith.constant 1.000000e+00 : f32
    %481 = vector.broadcast %cst_173 : f32 to vector<8x256xf32>
    %482 = arith.addf %481, %480 : vector<8x256xf32>
    %483 = arith.divf %481, %482 : vector<8x256xf32>
    %484 = vector.extract_strided_slice %456 {offsets = [0, 256], sizes = [8, 128], strides = [1, 1]} : vector<8x512xf32> to vector<8x128xf32>
    %485 = math.tanh %484 : vector<8x128xf32>
    %486 = vector.extract_strided_slice %456 {offsets = [0, 384], sizes = [8, 128], strides = [1, 1]} : vector<8x512xf32> to vector<8x128xf32>
    %487 = arith.negf %486 : vector<8x128xf32>
    %488 = math.exp %487 : vector<8x128xf32>
    %cst_174 = arith.constant 1.000000e+00 : f32
    %489 = vector.broadcast %cst_174 : f32 to vector<8x128xf32>
    %490 = arith.addf %489, %488 : vector<8x128xf32>
    %491 = arith.divf %489, %490 : vector<8x128xf32>
    %492 = vector.extract_strided_slice %483 {offsets = [0, 128], sizes = [8, 128], strides = [1, 1]} : vector<8x256xf32> to vector<8x128xf32>
    %493 = arith.mulf %492, %450 : vector<8x128xf32>
    %494 = vector.extract_strided_slice %483 {offsets = [0, 0], sizes = [8, 128], strides = [1, 1]} : vector<8x256xf32> to vector<8x128xf32>
    %495 = arith.mulf %494, %485 : vector<8x128xf32>
    %496 = arith.addf %493, %495 : vector<8x128xf32>
    %497 = math.tanh %496 : vector<8x128xf32>
    %498 = arith.mulf %491, %497 : vector<8x128xf32>
    %c0_175 = arith.constant 0 : index
    %c0_176 = arith.constant 0 : index
    %499 = vector.load %arg24[%c0_175, %c0_176] : memref<64x32xf32, #tpu.memory_space<vmem>>, vector<8x32xf32>
    tpu.vector_store %arg24[%c0_175, %c0_176], %477 {strides = array<i32>} : memref<64x32xf32, #tpu.memory_space<vmem>>, vector<8x32xf32>,
    %c0_177 = arith.constant 0 : index
    %c0_178 = arith.constant 0 : index
    %500 = vector.load %arg26[%c0_177, %c0_178] : memref<64x128xf32, #tpu.memory_space<vmem>>, vector<8x128xf32>
    tpu.vector_store %arg26[%c0_177, %c0_178], %498 {strides = array<i32>} : memref<64x128xf32, #tpu.memory_space<vmem>>, vector<8x128xf32>,
    %c8_179 = arith.constant 8 : index
    %c0_180 = arith.constant 0 : index
    %501 = vector.load %arg23[%c8_179, %c0_180] : memref<64x128xf32, #tpu.memory_space<vmem>>, vector<8x128xf32>
    %cst_181 = arith.constant dense<0.000000e+00> : vector<8x128xf32>
    %502 = tpu.matmul %477, %432, %cst_181 {dimension_numbers = #tpu.dot_dimension_numbers<[1], [0], [0], [1], [0, 0, 1, 1], [], []>} : vector<8x32xf32>, vector<32x128xf32>, vector<8x128xf32> -> vector<8x128xf32>
    %503 = arith.addf %501, %502 : vector<8x128xf32>
    %c8_182 = arith.constant 8 : index
    %c0_183 = arith.constant 0 : index
    %504 = vector.load %arg25[%c8_182, %c0_183] : memref<64x512xf32, #tpu.memory_space<vmem>>, vector<8x512xf32>
    %cst_184 = arith.constant dense<0.000000e+00> : vector<8x512xf32>
    %505 = tpu.matmul %498, %435, %cst_184 {dimension_numbers = #tpu.dot_dimension_numbers<[1], [0], [0], [1], [0, 0, 1, 1], [], []>} : vector<8x128xf32>, vector<128x512xf32>, vector<8x512xf32> -> vector<8x512xf32>
    %506 = arith.addf %504, %505 : vector<8x512xf32>
    %507 = vector.extract_strided_slice %503 {offsets = [0, 0], sizes = [8, 64], strides = [1, 1]} : vector<8x128xf32> to vector<8x64xf32>
    %508 = arith.negf %507 : vector<8x64xf32>
    %509 = math.exp %508 : vector<8x64xf32>
    %cst_185 = arith.constant 1.000000e+00 : f32
    %510 = vector.broadcast %cst_185 : f32 to vector<8x64xf32>
    %511 = arith.addf %510, %509 : vector<8x64xf32>
    %512 = arith.divf %510, %511 : vector<8x64xf32>
    %513 = vector.extract_strided_slice %503 {offsets = [0, 64], sizes = [8, 32], strides = [1, 1]} : vector<8x128xf32> to vector<8x32xf32>
    %514 = math.tanh %513 : vector<8x32xf32>
    %515 = vector.extract_strided_slice %503 {offsets = [0, 96], sizes = [8, 32], strides = [1, 1]} : vector<8x128xf32> to vector<8x32xf32>
    %516 = arith.negf %515 : vector<8x32xf32>
    %517 = math.exp %516 : vector<8x32xf32>
    %cst_186 = arith.constant 1.000000e+00 : f32
    %518 = vector.broadcast %cst_186 : f32 to vector<8x32xf32>
    %519 = arith.addf %518, %517 : vector<8x32xf32>
    %520 = arith.divf %518, %519 : vector<8x32xf32>
    %521 = vector.extract_strided_slice %512 {offsets = [0, 32], sizes = [8, 32], strides = [1, 1]} : vector<8x64xf32> to vector<8x32xf32>
    %522 = arith.mulf %521, %475 : vector<8x32xf32>
    %523 = vector.extract_strided_slice %512 {offsets = [0, 0], sizes = [8, 32], strides = [1, 1]} : vector<8x64xf32> to vector<8x32xf32>
    %524 = arith.mulf %523, %514 : vector<8x32xf32>
    %525 = arith.addf %522, %524 : vector<8x32xf32>
    %526 = math.tanh %525 : vector<8x32xf32>
    %527 = arith.mulf %520, %526 : vector<8x32xf32>
    %528 = vector.extract_strided_slice %506 {offsets = [0, 0], sizes = [8, 256], strides = [1, 1]} : vector<8x512xf32> to vector<8x256xf32>
    %529 = arith.negf %528 : vector<8x256xf32>
    %530 = math.exp %529 : vector<8x256xf32>
    %cst_187 = arith.constant 1.000000e+00 : f32
    %531 = vector.broadcast %cst_187 : f32 to vector<8x256xf32>
    %532 = arith.addf %531, %530 : vector<8x256xf32>
    %533 = arith.divf %531, %532 : vector<8x256xf32>
    %534 = vector.extract_strided_slice %506 {offsets = [0, 256], sizes = [8, 128], strides = [1, 1]} : vector<8x512xf32> to vector<8x128xf32>
    %535 = math.tanh %534 : vector<8x128xf32>
    %536 = vector.extract_strided_slice %506 {offsets = [0, 384], sizes = [8, 128], strides = [1, 1]} : vector<8x512xf32> to vector<8x128xf32>
    %537 = arith.negf %536 : vector<8x128xf32>
    %538 = math.exp %537 : vector<8x128xf32>
    %cst_188 = arith.constant 1.000000e+00 : f32
    %539 = vector.broadcast %cst_188 : f32 to vector<8x128xf32>
    %540 = arith.addf %539, %538 : vector<8x128xf32>
    %541 = arith.divf %539, %540 : vector<8x128xf32>
    %542 = vector.extract_strided_slice %533 {offsets = [0, 128], sizes = [8, 128], strides = [1, 1]} : vector<8x256xf32> to vector<8x128xf32>
    %543 = arith.mulf %542, %496 : vector<8x128xf32>
    %544 = vector.extract_strided_slice %533 {offsets = [0, 0], sizes = [8, 128], strides = [1, 1]} : vector<8x256xf32> to vector<8x128xf32>
    %545 = arith.mulf %544, %535 : vector<8x128xf32>
    %546 = arith.addf %543, %545 : vector<8x128xf32>
    %547 = math.tanh %546 : vector<8x128xf32>
    %548 = arith.mulf %541, %547 : vector<8x128xf32>
    %c8_189 = arith.constant 8 : index
    %c0_190 = arith.constant 0 : index
    %549 = vector.load %arg24[%c8_189, %c0_190] : memref<64x32xf32, #tpu.memory_space<vmem>>, vector<8x32xf32>
    tpu.vector_store %arg24[%c8_189, %c0_190], %527 {strides = array<i32>} : memref<64x32xf32, #tpu.memory_space<vmem>>, vector<8x32xf32>,
    %c8_191 = arith.constant 8 : index
    %c0_192 = arith.constant 0 : index
    %550 = vector.load %arg26[%c8_191, %c0_192] : memref<64x128xf32, #tpu.memory_space<vmem>>, vector<8x128xf32>
    tpu.vector_store %arg26[%c8_191, %c0_192], %548 {strides = array<i32>} : memref<64x128xf32, #tpu.memory_space<vmem>>, vector<8x128xf32>,
    %c16_193 = arith.constant 16 : index
    %c0_194 = arith.constant 0 : index
    %551 = vector.load %arg23[%c16_193, %c0_194] : memref<64x128xf32, #tpu.memory_space<vmem>>, vector<8x128xf32>
    %cst_195 = arith.constant dense<0.000000e+00> : vector<8x128xf32>
    %552 = tpu.matmul %527, %432, %cst_195 {dimension_numbers = #tpu.dot_dimension_numbers<[1], [0], [0], [1], [0, 0, 1, 1], [], []>} : vector<8x32xf32>, vector<32x128xf32>, vector<8x128xf32> -> vector<8x128xf32>
    %553 = arith.addf %551, %552 : vector<8x128xf32>
    %c16_196 = arith.constant 16 : index
    %c0_197 = arith.constant 0 : index
    %554 = vector.load %arg25[%c16_196, %c0_197] : memref<64x512xf32, #tpu.memory_space<vmem>>, vector<8x512xf32>
    %cst_198 = arith.constant dense<0.000000e+00> : vector<8x512xf32>
    %555 = tpu.matmul %548, %435, %cst_198 {dimension_numbers = #tpu.dot_dimension_numbers<[1], [0], [0], [1], [0, 0, 1, 1], [], []>} : vector<8x128xf32>, vector<128x512xf32>, vector<8x512xf32> -> vector<8x512xf32>
    %556 = arith.addf %554, %555 : vector<8x512xf32>
    %557 = vector.extract_strided_slice %553 {offsets = [0, 0], sizes = [8, 64], strides = [1, 1]} : vector<8x128xf32> to vector<8x64xf32>
    %558 = arith.negf %557 : vector<8x64xf32>
    %559 = math.exp %558 : vector<8x64xf32>
    %cst_199 = arith.constant 1.000000e+00 : f32
    %560 = vector.broadcast %cst_199 : f32 to vector<8x64xf32>
    %561 = arith.addf %560, %559 : vector<8x64xf32>
    %562 = arith.divf %560, %561 : vector<8x64xf32>
    %563 = vector.extract_strided_slice %553 {offsets = [0, 64], sizes = [8, 32], strides = [1, 1]} : vector<8x128xf32> to vector<8x32xf32>
    %564 = math.tanh %563 : vector<8x32xf32>
    %565 = vector.extract_strided_slice %553 {offsets = [0, 96], sizes = [8, 32], strides = [1, 1]} : vector<8x128xf32> to vector<8x32xf32>
    %566 = arith.negf %565 : vector<8x32xf32>
    %567 = math.exp %566 : vector<8x32xf32>
    %cst_200 = arith.constant 1.000000e+00 : f32
    %568 = vector.broadcast %cst_200 : f32 to vector<8x32xf32>
    %569 = arith.addf %568, %567 : vector<8x32xf32>
    %570 = arith.divf %568, %569 : vector<8x32xf32>
    %571 = vector.extract_strided_slice %562 {offsets = [0, 32], sizes = [8, 32], strides = [1, 1]} : vector<8x64xf32> to vector<8x32xf32>
    %572 = arith.mulf %571, %525 : vector<8x32xf32>
    %573 = vector.extract_strided_slice %562 {offsets = [0, 0], sizes = [8, 32], strides = [1, 1]} : vector<8x64xf32> to vector<8x32xf32>
    %574 = arith.mulf %573, %564 : vector<8x32xf32>
    %575 = arith.addf %572, %574 : vector<8x32xf32>
    %576 = math.tanh %575 : vector<8x32xf32>
    %577 = arith.mulf %570, %576 : vector<8x32xf32>
    %578 = vector.extract_strided_slice %556 {offsets = [0, 0], sizes = [8, 256], strides = [1, 1]} : vector<8x512xf32> to vector<8x256xf32>
    %579 = arith.negf %578 : vector<8x256xf32>
    %580 = math.exp %579 : vector<8x256xf32>
    %cst_201 = arith.constant 1.000000e+00 : f32
    %581 = vector.broadcast %cst_201 : f32 to vector<8x256xf32>
    %582 = arith.addf %581, %580 : vector<8x256xf32>
    %583 = arith.divf %581, %582 : vector<8x256xf32>
    %584 = vector.extract_strided_slice %556 {offsets = [0, 256], sizes = [8, 128], strides = [1, 1]} : vector<8x512xf32> to vector<8x128xf32>
    %585 = math.tanh %584 : vector<8x128xf32>
    %586 = vector.extract_strided_slice %556 {offsets = [0, 384], sizes = [8, 128], strides = [1, 1]} : vector<8x512xf32> to vector<8x128xf32>
    %587 = arith.negf %586 : vector<8x128xf32>
    %588 = math.exp %587 : vector<8x128xf32>
    %cst_202 = arith.constant 1.000000e+00 : f32
    %589 = vector.broadcast %cst_202 : f32 to vector<8x128xf32>
    %590 = arith.addf %589, %588 : vector<8x128xf32>
    %591 = arith.divf %589, %590 : vector<8x128xf32>
    %592 = vector.extract_strided_slice %583 {offsets = [0, 128], sizes = [8, 128], strides = [1, 1]} : vector<8x256xf32> to vector<8x128xf32>
    %593 = arith.mulf %592, %546 : vector<8x128xf32>
    %594 = vector.extract_strided_slice %583 {offsets = [0, 0], sizes = [8, 128], strides = [1, 1]} : vector<8x256xf32> to vector<8x128xf32>
    %595 = arith.mulf %594, %585 : vector<8x128xf32>
    %596 = arith.addf %593, %595 : vector<8x128xf32>
    %597 = math.tanh %596 : vector<8x128xf32>
    %598 = arith.mulf %591, %597 : vector<8x128xf32>
    %c16_203 = arith.constant 16 : index
    %c0_204 = arith.constant 0 : index
    %599 = vector.load %arg24[%c16_203, %c0_204] : memref<64x32xf32, #tpu.memory_space<vmem>>, vector<8x32xf32>
    tpu.vector_store %arg24[%c16_203, %c0_204], %577 {strides = array<i32>} : memref<64x32xf32, #tpu.memory_space<vmem>>, vector<8x32xf32>,
    %c16_205 = arith.constant 16 : index
    %c0_206 = arith.constant 0 : index
    %600 = vector.load %arg26[%c16_205, %c0_206] : memref<64x128xf32, #tpu.memory_space<vmem>>, vector<8x128xf32>
    tpu.vector_store %arg26[%c16_205, %c0_206], %598 {strides = array<i32>} : memref<64x128xf32, #tpu.memory_space<vmem>>, vector<8x128xf32>,
    %c24_207 = arith.constant 24 : index
    %c0_208 = arith.constant 0 : index
    %601 = vector.load %arg23[%c24_207, %c0_208] : memref<64x128xf32, #tpu.memory_space<vmem>>, vector<8x128xf32>
    %cst_209 = arith.constant dense<0.000000e+00> : vector<8x128xf32>
    %602 = tpu.matmul %577, %432, %cst_209 {dimension_numbers = #tpu.dot_dimension_numbers<[1], [0], [0], [1], [0, 0, 1, 1], [], []>} : vector<8x32xf32>, vector<32x128xf32>, vector<8x128xf32> -> vector<8x128xf32>
    %603 = arith.addf %601, %602 : vector<8x128xf32>
    %c24_210 = arith.constant 24 : index
    %c0_211 = arith.constant 0 : index
    %604 = vector.load %arg25[%c24_210, %c0_211] : memref<64x512xf32, #tpu.memory_space<vmem>>, vector<8x512xf32>
    %cst_212 = arith.constant dense<0.000000e+00> : vector<8x512xf32>
    %605 = tpu.matmul %598, %435, %cst_212 {dimension_numbers = #tpu.dot_dimension_numbers<[1], [0], [0], [1], [0, 0, 1, 1], [], []>} : vector<8x128xf32>, vector<128x512xf32>, vector<8x512xf32> -> vector<8x512xf32>
    %606 = arith.addf %604, %605 : vector<8x512xf32>
    %607 = vector.extract_strided_slice %603 {offsets = [0, 0], sizes = [8, 64], strides = [1, 1]} : vector<8x128xf32> to vector<8x64xf32>
    %608 = arith.negf %607 : vector<8x64xf32>
    %609 = math.exp %608 : vector<8x64xf32>
    %cst_213 = arith.constant 1.000000e+00 : f32
    %610 = vector.broadcast %cst_213 : f32 to vector<8x64xf32>
    %611 = arith.addf %610, %609 : vector<8x64xf32>
    %612 = arith.divf %610, %611 : vector<8x64xf32>
    %613 = vector.extract_strided_slice %603 {offsets = [0, 64], sizes = [8, 32], strides = [1, 1]} : vector<8x128xf32> to vector<8x32xf32>
    %614 = math.tanh %613 : vector<8x32xf32>
    %615 = vector.extract_strided_slice %603 {offsets = [0, 96], sizes = [8, 32], strides = [1, 1]} : vector<8x128xf32> to vector<8x32xf32>
    %616 = arith.negf %615 : vector<8x32xf32>
    %617 = math.exp %616 : vector<8x32xf32>
    %cst_214 = arith.constant 1.000000e+00 : f32
    %618 = vector.broadcast %cst_214 : f32 to vector<8x32xf32>
    %619 = arith.addf %618, %617 : vector<8x32xf32>
    %620 = arith.divf %618, %619 : vector<8x32xf32>
    %621 = vector.extract_strided_slice %612 {offsets = [0, 32], sizes = [8, 32], strides = [1, 1]} : vector<8x64xf32> to vector<8x32xf32>
    %622 = arith.mulf %621, %575 : vector<8x32xf32>
    %623 = vector.extract_strided_slice %612 {offsets = [0, 0], sizes = [8, 32], strides = [1, 1]} : vector<8x64xf32> to vector<8x32xf32>
    %624 = arith.mulf %623, %614 : vector<8x32xf32>
    %625 = arith.addf %622, %624 : vector<8x32xf32>
    %626 = math.tanh %625 : vector<8x32xf32>
    %627 = arith.mulf %620, %626 : vector<8x32xf32>
    %628 = vector.extract_strided_slice %606 {offsets = [0, 0], sizes = [8, 256], strides = [1, 1]} : vector<8x512xf32> to vector<8x256xf32>
    %629 = arith.negf %628 : vector<8x256xf32>
    %630 = math.exp %629 : vector<8x256xf32>
    %cst_215 = arith.constant 1.000000e+00 : f32
    %631 = vector.broadcast %cst_215 : f32 to vector<8x256xf32>
    %632 = arith.addf %631, %630 : vector<8x256xf32>
    %633 = arith.divf %631, %632 : vector<8x256xf32>
    %634 = vector.extract_strided_slice %606 {offsets = [0, 256], sizes = [8, 128], strides = [1, 1]} : vector<8x512xf32> to vector<8x128xf32>
    %635 = math.tanh %634 : vector<8x128xf32>
    %636 = vector.extract_strided_slice %606 {offsets = [0, 384], sizes = [8, 128], strides = [1, 1]} : vector<8x512xf32> to vector<8x128xf32>
    %637 = arith.negf %636 : vector<8x128xf32>
    %638 = math.exp %637 : vector<8x128xf32>
    %cst_216 = arith.constant 1.000000e+00 : f32
    %639 = vector.broadcast %cst_216 : f32 to vector<8x128xf32>
    %640 = arith.addf %639, %638 : vector<8x128xf32>
    %641 = arith.divf %639, %640 : vector<8x128xf32>
    %642 = vector.extract_strided_slice %633 {offsets = [0, 128], sizes = [8, 128], strides = [1, 1]} : vector<8x256xf32> to vector<8x128xf32>
    %643 = arith.mulf %642, %596 : vector<8x128xf32>
    %644 = vector.extract_strided_slice %633 {offsets = [0, 0], sizes = [8, 128], strides = [1, 1]} : vector<8x256xf32> to vector<8x128xf32>
    %645 = arith.mulf %644, %635 : vector<8x128xf32>
    %646 = arith.addf %643, %645 : vector<8x128xf32>
    %647 = math.tanh %646 : vector<8x128xf32>
    %648 = arith.mulf %641, %647 : vector<8x128xf32>
    %c24_217 = arith.constant 24 : index
    %c0_218 = arith.constant 0 : index
    %649 = vector.load %arg24[%c24_217, %c0_218] : memref<64x32xf32, #tpu.memory_space<vmem>>, vector<8x32xf32>
    tpu.vector_store %arg24[%c24_217, %c0_218], %627 {strides = array<i32>} : memref<64x32xf32, #tpu.memory_space<vmem>>, vector<8x32xf32>,
    %c24_219 = arith.constant 24 : index
    %c0_220 = arith.constant 0 : index
    %650 = vector.load %arg26[%c24_219, %c0_220] : memref<64x128xf32, #tpu.memory_space<vmem>>, vector<8x128xf32>
    tpu.vector_store %arg26[%c24_219, %c0_220], %648 {strides = array<i32>} : memref<64x128xf32, #tpu.memory_space<vmem>>, vector<8x128xf32>,
    %c32_221 = arith.constant 32 : index
    %c0_222 = arith.constant 0 : index
    %651 = vector.load %arg23[%c32_221, %c0_222] : memref<64x128xf32, #tpu.memory_space<vmem>>, vector<8x128xf32>
    %cst_223 = arith.constant dense<0.000000e+00> : vector<8x128xf32>
    %652 = tpu.matmul %627, %432, %cst_223 {dimension_numbers = #tpu.dot_dimension_numbers<[1], [0], [0], [1], [0, 0, 1, 1], [], []>} : vector<8x32xf32>, vector<32x128xf32>, vector<8x128xf32> -> vector<8x128xf32>
    %653 = arith.addf %651, %652 : vector<8x128xf32>
    %c32_224 = arith.constant 32 : index
    %c0_225 = arith.constant 0 : index
    %654 = vector.load %arg25[%c32_224, %c0_225] : memref<64x512xf32, #tpu.memory_space<vmem>>, vector<8x512xf32>
    %cst_226 = arith.constant dense<0.000000e+00> : vector<8x512xf32>
    %655 = tpu.matmul %648, %435, %cst_226 {dimension_numbers = #tpu.dot_dimension_numbers<[1], [0], [0], [1], [0, 0, 1, 1], [], []>} : vector<8x128xf32>, vector<128x512xf32>, vector<8x512xf32> -> vector<8x512xf32>
    %656 = arith.addf %654, %655 : vector<8x512xf32>
    %657 = vector.extract_strided_slice %653 {offsets = [0, 0], sizes = [8, 64], strides = [1, 1]} : vector<8x128xf32> to vector<8x64xf32>
    %658 = arith.negf %657 : vector<8x64xf32>
    %659 = math.exp %658 : vector<8x64xf32>
    %cst_227 = arith.constant 1.000000e+00 : f32
    %660 = vector.broadcast %cst_227 : f32 to vector<8x64xf32>
    %661 = arith.addf %660, %659 : vector<8x64xf32>
    %662 = arith.divf %660, %661 : vector<8x64xf32>
    %663 = vector.extract_strided_slice %653 {offsets = [0, 64], sizes = [8, 32], strides = [1, 1]} : vector<8x128xf32> to vector<8x32xf32>
    %664 = math.tanh %663 : vector<8x32xf32>
    %665 = vector.extract_strided_slice %653 {offsets = [0, 96], sizes = [8, 32], strides = [1, 1]} : vector<8x128xf32> to vector<8x32xf32>
    %666 = arith.negf %665 : vector<8x32xf32>
    %667 = math.exp %666 : vector<8x32xf32>
    %cst_228 = arith.constant 1.000000e+00 : f32
    %668 = vector.broadcast %cst_228 : f32 to vector<8x32xf32>
    %669 = arith.addf %668, %667 : vector<8x32xf32>
    %670 = arith.divf %668, %669 : vector<8x32xf32>
    %671 = vector.extract_strided_slice %662 {offsets = [0, 32], sizes = [8, 32], strides = [1, 1]} : vector<8x64xf32> to vector<8x32xf32>
    %672 = arith.mulf %671, %625 : vector<8x32xf32>
    %673 = vector.extract_strided_slice %662 {offsets = [0, 0], sizes = [8, 32], strides = [1, 1]} : vector<8x64xf32> to vector<8x32xf32>
    %674 = arith.mulf %673, %664 : vector<8x32xf32>
    %675 = arith.addf %672, %674 : vector<8x32xf32>
    %676 = math.tanh %675 : vector<8x32xf32>
    %677 = arith.mulf %670, %676 : vector<8x32xf32>
    %678 = vector.extract_strided_slice %656 {offsets = [0, 0], sizes = [8, 256], strides = [1, 1]} : vector<8x512xf32> to vector<8x256xf32>
    %679 = arith.negf %678 : vector<8x256xf32>
    %680 = math.exp %679 : vector<8x256xf32>
    %cst_229 = arith.constant 1.000000e+00 : f32
    %681 = vector.broadcast %cst_229 : f32 to vector<8x256xf32>
    %682 = arith.addf %681, %680 : vector<8x256xf32>
    %683 = arith.divf %681, %682 : vector<8x256xf32>
    %684 = vector.extract_strided_slice %656 {offsets = [0, 256], sizes = [8, 128], strides = [1, 1]} : vector<8x512xf32> to vector<8x128xf32>
    %685 = math.tanh %684 : vector<8x128xf32>
    %686 = vector.extract_strided_slice %656 {offsets = [0, 384], sizes = [8, 128], strides = [1, 1]} : vector<8x512xf32> to vector<8x128xf32>
    %687 = arith.negf %686 : vector<8x128xf32>
    %688 = math.exp %687 : vector<8x128xf32>
    %cst_230 = arith.constant 1.000000e+00 : f32
    %689 = vector.broadcast %cst_230 : f32 to vector<8x128xf32>
    %690 = arith.addf %689, %688 : vector<8x128xf32>
    %691 = arith.divf %689, %690 : vector<8x128xf32>
    %692 = vector.extract_strided_slice %683 {offsets = [0, 128], sizes = [8, 128], strides = [1, 1]} : vector<8x256xf32> to vector<8x128xf32>
    %693 = arith.mulf %692, %646 : vector<8x128xf32>
    %694 = vector.extract_strided_slice %683 {offsets = [0, 0], sizes = [8, 128], strides = [1, 1]} : vector<8x256xf32> to vector<8x128xf32>
    %695 = arith.mulf %694, %685 : vector<8x128xf32>
    %696 = arith.addf %693, %695 : vector<8x128xf32>
    %697 = math.tanh %696 : vector<8x128xf32>
    %698 = arith.mulf %691, %697 : vector<8x128xf32>
    %c32_231 = arith.constant 32 : index
    %c0_232 = arith.constant 0 : index
    %699 = vector.load %arg24[%c32_231, %c0_232] : memref<64x32xf32, #tpu.memory_space<vmem>>, vector<8x32xf32>
    tpu.vector_store %arg24[%c32_231, %c0_232], %677 {strides = array<i32>} : memref<64x32xf32, #tpu.memory_space<vmem>>, vector<8x32xf32>,
    %c32_233 = arith.constant 32 : index
    %c0_234 = arith.constant 0 : index
    %700 = vector.load %arg26[%c32_233, %c0_234] : memref<64x128xf32, #tpu.memory_space<vmem>>, vector<8x128xf32>
    tpu.vector_store %arg26[%c32_233, %c0_234], %698 {strides = array<i32>} : memref<64x128xf32, #tpu.memory_space<vmem>>, vector<8x128xf32>,
    %c40_235 = arith.constant 40 : index
    %c0_236 = arith.constant 0 : index
    %701 = vector.load %arg23[%c40_235, %c0_236] : memref<64x128xf32, #tpu.memory_space<vmem>>, vector<8x128xf32>
    %cst_237 = arith.constant dense<0.000000e+00> : vector<8x128xf32>
    %702 = tpu.matmul %677, %432, %cst_237 {dimension_numbers = #tpu.dot_dimension_numbers<[1], [0], [0], [1], [0, 0, 1, 1], [], []>} : vector<8x32xf32>, vector<32x128xf32>, vector<8x128xf32> -> vector<8x128xf32>
    %703 = arith.addf %701, %702 : vector<8x128xf32>
    %c40_238 = arith.constant 40 : index
    %c0_239 = arith.constant 0 : index
    %704 = vector.load %arg25[%c40_238, %c0_239] : memref<64x512xf32, #tpu.memory_space<vmem>>, vector<8x512xf32>
    %cst_240 = arith.constant dense<0.000000e+00> : vector<8x512xf32>
    %705 = tpu.matmul %698, %435, %cst_240 {dimension_numbers = #tpu.dot_dimension_numbers<[1], [0], [0], [1], [0, 0, 1, 1], [], []>} : vector<8x128xf32>, vector<128x512xf32>, vector<8x512xf32> -> vector<8x512xf32>
    %706 = arith.addf %704, %705 : vector<8x512xf32>
    %707 = vector.extract_strided_slice %703 {offsets = [0, 0], sizes = [8, 64], strides = [1, 1]} : vector<8x128xf32> to vector<8x64xf32>
    %708 = arith.negf %707 : vector<8x64xf32>
    %709 = math.exp %708 : vector<8x64xf32>
    %cst_241 = arith.constant 1.000000e+00 : f32
    %710 = vector.broadcast %cst_241 : f32 to vector<8x64xf32>
    %711 = arith.addf %710, %709 : vector<8x64xf32>
    %712 = arith.divf %710, %711 : vector<8x64xf32>
    %713 = vector.extract_strided_slice %703 {offsets = [0, 64], sizes = [8, 32], strides = [1, 1]} : vector<8x128xf32> to vector<8x32xf32>
    %714 = math.tanh %713 : vector<8x32xf32>
    %715 = vector.extract_strided_slice %703 {offsets = [0, 96], sizes = [8, 32], strides = [1, 1]} : vector<8x128xf32> to vector<8x32xf32>
    %716 = arith.negf %715 : vector<8x32xf32>
    %717 = math.exp %716 : vector<8x32xf32>
    %cst_242 = arith.constant 1.000000e+00 : f32
    %718 = vector.broadcast %cst_242 : f32 to vector<8x32xf32>
    %719 = arith.addf %718, %717 : vector<8x32xf32>
    %720 = arith.divf %718, %719 : vector<8x32xf32>
    %721 = vector.extract_strided_slice %712 {offsets = [0, 32], sizes = [8, 32], strides = [1, 1]} : vector<8x64xf32> to vector<8x32xf32>
    %722 = arith.mulf %721, %675 : vector<8x32xf32>
    %723 = vector.extract_strided_slice %712 {offsets = [0, 0], sizes = [8, 32], strides = [1, 1]} : vector<8x64xf32> to vector<8x32xf32>
    %724 = arith.mulf %723, %714 : vector<8x32xf32>
    %725 = arith.addf %722, %724 : vector<8x32xf32>
    %726 = math.tanh %725 : vector<8x32xf32>
    %727 = arith.mulf %720, %726 : vector<8x32xf32>
    %728 = vector.extract_strided_slice %706 {offsets = [0, 0], sizes = [8, 256], strides = [1, 1]} : vector<8x512xf32> to vector<8x256xf32>
    %729 = arith.negf %728 : vector<8x256xf32>
    %730 = math.exp %729 : vector<8x256xf32>
    %cst_243 = arith.constant 1.000000e+00 : f32
    %731 = vector.broadcast %cst_243 : f32 to vector<8x256xf32>
    %732 = arith.addf %731, %730 : vector<8x256xf32>
    %733 = arith.divf %731, %732 : vector<8x256xf32>
    %734 = vector.extract_strided_slice %706 {offsets = [0, 256], sizes = [8, 128], strides = [1, 1]} : vector<8x512xf32> to vector<8x128xf32>
    %735 = math.tanh %734 : vector<8x128xf32>
    %736 = vector.extract_strided_slice %706 {offsets = [0, 384], sizes = [8, 128], strides = [1, 1]} : vector<8x512xf32> to vector<8x128xf32>
    %737 = arith.negf %736 : vector<8x128xf32>
    %738 = math.exp %737 : vector<8x128xf32>
    %cst_244 = arith.constant 1.000000e+00 : f32
    %739 = vector.broadcast %cst_244 : f32 to vector<8x128xf32>
    %740 = arith.addf %739, %738 : vector<8x128xf32>
    %741 = arith.divf %739, %740 : vector<8x128xf32>
    %742 = vector.extract_strided_slice %733 {offsets = [0, 128], sizes = [8, 128], strides = [1, 1]} : vector<8x256xf32> to vector<8x128xf32>
    %743 = arith.mulf %742, %696 : vector<8x128xf32>
    %744 = vector.extract_strided_slice %733 {offsets = [0, 0], sizes = [8, 128], strides = [1, 1]} : vector<8x256xf32> to vector<8x128xf32>
    %745 = arith.mulf %744, %735 : vector<8x128xf32>
    %746 = arith.addf %743, %745 : vector<8x128xf32>
    %747 = math.tanh %746 : vector<8x128xf32>
    %748 = arith.mulf %741, %747 : vector<8x128xf32>
    %c40_245 = arith.constant 40 : index
    %c0_246 = arith.constant 0 : index
    %749 = vector.load %arg24[%c40_245, %c0_246] : memref<64x32xf32, #tpu.memory_space<vmem>>, vector<8x32xf32>
    tpu.vector_store %arg24[%c40_245, %c0_246], %727 {strides = array<i32>} : memref<64x32xf32, #tpu.memory_space<vmem>>, vector<8x32xf32>,
    %c40_247 = arith.constant 40 : index
    %c0_248 = arith.constant 0 : index
    %750 = vector.load %arg26[%c40_247, %c0_248] : memref<64x128xf32, #tpu.memory_space<vmem>>, vector<8x128xf32>
    tpu.vector_store %arg26[%c40_247, %c0_248], %748 {strides = array<i32>} : memref<64x128xf32, #tpu.memory_space<vmem>>, vector<8x128xf32>,
    %c48_249 = arith.constant 48 : index
    %c0_250 = arith.constant 0 : index
    %751 = vector.load %arg23[%c48_249, %c0_250] : memref<64x128xf32, #tpu.memory_space<vmem>>, vector<8x128xf32>
    %cst_251 = arith.constant dense<0.000000e+00> : vector<8x128xf32>
    %752 = tpu.matmul %727, %432, %cst_251 {dimension_numbers = #tpu.dot_dimension_numbers<[1], [0], [0], [1], [0, 0, 1, 1], [], []>} : vector<8x32xf32>, vector<32x128xf32>, vector<8x128xf32> -> vector<8x128xf32>
    %753 = arith.addf %751, %752 : vector<8x128xf32>
    %c48_252 = arith.constant 48 : index
    %c0_253 = arith.constant 0 : index
    %754 = vector.load %arg25[%c48_252, %c0_253] : memref<64x512xf32, #tpu.memory_space<vmem>>, vector<8x512xf32>
    %cst_254 = arith.constant dense<0.000000e+00> : vector<8x512xf32>
    %755 = tpu.matmul %748, %435, %cst_254 {dimension_numbers = #tpu.dot_dimension_numbers<[1], [0], [0], [1], [0, 0, 1, 1], [], []>} : vector<8x128xf32>, vector<128x512xf32>, vector<8x512xf32> -> vector<8x512xf32>
    %756 = arith.addf %754, %755 : vector<8x512xf32>
    %757 = vector.extract_strided_slice %753 {offsets = [0, 0], sizes = [8, 64], strides = [1, 1]} : vector<8x128xf32> to vector<8x64xf32>
    %758 = arith.negf %757 : vector<8x64xf32>
    %759 = math.exp %758 : vector<8x64xf32>
    %cst_255 = arith.constant 1.000000e+00 : f32
    %760 = vector.broadcast %cst_255 : f32 to vector<8x64xf32>
    %761 = arith.addf %760, %759 : vector<8x64xf32>
    %762 = arith.divf %760, %761 : vector<8x64xf32>
    %763 = vector.extract_strided_slice %753 {offsets = [0, 64], sizes = [8, 32], strides = [1, 1]} : vector<8x128xf32> to vector<8x32xf32>
    %764 = math.tanh %763 : vector<8x32xf32>
    %765 = vector.extract_strided_slice %753 {offsets = [0, 96], sizes = [8, 32], strides = [1, 1]} : vector<8x128xf32> to vector<8x32xf32>
    %766 = arith.negf %765 : vector<8x32xf32>
    %767 = math.exp %766 : vector<8x32xf32>
    %cst_256 = arith.constant 1.000000e+00 : f32
    %768 = vector.broadcast %cst_256 : f32 to vector<8x32xf32>
    %769 = arith.addf %768, %767 : vector<8x32xf32>
    %770 = arith.divf %768, %769 : vector<8x32xf32>
    %771 = vector.extract_strided_slice %762 {offsets = [0, 32], sizes = [8, 32], strides = [1, 1]} : vector<8x64xf32> to vector<8x32xf32>
    %772 = arith.mulf %771, %725 : vector<8x32xf32>
    %773 = vector.extract_strided_slice %762 {offsets = [0, 0], sizes = [8, 32], strides = [1, 1]} : vector<8x64xf32> to vector<8x32xf32>
    %774 = arith.mulf %773, %764 : vector<8x32xf32>
    %775 = arith.addf %772, %774 : vector<8x32xf32>
    %776 = math.tanh %775 : vector<8x32xf32>
    %777 = arith.mulf %770, %776 : vector<8x32xf32>
    %778 = vector.extract_strided_slice %756 {offsets = [0, 0], sizes = [8, 256], strides = [1, 1]} : vector<8x512xf32> to vector<8x256xf32>
    %779 = arith.negf %778 : vector<8x256xf32>
    %780 = math.exp %779 : vector<8x256xf32>
    %cst_257 = arith.constant 1.000000e+00 : f32
    %781 = vector.broadcast %cst_257 : f32 to vector<8x256xf32>
    %782 = arith.addf %781, %780 : vector<8x256xf32>
    %783 = arith.divf %781, %782 : vector<8x256xf32>
    %784 = vector.extract_strided_slice %756 {offsets = [0, 256], sizes = [8, 128], strides = [1, 1]} : vector<8x512xf32> to vector<8x128xf32>
    %785 = math.tanh %784 : vector<8x128xf32>
    %786 = vector.extract_strided_slice %756 {offsets = [0, 384], sizes = [8, 128], strides = [1, 1]} : vector<8x512xf32> to vector<8x128xf32>
    %787 = arith.negf %786 : vector<8x128xf32>
    %788 = math.exp %787 : vector<8x128xf32>
    %cst_258 = arith.constant 1.000000e+00 : f32
    %789 = vector.broadcast %cst_258 : f32 to vector<8x128xf32>
    %790 = arith.addf %789, %788 : vector<8x128xf32>
    %791 = arith.divf %789, %790 : vector<8x128xf32>
    %792 = vector.extract_strided_slice %783 {offsets = [0, 128], sizes = [8, 128], strides = [1, 1]} : vector<8x256xf32> to vector<8x128xf32>
    %793 = arith.mulf %792, %746 : vector<8x128xf32>
    %794 = vector.extract_strided_slice %783 {offsets = [0, 0], sizes = [8, 128], strides = [1, 1]} : vector<8x256xf32> to vector<8x128xf32>
    %795 = arith.mulf %794, %785 : vector<8x128xf32>
    %796 = arith.addf %793, %795 : vector<8x128xf32>
    %797 = math.tanh %796 : vector<8x128xf32>
    %798 = arith.mulf %791, %797 : vector<8x128xf32>
    %c48_259 = arith.constant 48 : index
    %c0_260 = arith.constant 0 : index
    %799 = vector.load %arg24[%c48_259, %c0_260] : memref<64x32xf32, #tpu.memory_space<vmem>>, vector<8x32xf32>
    tpu.vector_store %arg24[%c48_259, %c0_260], %777 {strides = array<i32>} : memref<64x32xf32, #tpu.memory_space<vmem>>, vector<8x32xf32>,
    %c48_261 = arith.constant 48 : index
    %c0_262 = arith.constant 0 : index
    %800 = vector.load %arg26[%c48_261, %c0_262] : memref<64x128xf32, #tpu.memory_space<vmem>>, vector<8x128xf32>
    tpu.vector_store %arg26[%c48_261, %c0_262], %798 {strides = array<i32>} : memref<64x128xf32, #tpu.memory_space<vmem>>, vector<8x128xf32>,
    %c56_263 = arith.constant 56 : index
    %c0_264 = arith.constant 0 : index
    %801 = vector.load %arg23[%c56_263, %c0_264] : memref<64x128xf32, #tpu.memory_space<vmem>>, vector<8x128xf32>
    %cst_265 = arith.constant dense<0.000000e+00> : vector<8x128xf32>
    %802 = tpu.matmul %777, %432, %cst_265 {dimension_numbers = #tpu.dot_dimension_numbers<[1], [0], [0], [1], [0, 0, 1, 1], [], []>} : vector<8x32xf32>, vector<32x128xf32>, vector<8x128xf32> -> vector<8x128xf32>
    %803 = arith.addf %801, %802 : vector<8x128xf32>
    %c56_266 = arith.constant 56 : index
    %c0_267 = arith.constant 0 : index
    %804 = vector.load %arg25[%c56_266, %c0_267] : memref<64x512xf32, #tpu.memory_space<vmem>>, vector<8x512xf32>
    %cst_268 = arith.constant dense<0.000000e+00> : vector<8x512xf32>
    %805 = tpu.matmul %798, %435, %cst_268 {dimension_numbers = #tpu.dot_dimension_numbers<[1], [0], [0], [1], [0, 0, 1, 1], [], []>} : vector<8x128xf32>, vector<128x512xf32>, vector<8x512xf32> -> vector<8x512xf32>
    %806 = arith.addf %804, %805 : vector<8x512xf32>
    %807 = vector.extract_strided_slice %803 {offsets = [0, 0], sizes = [8, 64], strides = [1, 1]} : vector<8x128xf32> to vector<8x64xf32>
    %808 = arith.negf %807 : vector<8x64xf32>
    %809 = math.exp %808 : vector<8x64xf32>
    %cst_269 = arith.constant 1.000000e+00 : f32
    %810 = vector.broadcast %cst_269 : f32 to vector<8x64xf32>
    %811 = arith.addf %810, %809 : vector<8x64xf32>
    %812 = arith.divf %810, %811 : vector<8x64xf32>
    %813 = vector.extract_strided_slice %803 {offsets = [0, 64], sizes = [8, 32], strides = [1, 1]} : vector<8x128xf32> to vector<8x32xf32>
    %814 = math.tanh %813 : vector<8x32xf32>
    %815 = vector.extract_strided_slice %803 {offsets = [0, 96], sizes = [8, 32], strides = [1, 1]} : vector<8x128xf32> to vector<8x32xf32>
    %816 = arith.negf %815 : vector<8x32xf32>
    %817 = math.exp %816 : vector<8x32xf32>
    %cst_270 = arith.constant 1.000000e+00 : f32
    %818 = vector.broadcast %cst_270 : f32 to vector<8x32xf32>
    %819 = arith.addf %818, %817 : vector<8x32xf32>
    %820 = arith.divf %818, %819 : vector<8x32xf32>
    %821 = vector.extract_strided_slice %812 {offsets = [0, 32], sizes = [8, 32], strides = [1, 1]} : vector<8x64xf32> to vector<8x32xf32>
    %822 = arith.mulf %821, %775 : vector<8x32xf32>
    %823 = vector.extract_strided_slice %812 {offsets = [0, 0], sizes = [8, 32], strides = [1, 1]} : vector<8x64xf32> to vector<8x32xf32>
    %824 = arith.mulf %823, %814 : vector<8x32xf32>
    %825 = arith.addf %822, %824 : vector<8x32xf32>
    %826 = math.tanh %825 : vector<8x32xf32>
    %827 = arith.mulf %820, %826 : vector<8x32xf32>
    %828 = vector.extract_strided_slice %806 {offsets = [0, 0], sizes = [8, 256], strides = [1, 1]} : vector<8x512xf32> to vector<8x256xf32>
    %829 = arith.negf %828 : vector<8x256xf32>
    %830 = math.exp %829 : vector<8x256xf32>
    %cst_271 = arith.constant 1.000000e+00 : f32
    %831 = vector.broadcast %cst_271 : f32 to vector<8x256xf32>
    %832 = arith.addf %831, %830 : vector<8x256xf32>
    %833 = arith.divf %831, %832 : vector<8x256xf32>
    %834 = vector.extract_strided_slice %806 {offsets = [0, 256], sizes = [8, 128], strides = [1, 1]} : vector<8x512xf32> to vector<8x128xf32>
    %835 = math.tanh %834 : vector<8x128xf32>
    %836 = vector.extract_strided_slice %806 {offsets = [0, 384], sizes = [8, 128], strides = [1, 1]} : vector<8x512xf32> to vector<8x128xf32>
    %837 = arith.negf %836 : vector<8x128xf32>
    %838 = math.exp %837 : vector<8x128xf32>
    %cst_272 = arith.constant 1.000000e+00 : f32
    %839 = vector.broadcast %cst_272 : f32 to vector<8x128xf32>
    %840 = arith.addf %839, %838 : vector<8x128xf32>
    %841 = arith.divf %839, %840 : vector<8x128xf32>
    %842 = vector.extract_strided_slice %833 {offsets = [0, 128], sizes = [8, 128], strides = [1, 1]} : vector<8x256xf32> to vector<8x128xf32>
    %843 = arith.mulf %842, %796 : vector<8x128xf32>
    %844 = vector.extract_strided_slice %833 {offsets = [0, 0], sizes = [8, 128], strides = [1, 1]} : vector<8x256xf32> to vector<8x128xf32>
    %845 = arith.mulf %844, %835 : vector<8x128xf32>
    %846 = arith.addf %843, %845 : vector<8x128xf32>
    %847 = math.tanh %846 : vector<8x128xf32>
    %848 = arith.mulf %841, %847 : vector<8x128xf32>
    %c56_273 = arith.constant 56 : index
    %c0_274 = arith.constant 0 : index
    %849 = vector.load %arg24[%c56_273, %c0_274] : memref<64x32xf32, #tpu.memory_space<vmem>>, vector<8x32xf32>
    tpu.vector_store %arg24[%c56_273, %c0_274], %827 {strides = array<i32>} : memref<64x32xf32, #tpu.memory_space<vmem>>, vector<8x32xf32>,
    %c56_275 = arith.constant 56 : index
    %c0_276 = arith.constant 0 : index
    %850 = vector.load %arg26[%c56_275, %c0_276] : memref<64x128xf32, #tpu.memory_space<vmem>>, vector<8x128xf32>
    tpu.vector_store %arg26[%c56_275, %c0_276], %848 {strides = array<i32>} : memref<64x128xf32, #tpu.memory_space<vmem>>, vector<8x128xf32>,
    %c1 = arith.constant 1 : index
    %c0_277 = arith.constant 0 : index
    %c0_278 = arith.constant 0 : index
    %851 = vector.load %arg19[%c1, %c0_277, %c0_278] : memref<2x8x32xf32, #tpu.memory_space<vmem>>, vector<1x8x32xf32>
    %852 = vector.shape_cast %851 : vector<1x8x32xf32> to vector<8x32xf32>
    %853 = vector.shape_cast %827 : vector<8x32xf32> to vector<1x8x32xf32>
    tpu.vector_store %arg19[%c1, %c0_277, %c0_278], %853 {strides = array<i32>} : memref<2x8x32xf32, #tpu.memory_space<vmem>>, vector<1x8x32xf32>,
    %c1_279 = arith.constant 1 : index
    %c0_280 = arith.constant 0 : index
    %c0_281 = arith.constant 0 : index
    %854 = vector.load %arg20[%c1_279, %c0_280, %c0_281] : memref<2x8x32xf32, #tpu.memory_space<vmem>>, vector<1x8x32xf32>
    %855 = vector.shape_cast %854 : vector<1x8x32xf32> to vector<8x32xf32>
    %856 = vector.shape_cast %825 : vector<8x32xf32> to vector<1x8x32xf32>
    tpu.vector_store %arg20[%c1_279, %c0_280, %c0_281], %856 {strides = array<i32>} : memref<2x8x32xf32, #tpu.memory_space<vmem>>, vector<1x8x32xf32>,
    %c1_282 = arith.constant 1 : index
    %c0_283 = arith.constant 0 : index
    %c0_284 = arith.constant 0 : index
    %857 = vector.load %arg21[%c1_282, %c0_283, %c0_284] : memref<2x8x128xf32, #tpu.memory_space<vmem>>, vector<1x8x128xf32>
    %858 = vector.shape_cast %857 : vector<1x8x128xf32> to vector<8x128xf32>
    %859 = vector.shape_cast %848 : vector<8x128xf32> to vector<1x8x128xf32>
    tpu.vector_store %arg21[%c1_282, %c0_283, %c0_284], %859 {strides = array<i32>} : memref<2x8x128xf32, #tpu.memory_space<vmem>>, vector<1x8x128xf32>,
    %c1_285 = arith.constant 1 : index
    %c0_286 = arith.constant 0 : index
    %c0_287 = arith.constant 0 : index
    %860 = vector.load %arg22[%c1_285, %c0_286, %c0_287] : memref<2x8x128xf32, #tpu.memory_space<vmem>>, vector<1x8x128xf32>
    %861 = vector.shape_cast %860 : vector<1x8x128xf32> to vector<8x128xf32>
    %862 = vector.shape_cast %846 : vector<8x128xf32> to vector<1x8x128xf32>
    tpu.vector_store %arg22[%c1_285, %c0_286, %c0_287], %862 {strides = array<i32>} : memref<2x8x128xf32, #tpu.memory_space<vmem>>, vector<1x8x128xf32>,
    %c0_288 = arith.constant 0 : index
    %c0_289 = arith.constant 0 : index
    %863 = vector.load %arg24[%c0_288, %c0_289] : memref<64x32xf32, #tpu.memory_space<vmem>>, vector<64x32xf32>
    %c0_290 = arith.constant 0 : index
    %c0_291 = arith.constant 0 : index
    %864 = vector.load %arg8[%c0_290, %c0_291] : memref<32x16xf32, #tpu.memory_space<vmem>>, vector<32x16xf32>
    %cst_292 = arith.constant dense<0.000000e+00> : vector<64x16xf32>
    %865 = tpu.matmul %863, %864, %cst_292 {dimension_numbers = #tpu.dot_dimension_numbers<[1], [0], [0], [1], [0, 0, 1, 1], [], []>} : vector<64x32xf32>, vector<32x16xf32>, vector<64x16xf32> -> vector<64x16xf32>
    %c0_293 = arith.constant 0 : index
    %c0_294 = arith.constant 0 : index
    %866 = vector.load %arg26[%c0_293, %c0_294] : memref<64x128xf32, #tpu.memory_space<vmem>>, vector<64x128xf32>
    %c0_295 = arith.constant 0 : index
    %c0_296 = arith.constant 0 : index
    %867 = vector.load %arg16[%c0_295, %c0_296] : memref<128x16xf32, #tpu.memory_space<vmem>>, vector<128x16xf32>
    %cst_297 = arith.constant dense<0.000000e+00> : vector<64x16xf32>
    %868 = tpu.matmul %866, %867, %cst_297 {dimension_numbers = #tpu.dot_dimension_numbers<[1], [0], [0], [1], [0, 0, 1, 1], [], []>} : vector<64x128xf32>, vector<128x16xf32>, vector<64x16xf32> -> vector<64x16xf32>
    %869 = arith.addf %865, %868 : vector<64x16xf32>
    %c0_298 = arith.constant 0 : index
    %c0_299 = arith.constant 0 : index
    %870 = vector.load %arg9[%c0_298, %c0_299] : memref<1x16xf32, #tpu.memory_space<vmem>>, vector<1x16xf32>
    %871 = vector.broadcast %870 : vector<1x16xf32> to vector<64x16xf32>
    %872 = arith.addf %869, %871 : vector<64x16xf32>
    %c0_300 = arith.constant 0 : index
    %c0_301 = arith.constant 0 : index
    %873 = vector.load %arg17[%c0_300, %c0_301] : memref<1x1xf32, #tpu.memory_space<vmem>>, vector<1x1xf32>
    %874 = vector.broadcast %873 : vector<1x1xf32> to vector<64x16xf32>
    %875 = arith.addf %872, %874 : vector<64x16xf32>
    %c0_302 = arith.constant 0 : index
    %c0_303 = arith.constant 0 : index
    %876 = vector.load %arg18[%c0_302, %c0_303] : memref<64x16xf32, #tpu.memory_space<vmem>>, vector<64x16xf32>
    tpu.vector_store %arg18[%c0_302, %c0_303], %875 {strides = array<i32>} : memref<64x16xf32, #tpu.memory_space<vmem>>, vector<64x16xf32>,
    return
  }
  func.func @transform_0(%arg0: i32) -> (i32, i32) {
    %c0_i32 = arith.constant 0 : i32
    %c0_i32_0 = arith.constant 0 : i32
    %c0_i32_1 = arith.constant 0 : i32
    return %c0_i32, %c0_i32_0 : i32, i32
  }
  func.func @transform_1(%arg0: i32) -> (i32, i32) {
    %c0_i32 = arith.constant 0 : i32
    %c0_i32_0 = arith.constant 0 : i32
    %c0_i32_1 = arith.constant 0 : i32
    return %c0_i32, %c0_i32_0 : i32, i32
  }
  func.func @transform_2(%arg0: i32) -> (i32, i32) {
    %c0_i32 = arith.constant 0 : i32
    %c0_i32_0 = arith.constant 0 : i32
    %c0_i32_1 = arith.constant 0 : i32
    return %c0_i32, %c0_i32_0 : i32, i32
  }
  func.func @transform_3(%arg0: i32) -> (i32, i32) {
    %c0_i32 = arith.constant 0 : i32
    %c0_i32_0 = arith.constant 0 : i32
    %c0_i32_1 = arith.constant 0 : i32
    return %c0_i32, %c0_i32_0 : i32, i32
  }
  func.func @transform_4(%arg0: i32) -> (i32, i32) {
    %c0_i32 = arith.constant 0 : i32
    %c0_i32_0 = arith.constant 0 : i32
    %c0_i32_1 = arith.constant 0 : i32
    return %c0_i32, %c0_i32_0 : i32, i32
  }
  func.func @transform_5(%arg0: i32) -> (i32, i32) {
    %c0_i32 = arith.constant 0 : i32
    %c0_i32_0 = arith.constant 0 : i32
    %c0_i32_1 = arith.constant 0 : i32
    return %c0_i32, %c0_i32_0 : i32, i32
  }
  func.func @transform_6(%arg0: i32) -> (i32, i32) {
    %c0_i32 = arith.constant 0 : i32
    %c0_i32_0 = arith.constant 0 : i32
    %c0_i32_1 = arith.constant 0 : i32
    return %c0_i32, %c0_i32_0 : i32, i32
  }
  func.func @transform_7(%arg0: i32) -> (i32, i32) {
    %c0_i32 = arith.constant 0 : i32
    %c0_i32_0 = arith.constant 0 : i32
    %c0_i32_1 = arith.constant 0 : i32
    return %c0_i32, %c0_i32_0 : i32, i32
  }
  func.func @transform_8(%arg0: i32) -> (i32, i32) {
    %c0_i32 = arith.constant 0 : i32
    %c0_i32_0 = arith.constant 0 : i32
    %c0_i32_1 = arith.constant 0 : i32
    return %c0_i32, %c0_i32_0 : i32, i32
  }
  func.func @transform_9(%arg0: i32) -> (i32, i32) {
    %c0_i32 = arith.constant 0 : i32
    %c0_i32_0 = arith.constant 0 : i32
    %c0_i32_1 = arith.constant 0 : i32
    return %c0_i32, %c0_i32_0 : i32, i32
  }
  func.func @transform_10(%arg0: i32) -> (i32, i32) {
    %c0_i32 = arith.constant 0 : i32
    %c0_i32_0 = arith.constant 0 : i32
    %c0_i32_1 = arith.constant 0 : i32
    return %c0_i32, %c0_i32_0 : i32, i32
  }
  func.func @transform_11(%arg0: i32) -> (i32, i32) {
    %c0_i32 = arith.constant 0 : i32
    %c0_i32_0 = arith.constant 0 : i32
    %c0_i32_1 = arith.constant 0 : i32
    return %c0_i32, %c0_i32_0 : i32, i32
  }
  func.func @transform_12(%arg0: i32) -> (i32, i32) {
    %c0_i32 = arith.constant 0 : i32
    %c0_i32_0 = arith.constant 0 : i32
    %c0_i32_1 = arith.constant 0 : i32
    return %c0_i32, %c0_i32_0 : i32, i32
  }
  func.func @transform_13(%arg0: i32) -> (i32, i32) {
    %c0_i32 = arith.constant 0 : i32
    %c0_i32_0 = arith.constant 0 : i32
    %c0_i32_1 = arith.constant 0 : i32
    return %c0_i32, %c0_i32_0 : i32, i32
  }
  func.func @transform_14(%arg0: i32) -> (i32, i32) {
    %c0_i32 = arith.constant 0 : i32
    %c0_i32_0 = arith.constant 0 : i32
    %c0_i32_1 = arith.constant 0 : i32
    return %c0_i32, %c0_i32_0 : i32, i32
  }
  func.func @transform_15(%arg0: i32) -> (i32, i32) {
    %c0_i32 = arith.constant 0 : i32
    %c0_i32_0 = arith.constant 0 : i32
    %c0_i32_1 = arith.constant 0 : i32
    return %c0_i32, %c0_i32_0 : i32, i32
  }
  func.func @transform_16(%arg0: i32) -> (i32, i32) {
    %c0_i32 = arith.constant 0 : i32
    %c0_i32_0 = arith.constant 0 : i32
    %c0_i32_1 = arith.constant 0 : i32
    return %c0_i32, %c0_i32_0 : i32, i32
  }
  func.func @transform_17(%arg0: i32) -> (i32, i32) {
    %c0_i32 = arith.constant 0 : i32
    %c0_i32_0 = arith.constant 0 : i32
    %c0_i32_1 = arith.constant 0 : i32
    return %c0_i32, %c0_i32_0 : i32, i32
  }
  func.func @transform_18(%arg0: i32) -> (i32, i32, i32) {
    %c0_i32 = arith.constant 0 : i32
    %c0_i32_0 = arith.constant 0 : i32
    %c0_i32_1 = arith.constant 0 : i32
    %c0_i32_2 = arith.constant 0 : i32
    return %c0_i32, %c0_i32_0, %c0_i32_1 : i32, i32, i32
  }
  func.func @transform_19(%arg0: i32) -> (i32, i32, i32) {
    %c0_i32 = arith.constant 0 : i32
    %c0_i32_0 = arith.constant 0 : i32
    %c0_i32_1 = arith.constant 0 : i32
    %c0_i32_2 = arith.constant 0 : i32
    return %c0_i32, %c0_i32_0, %c0_i32_1 : i32, i32, i32
  }
  func.func @transform_20(%arg0: i32) -> (i32, i32, i32) {
    %c0_i32 = arith.constant 0 : i32
    %c0_i32_0 = arith.constant 0 : i32
    %c0_i32_1 = arith.constant 0 : i32
    %c0_i32_2 = arith.constant 0 : i32
    return %c0_i32, %c0_i32_0, %c0_i32_1 : i32, i32, i32
  }
  func.func @transform_21(%arg0: i32) -> (i32, i32, i32) {
    %c0_i32 = arith.constant 0 : i32
    %c0_i32_0 = arith.constant 0 : i32
    %c0_i32_1 = arith.constant 0 : i32
    %c0_i32_2 = arith.constant 0 : i32
    return %c0_i32, %c0_i32_0, %c0_i32_1 : i32, i32, i32
  }
}

</mosaic_0001>

<llo_original>
// kernel: optimizer_opti_forward.1
$region0: #{optimizer_opti_forward.1}
  #allocation0 [shape = 'u32[]', space=smem, size = 0x4, offset = 0x4, fixed_abs, tag = 'smem constant byte address 0x4 - core index']
  #allocation1 [shape = 'u32[144,128]{1,0:T(1,128)}', space=vmem, size = 0x12000, scoped, tag = 'internal scratch']
  #allocation2 [shape = 'f32[64,128]{1,0:T(8,128)}', space=vmem, size = 0x8000, scoped, tag = 'scratch operand']
  #allocation3 [shape = 'f32[64,32]{1,0:T(8,128)}', space=vmem, size = 0x8000, scoped, tag = 'scratch operand']
  #allocation4 [shape = 'f32[64,512]{1,0:T(8,128)}', space=vmem, size = 0x20000, scoped, tag = 'scratch operand']
  #allocation5 [shape = 'f32[64,128]{1,0:T(8,128)}', space=vmem, size = 0x8000, scoped, tag = 'scratch operand']
  #allocation6 [shape = 'f32[1,1]{1,0:T(1,128)S(1)}', space=vmem, size = 0x200, scoped, tag = 'scoped memory for optimizer_opti_forward.1']
  %s0 = inlined_call_operand.vmem [shape: f32[64,16], index: 0, kind: input, shape index: {}]
  %s1 = inlined_call_operand.vmem [shape: f32[16,128], index: 1, kind: input, shape index: {}]
  %s2 = inlined_call_operand.vmem [shape: f32[32,128], index: 2, kind: input, shape index: {}]
  %s3 = inlined_call_operand.vmem [shape: f32[1,128], index: 3, kind: input, shape index: {}]
  %s4 = inlined_call_operand.vmem [shape: f32[32,128], index: 4, kind: input, shape index: {}]
  %s5 = inlined_call_operand.vmem [shape: f32[32,128], index: 5, kind: input, shape index: {}]
  %s6 = inlined_call_operand.vmem [shape: f32[1,128], index: 6, kind: input, shape index: {}]
  %s7 = inlined_call_operand.vmem [shape: f32[32,16], index: 7, kind: input, shape index: {}]
  %s8 = inlined_call_operand.vmem [shape: f32[1,16], index: 8, kind: input, shape index: {}]
  %s9 = inlined_call_operand.vmem [shape: f32[16,512], index: 9, kind: input, shape index: {}]
  %s10 = inlined_call_operand.vmem [shape: f32[128,512], index: 10, kind: input, shape index: {}]
  %s11 = inlined_call_operand.vmem [shape: f32[1,512], index: 11, kind: input, shape index: {}]
  %s12 = inlined_call_operand.vmem [shape: f32[128,512], index: 12, kind: input, shape index: {}]
  %s13 = inlined_call_operand.vmem [shape: f32[128,512], index: 13, kind: input, shape index: {}]
  %s14 = inlined_call_operand.vmem [shape: f32[1,512], index: 14, kind: input, shape index: {}]
  %s15 = inlined_call_operand.vmem [shape: f32[128,16], index: 15, kind: input, shape index: {}]
  %s16 = inlined_call_operand.<no memory space> [shape: f32[1,1], index: 16, kind: input, shape index: {}]
  %s17 = inlined_call_operand.vmem [shape: f32[64,16], index: 17, kind: output, shape index: {0}]
  %s18 = inlined_call_operand.vmem [shape: f32[2,8,32], index: 18, kind: output, shape index: {1}]
  %s19 = inlined_call_operand.vmem [shape: f32[2,8,32], index: 19, kind: output, shape index: {2}]
  %s20 = inlined_call_operand.vmem [shape: f32[2,8,128], index: 20, kind: output, shape index: {3}]
  %s21 = inlined_call_operand.vmem [shape: f32[2,8,128], index: 21, kind: output, shape index: {4}]
  %22 = xla_tuple %s17, %s18, %s19, %s20, %s21
  %s23 = sld [smem:[#allocation0]]
  $region110: #{optimizer_opti_forward.1} parent=0
    _
  %s25 = ssub.s32 1, %s23
  %s26 = scalar_select 0, %s25, %s23
  %v27 = vstv %s16
  %28 = vst [vmem:[#allocation6] sm:$0x1] %v27
  // Predicated region
  $region2: #{optimizer_opti_forward.1} parent=0 // pred_check
    _
  $region3: #{optimizer_opti_forward.1} parent=0 // pred_check_branch
    %30 = sbr.rel (0) target = $region5
  $region4: #{optimizer_opti_forward.1} parent=0 // pred_region
    _
  $region5: #{optimizer_opti_forward.1} parent=0 // pred_fallthru
    _
  // Predicated region
  $region6: #{optimizer_opti_forward.1} parent=0 // pred_check
    _
  $region7: #{optimizer_opti_forward.1} parent=0 // pred_check_branch
    %32 = sbr.rel (0) target = $region9
  $region8: #{optimizer_opti_forward.1} parent=0 // pred_region
    _
  $region9: #{optimizer_opti_forward.1} parent=0 // pred_fallthru
    _
  // Predicated region
  $region10: #{optimizer_opti_forward.1} parent=0 // pred_check
    _
  $region11: #{optimizer_opti_forward.1} parent=0 // pred_check_branch
    %34 = sbr.rel (0) target = $region13
  $region12: #{optimizer_opti_forward.1} parent=0 // pred_region
    _
  $region13: #{optimizer_opti_forward.1} parent=0 // pred_fallthru
    _
  // Predicated region
  $region14: #{optimizer_opti_forward.1} parent=0 // pred_check
    _
  $region15: #{optimizer_opti_forward.1} parent=0 // pred_check_branch
    %36 = sbr.rel (0) target = $region17
  $region16: #{optimizer_opti_forward.1} parent=0 // pred_region
    _
  $region17: #{optimizer_opti_forward.1} parent=0 // pred_fallthru
    _
  // Predicated region
  $region18: #{optimizer_opti_forward.1} parent=0 // pred_check
    _
  $region19: #{optimizer_opti_forward.1} parent=0 // pred_check_branch
    %38 = sbr.rel (0) target = $region21
  $region20: #{optimizer_opti_forward.1} parent=0 // pred_region
    _
  $region21: #{optimizer_opti_forward.1} parent=0 // pred_fallthru
    _
  // Predicated region
  $region22: #{optimizer_opti_forward.1} parent=0 // pred_check
    _
  $region23: #{optimizer_opti_forward.1} parent=0 // pred_check_branch
    %40 = sbr.rel (0) target = $region25
  $region24: #{optimizer_opti_forward.1} parent=0 // pred_region
    _
  $region25: #{optimizer_opti_forward.1} parent=0 // pred_fallthru
    _
  // Predicated region
  $region26: #{optimizer_opti_forward.1} parent=0 // pred_check
    _
  $region27: #{optimizer_opti_forward.1} parent=0 // pred_check_branch
    %42 = sbr.rel (0) target = $region29
  $region28: #{optimizer_opti_forward.1} parent=0 // pred_region
    _
  $region29: #{optimizer_opti_forward.1} parent=0 // pred_fallthru
    _
  // Predicated region
  $region30: #{optimizer_opti_forward.1} parent=0 // pred_check
    _
  $region31: #{optimizer_opti_forward.1} parent=0 // pred_check_branch
    %44 = sbr.rel (0) target = $region33
  $region32: #{optimizer_opti_forward.1} parent=0 // pred_region
    _
  $region33: #{optimizer_opti_forward.1} parent=0 // pred_fallthru
    _
  // Predicated region
  $region34: #{optimizer_opti_forward.1} parent=0 // pred_check
    _
  $region35: #{optimizer_opti_forward.1} parent=0 // pred_check_branch
    %46 = sbr.rel (0) target = $region37
  $region36: #{optimizer_opti_forward.1} parent=0 // pred_region
    _
  $region37: #{optimizer_opti_forward.1} parent=0 // pred_fallthru
    _
  // Predicated region
  $region38: #{optimizer_opti_forward.1} parent=0 // pred_check
    _
  $region39: #{optimizer_opti_forward.1} parent=0 // pred_check_branch
    %48 = sbr.rel (0) target = $region41
  $region40: #{optimizer_opti_forward.1} parent=0 // pred_region
    _
  $region41: #{optimizer_opti_forward.1} parent=0 // pred_fallthru
    _
  // Predicated region
  $region42: #{optimizer_opti_forward.1} parent=0 // pred_check
    _
  $region43: #{optimizer_opti_forward.1} parent=0 // pred_check_branch
    %50 = sbr.rel (0) target = $region45
  $region44: #{optimizer_opti_forward.1} parent=0 // pred_region
    _
  $region45: #{optimizer_opti_forward.1} parent=0 // pred_fallthru
    _
  // Predicated region
  $region46: #{optimizer_opti_forward.1} parent=0 // pred_check
    _
  $region47: #{optimizer_opti_forward.1} parent=0 // pred_check_branch
    %52 = sbr.rel (0) target = $region49
  $region48: #{optimizer_opti_forward.1} parent=0 // pred_region
    _
  $region49: #{optimizer_opti_forward.1} parent=0 // pred_fallthru
    _
  // Predicated region
  $region50: #{optimizer_opti_forward.1} parent=0 // pred_check
    _
  $region51: #{optimizer_opti_forward.1} parent=0 // pred_check_branch
    %54 = sbr.rel (0) target = $region53
  $region52: #{optimizer_opti_forward.1} parent=0 // pred_region
    _
  $region53: #{optimizer_opti_forward.1} parent=0 // pred_fallthru
    _
  // Predicated region
  $region54: #{optimizer_opti_forward.1} parent=0 // pred_check
    _
  $region55: #{optimizer_opti_forward.1} parent=0 // pred_check_branch
    %56 = sbr.rel (0) target = $region57
  $region56: #{optimizer_opti_forward.1} parent=0 // pred_region
    _
  $region57: #{optimizer_opti_forward.1} parent=0 // pred_fallthru
    _
  // Predicated region
  $region58: #{optimizer_opti_forward.1} parent=0 // pred_check
    _
  $region59: #{optimizer_opti_forward.1} parent=0 // pred_check_branch
    %58 = sbr.rel (0) target = $region61
  $region60: #{optimizer_opti_forward.1} parent=0 // pred_region
    _
  $region61: #{optimizer_opti_forward.1} parent=0 // pred_fallthru
    _
  // Predicated region
  $region62: #{optimizer_opti_forward.1} parent=0 // pred_check
    _
  $region63: #{optimizer_opti_forward.1} parent=0 // pred_check_branch
    %60 = sbr.rel (0) target = $region65
  $region64: #{optimizer_opti_forward.1} parent=0 // pred_region
    _
  $region65: #{optimizer_opti_forward.1} parent=0 // pred_fallthru
    _
  // Predicated region
  $region66: #{optimizer_opti_forward.1} parent=0 // pred_check
    _
  $region67: #{optimizer_opti_forward.1} parent=0 // pred_check_branch
    %62 = sbr.rel (0) target = $region69
  $region68: #{optimizer_opti_forward.1} parent=0 // pred_region
    _
  $region69: #{optimizer_opti_forward.1} parent=0 // pred_fallthru
    _
  %v63 = vld [vmem:[%s0] sm:$0xff]
  %v64 = vld [vmem:[%s0 + $0x8] sm:$0xff]
  %v65 = vld [vmem:[%s0 + $0x10] sm:$0xff]
  %v66 = vld [vmem:[%s0 + $0x18] sm:$0xff]
  %v67 = vld [vmem:[%s0 + $0x20] sm:$0xff]
  %v68 = vld [vmem:[%s0 + $0x28] sm:$0xff]
  %v69 = vld [vmem:[%s0 + $0x30] sm:$0xff]
  %v70 = vld [vmem:[%s0 + $0x38] sm:$0xff]
  %v71 = vld [vmem:[%s1] sm:$0xff]
  %v72 = vld [vmem:[%s1 + $0x8] sm:$0xff]
  %v73 = vld [vmem:[%s2] sm:$0xff]
  %v74 = vld [vmem:[%s2 + $0x8] sm:$0xff]
  %v75 = vld [vmem:[%s2 + $0x10] sm:$0xff]
  %v76 = vld [vmem:[%s2 + $0x18] sm:$0xff]
  %v77 = vld [vmem:[%s3] sm:$0x1]
  %v78 = vld [vmem:[%s9] sm:$0xff]
  %v79 = vld [vmem:[%s9 + $0x8] sm:$0xff]
  %v80 = vld [vmem:[%s9 + $0x10] sm:$0xff]
  %v81 = vld [vmem:[%s9 + $0x18] sm:$0xff]
  %v82 = vld [vmem:[%s9 + $0x20] sm:$0xff]
  %v83 = vld [vmem:[%s9 + $0x28] sm:$0xff]
  %v84 = vld [vmem:[%s9 + $0x30] sm:$0xff]
  %v85 = vld [vmem:[%s9 + $0x38] sm:$0xff]
  %v86 = vld [vmem:[%s10] sm:$0xff]
  %v87 = vld [vmem:[%s10 + $0x8] sm:$0xff]
  %v88 = vld [vmem:[%s10 + $0x10] sm:$0xff]
  %v89 = vld [vmem:[%s10 + $0x18] sm:$0xff]
  %v90 = vld [vmem:[%s10 + $0x20] sm:$0xff]
  %v91 = vld [vmem:[%s10 + $0x28] sm:$0xff]
  %v92 = vld [vmem:[%s10 + $0x30] sm:$0xff]
  %v93 = vld [vmem:[%s10 + $0x38] sm:$0xff]
  %v94 = vld [vmem:[%s10 + $0x40] sm:$0xff]
  %v95 = vld [vmem:[%s10 + $0x48] sm:$0xff]
  %v96 = vld [vmem:[%s10 + $0x50] sm:$0xff]
  %v97 = vld [vmem:[%s10 + $0x58] sm:$0xff]
  %v98 = vld [vmem:[%s10 + $0x60] sm:$0xff]
  %v99 = vld [vmem:[%s10 + $0x68] sm:$0xff]
  %v100 = vld [vmem:[%s10 + $0x70] sm:$0xff]
  %v101 = vld [vmem:[%s10 + $0x78] sm:$0xff]
  %v102 = vld [vmem:[%s10 + $0x80] sm:$0xff]
  %v103 = vld [vmem:[%s10 + $0x88] sm:$0xff]
  %v104 = vld [vmem:[%s10 + $0x90] sm:$0xff]
  %v105 = vld [vmem:[%s10 + $0x98] sm:$0xff]
  %v106 = vld [vmem:[%s10 + $0xa0] sm:$0xff]
  %v107 = vld [vmem:[%s10 + $0xa8] sm:$0xff]
  %v108 = vld [vmem:[%s10 + $0xb0] sm:$0xff]
  %v109 = vld [vmem:[%s10 + $0xb8] sm:$0xff]
  %v110 = vld [vmem:[%s10 + $0xc0] sm:$0xff]
  %v111 = vld [vmem:[%s10 + $0xc8] sm:$0xff]
  %v112 = vld [vmem:[%s10 + $0xd0] sm:$0xff]
  %v113 = vld [vmem:[%s10 + $0xd8] sm:$0xff]
  %v114 = vld [vmem:[%s10 + $0xe0] sm:$0xff]
  %v115 = vld [vmem:[%s10 + $0xe8] sm:$0xff]
  %v116 = vld [vmem:[%s10 + $0xf0] sm:$0xff]
  %v117 = vld [vmem:[%s10 + $0xf8] sm:$0xff]
  %v118 = vld [vmem:[%s10 + $0x100] sm:$0xff]
  %v119 = vld [vmem:[%s10 + $0x108] sm:$0xff]
  %v120 = vld [vmem:[%s10 + $0x110] sm:$0xff]
  %v121 = vld [vmem:[%s10 + $0x118] sm:$0xff]
  %v122 = vld [vmem:[%s10 + $0x120] sm:$0xff]
  %v123 = vld [vmem:[%s10 + $0x128] sm:$0xff]
  %v124 = vld [vmem:[%s10 + $0x130] sm:$0xff]
  %v125 = vld [vmem:[%s10 + $0x138] sm:$0xff]
  %v126 = vld [vmem:[%s10 + $0x140] sm:$0xff]
  %v127 = vld [vmem:[%s10 + $0x148] sm:$0xff]
  %v128 = vld [vmem:[%s10 + $0x150] sm:$0xff]
  %v129 = vld [vmem:[%s10 + $0x158] sm:$0xff]
  %v130 = vld [vmem:[%s10 + $0x160] sm:$0xff]
  %v131 = vld [vmem:[%s10 + $0x168] sm:$0xff]
  %v132 = vld [vmem:[%s10 + $0x170] sm:$0xff]
  %v133 = vld [vmem:[%s10 + $0x178] sm:$0xff]
  %v134 = vld [vmem:[%s10 + $0x180] sm:$0xff]
  %v135 = vld [vmem:[%s10 + $0x188] sm:$0xff]
  %v136 = vld [vmem:[%s10 + $0x190] sm:$0xff]
  %v137 = vld [vmem:[%s10 + $0x198] sm:$0xff]
  %v138 = vld [vmem:[%s10 + $0x1a0] sm:$0xff]
  %v139 = vld [vmem:[%s10 + $0x1a8] sm:$0xff]
  %v140 = vld [vmem:[%s10 + $0x1b0] sm:$0xff]
  %v141 = vld [vmem:[%s10 + $0x1b8] sm:$0xff]
  %v142 = vld [vmem:[%s10 + $0x1c0] sm:$0xff]
  %v143 = vld [vmem:[%s10 + $0x1c8] sm:$0xff]
  %v144 = vld [vmem:[%s10 + $0x1d0] sm:$0xff]
  %v145 = vld [vmem:[%s10 + $0x1d8] sm:$0xff]
  %v146 = vld [vmem:[%s10 + $0x1e0] sm:$0xff]
  %v147 = vld [vmem:[%s10 + $0x1e8] sm:$0xff]
  %v148 = vld [vmem:[%s10 + $0x1f0] sm:$0xff]
  %v149 = vld [vmem:[%s10 + $0x1f8] sm:$0xff]
  %v150 = vld [vmem:[%s11] sm:$0xf]
  %v152 = vlaneseq
  %v153 = vshrl.u32 %v152, 7
  %v154 = vsub.s32 0, %v153
  %v155 = vrot.slane %v77, %v154
  %vm157 = vcmask 130048
  %v159 = vsel %vm157, %v63, 0
  %v162 = vsel %vm157, %v64, 0
  %v165 = vsel %vm157, %v65, 0
  %v168 = vsel %vm157, %v66, 0
  %v171 = vsel %vm157, %v67, 0
  %v174 = vsel %vm157, %v68, 0
  %v177 = vsel %vm157, %v69, 0
  %v180 = vsel %vm157, %v70, 0
  %182 = vmatprep.subr.mxu0 0.0
  %183 = vmatpush1.msra.mxu0 0.0
  %184 = vmatprep.subr.mxu0 0.0
  %185 = vmatpush1.msra.mxu0 0.0
  %186 = vmatprep.subr.mxu0 0.0
  %187 = vmatpush1.msra.mxu0 0.0
  %188 = vmatprep.subr.mxu0 0.0
  %189 = vmatpush1.msra.mxu0 0.0
  %190 = vmatprep.subr.mxu0 0.0
  %191 = vmatpush1.msra.mxu0 0.0
  %192 = vmatprep.subr.mxu0 0.0
  %193 = vmatpush1.msra.mxu0 0.0
  %194 = vmatprep.subr.mxu0 0.0
  %195 = vmatpush1.msra.mxu0 0.0
  %196 = vmatprep.subr.mxu0 0.0
  %197 = vmatpush1.msra.mxu0 0.0
  %198 = vmatprep.subr.mxu0 0.0
  %199 = vmatpush1.msra.mxu0 0.0
  %200 = vmatprep.subr.mxu0 0.0
  %201 = vmatpush1.msra.mxu0 0.0
  %202 = vmatprep.subr.mxu0 0.0
  %203 = vmatpush1.msra.mxu0 0.0
  %204 = vmatprep.subr.mxu0 0.0
  %205 = vmatpush1.msra.mxu0 0.0
  %206 = vmatprep.subr.mxu0 0.0
  %207 = vmatpush1.msra.mxu0 0.0
  %208 = vmatprep.subr.mxu0 0.0
  %209 = vmatpush1.msra.mxu0 0.0
  %210 = vmatprep.subr.mxu0 0.0
  %211 = vmatpush1.msra.mxu0 %v72
  %212 = vmatprep.subr.mxu0 0.0
  %213 = vmatpush1.msra.mxu0 %v71
  %214 = vmatprep.subr.mxu0 0.0
  %215 = vmatpush2.msra.mxu0 0.0
  %216 = vmatprep.subr.mxu0 0.0
  %217 = vmatpush2.msra.mxu0 0.0
  %218 = vmatprep.subr.mxu0 0.0
  %219 = vmatpush2.msra.mxu0 0.0
  %220 = vmatprep.subr.mxu0 0.0
  %221 = vmatpush2.msra.mxu0 0.0
  %222 = vmatprep.subr.mxu0 0.0
  %223 = vmatpush2.msra.mxu0 0.0
  %224 = vmatprep.subr.mxu0 0.0
  %225 = vmatpush2.msra.mxu0 0.0
  %226 = vmatprep.subr.mxu0 0.0
  %227 = vmatpush2.msra.mxu0 0.0
  %228 = vmatprep.subr.mxu0 0.0
  %229 = vmatpush2.msra.mxu0 0.0
  %230 = vmatprep.subr.mxu0 0.0
  %231 = vmatpush2.msra.mxu0 0.0
  %232 = vmatprep.subr.mxu0 0.0
  %233 = vmatpush2.msra.mxu0 0.0
  %234 = vmatprep.subr.mxu0 0.0
  %235 = vmatpush2.msra.mxu0 0.0
  %236 = vmatprep.subr.mxu0 0.0
  %237 = vmatpush2.msra.mxu0 0.0
  %238 = vmatprep.subr.mxu0 0.0
  %239 = vmatpush2.msra.mxu0 0.0
  %240 = vmatprep.subr.mxu0 0.0
  %241 = vmatpush2.msra.mxu0 0.0
  %242 = vmatprep.subr.mxu0 0.0
  %243 = vmatpush2.msra.mxu0 0.0
  %244 = vmatprep.subr.mxu0 0.0
  %245 = vmatpush2.msra.mxu0 0.0
  %246 = vmatprep.mubr.f32.mxu0 0.0
  %247 = vmatmul.mubr.f32.gmra.mxu0 %v159
  %v248 = vpop.f32.mrf.mxu0
  %v249 = vadd.f32 %v155, %v248
  %v250 = vpop.f32.mrf.mxu0
  %251 = vmatprep.mubr.f32.mxu0 0.0
  %252 = vmatmul.mubr.f32.gmra.mxu0 %v162
  %v253 = vpop.f32.mrf.mxu0
  %v254 = vadd.f32 %v155, %v253
  %v255 = vpop.f32.mrf.mxu0
  %256 = vmatprep.mubr.f32.mxu0 0.0
  %257 = vmatmul.mubr.f32.gmra.mxu0 %v165
  %v258 = vpop.f32.mrf.mxu0
  %v259 = vadd.f32 %v155, %v258
  %v260 = vpop.f32.mrf.mxu0
  %261 = vmatprep.mubr.f32.mxu0 0.0
  %262 = vmatmul.mubr.f32.gmra.mxu0 %v168
  %v263 = vpop.f32.mrf.mxu0
  %v264 = vadd.f32 %v155, %v263
  %v265 = vpop.f32.mrf.mxu0
  %266 = vmatprep.mubr.f32.mxu0 0.0
  %267 = vmatmul.mubr.f32.gmra.mxu0 %v171
  %v268 = vpop.f32.mrf.mxu0
  %v269 = vadd.f32 %v155, %v268
  %v270 = vpop.f32.mrf.mxu0
  %271 = vmatprep.mubr.f32.mxu0 0.0
  %272 = vmatmul.mubr.f32.gmra.mxu0 %v174
  %v273 = vpop.f32.mrf.mxu0
  %v274 = vadd.f32 %v155, %v273
  %v275 = vpop.f32.mrf.mxu0
  %276 = vmatprep.mubr.f32.mxu0 0.0
  %277 = vmatmul.mubr.f32.gmra.mxu0 %v177
  %v278 = vpop.f32.mrf.mxu0
  %v279 = vadd.f32 %v155, %v278
  %v280 = vpop.f32.mrf.mxu0
  %281 = vmatprep.mubr.f32.mxu0 0.0
  %282 = vmatmul.mubr.f32.gmra.mxu0 %v180
  %v283 = vpop.f32.mrf.mxu0
  %v284 = vadd.f32 %v155, %v283
  %v285 = vpop.f32.mrf.mxu0
  %286 = vdwg.mxu0
  %287 = vst [vmem:[#allocation2] sm:$0xff] %v249
  %288 = vst [vmem:[#allocation2 + $0x8] sm:$0xff] %v254
  %289 = vst [vmem:[#allocation2 + $0x10] sm:$0xff] %v259
  %290 = vst [vmem:[#allocation2 + $0x18] sm:$0xff] %v264
  %291 = vst [vmem:[#allocation2 + $0x20] sm:$0xff] %v269
  %292 = vst [vmem:[#allocation2 + $0x28] sm:$0xff] %v274
  %293 = vst [vmem:[#allocation2 + $0x30] sm:$0xff] %v279
  %294 = vst [vmem:[#allocation2 + $0x38] sm:$0xff] %v284
  %v296 = vlaneseq
  %v297 = vshrl.u32 %v296, 7
  %v298 = vsub.s32 0, %v297
  %v299 = vrot.slane %v150, %v298
  %v300 = vlaneseq
  %v301 = vshrl.u32 %v300, 7
  %v302 = vsub.s32 1, %v301
  %v303 = vrot.slane %v150, %v302
  %v304 = vlaneseq
  %v305 = vshrl.u32 %v304, 7
  %v306 = vsub.s32 2, %v305
  %v307 = vrot.slane %v150, %v306
  %v308 = vlaneseq
  %v309 = vshrl.u32 %v308, 7
  %v310 = vsub.s32 3, %v309
  %v311 = vrot.slane %v150, %v310
  %316 = vmatprep.subr.mxu0 0.0
  %317 = vmatpush1.msra.mxu0 0.0
  %318 = vmatprep.subr.mxu0 0.0
  %319 = vmatpush1.msra.mxu0 0.0
  %320 = vmatprep.subr.mxu0 0.0
  %321 = vmatpush1.msra.mxu0 0.0
  %322 = vmatprep.subr.mxu0 0.0
  %323 = vmatpush1.msra.mxu0 0.0
  %324 = vmatprep.subr.mxu0 0.0
  %325 = vmatpush1.msra.mxu0 0.0
  %326 = vmatprep.subr.mxu0 0.0
  %327 = vmatpush1.msra.mxu0 0.0
  %328 = vmatprep.subr.mxu0 0.0
  %329 = vmatpush1.msra.mxu0 0.0
  %330 = vmatprep.subr.mxu0 0.0
  %331 = vmatpush1.msra.mxu0 0.0
  %332 = vmatprep.subr.mxu0 0.0
  %333 = vmatpush1.msra.mxu0 0.0
  %334 = vmatprep.subr.mxu0 0.0
  %335 = vmatpush1.msra.mxu0 0.0
  %336 = vmatprep.subr.mxu0 0.0
  %337 = vmatpush1.msra.mxu0 0.0
  %338 = vmatprep.subr.mxu0 0.0
  %339 = vmatpush1.msra.mxu0 0.0
  %340 = vmatprep.subr.mxu0 0.0
  %341 = vmatpush1.msra.mxu0 0.0
  %342 = vmatprep.subr.mxu0 0.0
  %343 = vmatpush1.msra.mxu0 0.0
  %344 = vmatprep.subr.mxu0 %v83
  %345 = vmatpush1.msra.mxu0 %v82
  %346 = vmatprep.subr.mxu0 %v79
  %347 = vmatpush1.msra.mxu0 %v78
  %348 = vmatprep.subr.mxu0 0.0
  %349 = vmatpush2.msra.mxu0 0.0
  %350 = vmatprep.subr.mxu0 0.0
  %351 = vmatpush2.msra.mxu0 0.0
  %352 = vmatprep.subr.mxu0 0.0
  %353 = vmatpush2.msra.mxu0 0.0
  %354 = vmatprep.subr.mxu0 0.0
  %355 = vmatpush2.msra.mxu0 0.0
  %356 = vmatprep.subr.mxu0 0.0
  %357 = vmatpush2.msra.mxu0 0.0
  %358 = vmatprep.subr.mxu0 0.0
  %359 = vmatpush2.msra.mxu0 0.0
  %360 = vmatprep.subr.mxu0 0.0
  %361 = vmatpush2.msra.mxu0 0.0
  %362 = vmatprep.subr.mxu0 0.0
  %363 = vmatpush2.msra.mxu0 0.0
  %364 = vmatprep.subr.mxu0 0.0
  %365 = vmatpush2.msra.mxu0 0.0
  %366 = vmatprep.subr.mxu0 0.0
  %367 = vmatpush2.msra.mxu0 0.0
  %368 = vmatprep.subr.mxu0 0.0
  %369 = vmatpush2.msra.mxu0 0.0
  %370 = vmatprep.subr.mxu0 0.0
  %371 = vmatpush2.msra.mxu0 0.0
  %372 = vmatprep.subr.mxu0 0.0
  %373 = vmatpush2.msra.mxu0 0.0
  %374 = vmatprep.subr.mxu0 0.0
  %375 = vmatpush2.msra.mxu0 0.0
  %376 = vmatprep.subr.mxu0 0.0
  %377 = vmatpush2.msra.mxu0 0.0
  %378 = vmatprep.subr.mxu0 0.0
  %379 = vmatpush2.msra.mxu0 0.0
  %380 = vmatprep.mubr.f32.mxu0 0.0
  %381 = vmatmul.mubr.f32.gmra.mxu0 %v159
  %v382 = vpop.f32.mrf.mxu0
  %v383 = vadd.f32 %v299, %v382
  %v384 = vpop.f32.mrf.mxu0
  %v385 = vadd.f32 %v303, %v384
  %386 = vmatprep.mubr.f32.mxu0 0.0
  %387 = vmatmul.mubr.f32.gmra.mxu0 %v162
  %v388 = vpop.f32.mrf.mxu0
  %v389 = vadd.f32 %v299, %v388
  %v390 = vpop.f32.mrf.mxu0
  %v391 = vadd.f32 %v303, %v390
  %392 = vmatprep.mubr.f32.mxu0 0.0
  %393 = vmatmul.mubr.f32.gmra.mxu0 %v165
  %v394 = vpop.f32.mrf.mxu0
  %v395 = vadd.f32 %v299, %v394
  %v396 = vpop.f32.mrf.mxu0
  %v397 = vadd.f32 %v303, %v396
  %398 = vmatprep.mubr.f32.mxu0 0.0
  %399 = vmatmul.mubr.f32.gmra.mxu0 %v168
  %v400 = vpop.f32.mrf.mxu0
  %v401 = vadd.f32 %v299, %v400
  %v402 = vpop.f32.mrf.mxu0
  %v403 = vadd.f32 %v303, %v402
  %404 = vmatprep.mubr.f32.mxu0 0.0
  %405 = vmatmul.mubr.f32.gmra.mxu0 %v171
  %v406 = vpop.f32.mrf.mxu0
  %v407 = vadd.f32 %v299, %v406
  %v408 = vpop.f32.mrf.mxu0
  %v409 = vadd.f32 %v303, %v408
  %410 = vmatprep.mubr.f32.mxu0 0.0
  %411 = vmatmul.mubr.f32.gmra.mxu0 %v174
  %v412 = vpop.f32.mrf.mxu0
  %v413 = vadd.f32 %v299, %v412
  %v414 = vpop.f32.mrf.mxu0
  %v415 = vadd.f32 %v303, %v414
  %416 = vmatprep.mubr.f32.mxu0 0.0
  %417 = vmatmul.mubr.f32.gmra.mxu0 %v177
  %v418 = vpop.f32.mrf.mxu0
  %v419 = vadd.f32 %v299, %v418
  %v420 = vpop.f32.mrf.mxu0
  %v421 = vadd.f32 %v303, %v420
  %422 = vmatprep.mubr.f32.mxu0 0.0
  %423 = vmatmul.mubr.f32.gmra.mxu0 %v180
  %v424 = vpop.f32.mrf.mxu0
  %v425 = vadd.f32 %v299, %v424
  %v426 = vpop.f32.mrf.mxu0
  %v427 = vadd.f32 %v303, %v426
  %428 = vdwg.mxu0
  %429 = vmatprep.subr.mxu0 0.0
  %430 = vmatpush1.msra.mxu0 0.0
  %431 = vmatprep.subr.mxu0 0.0
  %432 = vmatpush1.msra.mxu0 0.0
  %433 = vmatprep.subr.mxu0 0.0
  %434 = vmatpush1.msra.mxu0 0.0
  %435 = vmatprep.subr.mxu0 0.0
  %436 = vmatpush1.msra.mxu0 0.0
  %437 = vmatprep.subr.mxu0 0.0
  %438 = vmatpush1.msra.mxu0 0.0
  %439 = vmatprep.subr.mxu0 0.0
  %440 = vmatpush1.msra.mxu0 0.0
  %441 = vmatprep.subr.mxu0 0.0
  %442 = vmatpush1.msra.mxu0 0.0
  %443 = vmatprep.subr.mxu0 0.0
  %444 = vmatpush1.msra.mxu0 0.0
  %445 = vmatprep.subr.mxu0 0.0
  %446 = vmatpush1.msra.mxu0 0.0
  %447 = vmatprep.subr.mxu0 0.0
  %448 = vmatpush1.msra.mxu0 0.0
  %449 = vmatprep.subr.mxu0 0.0
  %450 = vmatpush1.msra.mxu0 0.0
  %451 = vmatprep.subr.mxu0 0.0
  %452 = vmatpush1.msra.mxu0 0.0
  %453 = vmatprep.subr.mxu0 0.0
  %454 = vmatpush1.msra.mxu0 0.0
  %455 = vmatprep.subr.mxu0 0.0
  %456 = vmatpush1.msra.mxu0 0.0
  %457 = vmatprep.subr.mxu0 %v85
  %458 = vmatpush1.msra.mxu0 %v84
  %459 = vmatprep.subr.mxu0 %v81
  %460 = vmatpush1.msra.mxu0 %v80
  %461 = vmatprep.subr.mxu0 0.0
  %462 = vmatpush2.msra.mxu0 0.0
  %463 = vmatprep.subr.mxu0 0.0
  %464 = vmatpush2.msra.mxu0 0.0
  %465 = vmatprep.subr.mxu0 0.0
  %466 = vmatpush2.msra.mxu0 0.0
  %467 = vmatprep.subr.mxu0 0.0
  %468 = vmatpush2.msra.mxu0 0.0
  %469 = vmatprep.subr.mxu0 0.0
  %470 = vmatpush2.msra.mxu0 0.0
  %471 = vmatprep.subr.mxu0 0.0
  %472 = vmatpush2.msra.mxu0 0.0
  %473 = vmatprep.subr.mxu0 0.0
  %474 = vmatpush2.msra.mxu0 0.0
  %475 = vmatprep.subr.mxu0 0.0
  %476 = vmatpush2.msra.mxu0 0.0
  %477 = vmatprep.subr.mxu0 0.0
  %478 = vmatpush2.msra.mxu0 0.0
  %479 = vmatprep.subr.mxu0 0.0
  %480 = vmatpush2.msra.mxu0 0.0
  %481 = vmatprep.subr.mxu0 0.0
  %482 = vmatpush2.msra.mxu0 0.0
  %483 = vmatprep.subr.mxu0 0.0
  %484 = vmatpush2.msra.mxu0 0.0
  %485 = vmatprep.subr.mxu0 0.0
  %486 = vmatpush2.msra.mxu0 0.0
  %487 = vmatprep.subr.mxu0 0.0
  %488 = vmatpush2.msra.mxu0 0.0
  %489 = vmatprep.subr.mxu0 0.0
  %490 = vmatpush2.msra.mxu0 0.0
  %491 = vmatprep.subr.mxu0 0.0
  %492 = vmatpush2.msra.mxu0 0.0
  %493 = vmatprep.mubr.f32.mxu0 0.0
  %494 = vmatmul.mubr.f32.gmra.mxu0 %v159
  %v495 = vpop.f32.mrf.mxu0
  %v496 = vadd.f32 %v307, %v495
  %v497 = vpop.f32.mrf.mxu0
  %v498 = vadd.f32 %v311, %v497
  %499 = vmatprep.mubr.f32.mxu0 0.0
  %500 = vmatmul.mubr.f32.gmra.mxu0 %v162
  %v501 = vpop.f32.mrf.mxu0
  %v502 = vadd.f32 %v307, %v501
  %v503 = vpop.f32.mrf.mxu0
  %v504 = vadd.f32 %v311, %v503
  %505 = vmatprep.mubr.f32.mxu0 0.0
  %506 = vmatmul.mubr.f32.gmra.mxu0 %v165
  %v507 = vpop.f32.mrf.mxu0
  %v508 = vadd.f32 %v307, %v507
  %v509 = vpop.f32.mrf.mxu0
  %v510 = vadd.f32 %v311, %v509
  %511 = vmatprep.mubr.f32.mxu0 0.0
  %512 = vmatmul.mubr.f32.gmra.mxu0 %v168
  %v513 = vpop.f32.mrf.mxu0
  %v514 = vadd.f32 %v307, %v513
  %v515 = vpop.f32.mrf.mxu0
  %v516 = vadd.f32 %v311, %v515
  %517 = vmatprep.mubr.f32.mxu0 0.0
  %518 = vmatmul.mubr.f32.gmra.mxu0 %v171
  %v519 = vpop.f32.mrf.mxu0
  %v520 = vadd.f32 %v307, %v519
  %v521 = vpop.f32.mrf.mxu0
  %v522 = vadd.f32 %v311, %v521
  %523 = vmatprep.mubr.f32.mxu0 0.0
  %524 = vmatmul.mubr.f32.gmra.mxu0 %v174
  %v525 = vpop.f32.mrf.mxu0
  %v526 = vadd.f32 %v307, %v525
  %v527 = vpop.f32.mrf.mxu0
  %v528 = vadd.f32 %v311, %v527
  %529 = vmatprep.mubr.f32.mxu0 0.0
  %530 = vmatmul.mubr.f32.gmra.mxu0 %v177
  %v531 = vpop.f32.mrf.mxu0
  %v532 = vadd.f32 %v307, %v531
  %v533 = vpop.f32.mrf.mxu0
  %v534 = vadd.f32 %v311, %v533
  %535 = vmatprep.mubr.f32.mxu0 0.0
  %536 = vmatmul.mubr.f32.gmra.mxu0 %v180
  %v537 = vpop.f32.mrf.mxu0
  %v538 = vadd.f32 %v307, %v537
  %v539 = vpop.f32.mrf.mxu0
  %v540 = vadd.f32 %v311, %v539
  %541 = vdwg.mxu0
  %542 = vst [vmem:[#allocation4] sm:$0xff] %v383
  %543 = vst [vmem:[#allocation4 + $0x8] sm:$0xff] %v385
  %544 = vst [vmem:[#allocation4 + $0x10] sm:$0xff] %v496
  %545 = vst [vmem:[#allocation4 + $0x18] sm:$0xff] %v498
  %546 = vst [vmem:[#allocation4 + $0x20] sm:$0xff] %v389
  %547 = vst [vmem:[#allocation4 + $0x28] sm:$0xff] %v391
  %548 = vst [vmem:[#allocation4 + $0x30] sm:$0xff] %v502
  %549 = vst [vmem:[#allocation4 + $0x38] sm:$0xff] %v504
  %550 = vst [vmem:[#allocation4 + $0x40] sm:$0xff] %v395
  %551 = vst [vmem:[#allocation4 + $0x48] sm:$0xff] %v397
  %552 = vst [vmem:[#allocation4 + $0x50] sm:$0xff] %v508
  %553 = vst [vmem:[#allocation4 + $0x58] sm:$0xff] %v510
  %554 = vst [vmem:[#allocation4 + $0x60] sm:$0xff] %v401
  %555 = vst [vmem:[#allocation4 + $0x68] sm:$0xff] %v403
  %556 = vst [vmem:[#allocation4 + $0x70] sm:$0xff] %v514
  %557 = vst [vmem:[#allocation4 + $0x78] sm:$0xff] %v516
  %558 = vst [vmem:[#allocation4 + $0x80] sm:$0xff] %v407
  %559 = vst [vmem:[#allocation4 + $0x88] sm:$0xff] %v409
  %560 = vst [vmem:[#allocation4 + $0x90] sm:$0xff] %v520
  %561 = vst [vmem:[#allocation4 + $0x98] sm:$0xff] %v522
  %562 = vst [vmem:[#allocation4 + $0xa0] sm:$0xff] %v413
  %563 = vst [vmem:[#allocation4 + $0xa8] sm:$0xff] %v415
  %564 = vst [vmem:[#allocation4 + $0xb0] sm:$0xff] %v526
  %565 = vst [vmem:[#allocation4 + $0xb8] sm:$0xff] %v528
  %566 = vst [vmem:[#allocation4 + $0xc0] sm:$0xff] %v419
  %567 = vst [vmem:[#allocation4 + $0xc8] sm:$0xff] %v421
  %568 = vst [vmem:[#allocation4 + $0xd0] sm:$0xff] %v532
  %569 = vst [vmem:[#allocation4 + $0xd8] sm:$0xff] %v534
  %570 = vst [vmem:[#allocation4 + $0xe0] sm:$0xff] %v425
  %571 = vst [vmem:[#allocation4 + $0xe8] sm:$0xff] %v427
  %572 = vst [vmem:[#allocation4 + $0xf0] sm:$0xff] %v538
  %573 = vst [vmem:[#allocation4 + $0xf8] sm:$0xff] %v540
  %v574 = vld [vmem:[#allocation2] sm:$0xff]
  %vm575 = vcmask 261120
  %v577 = vsel %vm575, 0.0, 0
  %579 = vmatprep.subr.mxu0 0.0
  %580 = vmatpush1.msra.mxu0 0.0
  %581 = vmatprep.subr.mxu0 0.0
  %582 = vmatpush1.msra.mxu0 0.0
  %583 = vmatprep.subr.mxu0 0.0
  %584 = vmatpush1.msra.mxu0 0.0
  %585 = vmatprep.subr.mxu0 0.0
  %586 = vmatpush1.msra.mxu0 0.0
  %587 = vmatprep.subr.mxu0 0.0
  %588 = vmatpush1.msra.mxu0 0.0
  %589 = vmatprep.subr.mxu0 0.0
  %590 = vmatpush1.msra.mxu0 0.0
  %591 = vmatprep.subr.mxu0 0.0
  %592 = vmatpush1.msra.mxu0 0.0
  %593 = vmatprep.subr.mxu0 0.0
  %594 = vmatpush1.msra.mxu0 0.0
  %595 = vmatprep.subr.mxu0 0.0
  %596 = vmatpush1.msra.mxu0 0.0
  %597 = vmatprep.subr.mxu0 0.0
  %598 = vmatpush1.msra.mxu0 0.0
  %599 = vmatprep.subr.mxu0 0.0
  %600 = vmatpush1.msra.mxu0 0.0
  %601 = vmatprep.subr.mxu0 0.0
  %602 = vmatpush1.msra.mxu0 0.0
  %603 = vmatprep.subr.mxu0 0.0
  %604 = vmatpush1.msra.mxu0 %v76
  %605 = vmatprep.subr.mxu0 0.0
  %606 = vmatpush1.msra.mxu0 %v75
  %607 = vmatprep.subr.mxu0 0.0
  %608 = vmatpush1.msra.mxu0 %v74
  %609 = vmatprep.subr.mxu0 0.0
  %610 = vmatpush1.msra.mxu0 %v73
  %611 = vmatprep.subr.mxu0 0.0
  %612 = vmatpush2.msra.mxu0 0.0
  %613 = vmatprep.subr.mxu0 0.0
  %614 = vmatpush2.msra.mxu0 0.0
  %615 = vmatprep.subr.mxu0 0.0
  %616 = vmatpush2.msra.mxu0 0.0
  %617 = vmatprep.subr.mxu0 0.0
  %618 = vmatpush2.msra.mxu0 0.0
  %619 = vmatprep.subr.mxu0 0.0
  %620 = vmatpush2.msra.mxu0 0.0
  %621 = vmatprep.subr.mxu0 0.0
  %622 = vmatpush2.msra.mxu0 0.0
  %623 = vmatprep.subr.mxu0 0.0
  %624 = vmatpush2.msra.mxu0 0.0
  %625 = vmatprep.subr.mxu0 0.0
  %626 = vmatpush2.msra.mxu0 0.0
  %627 = vmatprep.subr.mxu0 0.0
  %628 = vmatpush2.msra.mxu0 0.0
  %629 = vmatprep.subr.mxu0 0.0
  %630 = vmatpush2.msra.mxu0 0.0
  %631 = vmatprep.subr.mxu0 0.0
  %632 = vmatpush2.msra.mxu0 0.0
  %633 = vmatprep.subr.mxu0 0.0
  %634 = vmatpush2.msra.mxu0 0.0
  %635 = vmatprep.subr.mxu0 0.0
  %636 = vmatpush2.msra.mxu0 0.0
  %637 = vmatprep.subr.mxu0 0.0
  %638 = vmatpush2.msra.mxu0 0.0
  %639 = vmatprep.subr.mxu0 0.0
  %640 = vmatpush2.msra.mxu0 0.0
  %641 = vmatprep.subr.mxu0 0.0
  %642 = vmatpush2.msra.mxu0 0.0
  %643 = vmatprep.mubr.f32.mxu0 0.0
  %644 = vmatmul.mubr.f32.gmra.mxu0 %v577
  %v645 = vpop.f32.mrf.mxu0
  %v646 = vadd.f32 0.0, %v645
  %v647 = vpop.f32.mrf.mxu0
  %648 = vdwg.mxu0
  %v649 = vadd.f32 %v574, %v646
  %v650 = vld [vmem:[#allocation4] sm:$0xff]
  %v651 = vld [vmem:[#allocation4 + $0x8] sm:$0xff]
  %v652 = vld [vmem:[#allocation4 + $0x10] sm:$0xff]
  %v653 = vld [vmem:[#allocation4 + $0x18] sm:$0xff]
  %654 = vmatprep.subr.mxu0 %v147
  %655 = vmatpush1.msra.mxu0 %v146
  %656 = vmatprep.subr.mxu0 %v143
  %657 = vmatpush1.msra.mxu0 %v142
  %658 = vmatprep.subr.mxu0 %v139
  %659 = vmatpush1.msra.mxu0 %v138
  %660 = vmatprep.subr.mxu0 %v135
  %661 = vmatpush1.msra.mxu0 %v134
  %662 = vmatprep.subr.mxu0 %v131
  %663 = vmatpush1.msra.mxu0 %v130
  %664 = vmatprep.subr.mxu0 %v127
  %665 = vmatpush1.msra.mxu0 %v126
  %666 = vmatprep.subr.mxu0 %v123
  %667 = vmatpush1.msra.mxu0 %v122
  %668 = vmatprep.subr.mxu0 %v119
  %669 = vmatpush1.msra.mxu0 %v118
  %670 = vmatprep.subr.mxu0 %v115
  %671 = vmatpush1.msra.mxu0 %v114
  %672 = vmatprep.subr.mxu0 %v111
  %673 = vmatpush1.msra.mxu0 %v110
  %674 = vmatprep.subr.mxu0 %v107
  %675 = vmatpush1.msra.mxu0 %v106
  %676 = vmatprep.subr.mxu0 %v103
  %677 = vmatpush1.msra.mxu0 %v102
  %678 = vmatprep.subr.mxu0 %v99
  %679 = vmatpush1.msra.mxu0 %v98
  %680 = vmatprep.subr.mxu0 %v95
  %681 = vmatpush1.msra.mxu0 %v94
  %682 = vmatprep.subr.mxu0 %v91
  %683 = vmatpush1.msra.mxu0 %v90
  %684 = vmatprep.subr.mxu0 %v87
  %685 = vmatpush1.msra.mxu0 %v86
  %686 = vmatprep.subr.mxu0 0.0
  %687 = vmatpush2.msra.mxu0 0.0
  %688 = vmatprep.subr.mxu0 0.0
  %689 = vmatpush2.msra.mxu0 0.0
  %690 = vmatprep.subr.mxu0 0.0
  %691 = vmatpush2.msra.mxu0 0.0
  %692 = vmatprep.subr.mxu0 0.0
  %693 = vmatpush2.msra.mxu0 0.0
  %694 = vmatprep.subr.mxu0 0.0
  %695 = vmatpush2.msra.mxu0 0.0
  %696 = vmatprep.subr.mxu0 0.0
  %697 = vmatpush2.msra.mxu0 0.0
  %698 = vmatprep.subr.mxu0 0.0
  %699 = vmatpush2.msra.mxu0 0.0
  %700 = vmatprep.subr.mxu0 0.0
  %701 = vmatpush2.msra.mxu0 0.0
  %702 = vmatprep.subr.mxu0 0.0
  %703 = vmatpush2.msra.mxu0 0.0
  %704 = vmatprep.subr.mxu0 0.0
  %705 = vmatpush2.msra.mxu0 0.0
  %706 = vmatprep.subr.mxu0 0.0
  %707 = vmatpush2.msra.mxu0 0.0
  %708 = vmatprep.subr.mxu0 0.0
  %709 = vmatpush2.msra.mxu0 0.0
  %710 = vmatprep.subr.mxu0 0.0
  %711 = vmatpush2.msra.mxu0 0.0
  %712 = vmatprep.subr.mxu0 0.0
  %713 = vmatpush2.msra.mxu0 0.0
  %714 = vmatprep.subr.mxu0 0.0
  %715 = vmatpush2.msra.mxu0 0.0
  %716 = vmatprep.subr.mxu0 0.0
  %717 = vmatpush2.msra.mxu0 0.0
  %718 = vmatprep.mubr.f32.mxu0 0.0
  %719 = vmatmul.mubr.f32.gmra.mxu0 0.0
  %v720 = vpop.f32.mrf.mxu0
  %v721 = vadd.f32 0.0, %v720
  %v722 = vpop.f32.mrf.mxu0
  %v723 = vadd.f32 0.0, %v722
  %724 = vdwg.mxu0
  %725 = vmatprep.subr.mxu0 %v149
  %726 = vmatpush1.msra.mxu0 %v148
  %727 = vmatprep.subr.mxu0 %v145
  %728 = vmatpush1.msra.mxu0 %v144
  %729 = vmatprep.subr.mxu0 %v141
  %730 = vmatpush1.msra.mxu0 %v140
  %731 = vmatprep.subr.mxu0 %v137
  %732 = vmatpush1.msra.mxu0 %v136
  %733 = vmatprep.subr.mxu0 %v133
  %734 = vmatpush1.msra.mxu0 %v132
  %735 = vmatprep.subr.mxu0 %v129
  %736 = vmatpush1.msra.mxu0 %v128
  %737 = vmatprep.subr.mxu0 %v125
  %738 = vmatpush1.msra.mxu0 %v124
  %739 = vmatprep.subr.mxu0 %v121
  %740 = vmatpush1.msra.mxu0 %v120
  %741 = vmatprep.subr.mxu0 %v117
  %742 = vmatpush1.msra.mxu0 %v116
  %743 = vmatprep.subr.mxu0 %v113
  %744 = vmatpush1.msra.mxu0 %v112
  %745 = vmatprep.subr.mxu0 %v109
  %746 = vmatpush1.msra.mxu0 %v108
  %747 = vmatprep.subr.mxu0 %v105
  %748 = vmatpush1.msra.mxu0 %v104
  %749 = vmatprep.subr.mxu0 %v101
  %750 = vmatpush1.msra.mxu0 %v100
  %751 = vmatprep.subr.mxu0 %v97
  %752 = vmatpush1.msra.mxu0 %v96
  %753 = vmatprep.subr.mxu0 %v93
  %754 = vmatpush1.msra.mxu0 %v92
  %755 = vmatprep.subr.mxu0 %v89
  %756 = vmatpush1.msra.mxu0 %v88
  %757 = vmatprep.subr.mxu0 0.0
  %758 = vmatpush2.msra.mxu0 0.0
  %759 = vmatprep.subr.mxu0 0.0
  %760 = vmatpush2.msra.mxu0 0.0
  %761 = vmatprep.subr.mxu0 0.0
  %762 = vmatpush2.msra.mxu0 0.0
  %763 = vmatprep.subr.mxu0 0.0
  %764 = vmatpush2.msra.mxu0 0.0
  %765 = vmatprep.subr.mxu0 0.0
  %766 = vmatpush2.msra.mxu0 0.0
  %767 = vmatprep.subr.mxu0 0.0
  %768 = vmatpush2.msra.mxu0 0.0
  %769 = vmatprep.subr.mxu0 0.0
  %770 = vmatpush2.msra.mxu0 0.0
  %771 = vmatprep.subr.mxu0 0.0
  %772 = vmatpush2.msra.mxu0 0.0
  %773 = vmatprep.subr.mxu0 0.0
  %774 = vmatpush2.msra.mxu0 0.0
  %775 = vmatprep.subr.mxu0 0.0
  %776 = vmatpush2.msra.mxu0 0.0
  %777 = vmatprep.subr.mxu0 0.0
  %778 = vmatpush2.msra.mxu0 0.0
  %779 = vmatprep.subr.mxu0 0.0
  %780 = vmatpush2.msra.mxu0 0.0
  %781 = vmatprep.subr.mxu0 0.0
  %782 = vmatpush2.msra.mxu0 0.0
  %783 = vmatprep.subr.mxu0 0.0
  %784 = vmatpush2.msra.mxu0 0.0
  %785 = vmatprep.subr.mxu0 0.0
  %786 = vmatpush2.msra.mxu0 0.0
  %787 = vmatprep.subr.mxu0 0.0
  %788 = vmatpush2.msra.mxu0 0.0
  %789 = vmatprep.mubr.f32.mxu0 0.0
  %790 = vmatmul.mubr.f32.gmra.mxu0 0.0
  %v791 = vpop.f32.mrf.mxu0
  %v792 = vadd.f32 0.0, %v791
  %v793 = vpop.f32.mrf.mxu0
  %v794 = vadd.f32 0.0, %v793
  %795 = vdwg.mxu0
  %v796 = vadd.f32 %v650, %v721
  %v797 = vadd.f32 %v651, %v723
  %v798 = vadd.f32 %v652, %v792
  %v799 = vadd.f32 %v653, %v794
  %v800 = vxor.u32 %v649, 2147483648
  %v801 = vmul.f32 %v800, 1.442695
  %v802 = vpow.pop %v801
  %v803 = vadd.f32 %v802, 1.0
  %v804 = vrcp.pop %v803
  %v805 = vmul.f32 1.0, %v804
  %v806 = vtanh.pop %v649
  %v807 = vmul.f32 %v805, 0.0
  %809 = vrot.lane.b32.xlu0 %v806, 64
  %v810 = vpop.permute.xlu0 %809
  %v812 = vmul.f32 %v805, %v810
  %814 = vrot.lane.b32.xlu0 %v812, 32
  %v815 = vpop.permute.xlu0 %814
  %v817 = vadd.f32 %v807, %v815
  %v818 = vtanh.pop %v817
  %820 = vrot.lane.b32.xlu0 %v818, 64
  %v821 = vpop.permute.xlu0 %820
  %v823 = vmul.f32 %v805, %v821
  %v824 = vxor.u32 %v796, 2147483648
  %v825 = vxor.u32 %v797, 2147483648
  %v826 = vmul.f32 %v824, 1.442695
  %v827 = vpow.pop %v826
  %v828 = vmul.f32 %v825, 1.442695
  %v829 = vpow.pop %v828
  %v830 = vadd.f32 %v827, 1.0
  %v831 = vadd.f32 %v829, 1.0
  %v832 = vrcp.pop %v830
  %v833 = vmul.f32 1.0, %v832
  %v834 = vrcp.pop %v831
  %v835 = vmul.f32 1.0, %v834
  %v836 = vtanh.pop %v798
  %v837 = vxor.u32 %v799, 2147483648
  %v838 = vmul.f32 %v837, 1.442695
  %v839 = vpow.pop %v838
  %v840 = vadd.f32 %v839, 1.0
  %v841 = vrcp.pop %v840
  %v842 = vmul.f32 1.0, %v841
  %v843 = vmul.f32 %v835, 0.0
  %v844 = vmul.f32 %v833, %v836
  %v845 = vadd.f32 %v843, %v844
  %v846 = vtanh.pop %v845
  %v847 = vmul.f32 %v842, %v846
  %849 = vrot.lane.b32.xlu0 %v823, 32
  %v850 = vpop.permute.xlu0 %849
  %852 = vst.msk [vmem:[#allocation3] sm:$0xff] %vm575, %v850
  %853 = vst [vmem:[#allocation5] sm:$0xff] %v847
  %v854 = vld [vmem:[#allocation2 + $0x8] sm:$0xff]
  %v855 = vsel %vm575, %v850, 0
  %857 = vmatprep.subr.mxu0 0.0
  %858 = vmatpush1.msra.mxu0 0.0
  %859 = vmatprep.subr.mxu0 0.0
  %860 = vmatpush1.msra.mxu0 0.0
  %861 = vmatprep.subr.mxu0 0.0
  %862 = vmatpush1.msra.mxu0 0.0
  %863 = vmatprep.subr.mxu0 0.0
  %864 = vmatpush1.msra.mxu0 0.0
  %865 = vmatprep.subr.mxu0 0.0
  %866 = vmatpush1.msra.mxu0 0.0
  %867 = vmatprep.subr.mxu0 0.0
  %868 = vmatpush1.msra.mxu0 0.0
  %869 = vmatprep.subr.mxu0 0.0
  %870 = vmatpush1.msra.mxu0 0.0
  %871 = vmatprep.subr.mxu0 0.0
  %872 = vmatpush1.msra.mxu0 0.0
  %873 = vmatprep.subr.mxu0 0.0
  %874 = vmatpush1.msra.mxu0 0.0
  %875 = vmatprep.subr.mxu0 0.0
  %876 = vmatpush1.msra.mxu0 0.0
  %877 = vmatprep.subr.mxu0 0.0
  %878 = vmatpush1.msra.mxu0 0.0
  %879 = vmatprep.subr.mxu0 0.0
  %880 = vmatpush1.msra.mxu0 0.0
  %881 = vmatprep.subr.mxu0 0.0
  %882 = vmatpush1.msra.mxu0 %v76
  %883 = vmatprep.subr.mxu0 0.0
  %884 = vmatpush1.msra.mxu0 %v75
  %885 = vmatprep.subr.mxu0 0.0
  %886 = vmatpush1.msra.mxu0 %v74
  %887 = vmatprep.subr.mxu0 0.0
  %888 = vmatpush1.msra.mxu0 %v73
  %889 = vmatprep.subr.mxu0 0.0
  %890 = vmatpush2.msra.mxu0 0.0
  %891 = vmatprep.subr.mxu0 0.0
  %892 = vmatpush2.msra.mxu0 0.0
  %893 = vmatprep.subr.mxu0 0.0
  %894 = vmatpush2.msra.mxu0 0.0
  %895 = vmatprep.subr.mxu0 0.0
  %896 = vmatpush2.msra.mxu0 0.0
  %897 = vmatprep.subr.mxu0 0.0
  %898 = vmatpush2.msra.mxu0 0.0
  %899 = vmatprep.subr.mxu0 0.0
  %900 = vmatpush2.msra.mxu0 0.0
  %901 = vmatprep.subr.mxu0 0.0
  %902 = vmatpush2.msra.mxu0 0.0
  %903 = vmatprep.subr.mxu0 0.0
  %904 = vmatpush2.msra.mxu0 0.0
  %905 = vmatprep.subr.mxu0 0.0
  %906 = vmatpush2.msra.mxu0 0.0
  %907 = vmatprep.subr.mxu0 0.0
  %908 = vmatpush2.msra.mxu0 0.0
  %909 = vmatprep.subr.mxu0 0.0
  %910 = vmatpush2.msra.mxu0 0.0
  %911 = vmatprep.subr.mxu0 0.0
  %912 = vmatpush2.msra.mxu0 0.0
  %913 = vmatprep.subr.mxu0 0.0
  %914 = vmatpush2.msra.mxu0 0.0
  %915 = vmatprep.subr.mxu0 0.0
  %916 = vmatpush2.msra.mxu0 0.0
  %917 = vmatprep.subr.mxu0 0.0
  %918 = vmatpush2.msra.mxu0 0.0
  %919 = vmatprep.subr.mxu0 0.0
  %920 = vmatpush2.msra.mxu0 0.0
  %921 = vmatprep.mubr.f32.mxu0 0.0
  %922 = vmatmul.mubr.f32.gmra.mxu0 %v855
  %v923 = vpop.f32.mrf.mxu0
  %v924 = vadd.f32 0.0, %v923
  %v925 = vpop.f32.mrf.mxu0
  %926 = vdwg.mxu0
  %v927 = vadd.f32 %v854, %v924
  %v928 = vld [vmem:[#allocation4 + $0x20] sm:$0xff]
  %v929 = vld [vmem:[#allocation4 + $0x28] sm:$0xff]
  %v930 = vld [vmem:[#allocation4 + $0x30] sm:$0xff]
  %v931 = vld [vmem:[#allocation4 + $0x38] sm:$0xff]
  %932 = vmatprep.subr.mxu0 %v147
  %933 = vmatpush1.msra.mxu0 %v146
  %934 = vmatprep.subr.mxu0 %v143
  %935 = vmatpush1.msra.mxu0 %v142
  %936 = vmatprep.subr.mxu0 %v139
  %937 = vmatpush1.msra.mxu0 %v138
  %938 = vmatprep.subr.mxu0 %v135
  %939 = vmatpush1.msra.mxu0 %v134
  %940 = vmatprep.subr.mxu0 %v131
  %941 = vmatpush1.msra.mxu0 %v130
  %942 = vmatprep.subr.mxu0 %v127
  %943 = vmatpush1.msra.mxu0 %v126
  %944 = vmatprep.subr.mxu0 %v123
  %945 = vmatpush1.msra.mxu0 %v122
  %946 = vmatprep.subr.mxu0 %v119
  %947 = vmatpush1.msra.mxu0 %v118
  %948 = vmatprep.subr.mxu0 %v115
  %949 = vmatpush1.msra.mxu0 %v114
  %950 = vmatprep.subr.mxu0 %v111
  %951 = vmatpush1.msra.mxu0 %v110
  %952 = vmatprep.subr.mxu0 %v107
  %953 = vmatpush1.msra.mxu0 %v106
  %954 = vmatprep.subr.mxu0 %v103
  %955 = vmatpush1.msra.mxu0 %v102
  %956 = vmatprep.subr.mxu0 %v99
  %957 = vmatpush1.msra.mxu0 %v98
  %958 = vmatprep.subr.mxu0 %v95
  %959 = vmatpush1.msra.mxu0 %v94
  %960 = vmatprep.subr.mxu0 %v91
  %961 = vmatpush1.msra.mxu0 %v90
  %962 = vmatprep.subr.mxu0 %v87
  %963 = vmatpush1.msra.mxu0 %v86
  %964 = vmatprep.subr.mxu0 0.0
  %965 = vmatpush2.msra.mxu0 0.0
  %966 = vmatprep.subr.mxu0 0.0
  %967 = vmatpush2.msra.mxu0 0.0
  %968 = vmatprep.subr.mxu0 0.0
  %969 = vmatpush2.msra.mxu0 0.0
  %970 = vmatprep.subr.mxu0 0.0
  %971 = vmatpush2.msra.mxu0 0.0
  %972 = vmatprep.subr.mxu0 0.0
  %973 = vmatpush2.msra.mxu0 0.0
  %974 = vmatprep.subr.mxu0 0.0
  %975 = vmatpush2.msra.mxu0 0.0
  %976 = vmatprep.subr.mxu0 0.0
  %977 = vmatpush2.msra.mxu0 0.0
  %978 = vmatprep.subr.mxu0 0.0
  %979 = vmatpush2.msra.mxu0 0.0
  %980 = vmatprep.subr.mxu0 0.0
  %981 = vmatpush2.msra.mxu0 0.0
  %982 = vmatprep.subr.mxu0 0.0
  %983 = vmatpush2.msra.mxu0 0.0
  %984 = vmatprep.subr.mxu0 0.0
  %985 = vmatpush2.msra.mxu0 0.0
  %986 = vmatprep.subr.mxu0 0.0
  %987 = vmatpush2.msra.mxu0 0.0
  %988 = vmatprep.subr.mxu0 0.0
  %989 = vmatpush2.msra.mxu0 0.0
  %990 = vmatprep.subr.mxu0 0.0
  %991 = vmatpush2.msra.mxu0 0.0
  %992 = vmatprep.subr.mxu0 0.0
  %993 = vmatpush2.msra.mxu0 0.0
  %994 = vmatprep.subr.mxu0 0.0
  %995 = vmatpush2.msra.mxu0 0.0
  %996 = vmatprep.mubr.f32.mxu0 0.0
  %997 = vmatmul.mubr.f32.gmra.mxu0 %v847
  %v998 = vpop.f32.mrf.mxu0
  %v999 = vadd.f32 0.0, %v998
  %v1000 = vpop.f32.mrf.mxu0
  %v1001 = vadd.f32 0.0, %v1000
  %1002 = vdwg.mxu0
  %1003 = vmatprep.subr.mxu0 %v149
  %1004 = vmatpush1.msra.mxu0 %v148
  %1005 = vmatprep.subr.mxu0 %v145
  %1006 = vmatpush1.msra.mxu0 %v144
  %1007 = vmatprep.subr.mxu0 %v141
  %1008 = vmatpush1.msra.mxu0 %v140
  %1009 = vmatprep.subr.mxu0 %v137
  %1010 = vmatpush1.msra.mxu0 %v136
  %1011 = vmatprep.subr.mxu0 %v133
  %1012 = vmatpush1.msra.mxu0 %v132
  %1013 = vmatprep.subr.mxu0 %v129
  %1014 = vmatpush1.msra.mxu0 %v128
  %1015 = vmatprep.subr.mxu0 %v125
  %1016 = vmatpush1.msra.mxu0 %v124
  %1017 = vmatprep.subr.mxu0 %v121
  %1018 = vmatpush1.msra.mxu0 %v120
  %1019 = vmatprep.subr.mxu0 %v117
  %1020 = vmatpush1.msra.mxu0 %v116
  %1021 = vmatprep.subr.mxu0 %v113
  %1022 = vmatpush1.msra.mxu0 %v112
  %1023 = vmatprep.subr.mxu0 %v109
  %1024 = vmatpush1.msra.mxu0 %v108
  %1025 = vmatprep.subr.mxu0 %v105
  %1026 = vmatpush1.msra.mxu0 %v104
  %1027 = vmatprep.subr.mxu0 %v101
  %1028 = vmatpush1.msra.mxu0 %v100
  %1029 = vmatprep.subr.mxu0 %v97
  %1030 = vmatpush1.msra.mxu0 %v96
  %1031 = vmatprep.subr.mxu0 %v93
  %1032 = vmatpush1.msra.mxu0 %v92
  %1033 = vmatprep.subr.mxu0 %v89
  %1034 = vmatpush1.msra.mxu0 %v88
  %1035 = vmatprep.subr.mxu0 0.0
  %1036 = vmatpush2.msra.mxu0 0.0
  %1037 = vmatprep.subr.mxu0 0.0
  %1038 = vmatpush2.msra.mxu0 0.0
  %1039 = vmatprep.subr.mxu0 0.0
  %1040 = vmatpush2.msra.mxu0 0.0
  %1041 = vmatprep.subr.mxu0 0.0
  %1042 = vmatpush2.msra.mxu0 0.0
  %1043 = vmatprep.subr.mxu0 0.0
  %1044 = vmatpush2.msra.mxu0 0.0
  %1045 = vmatprep.subr.mxu0 0.0
  %1046 = vmatpush2.msra.mxu0 0.0
  %1047 = vmatprep.subr.mxu0 0.0
  %1048 = vmatpush2.msra.mxu0 0.0
  %1049 = vmatprep.subr.mxu0 0.0
  %1050 = vmatpush2.msra.mxu0 0.0
  %1051 = vmatprep.subr.mxu0 0.0
  %1052 = vmatpush2.msra.mxu0 0.0
  %1053 = vmatprep.subr.mxu0 0.0
  %1054 = vmatpush2.msra.mxu0 0.0
  %1055 = vmatprep.subr.mxu0 0.0
  %1056 = vmatpush2.msra.mxu0 0.0
  %1057 = vmatprep.subr.mxu0 0.0
  %1058 = vmatpush2.msra.mxu0 0.0
  %1059 = vmatprep.subr.mxu0 0.0
  %1060 = vmatpush2.msra.mxu0 0.0
  %1061 = vmatprep.subr.mxu0 0.0
  %1062 = vmatpush2.msra.mxu0 0.0
  %1063 = vmatprep.subr.mxu0 0.0
  %1064 = vmatpush2.msra.mxu0 0.0
  %1065 = vmatprep.subr.mxu0 0.0
  %1066 = vmatpush2.msra.mxu0 0.0
  %1067 = vmatprep.mubr.f32.mxu0 0.0
  %1068 = vmatmul.mubr.f32.gmra.mxu0 %v847
  %v1069 = vpop.f32.mrf.mxu0
  %v1070 = vadd.f32 0.0, %v1069
  %v1071 = vpop.f32.mrf.mxu0
  %v1072 = vadd.f32 0.0, %v1071
  %1073 = vdwg.mxu0
  %v1074 = vadd.f32 %v928, %v999
  %v1075 = vadd.f32 %v929, %v1001
  %v1076 = vadd.f32 %v930, %v1070
  %v1077 = vadd.f32 %v931, %v1072
  %v1078 = vxor.u32 %v927, 2147483648
  %v1079 = vmul.f32 %v1078, 1.442695
  %v1080 = vpow.pop %v1079
  %v1081 = vadd.f32 %v1080, 1.0
  %v1082 = vrcp.pop %v1081
  %v1083 = vmul.f32 1.0, %v1082
  %v1084 = vtanh.pop %v927
  %v1085 = vmul.f32 %v1083, %v817
  %1087 = vrot.lane.b32.xlu0 %v1084, 64
  %v1088 = vpop.permute.xlu0 %1087
  %v1090 = vmul.f32 %v1083, %v1088
  %1092 = vrot.lane.b32.xlu0 %v1090, 32
  %v1093 = vpop.permute.xlu0 %1092
  %v1095 = vadd.f32 %v1085, %v1093
  %v1096 = vtanh.pop %v1095
  %1098 = vrot.lane.b32.xlu0 %v1096, 64
  %v1099 = vpop.permute.xlu0 %1098
  %v1101 = vmul.f32 %v1083, %v1099
  %v1102 = vxor.u32 %v1074, 2147483648
  %v1103 = vxor.u32 %v1075, 2147483648
  %v1104 = vmul.f32 %v1102, 1.442695
  %v1105 = vpow.pop %v1104
  %v1106 = vmul.f32 %v1103, 1.442695
  %v1107 = vpow.pop %v1106
  %v1108 = vadd.f32 %v1105, 1.0
  %v1109 = vadd.f32 %v1107, 1.0
  %v1110 = vrcp.pop %v1108
  %v1111 = vmul.f32 1.0, %v1110
  %v1112 = vrcp.pop %v1109
  %v1113 = vmul.f32 1.0, %v1112
  %v1114 = vtanh.pop %v1076
  %v1115 = vxor.u32 %v1077, 2147483648
  %v1116 = vmul.f32 %v1115, 1.442695
  %v1117 = vpow.pop %v1116
  %v1118 = vadd.f32 %v1117, 1.0
  %v1119 = vrcp.pop %v1118
  %v1120 = vmul.f32 1.0, %v1119
  %v1121 = vmul.f32 %v1113, %v845
  %v1122 = vmul.f32 %v1111, %v1114
  %v1123 = vadd.f32 %v1121, %v1122
  %v1124 = vtanh.pop %v1123
  %v1125 = vmul.f32 %v1120, %v1124
  %1127 = vrot.lane.b32.xlu0 %v1101, 32
  %v1128 = vpop.permute.xlu0 %1127
  %1130 = vst.msk [vmem:[#allocation3 + $0x8] sm:$0xff] %vm575, %v1128
  %1131 = vst [vmem:[#allocation5 + $0x8] sm:$0xff] %v1125
  %v1132 = vld [vmem:[#allocation2 + $0x10] sm:$0xff]
  %v1133 = vsel %vm575, %v1128, 0
  %1135 = vmatprep.subr.mxu0 0.0
  %1136 = vmatpush1.msra.mxu0 0.0
  %1137 = vmatprep.subr.mxu0 0.0
  %1138 = vmatpush1.msra.mxu0 0.0
  %1139 = vmatprep.subr.mxu0 0.0
  %1140 = vmatpush1.msra.mxu0 0.0
  %1141 = vmatprep.subr.mxu0 0.0
  %1142 = vmatpush1.msra.mxu0 0.0
  %1143 = vmatprep.subr.mxu0 0.0
  %1144 = vmatpush1.msra.mxu0 0.0
  %1145 = vmatprep.subr.mxu0 0.0
  %1146 = vmatpush1.msra.mxu0 0.0
  %1147 = vmatprep.subr.mxu0 0.0
  %1148 = vmatpush1.msra.mxu0 0.0
  %1149 = vmatprep.subr.mxu0 0.0
  %1150 = vmatpush1.msra.mxu0 0.0
  %1151 = vmatprep.subr.mxu0 0.0
  %1152 = vmatpush1.msra.mxu0 0.0
  %1153 = vmatprep.subr.mxu0 0.0
  %1154 = vmatpush1.msra.mxu0 0.0
  %1155 = vmatprep.subr.mxu0 0.0
  %1156 = vmatpush1.msra.mxu0 0.0
  %1157 = vmatprep.subr.mxu0 0.0
  %1158 = vmatpush1.msra.mxu0 0.0
  %1159 = vmatprep.subr.mxu0 0.0
  %1160 = vmatpush1.msra.mxu0 %v76
  %1161 = vmatprep.subr.mxu0 0.0
  %1162 = vmatpush1.msra.mxu0 %v75
  %1163 = vmatprep.subr.mxu0 0.0
  %1164 = vmatpush1.msra.mxu0 %v74
  %1165 = vmatprep.subr.mxu0 0.0
  %1166 = vmatpush1.msra.mxu0 %v73
  %1167 = vmatprep.subr.mxu0 0.0
  %1168 = vmatpush2.msra.mxu0 0.0
  %1169 = vmatprep.subr.mxu0 0.0
  %1170 = vmatpush2.msra.mxu0 0.0
  %1171 = vmatprep.subr.mxu0 0.0
  %1172 = vmatpush2.msra.mxu0 0.0
  %1173 = vmatprep.subr.mxu0 0.0
  %1174 = vmatpush2.msra.mxu0 0.0
  %1175 = vmatprep.subr.mxu0 0.0
  %1176 = vmatpush2.msra.mxu0 0.0
  %1177 = vmatprep.subr.mxu0 0.0
  %1178 = vmatpush2.msra.mxu0 0.0
  %1179 = vmatprep.subr.mxu0 0.0
  %1180 = vmatpush2.msra.mxu0 0.0
  %1181 = vmatprep.subr.mxu0 0.0
  %1182 = vmatpush2.msra.mxu0 0.0
  %1183 = vmatprep.subr.mxu0 0.0
  %1184 = vmatpush2.msra.mxu0 0.0
  %1185 = vmatprep.subr.mxu0 0.0
  %1186 = vmatpush2.msra.mxu0 0.0
  %1187 = vmatprep.subr.mxu0 0.0
  %1188 = vmatpush2.msra.mxu0 0.0
  %1189 = vmatprep.subr.mxu0 0.0
  %1190 = vmatpush2.msra.mxu0 0.0
  %1191 = vmatprep.subr.mxu0 0.0
  %1192 = vmatpush2.msra.mxu0 0.0
  %1193 = vmatprep.subr.mxu0 0.0
  %1194 = vmatpush2.msra.mxu0 0.0
  %1195 = vmatprep.subr.mxu0 0.0
  %1196 = vmatpush2.msra.mxu0 0.0
  %1197 = vmatprep.subr.mxu0 0.0
  %1198 = vmatpush2.msra.mxu0 0.0
  %1199 = vmatprep.mubr.f32.mxu0 0.0
  %1200 = vmatmul.mubr.f32.gmra.mxu0 %v1133
  %v1201 = vpop.f32.mrf.mxu0
  %v1202 = vadd.f32 0.0, %v1201
  %v1203 = vpop.f32.mrf.mxu0
  %1204 = vdwg.mxu0
  %v1205 = vadd.f32 %v1132, %v1202
  %v1206 = vld [vmem:[#allocation4 + $0x40] sm:$0xff]
  %v1207 = vld [vmem:[#allocation4 + $0x48] sm:$0xff]
  %v1208 = vld [vmem:[#allocation4 + $0x50] sm:$0xff]
  %v1209 = vld [vmem:[#allocation4 + $0x58] sm:$0xff]
  %1210 = vmatprep.subr.mxu0 %v147
  %1211 = vmatpush1.msra.mxu0 %v146
  %1212 = vmatprep.subr.mxu0 %v143
  %1213 = vmatpush1.msra.mxu0 %v142
  %1214 = vmatprep.subr.mxu0 %v139
  %1215 = vmatpush1.msra.mxu0 %v138
  %1216 = vmatprep.subr.mxu0 %v135
  %1217 = vmatpush1.msra.mxu0 %v134
  %1218 = vmatprep.subr.mxu0 %v131
  %1219 = vmatpush1.msra.mxu0 %v130
  %1220 = vmatprep.subr.mxu0 %v127
  %1221 = vmatpush1.msra.mxu0 %v126
  %1222 = vmatprep.subr.mxu0 %v123
  %1223 = vmatpush1.msra.mxu0 %v122
  %1224 = vmatprep.subr.mxu0 %v119
  %1225 = vmatpush1.msra.mxu0 %v118
  %1226 = vmatprep.subr.mxu0 %v115
  %1227 = vmatpush1.msra.mxu0 %v114
  %1228 = vmatprep.subr.mxu0 %v111
  %1229 = vmatpush1.msra.mxu0 %v110
  %1230 = vmatprep.subr.mxu0 %v107
  %1231 = vmatpush1.msra.mxu0 %v106
  %1232 = vmatprep.subr.mxu0 %v103
  %1233 = vmatpush1.msra.mxu0 %v102
  %1234 = vmatprep.subr.mxu0 %v99
  %1235 = vmatpush1.msra.mxu0 %v98
  %1236 = vmatprep.subr.mxu0 %v95
  %1237 = vmatpush1.msra.mxu0 %v94
  %1238 = vmatprep.subr.mxu0 %v91
  %1239 = vmatpush1.msra.mxu0 %v90
  %1240 = vmatprep.subr.mxu0 %v87
  %1241 = vmatpush1.msra.mxu0 %v86
  %1242 = vmatprep.subr.mxu0 0.0
  %1243 = vmatpush2.msra.mxu0 0.0
  %1244 = vmatprep.subr.mxu0 0.0
  %1245 = vmatpush2.msra.mxu0 0.0
  %1246 = vmatprep.subr.mxu0 0.0
  %1247 = vmatpush2.msra.mxu0 0.0
  %1248 = vmatprep.subr.mxu0 0.0
  %1249 = vmatpush2.msra.mxu0 0.0
  %1250 = vmatprep.subr.mxu0 0.0
  %1251 = vmatpush2.msra.mxu0 0.0
  %1252 = vmatprep.subr.mxu0 0.0
  %1253 = vmatpush2.msra.mxu0 0.0
  %1254 = vmatprep.subr.mxu0 0.0
  %1255 = vmatpush2.msra.mxu0 0.0
  %1256 = vmatprep.subr.mxu0 0.0
  %1257 = vmatpush2.msra.mxu0 0.0
  %1258 = vmatprep.subr.mxu0 0.0
  %1259 = vmatpush2.msra.mxu0 0.0
  %1260 = vmatprep.subr.mxu0 0.0
  %1261 = vmatpush2.msra.mxu0 0.0
  %1262 = vmatprep.subr.mxu0 0.0
  %1263 = vmatpush2.msra.mxu0 0.0
  %1264 = vmatprep.subr.mxu0 0.0
  %1265 = vmatpush2.msra.mxu0 0.0
  %1266 = vmatprep.subr.mxu0 0.0
  %1267 = vmatpush2.msra.mxu0 0.0
  %1268 = vmatprep.subr.mxu0 0.0
  %1269 = vmatpush2.msra.mxu0 0.0
  %1270 = vmatprep.subr.mxu0 0.0
  %1271 = vmatpush2.msra.mxu0 0.0
  %1272 = vmatprep.subr.mxu0 0.0
  %1273 = vmatpush2.msra.mxu0 0.0
  %1274 = vmatprep.mubr.f32.mxu0 0.0
  %1275 = vmatmul.mubr.f32.gmra.mxu0 %v1125
  %v1276 = vpop.f32.mrf.mxu0
  %v1277 = vadd.f32 0.0, %v1276
  %v1278 = vpop.f32.mrf.mxu0
  %v1279 = vadd.f32 0.0, %v1278
  %1280 = vdwg.mxu0
  %1281 = vmatprep.subr.mxu0 %v149
  %1282 = vmatpush1.msra.mxu0 %v148
  %1283 = vmatprep.subr.mxu0 %v145
  %1284 = vmatpush1.msra.mxu0 %v144
  %1285 = vmatprep.subr.mxu0 %v141
  %1286 = vmatpush1.msra.mxu0 %v140
  %1287 = vmatprep.subr.mxu0 %v137
  %1288 = vmatpush1.msra.mxu0 %v136
  %1289 = vmatprep.subr.mxu0 %v133
  %1290 = vmatpush1.msra.mxu0 %v132
  %1291 = vmatprep.subr.mxu0 %v129
  %1292 = vmatpush1.msra.mxu0 %v128
  %1293 = vmatprep.subr.mxu0 %v125
  %1294 = vmatpush1.msra.mxu0 %v124
  %1295 = vmatprep.subr.mxu0 %v121
  %1296 = vmatpush1.msra.mxu0 %v120
  %1297 = vmatprep.subr.mxu0 %v117
  %1298 = vmatpush1.msra.mxu0 %v116
  %1299 = vmatprep.subr.mxu0 %v113
  %1300 = vmatpush1.msra.mxu0 %v112
  %1301 = vmatprep.subr.mxu0 %v109
  %1302 = vmatpush1.msra.mxu0 %v108
  %1303 = vmatprep.subr.mxu0 %v105
  %1304 = vmatpush1.msra.mxu0 %v104
  %1305 = vmatprep.subr.mxu0 %v101
  %1306 = vmatpush1.msra.mxu0 %v100
  %1307 = vmatprep.subr.mxu0 %v97
  %1308 = vmatpush1.msra.mxu0 %v96
  %1309 = vmatprep.subr.mxu0 %v93
  %1310 = vmatpush1.msra.mxu0 %v92
  %1311 = vmatprep.subr.mxu0 %v89
  %1312 = vmatpush1.msra.mxu0 %v88
  %1313 = vmatprep.subr.mxu0 0.0
  %1314 = vmatpush2.msra.mxu0 0.0
  %1315 = vmatprep.subr.mxu0 0.0
  %1316 = vmatpush2.msra.mxu0 0.0
  %1317 = vmatprep.subr.mxu0 0.0
  %1318 = vmatpush2.msra.mxu0 0.0
  %1319 = vmatprep.subr.mxu0 0.0
  %1320 = vmatpush2.msra.mxu0 0.0
  %1321 = vmatprep.subr.mxu0 0.0
  %1322 = vmatpush2.msra.mxu0 0.0
  %1323 = vmatprep.subr.mxu0 0.0
  %1324 = vmatpush2.msra.mxu0 0.0
  %1325 = vmatprep.subr.mxu0 0.0
  %1326 = vmatpush2.msra.mxu0 0.0
  %1327 = vmatprep.subr.mxu0 0.0
  %1328 = vmatpush2.msra.mxu0 0.0
  %1329 = vmatprep.subr.mxu0 0.0
  %1330 = vmatpush2.msra.mxu0 0.0
  %1331 = vmatprep.subr.mxu0 0.0
  %1332 = vmatpush2.msra.mxu0 0.0
  %1333 = vmatprep.subr.mxu0 0.0
  %1334 = vmatpush2.msra.mxu0 0.0
  %1335 = vmatprep.subr.mxu0 0.0
  %1336 = vmatpush2.msra.mxu0 0.0
  %1337 = vmatprep.subr.mxu0 0.0
  %1338 = vmatpush2.msra.mxu0 0.0
  %1339 = vmatprep.subr.mxu0 0.0
  %1340 = vmatpush2.msra.mxu0 0.0
  %1341 = vmatprep.subr.mxu0 0.0
  %1342 = vmatpush2.msra.mxu0 0.0
  %1343 = vmatprep.subr.mxu0 0.0
  %1344 = vmatpush2.msra.mxu0 0.0
  %1345 = vmatprep.mubr.f32.mxu0 0.0
  %1346 = vmatmul.mubr.f32.gmra.mxu0 %v1125
  %v1347 = vpop.f32.mrf.mxu0
  %v1348 = vadd.f32 0.0, %v1347
  %v1349 = vpop.f32.mrf.mxu0
  %v1350 = vadd.f32 0.0, %v1349
  %1351 = vdwg.mxu0
  %v1352 = vadd.f32 %v1206, %v1277
  %v1353 = vadd.f32 %v1207, %v1279
  %v1354 = vadd.f32 %v1208, %v1348
  %v1355 = vadd.f32 %v1209, %v1350
  %v1356 = vxor.u32 %v1205, 2147483648
  %v1357 = vmul.f32 %v1356, 1.442695
  %v1358 = vpow.pop %v1357
  %v1359 = vadd.f32 %v1358, 1.0
  %v1360 = vrcp.pop %v1359
  %v1361 = vmul.f32 1.0, %v1360
  %v1362 = vtanh.pop %v1205
  %v1363 = vmul.f32 %v1361, %v1095
  %1365 = vrot.lane.b32.xlu0 %v1362, 64
  %v1366 = vpop.permute.xlu0 %1365
  %v1368 = vmul.f32 %v1361, %v1366
  %1370 = vrot.lane.b32.xlu0 %v1368, 32
  %v1371 = vpop.permute.xlu0 %1370
  %v1373 = vadd.f32 %v1363, %v1371
  %v1374 = vtanh.pop %v1373
  %1376 = vrot.lane.b32.xlu0 %v1374, 64
  %v1377 = vpop.permute.xlu0 %1376
  %v1379 = vmul.f32 %v1361, %v1377
  %v1380 = vxor.u32 %v1352, 2147483648
  %v1381 = vxor.u32 %v1353, 2147483648
  %v1382 = vmul.f32 %v1380, 1.442695
  %v1383 = vpow.pop %v1382
  %v1384 = vmul.f32 %v1381, 1.442695
  %v1385 = vpow.pop %v1384
  %v1386 = vadd.f32 %v1383, 1.0
  %v1387 = vadd.f32 %v1385, 1.0
  %v1388 = vrcp.pop %v1386
  %v1389 = vmul.f32 1.0, %v1388
  %v1390 = vrcp.pop %v1387
  %v1391 = vmul.f32 1.0, %v1390
  %v1392 = vtanh.pop %v1354
  %v1393 = vxor.u32 %v1355, 2147483648
  %v1394 = vmul.f32 %v1393, 1.442695
  %v1395 = vpow.pop %v1394
  %v1396 = vadd.f32 %v1395, 1.0
  %v1397 = vrcp.pop %v1396
  %v1398 = vmul.f32 1.0, %v1397
  %v1399 = vmul.f32 %v1391, %v1123
  %v1400 = vmul.f32 %v1389, %v1392
  %v1401 = vadd.f32 %v1399, %v1400
  %v1402 = vtanh.pop %v1401
  %v1403 = vmul.f32 %v1398, %v1402
  %1405 = vrot.lane.b32.xlu0 %v1379, 32
  %v1406 = vpop.permute.xlu0 %1405
  %1408 = vst.msk [vmem:[#allocation3 + $0x10] sm:$0xff] %vm575, %v1406
  %1409 = vst [vmem:[#allocation5 + $0x10] sm:$0xff] %v1403
  %v1410 = vld [vmem:[#allocation2 + $0x18] sm:$0xff]
  %v1411 = vsel %vm575, %v1406, 0
  %1413 = vmatprep.subr.mxu0 0.0
  %1414 = vmatpush1.msra.mxu0 0.0
  %1415 = vmatprep.subr.mxu0 0.0
  %1416 = vmatpush1.msra.mxu0 0.0
  %1417 = vmatprep.subr.mxu0 0.0
  %1418 = vmatpush1.msra.mxu0 0.0
  %1419 = vmatprep.subr.mxu0 0.0
  %1420 = vmatpush1.msra.mxu0 0.0
  %1421 = vmatprep.subr.mxu0 0.0
  %1422 = vmatpush1.msra.mxu0 0.0
  %1423 = vmatprep.subr.mxu0 0.0
  %1424 = vmatpush1.msra.mxu0 0.0
  %1425 = vmatprep.subr.mxu0 0.0
  %1426 = vmatpush1.msra.mxu0 0.0
  %1427 = vmatprep.subr.mxu0 0.0
  %1428 = vmatpush1.msra.mxu0 0.0
  %1429 = vmatprep.subr.mxu0 0.0
  %1430 = vmatpush1.msra.mxu0 0.0
  %1431 = vmatprep.subr.mxu0 0.0
  %1432 = vmatpush1.msra.mxu0 0.0
  %1433 = vmatprep.subr.mxu0 0.0
  %1434 = vmatpush1.msra.mxu0 0.0
  %1435 = vmatprep.subr.mxu0 0.0
  %1436 = vmatpush1.msra.mxu0 0.0
  %1437 = vmatprep.subr.mxu0 0.0
  %1438 = vmatpush1.msra.mxu0 %v76
  %1439 = vmatprep.subr.mxu0 0.0
  %1440 = vmatpush1.msra.mxu0 %v75
  %1441 = vmatprep.subr.mxu0 0.0
  %1442 = vmatpush1.msra.mxu0 %v74
  %1443 = vmatprep.subr.mxu0 0.0
  %1444 = vmatpush1.msra.mxu0 %v73
  %1445 = vmatprep.subr.mxu0 0.0
  %1446 = vmatpush2.msra.mxu0 0.0
  %1447 = vmatprep.subr.mxu0 0.0
  %1448 = vmatpush2.msra.mxu0 0.0
  %1449 = vmatprep.subr.mxu0 0.0
  %1450 = vmatpush2.msra.mxu0 0.0
  %1451 = vmatprep.subr.mxu0 0.0
  %1452 = vmatpush2.msra.mxu0 0.0
  %1453 = vmatprep.subr.mxu0 0.0
  %1454 = vmatpush2.msra.mxu0 0.0
  %1455 = vmatprep.subr.mxu0 0.0
  %1456 = vmatpush2.msra.mxu0 0.0
  %1457 = vmatprep.subr.mxu0 0.0
  %1458 = vmatpush2.msra.mxu0 0.0
  %1459 = vmatprep.subr.mxu0 0.0
  %1460 = vmatpush2.msra.mxu0 0.0
  %1461 = vmatprep.subr.mxu0 0.0
  %1462 = vmatpush2.msra.mxu0 0.0
  %1463 = vmatprep.subr.mxu0 0.0
  %1464 = vmatpush2.msra.mxu0 0.0
  %1465 = vmatprep.subr.mxu0 0.0
  %1466 = vmatpush2.msra.mxu0 0.0
  %1467 = vmatprep.subr.mxu0 0.0
  %1468 = vmatpush2.msra.mxu0 0.0
  %1469 = vmatprep.subr.mxu0 0.0
  %1470 = vmatpush2.msra.mxu0 0.0
  %1471 = vmatprep.subr.mxu0 0.0
  %1472 = vmatpush2.msra.mxu0 0.0
  %1473 = vmatprep.subr.mxu0 0.0
  %1474 = vmatpush2.msra.mxu0 0.0
  %1475 = vmatprep.subr.mxu0 0.0
  %1476 = vmatpush2.msra.mxu0 0.0
  %1477 = vmatprep.mubr.f32.mxu0 0.0
  %1478 = vmatmul.mubr.f32.gmra.mxu0 %v1411
  %v1479 = vpop.f32.mrf.mxu0
  %v1480 = vadd.f32 0.0, %v1479
  %v1481 = vpop.f32.mrf.mxu0
  %1482 = vdwg.mxu0
  %v1483 = vadd.f32 %v1410, %v1480
  %v1484 = vld [vmem:[#allocation4 + $0x60] sm:$0xff]
  %v1485 = vld [vmem:[#allocation4 + $0x68] sm:$0xff]
  %v1486 = vld [vmem:[#allocation4 + $0x70] sm:$0xff]
  %v1487 = vld [vmem:[#allocation4 + $0x78] sm:$0xff]
  %1488 = vmatprep.subr.mxu0 %v147
  %1489 = vmatpush1.msra.mxu0 %v146
  %1490 = vmatprep.subr.mxu0 %v143
  %1491 = vmatpush1.msra.mxu0 %v142
  %1492 = vmatprep.subr.mxu0 %v139
  %1493 = vmatpush1.msra.mxu0 %v138
  %1494 = vmatprep.subr.mxu0 %v135
  %1495 = vmatpush1.msra.mxu0 %v134
  %1496 = vmatprep.subr.mxu0 %v131
  %1497 = vmatpush1.msra.mxu0 %v130
  %1498 = vmatprep.subr.mxu0 %v127
  %1499 = vmatpush1.msra.mxu0 %v126
  %1500 = vmatprep.subr.mxu0 %v123
  %1501 = vmatpush1.msra.mxu0 %v122
  %1502 = vmatprep.subr.mxu0 %v119
  %1503 = vmatpush1.msra.mxu0 %v118
  %1504 = vmatprep.subr.mxu0 %v115
  %1505 = vmatpush1.msra.mxu0 %v114
  %1506 = vmatprep.subr.mxu0 %v111
  %1507 = vmatpush1.msra.mxu0 %v110
  %1508 = vmatprep.subr.mxu0 %v107
  %1509 = vmatpush1.msra.mxu0 %v106
  %1510 = vmatprep.subr.mxu0 %v103
  %1511 = vmatpush1.msra.mxu0 %v102
  %1512 = vmatprep.subr.mxu0 %v99
  %1513 = vmatpush1.msra.mxu0 %v98
  %1514 = vmatprep.subr.mxu0 %v95
  %1515 = vmatpush1.msra.mxu0 %v94
  %1516 = vmatprep.subr.mxu0 %v91
  %1517 = vmatpush1.msra.mxu0 %v90
  %1518 = vmatprep.subr.mxu0 %v87
  %1519 = vmatpush1.msra.mxu0 %v86
  %1520 = vmatprep.subr.mxu0 0.0
  %1521 = vmatpush2.msra.mxu0 0.0
  %1522 = vmatprep.subr.mxu0 0.0
  %1523 = vmatpush2.msra.mxu0 0.0
  %1524 = vmatprep.subr.mxu0 0.0
  %1525 = vmatpush2.msra.mxu0 0.0
  %1526 = vmatprep.subr.mxu0 0.0
  %1527 = vmatpush2.msra.mxu0 0.0
  %1528 = vmatprep.subr.mxu0 0.0
  %1529 = vmatpush2.msra.mxu0 0.0
  %1530 = vmatprep.subr.mxu0 0.0
  %1531 = vmatpush2.msra.mxu0 0.0
  %1532 = vmatprep.subr.mxu0 0.0
  %1533 = vmatpush2.msra.mxu0 0.0
  %1534 = vmatprep.subr.mxu0 0.0
  %1535 = vmatpush2.msra.mxu0 0.0
  %1536 = vmatprep.subr.mxu0 0.0
  %1537 = vmatpush2.msra.mxu0 0.0
  %1538 = vmatprep.subr.mxu0 0.0
  %1539 = vmatpush2.msra.mxu0 0.0
  %1540 = vmatprep.subr.mxu0 0.0
  %1541 = vmatpush2.msra.mxu0 0.0
  %1542 = vmatprep.subr.mxu0 0.0
  %1543 = vmatpush2.msra.mxu0 0.0
  %1544 = vmatprep.subr.mxu0 0.0
  %1545 = vmatpush2.msra.mxu0 0.0
  %1546 = vmatprep.subr.mxu0 0.0
  %1547 = vmatpush2.msra.mxu0 0.0
  %1548 = vmatprep.subr.mxu0 0.0
  %1549 = vmatpush2.msra.mxu0 0.0
  %1550 = vmatprep.subr.mxu0 0.0
  %1551 = vmatpush2.msra.mxu0 0.0
  %1552 = vmatprep.mubr.f32.mxu0 0.0
  %1553 = vmatmul.mubr.f32.gmra.mxu0 %v1403
  %v1554 = vpop.f32.mrf.mxu0
  %v1555 = vadd.f32 0.0, %v1554
  %v1556 = vpop.f32.mrf.mxu0
  %v1557 = vadd.f32 0.0, %v1556
  %1558 = vdwg.mxu0
  %1559 = vmatprep.subr.mxu0 %v149
  %1560 = vmatpush1.msra.mxu0 %v148
  %1561 = vmatprep.subr.mxu0 %v145
  %1562 = vmatpush1.msra.mxu0 %v144
  %1563 = vmatprep.subr.mxu0 %v141
  %1564 = vmatpush1.msra.mxu0 %v140
  %1565 = vmatprep.subr.mxu0 %v137
  %1566 = vmatpush1.msra.mxu0 %v136
  %1567 = vmatprep.subr.mxu0 %v133
  %1568 = vmatpush1.msra.mxu0 %v132
  %1569 = vmatprep.subr.mxu0 %v129
  %1570 = vmatpush1.msra.mxu0 %v128
  %1571 = vmatprep.subr.mxu0 %v125
  %1572 = vmatpush1.msra.mxu0 %v124
  %1573 = vmatprep.subr.mxu0 %v121
  %1574 = vmatpush1.msra.mxu0 %v120
  %1575 = vmatprep.subr.mxu0 %v117
  %1576 = vmatpush1.msra.mxu0 %v116
  %1577 = vmatprep.subr.mxu0 %v113
  %1578 = vmatpush1.msra.mxu0 %v112
  %1579 = vmatprep.subr.mxu0 %v109
  %1580 = vmatpush1.msra.mxu0 %v108
  %1581 = vmatprep.subr.mxu0 %v105
  %1582 = vmatpush1.msra.mxu0 %v104
  %1583 = vmatprep.subr.mxu0 %v101
  %1584 = vmatpush1.msra.mxu0 %v100
  %1585 = vmatprep.subr.mxu0 %v97
  %1586 = vmatpush1.msra.mxu0 %v96
  %1587 = vmatprep.subr.mxu0 %v93
  %1588 = vmatpush1.msra.mxu0 %v92
  %1589 = vmatprep.subr.mxu0 %v89
  %1590 = vmatpush1.msra.mxu0 %v88
  %1591 = vmatprep.subr.mxu0 0.0
  %1592 = vmatpush2.msra.mxu0 0.0
  %1593 = vmatprep.subr.mxu0 0.0
  %1594 = vmatpush2.msra.mxu0 0.0
  %1595 = vmatprep.subr.mxu0 0.0
  %1596 = vmatpush2.msra.mxu0 0.0
  %1597 = vmatprep.subr.mxu0 0.0
  %1598 = vmatpush2.msra.mxu0 0.0
  %1599 = vmatprep.subr.mxu0 0.0
  %1600 = vmatpush2.msra.mxu0 0.0
  %1601 = vmatprep.subr.mxu0 0.0
  %1602 = vmatpush2.msra.mxu0 0.0
  %1603 = vmatprep.subr.mxu0 0.0
  %1604 = vmatpush2.msra.mxu0 0.0
  %1605 = vmatprep.subr.mxu0 0.0
  %1606 = vmatpush2.msra.mxu0 0.0
  %1607 = vmatprep.subr.mxu0 0.0
  %1608 = vmatpush2.msra.mxu0 0.0
  %1609 = vmatprep.subr.mxu0 0.0
  %1610 = vmatpush2.msra.mxu0 0.0
  %1611 = vmatprep.subr.mxu0 0.0
  %1612 = vmatpush2.msra.mxu0 0.0
  %1613 = vmatprep.subr.mxu0 0.0
  %1614 = vmatpush2.msra.mxu0 0.0
  %1615 = vmatprep.subr.mxu0 0.0
  %1616 = vmatpush2.msra.mxu0 0.0
  %1617 = vmatprep.subr.mxu0 0.0
  %1618 = vmatpush2.msra.mxu0 0.0
  %1619 = vmatprep.subr.mxu0 0.0
  %1620 = vmatpush2.msra.mxu0 0.0
  %1621 = vmatprep.subr.mxu0 0.0
  %1622 = vmatpush2.msra.mxu0 0.0
  %1623 = vmatprep.mubr.f32.mxu0 0.0
  %1624 = vmatmul.mubr.f32.gmra.mxu0 %v1403
  %v1625 = vpop.f32.mrf.mxu0
  %v1626 = vadd.f32 0.0, %v1625
  %v1627 = vpop.f32.mrf.mxu0
  %v1628 = vadd.f32 0.0, %v1627
  %1629 = vdwg.mxu0
  %v1630 = vadd.f32 %v1484, %v1555
  %v1631 = vadd.f32 %v1485, %v1557
  %v1632 = vadd.f32 %v1486, %v1626
  %v1633 = vadd.f32 %v1487, %v1628
  %v1634 = vxor.u32 %v1483, 2147483648
  %v1635 = vmul.f32 %v1634, 1.442695
  %v1636 = vpow.pop %v1635
  %v1637 = vadd.f32 %v1636, 1.0
  %v1638 = vrcp.pop %v1637
  %v1639 = vmul.f32 1.0, %v1638
  %v1640 = vtanh.pop %v1483
  %v1641 = vmul.f32 %v1639, %v1373
  %1643 = vrot.lane.b32.xlu0 %v1640, 64
  %v1644 = vpop.permute.xlu0 %1643
  %v1646 = vmul.f32 %v1639, %v1644
  %1648 = vrot.lane.b32.xlu0 %v1646, 32
  %v1649 = vpop.permute.xlu0 %1648
  %v1651 = vadd.f32 %v1641, %v1649
  %v1652 = vtanh.pop %v1651
  %1654 = vrot.lane.b32.xlu0 %v1652, 64
  %v1655 = vpop.permute.xlu0 %1654
  %v1657 = vmul.f32 %v1639, %v1655
  %v1658 = vxor.u32 %v1630, 2147483648
  %v1659 = vxor.u32 %v1631, 2147483648
  %v1660 = vmul.f32 %v1658, 1.442695
  %v1661 = vpow.pop %v1660
  %v1662 = vmul.f32 %v1659, 1.442695
  %v1663 = vpow.pop %v1662
  %v1664 = vadd.f32 %v1661, 1.0
  %v1665 = vadd.f32 %v1663, 1.0
  %v1666 = vrcp.pop %v1664
  %v1667 = vmul.f32 1.0, %v1666
  %v1668 = vrcp.pop %v1665
  %v1669 = vmul.f32 1.0, %v1668
  %v1670 = vtanh.pop %v1632
  %v1671 = vxor.u32 %v1633, 2147483648
  %v1672 = vmul.f32 %v1671, 1.442695
  %v1673 = vpow.pop %v1672
  %v1674 = vadd.f32 %v1673, 1.0
  %v1675 = vrcp.pop %v1674
  %v1676 = vmul.f32 1.0, %v1675
  %v1677 = vmul.f32 %v1669, %v1401
  %v1678 = vmul.f32 %v1667, %v1670
  %v1679 = vadd.f32 %v1677, %v1678
  %v1680 = vtanh.pop %v1679
  %v1681 = vmul.f32 %v1676, %v1680
  %1683 = vrot.lane.b32.xlu0 %v1657, 32
  %v1684 = vpop.permute.xlu0 %1683
  %1686 = vst.msk [vmem:[#allocation3 + $0x18] sm:$0xff] %vm575, %v1684
  %1687 = vst [vmem:[#allocation5 + $0x18] sm:$0xff] %v1681
  %v1688 = vld [vmem:[#allocation2 + $0x20] sm:$0xff]
  %v1689 = vsel %vm575, %v1684, 0
  %1691 = vmatprep.subr.mxu0 0.0
  %1692 = vmatpush1.msra.mxu0 0.0
  %1693 = vmatprep.subr.mxu0 0.0
  %1694 = vmatpush1.msra.mxu0 0.0
  %1695 = vmatprep.subr.mxu0 0.0
  %1696 = vmatpush1.msra.mxu0 0.0
  %1697 = vmatprep.subr.mxu0 0.0
  %1698 = vmatpush1.msra.mxu0 0.0
  %1699 = vmatprep.subr.mxu0 0.0
  %1700 = vmatpush1.msra.mxu0 0.0
  %1701 = vmatprep.subr.mxu0 0.0
  %1702 = vmatpush1.msra.mxu0 0.0
  %1703 = vmatprep.subr.mxu0 0.0
  %1704 = vmatpush1.msra.mxu0 0.0
  %1705 = vmatprep.subr.mxu0 0.0
  %1706 = vmatpush1.msra.mxu0 0.0
  %1707 = vmatprep.subr.mxu0 0.0
  %1708 = vmatpush1.msra.mxu0 0.0
  %1709 = vmatprep.subr.mxu0 0.0
  %1710 = vmatpush1.msra.mxu0 0.0
  %1711 = vmatprep.subr.mxu0 0.0
  %1712 = vmatpush1.msra.mxu0 0.0
  %1713 = vmatprep.subr.mxu0 0.0
  %1714 = vmatpush1.msra.mxu0 0.0
  %1715 = vmatprep.subr.mxu0 0.0
  %1716 = vmatpush1.msra.mxu0 %v76
  %1717 = vmatprep.subr.mxu0 0.0
  %1718 = vmatpush1.msra.mxu0 %v75
  %1719 = vmatprep.subr.mxu0 0.0
  %1720 = vmatpush1.msra.mxu0 %v74
  %1721 = vmatprep.subr.mxu0 0.0
  %1722 = vmatpush1.msra.mxu0 %v73
  %1723 = vmatprep.subr.mxu0 0.0
  %1724 = vmatpush2.msra.mxu0 0.0
  %1725 = vmatprep.subr.mxu0 0.0
  %1726 = vmatpush2.msra.mxu0 0.0
  %1727 = vmatprep.subr.mxu0 0.0
  %1728 = vmatpush2.msra.mxu0 0.0
  %1729 = vmatprep.subr.mxu0 0.0
  %1730 = vmatpush2.msra.mxu0 0.0
  %1731 = vmatprep.subr.mxu0 0.0
  %1732 = vmatpush2.msra.mxu0 0.0
  %1733 = vmatprep.subr.mxu0 0.0
  %1734 = vmatpush2.msra.mxu0 0.0
  %1735 = vmatprep.subr.mxu0 0.0
  %1736 = vmatpush2.msra.mxu0 0.0
  %1737 = vmatprep.subr.mxu0 0.0
  %1738 = vmatpush2.msra.mxu0 0.0
  %1739 = vmatprep.subr.mxu0 0.0
  %1740 = vmatpush2.msra.mxu0 0.0
  %1741 = vmatprep.subr.mxu0 0.0
  %1742 = vmatpush2.msra.mxu0 0.0
  %1743 = vmatprep.subr.mxu0 0.0
  %1744 = vmatpush2.msra.mxu0 0.0
  %1745 = vmatprep.subr.mxu0 0.0
  %1746 = vmatpush2.msra.mxu0 0.0
  %1747 = vmatprep.subr.mxu0 0.0
  %1748 = vmatpush2.msra.mxu0 0.0
  %1749 = vmatprep.subr.mxu0 0.0
  %1750 = vmatpush2.msra.mxu0 0.0
  %1751 = vmatprep.subr.mxu0 0.0
  %1752 = vmatpush2.msra.mxu0 0.0
  %1753 = vmatprep.subr.mxu0 0.0
  %1754 = vmatpush2.msra.mxu0 0.0
  %1755 = vmatprep.mubr.f32.mxu0 0.0
  %1756 = vmatmul.mubr.f32.gmra.mxu0 %v1689
  %v1757 = vpop.f32.mrf.mxu0
  %v1758 = vadd.f32 0.0, %v1757
  %v1759 = vpop.f32.mrf.mxu0
  %1760 = vdwg.mxu0
  %v1761 = vadd.f32 %v1688, %v1758
  %v1762 = vld [vmem:[#allocation4 + $0x80] sm:$0xff]
  %v1763 = vld [vmem:[#allocation4 + $0x88] sm:$0xff]
  %v1764 = vld [vmem:[#allocation4 + $0x90] sm:$0xff]
  %v1765 = vld [vmem:[#allocation4 + $0x98] sm:$0xff]
  %1766 = vmatprep.subr.mxu0 %v147
  %1767 = vmatpush1.msra.mxu0 %v146
  %1768 = vmatprep.subr.mxu0 %v143
  %1769 = vmatpush1.msra.mxu0 %v142
  %1770 = vmatprep.subr.mxu0 %v139
  %1771 = vmatpush1.msra.mxu0 %v138
  %1772 = vmatprep.subr.mxu0 %v135
  %1773 = vmatpush1.msra.mxu0 %v134
  %1774 = vmatprep.subr.mxu0 %v131
  %1775 = vmatpush1.msra.mxu0 %v130
  %1776 = vmatprep.subr.mxu0 %v127
  %1777 = vmatpush1.msra.mxu0 %v126
  %1778 = vmatprep.subr.mxu0 %v123
  %1779 = vmatpush1.msra.mxu0 %v122
  %1780 = vmatprep.subr.mxu0 %v119
  %1781 = vmatpush1.msra.mxu0 %v118
  %1782 = vmatprep.subr.mxu0 %v115
  %1783 = vmatpush1.msra.mxu0 %v114
  %1784 = vmatprep.subr.mxu0 %v111
  %1785 = vmatpush1.msra.mxu0 %v110
  %1786 = vmatprep.subr.mxu0 %v107
  %1787 = vmatpush1.msra.mxu0 %v106
  %1788 = vmatprep.subr.mxu0 %v103
  %1789 = vmatpush1.msra.mxu0 %v102
  %1790 = vmatprep.subr.mxu0 %v99
  %1791 = vmatpush1.msra.mxu0 %v98
  %1792 = vmatprep.subr.mxu0 %v95
  %1793 = vmatpush1.msra.mxu0 %v94
  %1794 = vmatprep.subr.mxu0 %v91
  %1795 = vmatpush1.msra.mxu0 %v90
  %1796 = vmatprep.subr.mxu0 %v87
  %1797 = vmatpush1.msra.mxu0 %v86
  %1798 = vmatprep.subr.mxu0 0.0
  %1799 = vmatpush2.msra.mxu0 0.0
  %1800 = vmatprep.subr.mxu0 0.0
  %1801 = vmatpush2.msra.mxu0 0.0
  %1802 = vmatprep.subr.mxu0 0.0
  %1803 = vmatpush2.msra.mxu0 0.0
  %1804 = vmatprep.subr.mxu0 0.0
  %1805 = vmatpush2.msra.mxu0 0.0
  %1806 = vmatprep.subr.mxu0 0.0
  %1807 = vmatpush2.msra.mxu0 0.0
  %1808 = vmatprep.subr.mxu0 0.0
  %1809 = vmatpush2.msra.mxu0 0.0
  %1810 = vmatprep.subr.mxu0 0.0
  %1811 = vmatpush2.msra.mxu0 0.0
  %1812 = vmatprep.subr.mxu0 0.0
  %1813 = vmatpush2.msra.mxu0 0.0
  %1814 = vmatprep.subr.mxu0 0.0
  %1815 = vmatpush2.msra.mxu0 0.0
  %1816 = vmatprep.subr.mxu0 0.0
  %1817 = vmatpush2.msra.mxu0 0.0
  %1818 = vmatprep.subr.mxu0 0.0
  %1819 = vmatpush2.msra.mxu0 0.0
  %1820 = vmatprep.subr.mxu0 0.0
  %1821 = vmatpush2.msra.mxu0 0.0
  %1822 = vmatprep.subr.mxu0 0.0
  %1823 = vmatpush2.msra.mxu0 0.0
  %1824 = vmatprep.subr.mxu0 0.0
  %1825 = vmatpush2.msra.mxu0 0.0
  %1826 = vmatprep.subr.mxu0 0.0
  %1827 = vmatpush2.msra.mxu0 0.0
  %1828 = vmatprep.subr.mxu0 0.0
  %1829 = vmatpush2.msra.mxu0 0.0
  %1830 = vmatprep.mubr.f32.mxu0 0.0
  %1831 = vmatmul.mubr.f32.gmra.mxu0 %v1681
  %v1832 = vpop.f32.mrf.mxu0
  %v1833 = vadd.f32 0.0, %v1832
  %v1834 = vpop.f32.mrf.mxu0
  %v1835 = vadd.f32 0.0, %v1834
  %1836 = vdwg.mxu0
  %1837 = vmatprep.subr.mxu0 %v149
  %1838 = vmatpush1.msra.mxu0 %v148
  %1839 = vmatprep.subr.mxu0 %v145
  %1840 = vmatpush1.msra.mxu0 %v144
  %1841 = vmatprep.subr.mxu0 %v141
  %1842 = vmatpush1.msra.mxu0 %v140
  %1843 = vmatprep.subr.mxu0 %v137
  %1844 = vmatpush1.msra.mxu0 %v136
  %1845 = vmatprep.subr.mxu0 %v133
  %1846 = vmatpush1.msra.mxu0 %v132
  %1847 = vmatprep.subr.mxu0 %v129
  %1848 = vmatpush1.msra.mxu0 %v128
  %1849 = vmatprep.subr.mxu0 %v125
  %1850 = vmatpush1.msra.mxu0 %v124
  %1851 = vmatprep.subr.mxu0 %v121
  %1852 = vmatpush1.msra.mxu0 %v120
  %1853 = vmatprep.subr.mxu0 %v117
  %1854 = vmatpush1.msra.mxu0 %v116
  %1855 = vmatprep.subr.mxu0 %v113
  %1856 = vmatpush1.msra.mxu0 %v112
  %1857 = vmatprep.subr.mxu0 %v109
  %1858 = vmatpush1.msra.mxu0 %v108
  %1859 = vmatprep.subr.mxu0 %v105
  %1860 = vmatpush1.msra.mxu0 %v104
  %1861 = vmatprep.subr.mxu0 %v101
  %1862 = vmatpush1.msra.mxu0 %v100
  %1863 = vmatprep.subr.mxu0 %v97
  %1864 = vmatpush1.msra.mxu0 %v96
  %1865 = vmatprep.subr.mxu0 %v93
  %1866 = vmatpush1.msra.mxu0 %v92
  %1867 = vmatprep.subr.mxu0 %v89
  %1868 = vmatpush1.msra.mxu0 %v88
  %1869 = vmatprep.subr.mxu0 0.0
  %1870 = vmatpush2.msra.mxu0 0.0
  %1871 = vmatprep.subr.mxu0 0.0
  %1872 = vmatpush2.msra.mxu0 0.0
  %1873 = vmatprep.subr.mxu0 0.0
  %1874 = vmatpush2.msra.mxu0 0.0
  %1875 = vmatprep.subr.mxu0 0.0
  %1876 = vmatpush2.msra.mxu0 0.0
  %1877 = vmatprep.subr.mxu0 0.0
  %1878 = vmatpush2.msra.mxu0 0.0
  %1879 = vmatprep.subr.mxu0 0.0
  %1880 = vmatpush2.msra.mxu0 0.0
  %1881 = vmatprep.subr.mxu0 0.0
  %1882 = vmatpush2.msra.mxu0 0.0
  %1883 = vmatprep.subr.mxu0 0.0
  %1884 = vmatpush2.msra.mxu0 0.0
  %1885 = vmatprep.subr.mxu0 0.0
  %1886 = vmatpush2.msra.mxu0 0.0
  %1887 = vmatprep.subr.mxu0 0.0
  %1888 = vmatpush2.msra.mxu0 0.0
  %1889 = vmatprep.subr.mxu0 0.0
  %1890 = vmatpush2.msra.mxu0 0.0
  %1891 = vmatprep.subr.mxu0 0.0
  %1892 = vmatpush2.msra.mxu0 0.0
  %1893 = vmatprep.subr.mxu0 0.0
  %1894 = vmatpush2.msra.mxu0 0.0
  %1895 = vmatprep.subr.mxu0 0.0
  %1896 = vmatpush2.msra.mxu0 0.0
  %1897 = vmatprep.subr.mxu0 0.0
  %1898 = vmatpush2.msra.mxu0 0.0
  %1899 = vmatprep.subr.mxu0 0.0
  %1900 = vmatpush2.msra.mxu0 0.0
  %1901 = vmatprep.mubr.f32.mxu0 0.0
  %1902 = vmatmul.mubr.f32.gmra.mxu0 %v1681
  %v1903 = vpop.f32.mrf.mxu0
  %v1904 = vadd.f32 0.0, %v1903
  %v1905 = vpop.f32.mrf.mxu0
  %v1906 = vadd.f32 0.0, %v1905
  %1907 = vdwg.mxu0
  %v1908 = vadd.f32 %v1762, %v1833
  %v1909 = vadd.f32 %v1763, %v1835
  %v1910 = vadd.f32 %v1764, %v1904
  %v1911 = vadd.f32 %v1765, %v1906
  %v1912 = vxor.u32 %v1761, 2147483648
  %v1913 = vmul.f32 %v1912, 1.442695
  %v1914 = vpow.pop %v1913
  %v1915 = vadd.f32 %v1914, 1.0
  %v1916 = vrcp.pop %v1915
  %v1917 = vmul.f32 1.0, %v1916
  %v1918 = vtanh.pop %v1761
  %v1919 = vmul.f32 %v1917, %v1651
  %1921 = vrot.lane.b32.xlu0 %v1918, 64
  %v1922 = vpop.permute.xlu0 %1921
  %v1924 = vmul.f32 %v1917, %v1922
  %1926 = vrot.lane.b32.xlu0 %v1924, 32
  %v1927 = vpop.permute.xlu0 %1926
  %v1929 = vadd.f32 %v1919, %v1927
  %v1930 = vtanh.pop %v1929
  %1932 = vrot.lane.b32.xlu0 %v1930, 64
  %v1933 = vpop.permute.xlu0 %1932
  %v1935 = vmul.f32 %v1917, %v1933
  %v1936 = vxor.u32 %v1908, 2147483648
  %v1937 = vxor.u32 %v1909, 2147483648
  %v1938 = vmul.f32 %v1936, 1.442695
  %v1939 = vpow.pop %v1938
  %v1940 = vmul.f32 %v1937, 1.442695
  %v1941 = vpow.pop %v1940
  %v1942 = vadd.f32 %v1939, 1.0
  %v1943 = vadd.f32 %v1941, 1.0
  %v1944 = vrcp.pop %v1942
  %v1945 = vmul.f32 1.0, %v1944
  %v1946 = vrcp.pop %v1943
  %v1947 = vmul.f32 1.0, %v1946
  %v1948 = vtanh.pop %v1910
  %v1949 = vxor.u32 %v1911, 2147483648
  %v1950 = vmul.f32 %v1949, 1.442695
  %v1951 = vpow.pop %v1950
  %v1952 = vadd.f32 %v1951, 1.0
  %v1953 = vrcp.pop %v1952
  %v1954 = vmul.f32 1.0, %v1953
  %v1955 = vmul.f32 %v1947, %v1679
  %v1956 = vmul.f32 %v1945, %v1948
  %v1957 = vadd.f32 %v1955, %v1956
  %v1958 = vtanh.pop %v1957
  %v1959 = vmul.f32 %v1954, %v1958
  %1961 = vrot.lane.b32.xlu0 %v1935, 32
  %v1962 = vpop.permute.xlu0 %1961
  %1964 = vst.msk [vmem:[#allocation3 + $0x20] sm:$0xff] %vm575, %v1962
  %1965 = vst [vmem:[#allocation5 + $0x20] sm:$0xff] %v1959
  %v1966 = vld [vmem:[#allocation2 + $0x28] sm:$0xff]
  %v1967 = vsel %vm575, %v1962, 0
  %1969 = vmatprep.subr.mxu0 0.0
  %1970 = vmatpush1.msra.mxu0 0.0
  %1971 = vmatprep.subr.mxu0 0.0
  %1972 = vmatpush1.msra.mxu0 0.0
  %1973 = vmatprep.subr.mxu0 0.0
  %1974 = vmatpush1.msra.mxu0 0.0
  %1975 = vmatprep.subr.mxu0 0.0
  %1976 = vmatpush1.msra.mxu0 0.0
  %1977 = vmatprep.subr.mxu0 0.0
  %1978 = vmatpush1.msra.mxu0 0.0
  %1979 = vmatprep.subr.mxu0 0.0
  %1980 = vmatpush1.msra.mxu0 0.0
  %1981 = vmatprep.subr.mxu0 0.0
  %1982 = vmatpush1.msra.mxu0 0.0
  %1983 = vmatprep.subr.mxu0 0.0
  %1984 = vmatpush1.msra.mxu0 0.0
  %1985 = vmatprep.subr.mxu0 0.0
  %1986 = vmatpush1.msra.mxu0 0.0
  %1987 = vmatprep.subr.mxu0 0.0
  %1988 = vmatpush1.msra.mxu0 0.0
  %1989 = vmatprep.subr.mxu0 0.0
  %1990 = vmatpush1.msra.mxu0 0.0
  %1991 = vmatprep.subr.mxu0 0.0
  %1992 = vmatpush1.msra.mxu0 0.0
  %1993 = vmatprep.subr.mxu0 0.0
  %1994 = vmatpush1.msra.mxu0 %v76
  %1995 = vmatprep.subr.mxu0 0.0
  %1996 = vmatpush1.msra.mxu0 %v75
  %1997 = vmatprep.subr.mxu0 0.0
  %1998 = vmatpush1.msra.mxu0 %v74
  %1999 = vmatprep.subr.mxu0 0.0
  %2000 = vmatpush1.msra.mxu0 %v73
  %2001 = vmatprep.subr.mxu0 0.0
  %2002 = vmatpush2.msra.mxu0 0.0
  %2003 = vmatprep.subr.mxu0 0.0
  %2004 = vmatpush2.msra.mxu0 0.0
  %2005 = vmatprep.subr.mxu0 0.0
  %2006 = vmatpush2.msra.mxu0 0.0
  %2007 = vmatprep.subr.mxu0 0.0
  %2008 = vmatpush2.msra.mxu0 0.0
  %2009 = vmatprep.subr.mxu0 0.0
  %2010 = vmatpush2.msra.mxu0 0.0
  %2011 = vmatprep.subr.mxu0 0.0
  %2012 = vmatpush2.msra.mxu0 0.0
  %2013 = vmatprep.subr.mxu0 0.0
  %2014 = vmatpush2.msra.mxu0 0.0
  %2015 = vmatprep.subr.mxu0 0.0
  %2016 = vmatpush2.msra.mxu0 0.0
  %2017 = vmatprep.subr.mxu0 0.0
  %2018 = vmatpush2.msra.mxu0 0.0
  %2019 = vmatprep.subr.mxu0 0.0
  %2020 = vmatpush2.msra.mxu0 0.0
  %2021 = vmatprep.subr.mxu0 0.0
  %2022 = vmatpush2.msra.mxu0 0.0
  %2023 = vmatprep.subr.mxu0 0.0
  %2024 = vmatpush2.msra.mxu0 0.0
  %2025 = vmatprep.subr.mxu0 0.0
  %2026 = vmatpush2.msra.mxu0 0.0
  %2027 = vmatprep.subr.mxu0 0.0
  %2028 = vmatpush2.msra.mxu0 0.0
  %2029 = vmatprep.subr.mxu0 0.0
  %2030 = vmatpush2.msra.mxu0 0.0
  %2031 = vmatprep.subr.mxu0 0.0
  %2032 = vmatpush2.msra.mxu0 0.0
  %2033 = vmatprep.mubr.f32.mxu0 0.0
  %2034 = vmatmul.mubr.f32.gmra.mxu0 %v1967
  %v2035 = vpop.f32.mrf.mxu0
  %v2036 = vadd.f32 0.0, %v2035
  %v2037 = vpop.f32.mrf.mxu0
  %2038 = vdwg.mxu0
  %v2039 = vadd.f32 %v1966, %v2036
  %v2040 = vld [vmem:[#allocation4 + $0xa0] sm:$0xff]
  %v2041 = vld [vmem:[#allocation4 + $0xa8] sm:$0xff]
  %v2042 = vld [vmem:[#allocation4 + $0xb0] sm:$0xff]
  %v2043 = vld [vmem:[#allocation4 + $0xb8] sm:$0xff]
  %2044 = vmatprep.subr.mxu0 %v147
  %2045 = vmatpush1.msra.mxu0 %v146
  %2046 = vmatprep.subr.mxu0 %v143
  %2047 = vmatpush1.msra.mxu0 %v142
  %2048 = vmatprep.subr.mxu0 %v139
  %2049 = vmatpush1.msra.mxu0 %v138
  %2050 = vmatprep.subr.mxu0 %v135
  %2051 = vmatpush1.msra.mxu0 %v134
  %2052 = vmatprep.subr.mxu0 %v131
  %2053 = vmatpush1.msra.mxu0 %v130
  %2054 = vmatprep.subr.mxu0 %v127
  %2055 = vmatpush1.msra.mxu0 %v126
  %2056 = vmatprep.subr.mxu0 %v123
  %2057 = vmatpush1.msra.mxu0 %v122
  %2058 = vmatprep.subr.mxu0 %v119
  %2059 = vmatpush1.msra.mxu0 %v118
  %2060 = vmatprep.subr.mxu0 %v115
  %2061 = vmatpush1.msra.mxu0 %v114
  %2062 = vmatprep.subr.mxu0 %v111
  %2063 = vmatpush1.msra.mxu0 %v110
  %2064 = vmatprep.subr.mxu0 %v107
  %2065 = vmatpush1.msra.mxu0 %v106
  %2066 = vmatprep.subr.mxu0 %v103
  %2067 = vmatpush1.msra.mxu0 %v102
  %2068 = vmatprep.subr.mxu0 %v99
  %2069 = vmatpush1.msra.mxu0 %v98
  %2070 = vmatprep.subr.mxu0 %v95
  %2071 = vmatpush1.msra.mxu0 %v94
  %2072 = vmatprep.subr.mxu0 %v91
  %2073 = vmatpush1.msra.mxu0 %v90
  %2074 = vmatprep.subr.mxu0 %v87
  %2075 = vmatpush1.msra.mxu0 %v86
  %2076 = vmatprep.subr.mxu0 0.0
  %2077 = vmatpush2.msra.mxu0 0.0
  %2078 = vmatprep.subr.mxu0 0.0
  %2079 = vmatpush2.msra.mxu0 0.0
  %2080 = vmatprep.subr.mxu0 0.0
  %2081 = vmatpush2.msra.mxu0 0.0
  %2082 = vmatprep.subr.mxu0 0.0
  %2083 = vmatpush2.msra.mxu0 0.0
  %2084 = vmatprep.subr.mxu0 0.0
  %2085 = vmatpush2.msra.mxu0 0.0
  %2086 = vmatprep.subr.mxu0 0.0
  %2087 = vmatpush2.msra.mxu0 0.0
  %2088 = vmatprep.subr.mxu0 0.0
  %2089 = vmatpush2.msra.mxu0 0.0
  %2090 = vmatprep.subr.mxu0 0.0
  %2091 = vmatpush2.msra.mxu0 0.0
  %2092 = vmatprep.subr.mxu0 0.0
  %2093 = vmatpush2.msra.mxu0 0.0
  %2094 = vmatprep.subr.mxu0 0.0
  %2095 = vmatpush2.msra.mxu0 0.0
  %2096 = vmatprep.subr.mxu0 0.0
  %2097 = vmatpush2.msra.mxu0 0.0
  %2098 = vmatprep.subr.mxu0 0.0
  %2099 = vmatpush2.msra.mxu0 0.0
  %2100 = vmatprep.subr.mxu0 0.0
  %2101 = vmatpush2.msra.mxu0 0.0
  %2102 = vmatprep.subr.mxu0 0.0
  %2103 = vmatpush2.msra.mxu0 0.0
  %2104 = vmatprep.subr.mxu0 0.0
  %2105 = vmatpush2.msra.mxu0 0.0
  %2106 = vmatprep.subr.mxu0 0.0
  %2107 = vmatpush2.msra.mxu0 0.0
  %2108 = vmatprep.mubr.f32.mxu0 0.0
  %2109 = vmatmul.mubr.f32.gmra.mxu0 %v1959
  %v2110 = vpop.f32.mrf.mxu0
  %v2111 = vadd.f32 0.0, %v2110
  %v2112 = vpop.f32.mrf.mxu0
  %v2113 = vadd.f32 0.0, %v2112
  %2114 = vdwg.mxu0
  %2115 = vmatprep.subr.mxu0 %v149
  %2116 = vmatpush1.msra.mxu0 %v148
  %2117 = vmatprep.subr.mxu0 %v145
  %2118 = vmatpush1.msra.mxu0 %v144
  %2119 = vmatprep.subr.mxu0 %v141
  %2120 = vmatpush1.msra.mxu0 %v140
  %2121 = vmatprep.subr.mxu0 %v137
  %2122 = vmatpush1.msra.mxu0 %v136
  %2123 = vmatprep.subr.mxu0 %v133
  %2124 = vmatpush1.msra.mxu0 %v132
  %2125 = vmatprep.subr.mxu0 %v129
  %2126 = vmatpush1.msra.mxu0 %v128
  %2127 = vmatprep.subr.mxu0 %v125
  %2128 = vmatpush1.msra.mxu0 %v124
  %2129 = vmatprep.subr.mxu0 %v121
  %2130 = vmatpush1.msra.mxu0 %v120
  %2131 = vmatprep.subr.mxu0 %v117
  %2132 = vmatpush1.msra.mxu0 %v116
  %2133 = vmatprep.subr.mxu0 %v113
  %2134 = vmatpush1.msra.mxu0 %v112
  %2135 = vmatprep.subr.mxu0 %v109
  %2136 = vmatpush1.msra.mxu0 %v108
  %2137 = vmatprep.subr.mxu0 %v105
  %2138 = vmatpush1.msra.mxu0 %v104
  %2139 = vmatprep.subr.mxu0 %v101
  %2140 = vmatpush1.msra.mxu0 %v100
  %2141 = vmatprep.subr.mxu0 %v97
  %2142 = vmatpush1.msra.mxu0 %v96
  %2143 = vmatprep.subr.mxu0 %v93
  %2144 = vmatpush1.msra.mxu0 %v92
  %2145 = vmatprep.subr.mxu0 %v89
  %2146 = vmatpush1.msra.mxu0 %v88
  %2147 = vmatprep.subr.mxu0 0.0
  %2148 = vmatpush2.msra.mxu0 0.0
  %2149 = vmatprep.subr.mxu0 0.0
  %2150 = vmatpush2.msra.mxu0 0.0
  %2151 = vmatprep.subr.mxu0 0.0
  %2152 = vmatpush2.msra.mxu0 0.0
  %2153 = vmatprep.subr.mxu0 0.0
  %2154 = vmatpush2.msra.mxu0 0.0
  %2155 = vmatprep.subr.mxu0 0.0
  %2156 = vmatpush2.msra.mxu0 0.0
  %2157 = vmatprep.subr.mxu0 0.0
  %2158 = vmatpush2.msra.mxu0 0.0
  %2159 = vmatprep.subr.mxu0 0.0
  %2160 = vmatpush2.msra.mxu0 0.0
  %2161 = vmatprep.subr.mxu0 0.0
  %2162 = vmatpush2.msra.mxu0 0.0
  %2163 = vmatprep.subr.mxu0 0.0
  %2164 = vmatpush2.msra.mxu0 0.0
  %2165 = vmatprep.subr.mxu0 0.0
  %2166 = vmatpush2.msra.mxu0 0.0
  %2167 = vmatprep.subr.mxu0 0.0
  %2168 = vmatpush2.msra.mxu0 0.0
  %2169 = vmatprep.subr.mxu0 0.0
  %2170 = vmatpush2.msra.mxu0 0.0
  %2171 = vmatprep.subr.mxu0 0.0
  %2172 = vmatpush2.msra.mxu0 0.0
  %2173 = vmatprep.subr.mxu0 0.0
  %2174 = vmatpush2.msra.mxu0 0.0
  %2175 = vmatprep.subr.mxu0 0.0
  %2176 = vmatpush2.msra.mxu0 0.0
  %2177 = vmatprep.subr.mxu0 0.0
  %2178 = vmatpush2.msra.mxu0 0.0
  %2179 = vmatprep.mubr.f32.mxu0 0.0
  %2180 = vmatmul.mubr.f32.gmra.mxu0 %v1959
  %v2181 = vpop.f32.mrf.mxu0
  %v2182 = vadd.f32 0.0, %v2181
  %v2183 = vpop.f32.mrf.mxu0
  %v2184 = vadd.f32 0.0, %v2183
  %2185 = vdwg.mxu0
  %v2186 = vadd.f32 %v2040, %v2111
  %v2187 = vadd.f32 %v2041, %v2113
  %v2188 = vadd.f32 %v2042, %v2182
  %v2189 = vadd.f32 %v2043, %v2184
  %v2190 = vxor.u32 %v2039, 2147483648
  %v2191 = vmul.f32 %v2190, 1.442695
  %v2192 = vpow.pop %v2191
  %v2193 = vadd.f32 %v2192, 1.0
  %v2194 = vrcp.pop %v2193
  %v2195 = vmul.f32 1.0, %v2194
  %v2196 = vtanh.pop %v2039
  %v2197 = vmul.f32 %v2195, %v1929
  %2199 = vrot.lane.b32.xlu0 %v2196, 64
  %v2200 = vpop.permute.xlu0 %2199
  %v2202 = vmul.f32 %v2195, %v2200
  %2204 = vrot.lane.b32.xlu0 %v2202, 32
  %v2205 = vpop.permute.xlu0 %2204
  %v2207 = vadd.f32 %v2197, %v2205
  %v2208 = vtanh.pop %v2207
  %2210 = vrot.lane.b32.xlu0 %v2208, 64
  %v2211 = vpop.permute.xlu0 %2210
  %v2213 = vmul.f32 %v2195, %v2211
  %v2214 = vxor.u32 %v2186, 2147483648
  %v2215 = vxor.u32 %v2187, 2147483648
  %v2216 = vmul.f32 %v2214, 1.442695
  %v2217 = vpow.pop %v2216
  %v2218 = vmul.f32 %v2215, 1.442695
  %v2219 = vpow.pop %v2218
  %v2220 = vadd.f32 %v2217, 1.0
  %v2221 = vadd.f32 %v2219, 1.0
  %v2222 = vrcp.pop %v2220
  %v2223 = vmul.f32 1.0, %v2222
  %v2224 = vrcp.pop %v2221
  %v2225 = vmul.f32 1.0, %v2224
  %v2226 = vtanh.pop %v2188
  %v2227 = vxor.u32 %v2189, 2147483648
  %v2228 = vmul.f32 %v2227, 1.442695
  %v2229 = vpow.pop %v2228
  %v2230 = vadd.f32 %v2229, 1.0
  %v2231 = vrcp.pop %v2230
  %v2232 = vmul.f32 1.0, %v2231
  %v2233 = vmul.f32 %v2225, %v1957
  %v2234 = vmul.f32 %v2223, %v2226
  %v2235 = vadd.f32 %v2233, %v2234
  %v2236 = vtanh.pop %v2235
  %v2237 = vmul.f32 %v2232, %v2236
  %2239 = vrot.lane.b32.xlu0 %v2213, 32
  %v2240 = vpop.permute.xlu0 %2239
  %2242 = vst.msk [vmem:[#allocation3 + $0x28] sm:$0xff] %vm575, %v2240
  %2243 = vst [vmem:[#allocation5 + $0x28] sm:$0xff] %v2237
  %v2244 = vld [vmem:[#allocation2 + $0x30] sm:$0xff]
  %v2245 = vsel %vm575, %v2240, 0
  %2247 = vmatprep.subr.mxu0 0.0
  %2248 = vmatpush1.msra.mxu0 0.0
  %2249 = vmatprep.subr.mxu0 0.0
  %2250 = vmatpush1.msra.mxu0 0.0
  %2251 = vmatprep.subr.mxu0 0.0
  %2252 = vmatpush1.msra.mxu0 0.0
  %2253 = vmatprep.subr.mxu0 0.0
  %2254 = vmatpush1.msra.mxu0 0.0
  %2255 = vmatprep.subr.mxu0 0.0
  %2256 = vmatpush1.msra.mxu0 0.0
  %2257 = vmatprep.subr.mxu0 0.0
  %2258 = vmatpush1.msra.mxu0 0.0
  %2259 = vmatprep.subr.mxu0 0.0
  %2260 = vmatpush1.msra.mxu0 0.0
  %2261 = vmatprep.subr.mxu0 0.0
  %2262 = vmatpush1.msra.mxu0 0.0
  %2263 = vmatprep.subr.mxu0 0.0
  %2264 = vmatpush1.msra.mxu0 0.0
  %2265 = vmatprep.subr.mxu0 0.0
  %2266 = vmatpush1.msra.mxu0 0.0
  %2267 = vmatprep.subr.mxu0 0.0
  %2268 = vmatpush1.msra.mxu0 0.0
  %2269 = vmatprep.subr.mxu0 0.0
  %2270 = vmatpush1.msra.mxu0 0.0
  %2271 = vmatprep.subr.mxu0 0.0
  %2272 = vmatpush1.msra.mxu0 %v76
  %2273 = vmatprep.subr.mxu0 0.0
  %2274 = vmatpush1.msra.mxu0 %v75
  %2275 = vmatprep.subr.mxu0 0.0
  %2276 = vmatpush1.msra.mxu0 %v74
  %2277 = vmatprep.subr.mxu0 0.0
  %2278 = vmatpush1.msra.mxu0 %v73
  %2279 = vmatprep.subr.mxu0 0.0
  %2280 = vmatpush2.msra.mxu0 0.0
  %2281 = vmatprep.subr.mxu0 0.0
  %2282 = vmatpush2.msra.mxu0 0.0
  %2283 = vmatprep.subr.mxu0 0.0
  %2284 = vmatpush2.msra.mxu0 0.0
  %2285 = vmatprep.subr.mxu0 0.0
  %2286 = vmatpush2.msra.mxu0 0.0
  %2287 = vmatprep.subr.mxu0 0.0
  %2288 = vmatpush2.msra.mxu0 0.0
  %2289 = vmatprep.subr.mxu0 0.0
  %2290 = vmatpush2.msra.mxu0 0.0
  %2291 = vmatprep.subr.mxu0 0.0
  %2292 = vmatpush2.msra.mxu0 0.0
  %2293 = vmatprep.subr.mxu0 0.0
  %2294 = vmatpush2.msra.mxu0 0.0
  %2295 = vmatprep.subr.mxu0 0.0
  %2296 = vmatpush2.msra.mxu0 0.0
  %2297 = vmatprep.subr.mxu0 0.0
  %2298 = vmatpush2.msra.mxu0 0.0
  %2299 = vmatprep.subr.mxu0 0.0
  %2300 = vmatpush2.msra.mxu0 0.0
  %2301 = vmatprep.subr.mxu0 0.0
  %2302 = vmatpush2.msra.mxu0 0.0
  %2303 = vmatprep.subr.mxu0 0.0
  %2304 = vmatpush2.msra.mxu0 0.0
  %2305 = vmatprep.subr.mxu0 0.0
  %2306 = vmatpush2.msra.mxu0 0.0
  %2307 = vmatprep.subr.mxu0 0.0
  %2308 = vmatpush2.msra.mxu0 0.0
  %2309 = vmatprep.subr.mxu0 0.0
  %2310 = vmatpush2.msra.mxu0 0.0
  %2311 = vmatprep.mubr.f32.mxu0 0.0
  %2312 = vmatmul.mubr.f32.gmra.mxu0 %v2245
  %v2313 = vpop.f32.mrf.mxu0
  %v2314 = vadd.f32 0.0, %v2313
  %v2315 = vpop.f32.mrf.mxu0
  %2316 = vdwg.mxu0
  %v2317 = vadd.f32 %v2244, %v2314
  %v2318 = vld [vmem:[#allocation4 + $0xc0] sm:$0xff]
  %v2319 = vld [vmem:[#allocation4 + $0xc8] sm:$0xff]
  %v2320 = vld [vmem:[#allocation4 + $0xd0] sm:$0xff]
  %v2321 = vld [vmem:[#allocation4 + $0xd8] sm:$0xff]
  %2322 = vmatprep.subr.mxu0 %v147
  %2323 = vmatpush1.msra.mxu0 %v146
  %2324 = vmatprep.subr.mxu0 %v143
  %2325 = vmatpush1.msra.mxu0 %v142
  %2326 = vmatprep.subr.mxu0 %v139
  %2327 = vmatpush1.msra.mxu0 %v138
  %2328 = vmatprep.subr.mxu0 %v135
  %2329 = vmatpush1.msra.mxu0 %v134
  %2330 = vmatprep.subr.mxu0 %v131
  %2331 = vmatpush1.msra.mxu0 %v130
  %2332 = vmatprep.subr.mxu0 %v127
  %2333 = vmatpush1.msra.mxu0 %v126
  %2334 = vmatprep.subr.mxu0 %v123
  %2335 = vmatpush1.msra.mxu0 %v122
  %2336 = vmatprep.subr.mxu0 %v119
  %2337 = vmatpush1.msra.mxu0 %v118
  %2338 = vmatprep.subr.mxu0 %v115
  %2339 = vmatpush1.msra.mxu0 %v114
  %2340 = vmatprep.subr.mxu0 %v111
  %2341 = vmatpush1.msra.mxu0 %v110
  %2342 = vmatprep.subr.mxu0 %v107
  %2343 = vmatpush1.msra.mxu0 %v106
  %2344 = vmatprep.subr.mxu0 %v103
  %2345 = vmatpush1.msra.mxu0 %v102
  %2346 = vmatprep.subr.mxu0 %v99
  %2347 = vmatpush1.msra.mxu0 %v98
  %2348 = vmatprep.subr.mxu0 %v95
  %2349 = vmatpush1.msra.mxu0 %v94
  %2350 = vmatprep.subr.mxu0 %v91
  %2351 = vmatpush1.msra.mxu0 %v90
  %2352 = vmatprep.subr.mxu0 %v87
  %2353 = vmatpush1.msra.mxu0 %v86
  %2354 = vmatprep.subr.mxu0 0.0
  %2355 = vmatpush2.msra.mxu0 0.0
  %2356 = vmatprep.subr.mxu0 0.0
  %2357 = vmatpush2.msra.mxu0 0.0
  %2358 = vmatprep.subr.mxu0 0.0
  %2359 = vmatpush2.msra.mxu0 0.0
  %2360 = vmatprep.subr.mxu0 0.0
  %2361 = vmatpush2.msra.mxu0 0.0
  %2362 = vmatprep.subr.mxu0 0.0
  %2363 = vmatpush2.msra.mxu0 0.0
  %2364 = vmatprep.subr.mxu0 0.0
  %2365 = vmatpush2.msra.mxu0 0.0
  %2366 = vmatprep.subr.mxu0 0.0
  %2367 = vmatpush2.msra.mxu0 0.0
  %2368 = vmatprep.subr.mxu0 0.0
  %2369 = vmatpush2.msra.mxu0 0.0
  %2370 = vmatprep.subr.mxu0 0.0
  %2371 = vmatpush2.msra.mxu0 0.0
  %2372 = vmatprep.subr.mxu0 0.0
  %2373 = vmatpush2.msra.mxu0 0.0
  %2374 = vmatprep.subr.mxu0 0.0
  %2375 = vmatpush2.msra.mxu0 0.0
  %2376 = vmatprep.subr.mxu0 0.0
  %2377 = vmatpush2.msra.mxu0 0.0
  %2378 = vmatprep.subr.mxu0 0.0
  %2379 = vmatpush2.msra.mxu0 0.0
  %2380 = vmatprep.subr.mxu0 0.0
  %2381 = vmatpush2.msra.mxu0 0.0
  %2382 = vmatprep.subr.mxu0 0.0
  %2383 = vmatpush2.msra.mxu0 0.0
  %2384 = vmatprep.subr.mxu0 0.0
  %2385 = vmatpush2.msra.mxu0 0.0
  %2386 = vmatprep.mubr.f32.mxu0 0.0
  %2387 = vmatmul.mubr.f32.gmra.mxu0 %v2237
  %v2388 = vpop.f32.mrf.mxu0
  %v2389 = vadd.f32 0.0, %v2388
  %v2390 = vpop.f32.mrf.mxu0
  %v2391 = vadd.f32 0.0, %v2390
  %2392 = vdwg.mxu0
  %2393 = vmatprep.subr.mxu0 %v149
  %2394 = vmatpush1.msra.mxu0 %v148
  %2395 = vmatprep.subr.mxu0 %v145
  %2396 = vmatpush1.msra.mxu0 %v144
  %2397 = vmatprep.subr.mxu0 %v141
  %2398 = vmatpush1.msra.mxu0 %v140
  %2399 = vmatprep.subr.mxu0 %v137
  %2400 = vmatpush1.msra.mxu0 %v136
  %2401 = vmatprep.subr.mxu0 %v133
  %2402 = vmatpush1.msra.mxu0 %v132
  %2403 = vmatprep.subr.mxu0 %v129
  %2404 = vmatpush1.msra.mxu0 %v128
  %2405 = vmatprep.subr.mxu0 %v125
  %2406 = vmatpush1.msra.mxu0 %v124
  %2407 = vmatprep.subr.mxu0 %v121
  %2408 = vmatpush1.msra.mxu0 %v120
  %2409 = vmatprep.subr.mxu0 %v117
  %2410 = vmatpush1.msra.mxu0 %v116
  %2411 = vmatprep.subr.mxu0 %v113
  %2412 = vmatpush1.msra.mxu0 %v112
  %2413 = vmatprep.subr.mxu0 %v109
  %2414 = vmatpush1.msra.mxu0 %v108
  %2415 = vmatprep.subr.mxu0 %v105
  %2416 = vmatpush1.msra.mxu0 %v104
  %2417 = vmatprep.subr.mxu0 %v101
  %2418 = vmatpush1.msra.mxu0 %v100
  %2419 = vmatprep.subr.mxu0 %v97
  %2420 = vmatpush1.msra.mxu0 %v96
  %2421 = vmatprep.subr.mxu0 %v93
  %2422 = vmatpush1.msra.mxu0 %v92
  %2423 = vmatprep.subr.mxu0 %v89
  %2424 = vmatpush1.msra.mxu0 %v88
  %2425 = vmatprep.subr.mxu0 0.0
  %2426 = vmatpush2.msra.mxu0 0.0
  %2427 = vmatprep.subr.mxu0 0.0
  %2428 = vmatpush2.msra.mxu0 0.0
  %2429 = vmatprep.subr.mxu0 0.0
  %2430 = vmatpush2.msra.mxu0 0.0
  %2431 = vmatprep.subr.mxu0 0.0
  %2432 = vmatpush2.msra.mxu0 0.0
  %2433 = vmatprep.subr.mxu0 0.0
  %2434 = vmatpush2.msra.mxu0 0.0
  %2435 = vmatprep.subr.mxu0 0.0
  %2436 = vmatpush2.msra.mxu0 0.0
  %2437 = vmatprep.subr.mxu0 0.0
  %2438 = vmatpush2.msra.mxu0 0.0
  %2439 = vmatprep.subr.mxu0 0.0
  %2440 = vmatpush2.msra.mxu0 0.0
  %2441 = vmatprep.subr.mxu0 0.0
  %2442 = vmatpush2.msra.mxu0 0.0
  %2443 = vmatprep.subr.mxu0 0.0
  %2444 = vmatpush2.msra.mxu0 0.0
  %2445 = vmatprep.subr.mxu0 0.0
  %2446 = vmatpush2.msra.mxu0 0.0
  %2447 = vmatprep.subr.mxu0 0.0
  %2448 = vmatpush2.msra.mxu0 0.0
  %2449 = vmatprep.subr.mxu0 0.0
  %2450 = vmatpush2.msra.mxu0 0.0
  %2451 = vmatprep.subr.mxu0 0.0
  %2452 = vmatpush2.msra.mxu0 0.0
  %2453 = vmatprep.subr.mxu0 0.0
  %2454 = vmatpush2.msra.mxu0 0.0
  %2455 = vmatprep.subr.mxu0 0.0
  %2456 = vmatpush2.msra.mxu0 0.0
  %2457 = vmatprep.mubr.f32.mxu0 0.0
  %2458 = vmatmul.mubr.f32.gmra.mxu0 %v2237
  %v2459 = vpop.f32.mrf.mxu0
  %v2460 = vadd.f32 0.0, %v2459
  %v2461 = vpop.f32.mrf.mxu0
  %v2462 = vadd.f32 0.0, %v2461
  %2463 = vdwg.mxu0
  %v2464 = vadd.f32 %v2318, %v2389
  %v2465 = vadd.f32 %v2319, %v2391
  %v2466 = vadd.f32 %v2320, %v2460
  %v2467 = vadd.f32 %v2321, %v2462
  %v2468 = vxor.u32 %v2317, 2147483648
  %v2469 = vmul.f32 %v2468, 1.442695
  %v2470 = vpow.pop %v2469
  %v2471 = vadd.f32 %v2470, 1.0
  %v2472 = vrcp.pop %v2471
  %v2473 = vmul.f32 1.0, %v2472
  %v2474 = vtanh.pop %v2317
  %v2475 = vmul.f32 %v2473, %v2207
  %2477 = vrot.lane.b32.xlu0 %v2474, 64
  %v2478 = vpop.permute.xlu0 %2477
  %v2480 = vmul.f32 %v2473, %v2478
  %2482 = vrot.lane.b32.xlu0 %v2480, 32
  %v2483 = vpop.permute.xlu0 %2482
  %v2485 = vadd.f32 %v2475, %v2483
  %v2486 = vtanh.pop %v2485
  %2488 = vrot.lane.b32.xlu0 %v2486, 64
  %v2489 = vpop.permute.xlu0 %2488
  %v2491 = vmul.f32 %v2473, %v2489
  %v2492 = vxor.u32 %v2464, 2147483648
  %v2493 = vxor.u32 %v2465, 2147483648
  %v2494 = vmul.f32 %v2492, 1.442695
  %v2495 = vpow.pop %v2494
  %v2496 = vmul.f32 %v2493, 1.442695
  %v2497 = vpow.pop %v2496
  %v2498 = vadd.f32 %v2495, 1.0
  %v2499 = vadd.f32 %v2497, 1.0
  %v2500 = vrcp.pop %v2498
  %v2501 = vmul.f32 1.0, %v2500
  %v2502 = vrcp.pop %v2499
  %v2503 = vmul.f32 1.0, %v2502
  %v2504 = vtanh.pop %v2466
  %v2505 = vxor.u32 %v2467, 2147483648
  %v2506 = vmul.f32 %v2505, 1.442695
  %v2507 = vpow.pop %v2506
  %v2508 = vadd.f32 %v2507, 1.0
  %v2509 = vrcp.pop %v2508
  %v2510 = vmul.f32 1.0, %v2509
  %v2511 = vmul.f32 %v2503, %v2235
  %v2512 = vmul.f32 %v2501, %v2504
  %v2513 = vadd.f32 %v2511, %v2512
  %v2514 = vtanh.pop %v2513
  %v2515 = vmul.f32 %v2510, %v2514
  %2517 = vrot.lane.b32.xlu0 %v2491, 32
  %v2518 = vpop.permute.xlu0 %2517
  %2520 = vst.msk [vmem:[#allocation3 + $0x30] sm:$0xff] %vm575, %v2518
  %2521 = vst [vmem:[#allocation5 + $0x30] sm:$0xff] %v2515
  %v2522 = vld [vmem:[#allocation2 + $0x38] sm:$0xff]
  %v2523 = vsel %vm575, %v2518, 0
  %2525 = vmatprep.subr.mxu0 0.0
  %2526 = vmatpush1.msra.mxu0 0.0
  %2527 = vmatprep.subr.mxu0 0.0
  %2528 = vmatpush1.msra.mxu0 0.0
  %2529 = vmatprep.subr.mxu0 0.0
  %2530 = vmatpush1.msra.mxu0 0.0
  %2531 = vmatprep.subr.mxu0 0.0
  %2532 = vmatpush1.msra.mxu0 0.0
  %2533 = vmatprep.subr.mxu0 0.0
  %2534 = vmatpush1.msra.mxu0 0.0
  %2535 = vmatprep.subr.mxu0 0.0
  %2536 = vmatpush1.msra.mxu0 0.0
  %2537 = vmatprep.subr.mxu0 0.0
  %2538 = vmatpush1.msra.mxu0 0.0
  %2539 = vmatprep.subr.mxu0 0.0
  %2540 = vmatpush1.msra.mxu0 0.0
  %2541 = vmatprep.subr.mxu0 0.0
  %2542 = vmatpush1.msra.mxu0 0.0
  %2543 = vmatprep.subr.mxu0 0.0
  %2544 = vmatpush1.msra.mxu0 0.0
  %2545 = vmatprep.subr.mxu0 0.0
  %2546 = vmatpush1.msra.mxu0 0.0
  %2547 = vmatprep.subr.mxu0 0.0
  %2548 = vmatpush1.msra.mxu0 0.0
  %2549 = vmatprep.subr.mxu0 0.0
  %2550 = vmatpush1.msra.mxu0 %v76
  %2551 = vmatprep.subr.mxu0 0.0
  %2552 = vmatpush1.msra.mxu0 %v75
  %2553 = vmatprep.subr.mxu0 0.0
  %2554 = vmatpush1.msra.mxu0 %v74
  %2555 = vmatprep.subr.mxu0 0.0
  %2556 = vmatpush1.msra.mxu0 %v73
  %2557 = vmatprep.subr.mxu0 0.0
  %2558 = vmatpush2.msra.mxu0 0.0
  %2559 = vmatprep.subr.mxu0 0.0
  %2560 = vmatpush2.msra.mxu0 0.0
  %2561 = vmatprep.subr.mxu0 0.0
  %2562 = vmatpush2.msra.mxu0 0.0
  %2563 = vmatprep.subr.mxu0 0.0
  %2564 = vmatpush2.msra.mxu0 0.0
  %2565 = vmatprep.subr.mxu0 0.0
  %2566 = vmatpush2.msra.mxu0 0.0
  %2567 = vmatprep.subr.mxu0 0.0
  %2568 = vmatpush2.msra.mxu0 0.0
  %2569 = vmatprep.subr.mxu0 0.0
  %2570 = vmatpush2.msra.mxu0 0.0
  %2571 = vmatprep.subr.mxu0 0.0
  %2572 = vmatpush2.msra.mxu0 0.0
  %2573 = vmatprep.subr.mxu0 0.0
  %2574 = vmatpush2.msra.mxu0 0.0
  %2575 = vmatprep.subr.mxu0 0.0
  %2576 = vmatpush2.msra.mxu0 0.0
  %2577 = vmatprep.subr.mxu0 0.0
  %2578 = vmatpush2.msra.mxu0 0.0
  %2579 = vmatprep.subr.mxu0 0.0
  %2580 = vmatpush2.msra.mxu0 0.0
  %2581 = vmatprep.subr.mxu0 0.0
  %2582 = vmatpush2.msra.mxu0 0.0
  %2583 = vmatprep.subr.mxu0 0.0
  %2584 = vmatpush2.msra.mxu0 0.0
  %2585 = vmatprep.subr.mxu0 0.0
  %2586 = vmatpush2.msra.mxu0 0.0
  %2587 = vmatprep.subr.mxu0 0.0
  %2588 = vmatpush2.msra.mxu0 0.0
  %2589 = vmatprep.mubr.f32.mxu0 0.0
  %2590 = vmatmul.mubr.f32.gmra.mxu0 %v2523
  %v2591 = vpop.f32.mrf.mxu0
  %v2592 = vadd.f32 0.0, %v2591
  %v2593 = vpop.f32.mrf.mxu0
  %2594 = vdwg.mxu0
  %v2595 = vadd.f32 %v2522, %v2592
  %v2596 = vld [vmem:[#allocation4 + $0xe0] sm:$0xff]
  %v2597 = vld [vmem:[#allocation4 + $0xe8] sm:$0xff]
  %v2598 = vld [vmem:[#allocation4 + $0xf0] sm:$0xff]
  %v2599 = vld [vmem:[#allocation4 + $0xf8] sm:$0xff]
  %2600 = vmatprep.subr.mxu0 %v147
  %2601 = vmatpush1.msra.mxu0 %v146
  %2602 = vmatprep.subr.mxu0 %v143
  %2603 = vmatpush1.msra.mxu0 %v142
  %2604 = vmatprep.subr.mxu0 %v139
  %2605 = vmatpush1.msra.mxu0 %v138
  %2606 = vmatprep.subr.mxu0 %v135
  %2607 = vmatpush1.msra.mxu0 %v134
  %2608 = vmatprep.subr.mxu0 %v131
  %2609 = vmatpush1.msra.mxu0 %v130
  %2610 = vmatprep.subr.mxu0 %v127
  %2611 = vmatpush1.msra.mxu0 %v126
  %2612 = vmatprep.subr.mxu0 %v123
  %2613 = vmatpush1.msra.mxu0 %v122
  %2614 = vmatprep.subr.mxu0 %v119
  %2615 = vmatpush1.msra.mxu0 %v118
  %2616 = vmatprep.subr.mxu0 %v115
  %2617 = vmatpush1.msra.mxu0 %v114
  %2618 = vmatprep.subr.mxu0 %v111
  %2619 = vmatpush1.msra.mxu0 %v110
  %2620 = vmatprep.subr.mxu0 %v107
  %2621 = vmatpush1.msra.mxu0 %v106
  %2622 = vmatprep.subr.mxu0 %v103
  %2623 = vmatpush1.msra.mxu0 %v102
  %2624 = vmatprep.subr.mxu0 %v99
  %2625 = vmatpush1.msra.mxu0 %v98
  %2626 = vmatprep.subr.mxu0 %v95
  %2627 = vmatpush1.msra.mxu0 %v94
  %2628 = vmatprep.subr.mxu0 %v91
  %2629 = vmatpush1.msra.mxu0 %v90
  %2630 = vmatprep.subr.mxu0 %v87
  %2631 = vmatpush1.msra.mxu0 %v86
  %2632 = vmatprep.subr.mxu0 0.0
  %2633 = vmatpush2.msra.mxu0 0.0
  %2634 = vmatprep.subr.mxu0 0.0
  %2635 = vmatpush2.msra.mxu0 0.0
  %2636 = vmatprep.subr.mxu0 0.0
  %2637 = vmatpush2.msra.mxu0 0.0
  %2638 = vmatprep.subr.mxu0 0.0
  %2639 = vmatpush2.msra.mxu0 0.0
  %2640 = vmatprep.subr.mxu0 0.0
  %2641 = vmatpush2.msra.mxu0 0.0
  %2642 = vmatprep.subr.mxu0 0.0
  %2643 = vmatpush2.msra.mxu0 0.0
  %2644 = vmatprep.subr.mxu0 0.0
  %2645 = vmatpush2.msra.mxu0 0.0
  %2646 = vmatprep.subr.mxu0 0.0
  %2647 = vmatpush2.msra.mxu0 0.0
  %2648 = vmatprep.subr.mxu0 0.0
  %2649 = vmatpush2.msra.mxu0 0.0
  %2650 = vmatprep.subr.mxu0 0.0
  %2651 = vmatpush2.msra.mxu0 0.0
  %2652 = vmatprep.subr.mxu0 0.0
  %2653 = vmatpush2.msra.mxu0 0.0
  %2654 = vmatprep.subr.mxu0 0.0
  %2655 = vmatpush2.msra.mxu0 0.0
  %2656 = vmatprep.subr.mxu0 0.0
  %2657 = vmatpush2.msra.mxu0 0.0
  %2658 = vmatprep.subr.mxu0 0.0
  %2659 = vmatpush2.msra.mxu0 0.0
  %2660 = vmatprep.subr.mxu0 0.0
  %2661 = vmatpush2.msra.mxu0 0.0
  %2662 = vmatprep.subr.mxu0 0.0
  %2663 = vmatpush2.msra.mxu0 0.0
  %2664 = vmatprep.mubr.f32.mxu0 0.0
  %2665 = vmatmul.mubr.f32.gmra.mxu0 %v2515
  %v2666 = vpop.f32.mrf.mxu0
  %v2667 = vadd.f32 0.0, %v2666
  %v2668 = vpop.f32.mrf.mxu0
  %v2669 = vadd.f32 0.0, %v2668
  %2670 = vdwg.mxu0
  %2671 = vmatprep.subr.mxu0 %v149
  %2672 = vmatpush1.msra.mxu0 %v148
  %2673 = vmatprep.subr.mxu0 %v145
  %2674 = vmatpush1.msra.mxu0 %v144
  %2675 = vmatprep.subr.mxu0 %v141
  %2676 = vmatpush1.msra.mxu0 %v140
  %2677 = vmatprep.subr.mxu0 %v137
  %2678 = vmatpush1.msra.mxu0 %v136
  %2679 = vmatprep.subr.mxu0 %v133
  %2680 = vmatpush1.msra.mxu0 %v132
  %2681 = vmatprep.subr.mxu0 %v129
  %2682 = vmatpush1.msra.mxu0 %v128
  %2683 = vmatprep.subr.mxu0 %v125
  %2684 = vmatpush1.msra.mxu0 %v124
  %2685 = vmatprep.subr.mxu0 %v121
  %2686 = vmatpush1.msra.mxu0 %v120
  %2687 = vmatprep.subr.mxu0 %v117
  %2688 = vmatpush1.msra.mxu0 %v116
  %2689 = vmatprep.subr.mxu0 %v113
  %2690 = vmatpush1.msra.mxu0 %v112
  %2691 = vmatprep.subr.mxu0 %v109
  %2692 = vmatpush1.msra.mxu0 %v108
  %2693 = vmatprep.subr.mxu0 %v105
  %2694 = vmatpush1.msra.mxu0 %v104
  %2695 = vmatprep.subr.mxu0 %v101
  %2696 = vmatpush1.msra.mxu0 %v100
  %2697 = vmatprep.subr.mxu0 %v97
  %2698 = vmatpush1.msra.mxu0 %v96
  %2699 = vmatprep.subr.mxu0 %v93
  %2700 = vmatpush1.msra.mxu0 %v92
  %2701 = vmatprep.subr.mxu0 %v89
  %2702 = vmatpush1.msra.mxu0 %v88
  %2703 = vmatprep.subr.mxu0 0.0
  %2704 = vmatpush2.msra.mxu0 0.0
  %2705 = vmatprep.subr.mxu0 0.0
  %2706 = vmatpush2.msra.mxu0 0.0
  %2707 = vmatprep.subr.mxu0 0.0
  %2708 = vmatpush2.msra.mxu0 0.0
  %2709 = vmatprep.subr.mxu0 0.0
  %2710 = vmatpush2.msra.mxu0 0.0
  %2711 = vmatprep.subr.mxu0 0.0
  %2712 = vmatpush2.msra.mxu0 0.0
  %2713 = vmatprep.subr.mxu0 0.0
  %2714 = vmatpush2.msra.mxu0 0.0
  %2715 = vmatprep.subr.mxu0 0.0
  %2716 = vmatpush2.msra.mxu0 0.0
  %2717 = vmatprep.subr.mxu0 0.0
  %2718 = vmatpush2.msra.mxu0 0.0
  %2719 = vmatprep.subr.mxu0 0.0
  %2720 = vmatpush2.msra.mxu0 0.0
  %2721 = vmatprep.subr.mxu0 0.0
  %2722 = vmatpush2.msra.mxu0 0.0
  %2723 = vmatprep.subr.mxu0 0.0
  %2724 = vmatpush2.msra.mxu0 0.0
  %2725 = vmatprep.subr.mxu0 0.0
  %2726 = vmatpush2.msra.mxu0 0.0
  %2727 = vmatprep.subr.mxu0 0.0
  %2728 = vmatpush2.msra.mxu0 0.0
  %2729 = vmatprep.subr.mxu0 0.0
  %2730 = vmatpush2.msra.mxu0 0.0
  %2731 = vmatprep.subr.mxu0 0.0
  %2732 = vmatpush2.msra.mxu0 0.0
  %2733 = vmatprep.subr.mxu0 0.0
  %2734 = vmatpush2.msra.mxu0 0.0
  %2735 = vmatprep.mubr.f32.mxu0 0.0
  %2736 = vmatmul.mubr.f32.gmra.mxu0 %v2515
  %v2737 = vpop.f32.mrf.mxu0
  %v2738 = vadd.f32 0.0, %v2737
  %v2739 = vpop.f32.mrf.mxu0
  %v2740 = vadd.f32 0.0, %v2739
  %2741 = vdwg.mxu0
  %v2742 = vadd.f32 %v2596, %v2667
  %v2743 = vadd.f32 %v2597, %v2669
  %v2744 = vadd.f32 %v2598, %v2738
  %v2745 = vadd.f32 %v2599, %v2740
  %v2746 = vxor.u32 %v2595, 2147483648
  %v2747 = vmul.f32 %v2746, 1.442695
  %v2748 = vpow.pop %v2747
  %v2749 = vadd.f32 %v2748, 1.0
  %v2750 = vrcp.pop %v2749
  %v2751 = vmul.f32 1.0, %v2750
  %v2752 = vtanh.pop %v2595
  %v2753 = vmul.f32 %v2751, %v2485
  %2755 = vrot.lane.b32.xlu0 %v2752, 64
  %v2756 = vpop.permute.xlu0 %2755
  %v2758 = vmul.f32 %v2751, %v2756
  %2760 = vrot.lane.b32.xlu0 %v2758, 32
  %v2761 = vpop.permute.xlu0 %2760
  %v2763 = vadd.f32 %v2753, %v2761
  %v2764 = vtanh.pop %v2763
  %2766 = vrot.lane.b32.xlu0 %v2764, 64
  %v2767 = vpop.permute.xlu0 %2766
  %v2769 = vmul.f32 %v2751, %v2767
  %v2770 = vxor.u32 %v2742, 2147483648
  %v2771 = vxor.u32 %v2743, 2147483648
  %v2772 = vmul.f32 %v2770, 1.442695
  %v2773 = vpow.pop %v2772
  %v2774 = vmul.f32 %v2771, 1.442695
  %v2775 = vpow.pop %v2774
  %v2776 = vadd.f32 %v2773, 1.0
  %v2777 = vadd.f32 %v2775, 1.0
  %v2778 = vrcp.pop %v2776
  %v2779 = vmul.f32 1.0, %v2778
  %v2780 = vrcp.pop %v2777
  %v2781 = vmul.f32 1.0, %v2780
  %v2782 = vtanh.pop %v2744
  %v2783 = vxor.u32 %v2745, 2147483648
  %v2784 = vmul.f32 %v2783, 1.442695
  %v2785 = vpow.pop %v2784
  %v2786 = vadd.f32 %v2785, 1.0
  %v2787 = vrcp.pop %v2786
  %v2788 = vmul.f32 1.0, %v2787
  %v2789 = vmul.f32 %v2781, %v2513
  %v2790 = vmul.f32 %v2779, %v2782
  %v2791 = vadd.f32 %v2789, %v2790
  %v2792 = vtanh.pop %v2791
  %v2793 = vmul.f32 %v2788, %v2792
  %2795 = vrot.lane.b32.xlu0 %v2769, 32
  %v2796 = vpop.permute.xlu0 %2795
  %2798 = vst.msk [vmem:[#allocation3 + $0x38] sm:$0xff] %vm575, %v2796
  %2799 = vst [vmem:[#allocation5 + $0x38] sm:$0xff] %v2793
  %2800 = vst.msk [vmem:[%s18] sm:$0xff] %vm575, %v2796
  %2802 = vrot.lane.b32.xlu0 %v2763, 96
  %v2803 = vpop.permute.xlu0 %2802
  %2805 = vst.msk [vmem:[%s19] sm:$0xff] %vm575, %v2803
  %2806 = vst [vmem:[%s20] sm:$0xff] %v2793
  %2807 = vst [vmem:[%s21] sm:$0xff] %v2791
  %v2808 = vld [vmem:[%s4] sm:$0xff]
  %v2809 = vld [vmem:[%s4 + $0x8] sm:$0xff]
  %v2810 = vld [vmem:[%s4 + $0x10] sm:$0xff]
  %v2811 = vld [vmem:[%s4 + $0x18] sm:$0xff]
  %v2812 = vld [vmem:[%s5] sm:$0xff]
  %v2813 = vld [vmem:[%s5 + $0x8] sm:$0xff]
  %v2814 = vld [vmem:[%s5 + $0x10] sm:$0xff]
  %v2815 = vld [vmem:[%s5 + $0x18] sm:$0xff]
  %v2816 = vld [vmem:[%s6] sm:$0x1]
  %v2817 = vld [vmem:[%s12] sm:$0xff]
  %v2818 = vld [vmem:[%s12 + $0x8] sm:$0xff]
  %v2819 = vld [vmem:[%s12 + $0x10] sm:$0xff]
  %v2820 = vld [vmem:[%s12 + $0x18] sm:$0xff]
  %v2821 = vld [vmem:[%s12 + $0x20] sm:$0xff]
  %v2822 = vld [vmem:[%s12 + $0x28] sm:$0xff]
  %v2823 = vld [vmem:[%s12 + $0x30] sm:$0xff]
  %v2824 = vld [vmem:[%s12 + $0x38] sm:$0xff]
  %v2825 = vld [vmem:[%s12 + $0x40] sm:$0xff]
  %v2826 = vld [vmem:[%s12 + $0x48] sm:$0xff]
  %v2827 = vld [vmem:[%s12 + $0x50] sm:$0xff]
  %v2828 = vld [vmem:[%s12 + $0x58] sm:$0xff]
  %v2829 = vld [vmem:[%s12 + $0x60] sm:$0xff]
  %v2830 = vld [vmem:[%s12 + $0x68] sm:$0xff]
  %v2831 = vld [vmem:[%s12 + $0x70] sm:$0xff]
  %v2832 = vld [vmem:[%s12 + $0x78] sm:$0xff]
  %v2833 = vld [vmem:[%s12 + $0x80] sm:$0xff]
  %v2834 = vld [vmem:[%s12 + $0x88] sm:$0xff]
  %v2835 = vld [vmem:[%s12 + $0x90] sm:$0xff]
  %v2836 = vld [vmem:[%s12 + $0x98] sm:$0xff]
  %v2837 = vld [vmem:[%s12 + $0xa0] sm:$0xff]
  %v2838 = vld [vmem:[%s12 + $0xa8] sm:$0xff]
  %v2839 = vld [vmem:[%s12 + $0xb0] sm:$0xff]
  %v2840 = vld [vmem:[%s12 + $0xb8] sm:$0xff]
  %v2841 = vld [vmem:[%s12 + $0xc0] sm:$0xff]
  %v2842 = vld [vmem:[%s12 + $0xc8] sm:$0xff]
  %v2843 = vld [vmem:[%s12 + $0xd0] sm:$0xff]
  %v2844 = vld [vmem:[%s12 + $0xd8] sm:$0xff]
  %v2845 = vld [vmem:[%s12 + $0xe0] sm:$0xff]
  %v2846 = vld [vmem:[%s12 + $0xe8] sm:$0xff]
  %v2847 = vld [vmem:[%s12 + $0xf0] sm:$0xff]
  %v2848 = vld [vmem:[%s12 + $0xf8] sm:$0xff]
  %v2849 = vld [vmem:[%s12 + $0x100] sm:$0xff]
  %v2850 = vld [vmem:[%s12 + $0x108] sm:$0xff]
  %v2851 = vld [vmem:[%s12 + $0x110] sm:$0xff]
  %v2852 = vld [vmem:[%s12 + $0x118] sm:$0xff]
  %v2853 = vld [vmem:[%s12 + $0x120] sm:$0xff]
  %v2854 = vld [vmem:[%s12 + $0x128] sm:$0xff]
  %v2855 = vld [vmem:[%s12 + $0x130] sm:$0xff]
  %v2856 = vld [vmem:[%s12 + $0x138] sm:$0xff]
  %v2857 = vld [vmem:[%s12 + $0x140] sm:$0xff]
  %v2858 = vld [vmem:[%s12 + $0x148] sm:$0xff]
  %v2859 = vld [vmem:[%s12 + $0x150] sm:$0xff]
  %v2860 = vld [vmem:[%s12 + $0x158] sm:$0xff]
  %v2861 = vld [vmem:[%s12 + $0x160] sm:$0xff]
  %v2862 = vld [vmem:[%s12 + $0x168] sm:$0xff]
  %v2863 = vld [vmem:[%s12 + $0x170] sm:$0xff]
  %v2864 = vld [vmem:[%s12 + $0x178] sm:$0xff]
  %v2865 = vld [vmem:[%s12 + $0x180] sm:$0xff]
  %v2866 = vld [vmem:[%s12 + $0x188] sm:$0xff]
  %v2867 = vld [vmem:[%s12 + $0x190] sm:$0xff]
  %v2868 = vld [vmem:[%s12 + $0x198] sm:$0xff]
  %v2869 = vld [vmem:[%s12 + $0x1a0] sm:$0xff]
  %v2870 = vld [vmem:[%s12 + $0x1a8] sm:$0xff]
  %v2871 = vld [vmem:[%s12 + $0x1b0] sm:$0xff]
  %v2872 = vld [vmem:[%s12 + $0x1b8] sm:$0xff]
  %v2873 = vld [vmem:[%s12 + $0x1c0] sm:$0xff]
  %v2874 = vld [vmem:[%s12 + $0x1c8] sm:$0xff]
  %v2875 = vld [vmem:[%s12 + $0x1d0] sm:$0xff]
  %v2876 = vld [vmem:[%s12 + $0x1d8] sm:$0xff]
  %v2877 = vld [vmem:[%s12 + $0x1e0] sm:$0xff]
  %v2878 = vld [vmem:[%s12 + $0x1e8] sm:$0xff]
  %v2879 = vld [vmem:[%s12 + $0x1f0] sm:$0xff]
  %v2880 = vld [vmem:[%s12 + $0x1f8] sm:$0xff]
  %v2881 = vld [vmem:[%s13] sm:$0xff]
  %v2882 = vld [vmem:[%s13 + $0x8] sm:$0xff]
  %v2883 = vld [vmem:[%s13 + $0x10] sm:$0xff]
  %v2884 = vld [vmem:[%s13 + $0x18] sm:$0xff]
  %v2885 = vld [vmem:[%s13 + $0x20] sm:$0xff]
  %v2886 = vld [vmem:[%s13 + $0x28] sm:$0xff]
  %v2887 = vld [vmem:[%s13 + $0x30] sm:$0xff]
  %v2888 = vld [vmem:[%s13 + $0x38] sm:$0xff]
  %v2889 = vld [vmem:[%s13 + $0x40] sm:$0xff]
  %v2890 = vld [vmem:[%s13 + $0x48] sm:$0xff]
  %v2891 = vld [vmem:[%s13 + $0x50] sm:$0xff]
  %v2892 = vld [vmem:[%s13 + $0x58] sm:$0xff]
  %v2893 = vld [vmem:[%s13 + $0x60] sm:$0xff]
  %v2894 = vld [vmem:[%s13 + $0x68] sm:$0xff]
  %v2895 = vld [vmem:[%s13 + $0x70] sm:$0xff]
  %v2896 = vld [vmem:[%s13 + $0x78] sm:$0xff]
  %v2897 = vld [vmem:[%s13 + $0x80] sm:$0xff]
  %v2898 = vld [vmem:[%s13 + $0x88] sm:$0xff]
  %v2899 = vld [vmem:[%s13 + $0x90] sm:$0xff]
  %v2900 = vld [vmem:[%s13 + $0x98] sm:$0xff]
  %v2901 = vld [vmem:[%s13 + $0xa0] sm:$0xff]
  %v2902 = vld [vmem:[%s13 + $0xa8] sm:$0xff]
  %v2903 = vld [vmem:[%s13 + $0xb0] sm:$0xff]
  %v2904 = vld [vmem:[%s13 + $0xb8] sm:$0xff]
  %v2905 = vld [vmem:[%s13 + $0xc0] sm:$0xff]
  %v2906 = vld [vmem:[%s13 + $0xc8] sm:$0xff]
  %v2907 = vld [vmem:[%s13 + $0xd0] sm:$0xff]
  %v2908 = vld [vmem:[%s13 + $0xd8] sm:$0xff]
  %v2909 = vld [vmem:[%s13 + $0xe0] sm:$0xff]
  %v2910 = vld [vmem:[%s13 + $0xe8] sm:$0xff]
  %v2911 = vld [vmem:[%s13 + $0xf0] sm:$0xff]
  %v2912 = vld [vmem:[%s13 + $0xf8] sm:$0xff]
  %v2913 = vld [vmem:[%s13 + $0x100] sm:$0xff]
  %v2914 = vld [vmem:[%s13 + $0x108] sm:$0xff]
  %v2915 = vld [vmem:[%s13 + $0x110] sm:$0xff]
  %v2916 = vld [vmem:[%s13 + $0x118] sm:$0xff]
  %v2917 = vld [vmem:[%s13 + $0x120] sm:$0xff]
  %v2918 = vld [vmem:[%s13 + $0x128] sm:$0xff]
  %v2919 = vld [vmem:[%s13 + $0x130] sm:$0xff]
  %v2920 = vld [vmem:[%s13 + $0x138] sm:$0xff]
  %v2921 = vld [vmem:[%s13 + $0x140] sm:$0xff]
  %v2922 = vld [vmem:[%s13 + $0x148] sm:$0xff]
  %v2923 = vld [vmem:[%s13 + $0x150] sm:$0xff]
  %v2924 = vld [vmem:[%s13 + $0x158] sm:$0xff]
  %v2925 = vld [vmem:[%s13 + $0x160] sm:$0xff]
  %v2926 = vld [vmem:[%s13 + $0x168] sm:$0xff]
  %v2927 = vld [vmem:[%s13 + $0x170] sm:$0xff]
  %v2928 = vld [vmem:[%s13 + $0x178] sm:$0xff]
  %v2929 = vld [vmem:[%s13 + $0x180] sm:$0xff]
  %v2930 = vld [vmem:[%s13 + $0x188] sm:$0xff]
  %v2931 = vld [vmem:[%s13 + $0x190] sm:$0xff]
  %v2932 = vld [vmem:[%s13 + $0x198] sm:$0xff]
  %v2933 = vld [vmem:[%s13 + $0x1a0] sm:$0xff]
  %v2934 = vld [vmem:[%s13 + $0x1a8] sm:$0xff]
  %v2935 = vld [vmem:[%s13 + $0x1b0] sm:$0xff]
  %v2936 = vld [vmem:[%s13 + $0x1b8] sm:$0xff]
  %v2937 = vld [vmem:[%s13 + $0x1c0] sm:$0xff]
  %v2938 = vld [vmem:[%s13 + $0x1c8] sm:$0xff]
  %v2939 = vld [vmem:[%s13 + $0x1d0] sm:$0xff]
  %v2940 = vld [vmem:[%s13 + $0x1d8] sm:$0xff]
  %v2941 = vld [vmem:[%s13 + $0x1e0] sm:$0xff]
  %v2942 = vld [vmem:[%s13 + $0x1e8] sm:$0xff]
  %v2943 = vld [vmem:[%s13 + $0x1f0] sm:$0xff]
  %v2944 = vld [vmem:[%s13 + $0x1f8] sm:$0xff]
  %v2945 = vld [vmem:[%s14] sm:$0xf]
  %v2946 = vld [vmem:[#allocation3] sm:$0xff]
  %v2947 = vld [vmem:[#allocation3 + $0x8] sm:$0xff]
  %v2948 = vld [vmem:[#allocation3 + $0x10] sm:$0xff]
  %v2949 = vld [vmem:[#allocation3 + $0x18] sm:$0xff]
  %v2950 = vld [vmem:[#allocation3 + $0x20] sm:$0xff]
  %v2951 = vld [vmem:[#allocation3 + $0x28] sm:$0xff]
  %v2952 = vld [vmem:[#allocation3 + $0x30] sm:$0xff]
  %v2953 = vld [vmem:[#allocation3 + $0x38] sm:$0xff]
  %v2954 = vld [vmem:[#allocation5] sm:$0xff]
  %v2955 = vld [vmem:[#allocation5 + $0x8] sm:$0xff]
  %v2956 = vld [vmem:[#allocation5 + $0x10] sm:$0xff]
  %v2957 = vld [vmem:[#allocation5 + $0x18] sm:$0xff]
  %v2958 = vld [vmem:[#allocation5 + $0x20] sm:$0xff]
  %v2959 = vld [vmem:[#allocation5 + $0x28] sm:$0xff]
  %v2960 = vld [vmem:[#allocation5 + $0x30] sm:$0xff]
  %v2961 = vld [vmem:[#allocation5 + $0x38] sm:$0xff]
  %v2963 = vlaneseq
  %v2964 = vshrl.u32 %v2963, 7
  %v2965 = vsub.s32 0, %v2964
  %v2966 = vrot.slane %v2816, %v2965
  %v2969 = vsel %vm575, %v2946, 0
  %v2972 = vsel %vm575, %v2947, 0
  %v2975 = vsel %vm575, %v2948, 0
  %v2978 = vsel %vm575, %v2949, 0
  %v2981 = vsel %vm575, %v2950, 0
  %v2984 = vsel %vm575, %v2951, 0
  %v2987 = vsel %vm575, %v2952, 0
  %v2990 = vsel %vm575, %v2953, 0
  %2992 = vmatprep.subr.mxu0 0.0
  %2993 = vmatpush1.msra.mxu0 0.0
  %2994 = vmatprep.subr.mxu0 0.0
  %2995 = vmatpush1.msra.mxu0 0.0
  %2996 = vmatprep.subr.mxu0 0.0
  %2997 = vmatpush1.msra.mxu0 0.0
  %2998 = vmatprep.subr.mxu0 0.0
  %2999 = vmatpush1.msra.mxu0 0.0
  %3000 = vmatprep.subr.mxu0 0.0
  %3001 = vmatpush1.msra.mxu0 0.0
  %3002 = vmatprep.subr.mxu0 0.0
  %3003 = vmatpush1.msra.mxu0 0.0
  %3004 = vmatprep.subr.mxu0 0.0
  %3005 = vmatpush1.msra.mxu0 0.0
  %3006 = vmatprep.subr.mxu0 0.0
  %3007 = vmatpush1.msra.mxu0 0.0
  %3008 = vmatprep.subr.mxu0 0.0
  %3009 = vmatpush1.msra.mxu0 0.0
  %3010 = vmatprep.subr.mxu0 0.0
  %3011 = vmatpush1.msra.mxu0 0.0
  %3012 = vmatprep.subr.mxu0 0.0
  %3013 = vmatpush1.msra.mxu0 0.0
  %3014 = vmatprep.subr.mxu0 0.0
  %3015 = vmatpush1.msra.mxu0 0.0
  %3016 = vmatprep.subr.mxu0 0.0
  %3017 = vmatpush1.msra.mxu0 %v2811
  %3018 = vmatprep.subr.mxu0 0.0
  %3019 = vmatpush1.msra.mxu0 %v2810
  %3020 = vmatprep.subr.mxu0 0.0
  %3021 = vmatpush1.msra.mxu0 %v2809
  %3022 = vmatprep.subr.mxu0 0.0
  %3023 = vmatpush1.msra.mxu0 %v2808
  %3024 = vmatprep.subr.mxu0 0.0
  %3025 = vmatpush2.msra.mxu0 0.0
  %3026 = vmatprep.subr.mxu0 0.0
  %3027 = vmatpush2.msra.mxu0 0.0
  %3028 = vmatprep.subr.mxu0 0.0
  %3029 = vmatpush2.msra.mxu0 0.0
  %3030 = vmatprep.subr.mxu0 0.0
  %3031 = vmatpush2.msra.mxu0 0.0
  %3032 = vmatprep.subr.mxu0 0.0
  %3033 = vmatpush2.msra.mxu0 0.0
  %3034 = vmatprep.subr.mxu0 0.0
  %3035 = vmatpush2.msra.mxu0 0.0
  %3036 = vmatprep.subr.mxu0 0.0
  %3037 = vmatpush2.msra.mxu0 0.0
  %3038 = vmatprep.subr.mxu0 0.0
  %3039 = vmatpush2.msra.mxu0 0.0
  %3040 = vmatprep.subr.mxu0 0.0
  %3041 = vmatpush2.msra.mxu0 0.0
  %3042 = vmatprep.subr.mxu0 0.0
  %3043 = vmatpush2.msra.mxu0 0.0
  %3044 = vmatprep.subr.mxu0 0.0
  %3045 = vmatpush2.msra.mxu0 0.0
  %3046 = vmatprep.subr.mxu0 0.0
  %3047 = vmatpush2.msra.mxu0 0.0
  %3048 = vmatprep.subr.mxu0 0.0
  %3049 = vmatpush2.msra.mxu0 0.0
  %3050 = vmatprep.subr.mxu0 0.0
  %3051 = vmatpush2.msra.mxu0 0.0
  %3052 = vmatprep.subr.mxu0 0.0
  %3053 = vmatpush2.msra.mxu0 0.0
  %3054 = vmatprep.subr.mxu0 0.0
  %3055 = vmatpush2.msra.mxu0 0.0
  %3056 = vmatprep.mubr.f32.mxu0 0.0
  %3057 = vmatmul.mubr.f32.gmra.mxu0 %v2969
  %v3058 = vpop.f32.mrf.mxu0
  %v3059 = vadd.f32 %v2966, %v3058
  %v3060 = vpop.f32.mrf.mxu0
  %3061 = vmatprep.mubr.f32.mxu0 0.0
  %3062 = vmatmul.mubr.f32.gmra.mxu0 %v2972
  %v3063 = vpop.f32.mrf.mxu0
  %v3064 = vadd.f32 %v2966, %v3063
  %v3065 = vpop.f32.mrf.mxu0
  %3066 = vmatprep.mubr.f32.mxu0 0.0
  %3067 = vmatmul.mubr.f32.gmra.mxu0 %v2975
  %v3068 = vpop.f32.mrf.mxu0
  %v3069 = vadd.f32 %v2966, %v3068
  %v3070 = vpop.f32.mrf.mxu0
  %3071 = vmatprep.mubr.f32.mxu0 0.0
  %3072 = vmatmul.mubr.f32.gmra.mxu0 %v2978
  %v3073 = vpop.f32.mrf.mxu0
  %v3074 = vadd.f32 %v2966, %v3073
  %v3075 = vpop.f32.mrf.mxu0
  %3076 = vmatprep.mubr.f32.mxu0 0.0
  %3077 = vmatmul.mubr.f32.gmra.mxu0 %v2981
  %v3078 = vpop.f32.mrf.mxu0
  %v3079 = vadd.f32 %v2966, %v3078
  %v3080 = vpop.f32.mrf.mxu0
  %3081 = vmatprep.mubr.f32.mxu0 0.0
  %3082 = vmatmul.mubr.f32.gmra.mxu0 %v2984
  %v3083 = vpop.f32.mrf.mxu0
  %v3084 = vadd.f32 %v2966, %v3083
  %v3085 = vpop.f32.mrf.mxu0
  %3086 = vmatprep.mubr.f32.mxu0 0.0
  %3087 = vmatmul.mubr.f32.gmra.mxu0 %v2987
  %v3088 = vpop.f32.mrf.mxu0
  %v3089 = vadd.f32 %v2966, %v3088
  %v3090 = vpop.f32.mrf.mxu0
  %3091 = vmatprep.mubr.f32.mxu0 0.0
  %3092 = vmatmul.mubr.f32.gmra.mxu0 %v2990
  %v3093 = vpop.f32.mrf.mxu0
  %v3094 = vadd.f32 %v2966, %v3093
  %v3095 = vpop.f32.mrf.mxu0
  %3096 = vdwg.mxu0
  %3097 = vst [vmem:[#allocation2] sm:$0xff] %v3059
  %3098 = vst [vmem:[#allocation2 + $0x8] sm:$0xff] %v3064
  %3099 = vst [vmem:[#allocation2 + $0x10] sm:$0xff] %v3069
  %3100 = vst [vmem:[#allocation2 + $0x18] sm:$0xff] %v3074
  %3101 = vst [vmem:[#allocation2 + $0x20] sm:$0xff] %v3079
  %3102 = vst [vmem:[#allocation2 + $0x28] sm:$0xff] %v3084
  %3103 = vst [vmem:[#allocation2 + $0x30] sm:$0xff] %v3089
  %3104 = vst [vmem:[#allocation2 + $0x38] sm:$0xff] %v3094
  %v3106 = vlaneseq
  %v3107 = vshrl.u32 %v3106, 7
  %v3108 = vsub.s32 0, %v3107
  %v3109 = vrot.slane %v2945, %v3108
  %v3110 = vlaneseq
  %v3111 = vshrl.u32 %v3110, 7
  %v3112 = vsub.s32 1, %v3111
  %v3113 = vrot.slane %v2945, %v3112
  %v3114 = vlaneseq
  %v3115 = vshrl.u32 %v3114, 7
  %v3116 = vsub.s32 2, %v3115
  %v3117 = vrot.slane %v2945, %v3116
  %v3118 = vlaneseq
  %v3119 = vshrl.u32 %v3118, 7
  %v3120 = vsub.s32 3, %v3119
  %v3121 = vrot.slane %v2945, %v3120
  %3126 = vmatprep.subr.mxu0 %v2878
  %3127 = vmatpush1.msra.mxu0 %v2877
  %3128 = vmatprep.subr.mxu0 %v2874
  %3129 = vmatpush1.msra.mxu0 %v2873
  %3130 = vmatprep.subr.mxu0 %v2870
  %3131 = vmatpush1.msra.mxu0 %v2869
  %3132 = vmatprep.subr.mxu0 %v2866
  %3133 = vmatpush1.msra.mxu0 %v2865
  %3134 = vmatprep.subr.mxu0 %v2862
  %3135 = vmatpush1.msra.mxu0 %v2861
  %3136 = vmatprep.subr.mxu0 %v2858
  %3137 = vmatpush1.msra.mxu0 %v2857
  %3138 = vmatprep.subr.mxu0 %v2854
  %3139 = vmatpush1.msra.mxu0 %v2853
  %3140 = vmatprep.subr.mxu0 %v2850
  %3141 = vmatpush1.msra.mxu0 %v2849
  %3142 = vmatprep.subr.mxu0 %v2846
  %3143 = vmatpush1.msra.mxu0 %v2845
  %3144 = vmatprep.subr.mxu0 %v2842
  %3145 = vmatpush1.msra.mxu0 %v2841
  %3146 = vmatprep.subr.mxu0 %v2838
  %3147 = vmatpush1.msra.mxu0 %v2837
  %3148 = vmatprep.subr.mxu0 %v2834
  %3149 = vmatpush1.msra.mxu0 %v2833
  %3150 = vmatprep.subr.mxu0 %v2830
  %3151 = vmatpush1.msra.mxu0 %v2829
  %3152 = vmatprep.subr.mxu0 %v2826
  %3153 = vmatpush1.msra.mxu0 %v2825
  %3154 = vmatprep.subr.mxu0 %v2822
  %3155 = vmatpush1.msra.mxu0 %v2821
  %3156 = vmatprep.subr.mxu0 %v2818
  %3157 = vmatpush1.msra.mxu0 %v2817
  %3158 = vmatprep.subr.mxu0 0.0
  %3159 = vmatpush2.msra.mxu0 0.0
  %3160 = vmatprep.subr.mxu0 0.0
  %3161 = vmatpush2.msra.mxu0 0.0
  %3162 = vmatprep.subr.mxu0 0.0
  %3163 = vmatpush2.msra.mxu0 0.0
  %3164 = vmatprep.subr.mxu0 0.0
  %3165 = vmatpush2.msra.mxu0 0.0
  %3166 = vmatprep.subr.mxu0 0.0
  %3167 = vmatpush2.msra.mxu0 0.0
  %3168 = vmatprep.subr.mxu0 0.0
  %3169 = vmatpush2.msra.mxu0 0.0
  %3170 = vmatprep.subr.mxu0 0.0
  %3171 = vmatpush2.msra.mxu0 0.0
  %3172 = vmatprep.subr.mxu0 0.0
  %3173 = vmatpush2.msra.mxu0 0.0
  %3174 = vmatprep.subr.mxu0 0.0
  %3175 = vmatpush2.msra.mxu0 0.0
  %3176 = vmatprep.subr.mxu0 0.0
  %3177 = vmatpush2.msra.mxu0 0.0
  %3178 = vmatprep.subr.mxu0 0.0
  %3179 = vmatpush2.msra.mxu0 0.0
  %3180 = vmatprep.subr.mxu0 0.0
  %3181 = vmatpush2.msra.mxu0 0.0
  %3182 = vmatprep.subr.mxu0 0.0
  %3183 = vmatpush2.msra.mxu0 0.0
  %3184 = vmatprep.subr.mxu0 0.0
  %3185 = vmatpush2.msra.mxu0 0.0
  %3186 = vmatprep.subr.mxu0 0.0
  %3187 = vmatpush2.msra.mxu0 0.0
  %3188 = vmatprep.subr.mxu0 0.0
  %3189 = vmatpush2.msra.mxu0 0.0
  %3190 = vmatprep.mubr.f32.mxu0 0.0
  %3191 = vmatmul.mubr.f32.gmra.mxu0 %v2954
  %v3192 = vpop.f32.mrf.mxu0
  %v3193 = vadd.f32 %v3109, %v3192
  %v3194 = vpop.f32.mrf.mxu0
  %v3195 = vadd.f32 %v3113, %v3194
  %3196 = vmatprep.mubr.f32.mxu0 0.0
  %3197 = vmatmul.mubr.f32.gmra.mxu0 %v2955
  %v3198 = vpop.f32.mrf.mxu0
  %v3199 = vadd.f32 %v3109, %v3198
  %v3200 = vpop.f32.mrf.mxu0
  %v3201 = vadd.f32 %v3113, %v3200
  %3202 = vmatprep.mubr.f32.mxu0 0.0
  %3203 = vmatmul.mubr.f32.gmra.mxu0 %v2956
  %v3204 = vpop.f32.mrf.mxu0
  %v3205 = vadd.f32 %v3109, %v3204
  %v3206 = vpop.f32.mrf.mxu0
  %v3207 = vadd.f32 %v3113, %v3206
  %3208 = vmatprep.mubr.f32.mxu0 0.0
  %3209 = vmatmul.mubr.f32.gmra.mxu0 %v2957
  %v3210 = vpop.f32.mrf.mxu0
  %v3211 = vadd.f32 %v3109, %v3210
  %v3212 = vpop.f32.mrf.mxu0
  %v3213 = vadd.f32 %v3113, %v3212
  %3214 = vmatprep.mubr.f32.mxu0 0.0
  %3215 = vmatmul.mubr.f32.gmra.mxu0 %v2958
  %v3216 = vpop.f32.mrf.mxu0
  %v3217 = vadd.f32 %v3109, %v3216
  %v3218 = vpop.f32.mrf.mxu0
  %v3219 = vadd.f32 %v3113, %v3218
  %3220 = vmatprep.mubr.f32.mxu0 0.0
  %3221 = vmatmul.mubr.f32.gmra.mxu0 %v2959
  %v3222 = vpop.f32.mrf.mxu0
  %v3223 = vadd.f32 %v3109, %v3222
  %v3224 = vpop.f32.mrf.mxu0
  %v3225 = vadd.f32 %v3113, %v3224
  %3226 = vmatprep.mubr.f32.mxu0 0.0
  %3227 = vmatmul.mubr.f32.gmra.mxu0 %v2960
  %v3228 = vpop.f32.mrf.mxu0
  %v3229 = vadd.f32 %v3109, %v3228
  %v3230 = vpop.f32.mrf.mxu0
  %v3231 = vadd.f32 %v3113, %v3230
  %3232 = vmatprep.mubr.f32.mxu0 0.0
  %3233 = vmatmul.mubr.f32.gmra.mxu0 %v2961
  %v3234 = vpop.f32.mrf.mxu0
  %v3235 = vadd.f32 %v3109, %v3234
  %v3236 = vpop.f32.mrf.mxu0
  %v3237 = vadd.f32 %v3113, %v3236
  %3238 = vdwg.mxu0
  %3239 = vmatprep.subr.mxu0 %v2880
  %3240 = vmatpush1.msra.mxu0 %v2879
  %3241 = vmatprep.subr.mxu0 %v2876
  %3242 = vmatpush1.msra.mxu0 %v2875
  %3243 = vmatprep.subr.mxu0 %v2872
  %3244 = vmatpush1.msra.mxu0 %v2871
  %3245 = vmatprep.subr.mxu0 %v2868
  %3246 = vmatpush1.msra.mxu0 %v2867
  %3247 = vmatprep.subr.mxu0 %v2864
  %3248 = vmatpush1.msra.mxu0 %v2863
  %3249 = vmatprep.subr.mxu0 %v2860
  %3250 = vmatpush1.msra.mxu0 %v2859
  %3251 = vmatprep.subr.mxu0 %v2856
  %3252 = vmatpush1.msra.mxu0 %v2855
  %3253 = vmatprep.subr.mxu0 %v2852
  %3254 = vmatpush1.msra.mxu0 %v2851
  %3255 = vmatprep.subr.mxu0 %v2848
  %3256 = vmatpush1.msra.mxu0 %v2847
  %3257 = vmatprep.subr.mxu0 %v2844
  %3258 = vmatpush1.msra.mxu0 %v2843
  %3259 = vmatprep.subr.mxu0 %v2840
  %3260 = vmatpush1.msra.mxu0 %v2839
  %3261 = vmatprep.subr.mxu0 %v2836
  %3262 = vmatpush1.msra.mxu0 %v2835
  %3263 = vmatprep.subr.mxu0 %v2832
  %3264 = vmatpush1.msra.mxu0 %v2831
  %3265 = vmatprep.subr.mxu0 %v2828
  %3266 = vmatpush1.msra.mxu0 %v2827
  %3267 = vmatprep.subr.mxu0 %v2824
  %3268 = vmatpush1.msra.mxu0 %v2823
  %3269 = vmatprep.subr.mxu0 %v2820
  %3270 = vmatpush1.msra.mxu0 %v2819
  %3271 = vmatprep.subr.mxu0 0.0
  %3272 = vmatpush2.msra.mxu0 0.0
  %3273 = vmatprep.subr.mxu0 0.0
  %3274 = vmatpush2.msra.mxu0 0.0
  %3275 = vmatprep.subr.mxu0 0.0
  %3276 = vmatpush2.msra.mxu0 0.0
  %3277 = vmatprep.subr.mxu0 0.0
  %3278 = vmatpush2.msra.mxu0 0.0
  %3279 = vmatprep.subr.mxu0 0.0
  %3280 = vmatpush2.msra.mxu0 0.0
  %3281 = vmatprep.subr.mxu0 0.0
  %3282 = vmatpush2.msra.mxu0 0.0
  %3283 = vmatprep.subr.mxu0 0.0
  %3284 = vmatpush2.msra.mxu0 0.0
  %3285 = vmatprep.subr.mxu0 0.0
  %3286 = vmatpush2.msra.mxu0 0.0
  %3287 = vmatprep.subr.mxu0 0.0
  %3288 = vmatpush2.msra.mxu0 0.0
  %3289 = vmatprep.subr.mxu0 0.0
  %3290 = vmatpush2.msra.mxu0 0.0
  %3291 = vmatprep.subr.mxu0 0.0
  %3292 = vmatpush2.msra.mxu0 0.0
  %3293 = vmatprep.subr.mxu0 0.0
  %3294 = vmatpush2.msra.mxu0 0.0
  %3295 = vmatprep.subr.mxu0 0.0
  %3296 = vmatpush2.msra.mxu0 0.0
  %3297 = vmatprep.subr.mxu0 0.0
  %3298 = vmatpush2.msra.mxu0 0.0
  %3299 = vmatprep.subr.mxu0 0.0
  %3300 = vmatpush2.msra.mxu0 0.0
  %3301 = vmatprep.subr.mxu0 0.0
  %3302 = vmatpush2.msra.mxu0 0.0
  %3303 = vmatprep.mubr.f32.mxu0 0.0
  %3304 = vmatmul.mubr.f32.gmra.mxu0 %v2954
  %v3305 = vpop.f32.mrf.mxu0
  %v3306 = vadd.f32 %v3117, %v3305
  %v3307 = vpop.f32.mrf.mxu0
  %v3308 = vadd.f32 %v3121, %v3307
  %3309 = vmatprep.mubr.f32.mxu0 0.0
  %3310 = vmatmul.mubr.f32.gmra.mxu0 %v2955
  %v3311 = vpop.f32.mrf.mxu0
  %v3312 = vadd.f32 %v3117, %v3311
  %v3313 = vpop.f32.mrf.mxu0
  %v3314 = vadd.f32 %v3121, %v3313
  %3315 = vmatprep.mubr.f32.mxu0 0.0
  %3316 = vmatmul.mubr.f32.gmra.mxu0 %v2956
  %v3317 = vpop.f32.mrf.mxu0
  %v3318 = vadd.f32 %v3117, %v3317
  %v3319 = vpop.f32.mrf.mxu0
  %v3320 = vadd.f32 %v3121, %v3319
  %3321 = vmatprep.mubr.f32.mxu0 0.0
  %3322 = vmatmul.mubr.f32.gmra.mxu0 %v2957
  %v3323 = vpop.f32.mrf.mxu0
  %v3324 = vadd.f32 %v3117, %v3323
  %v3325 = vpop.f32.mrf.mxu0
  %v3326 = vadd.f32 %v3121, %v3325
  %3327 = vmatprep.mubr.f32.mxu0 0.0
  %3328 = vmatmul.mubr.f32.gmra.mxu0 %v2958
  %v3329 = vpop.f32.mrf.mxu0
  %v3330 = vadd.f32 %v3117, %v3329
  %v3331 = vpop.f32.mrf.mxu0
  %v3332 = vadd.f32 %v3121, %v3331
  %3333 = vmatprep.mubr.f32.mxu0 0.0
  %3334 = vmatmul.mubr.f32.gmra.mxu0 %v2959
  %v3335 = vpop.f32.mrf.mxu0
  %v3336 = vadd.f32 %v3117, %v3335
  %v3337 = vpop.f32.mrf.mxu0
  %v3338 = vadd.f32 %v3121, %v3337
  %3339 = vmatprep.mubr.f32.mxu0 0.0
  %3340 = vmatmul.mubr.f32.gmra.mxu0 %v2960
  %v3341 = vpop.f32.mrf.mxu0
  %v3342 = vadd.f32 %v3117, %v3341
  %v3343 = vpop.f32.mrf.mxu0
  %v3344 = vadd.f32 %v3121, %v3343
  %3345 = vmatprep.mubr.f32.mxu0 0.0
  %3346 = vmatmul.mubr.f32.gmra.mxu0 %v2961
  %v3347 = vpop.f32.mrf.mxu0
  %v3348 = vadd.f32 %v3117, %v3347
  %v3349 = vpop.f32.mrf.mxu0
  %v3350 = vadd.f32 %v3121, %v3349
  %3351 = vdwg.mxu0
  %3352 = vst [vmem:[#allocation4] sm:$0xff] %v3193
  %3353 = vst [vmem:[#allocation4 + $0x8] sm:$0xff] %v3195
  %3354 = vst [vmem:[#allocation4 + $0x10] sm:$0xff] %v3306
  %3355 = vst [vmem:[#allocation4 + $0x18] sm:$0xff] %v3308
  %3356 = vst [vmem:[#allocation4 + $0x20] sm:$0xff] %v3199
  %3357 = vst [vmem:[#allocation4 + $0x28] sm:$0xff] %v3201
  %3358 = vst [vmem:[#allocation4 + $0x30] sm:$0xff] %v3312
  %3359 = vst [vmem:[#allocation4 + $0x38] sm:$0xff] %v3314
  %3360 = vst [vmem:[#allocation4 + $0x40] sm:$0xff] %v3205
  %3361 = vst [vmem:[#allocation4 + $0x48] sm:$0xff] %v3207
  %3362 = vst [vmem:[#allocation4 + $0x50] sm:$0xff] %v3318
  %3363 = vst [vmem:[#allocation4 + $0x58] sm:$0xff] %v3320
  %3364 = vst [vmem:[#allocation4 + $0x60] sm:$0xff] %v3211
  %3365 = vst [vmem:[#allocation4 + $0x68] sm:$0xff] %v3213
  %3366 = vst [vmem:[#allocation4 + $0x70] sm:$0xff] %v3324
  %3367 = vst [vmem:[#allocation4 + $0x78] sm:$0xff] %v3326
  %3368 = vst [vmem:[#allocation4 + $0x80] sm:$0xff] %v3217
  %3369 = vst [vmem:[#allocation4 + $0x88] sm:$0xff] %v3219
  %3370 = vst [vmem:[#allocation4 + $0x90] sm:$0xff] %v3330
  %3371 = vst [vmem:[#allocation4 + $0x98] sm:$0xff] %v3332
  %3372 = vst [vmem:[#allocation4 + $0xa0] sm:$0xff] %v3223
  %3373 = vst [vmem:[#allocation4 + $0xa8] sm:$0xff] %v3225
  %3374 = vst [vmem:[#allocation4 + $0xb0] sm:$0xff] %v3336
  %3375 = vst [vmem:[#allocation4 + $0xb8] sm:$0xff] %v3338
  %3376 = vst [vmem:[#allocation4 + $0xc0] sm:$0xff] %v3229
  %3377 = vst [vmem:[#allocation4 + $0xc8] sm:$0xff] %v3231
  %3378 = vst [vmem:[#allocation4 + $0xd0] sm:$0xff] %v3342
  %3379 = vst [vmem:[#allocation4 + $0xd8] sm:$0xff] %v3344
  %3380 = vst [vmem:[#allocation4 + $0xe0] sm:$0xff] %v3235
  %3381 = vst [vmem:[#allocation4 + $0xe8] sm:$0xff] %v3237
  %3382 = vst [vmem:[#allocation4 + $0xf0] sm:$0xff] %v3348
  %3383 = vst [vmem:[#allocation4 + $0xf8] sm:$0xff] %v3350
  %v3384 = vld [vmem:[#allocation2] sm:$0xff]
  %3385 = vmatprep.subr.mxu0 0.0
  %3386 = vmatpush1.msra.mxu0 0.0
  %3387 = vmatprep.subr.mxu0 0.0
  %3388 = vmatpush1.msra.mxu0 0.0
  %3389 = vmatprep.subr.mxu0 0.0
  %3390 = vmatpush1.msra.mxu0 0.0
  %3391 = vmatprep.subr.mxu0 0.0
  %3392 = vmatpush1.msra.mxu0 0.0
  %3393 = vmatprep.subr.mxu0 0.0
  %3394 = vmatpush1.msra.mxu0 0.0
  %3395 = vmatprep.subr.mxu0 0.0
  %3396 = vmatpush1.msra.mxu0 0.0
  %3397 = vmatprep.subr.mxu0 0.0
  %3398 = vmatpush1.msra.mxu0 0.0
  %3399 = vmatprep.subr.mxu0 0.0
  %3400 = vmatpush1.msra.mxu0 0.0
  %3401 = vmatprep.subr.mxu0 0.0
  %3402 = vmatpush1.msra.mxu0 0.0
  %3403 = vmatprep.subr.mxu0 0.0
  %3404 = vmatpush1.msra.mxu0 0.0
  %3405 = vmatprep.subr.mxu0 0.0
  %3406 = vmatpush1.msra.mxu0 0.0
  %3407 = vmatprep.subr.mxu0 0.0
  %3408 = vmatpush1.msra.mxu0 0.0
  %3409 = vmatprep.subr.mxu0 0.0
  %3410 = vmatpush1.msra.mxu0 %v2815
  %3411 = vmatprep.subr.mxu0 0.0
  %3412 = vmatpush1.msra.mxu0 %v2814
  %3413 = vmatprep.subr.mxu0 0.0
  %3414 = vmatpush1.msra.mxu0 %v2813
  %3415 = vmatprep.subr.mxu0 0.0
  %3416 = vmatpush1.msra.mxu0 %v2812
  %3417 = vmatprep.subr.mxu0 0.0
  %3418 = vmatpush2.msra.mxu0 0.0
  %3419 = vmatprep.subr.mxu0 0.0
  %3420 = vmatpush2.msra.mxu0 0.0
  %3421 = vmatprep.subr.mxu0 0.0
  %3422 = vmatpush2.msra.mxu0 0.0
  %3423 = vmatprep.subr.mxu0 0.0
  %3424 = vmatpush2.msra.mxu0 0.0
  %3425 = vmatprep.subr.mxu0 0.0
  %3426 = vmatpush2.msra.mxu0 0.0
  %3427 = vmatprep.subr.mxu0 0.0
  %3428 = vmatpush2.msra.mxu0 0.0
  %3429 = vmatprep.subr.mxu0 0.0
  %3430 = vmatpush2.msra.mxu0 0.0
  %3431 = vmatprep.subr.mxu0 0.0
  %3432 = vmatpush2.msra.mxu0 0.0
  %3433 = vmatprep.subr.mxu0 0.0
  %3434 = vmatpush2.msra.mxu0 0.0
  %3435 = vmatprep.subr.mxu0 0.0
  %3436 = vmatpush2.msra.mxu0 0.0
  %3437 = vmatprep.subr.mxu0 0.0
  %3438 = vmatpush2.msra.mxu0 0.0
  %3439 = vmatprep.subr.mxu0 0.0
  %3440 = vmatpush2.msra.mxu0 0.0
  %3441 = vmatprep.subr.mxu0 0.0
  %3442 = vmatpush2.msra.mxu0 0.0
  %3443 = vmatprep.subr.mxu0 0.0
  %3444 = vmatpush2.msra.mxu0 0.0
  %3445 = vmatprep.subr.mxu0 0.0
  %3446 = vmatpush2.msra.mxu0 0.0
  %3447 = vmatprep.subr.mxu0 0.0
  %3448 = vmatpush2.msra.mxu0 0.0
  %3449 = vmatprep.mubr.f32.mxu0 0.0
  %3450 = vmatmul.mubr.f32.gmra.mxu0 %v577
  %v3451 = vpop.f32.mrf.mxu0
  %v3452 = vadd.f32 0.0, %v3451
  %v3453 = vpop.f32.mrf.mxu0
  %3454 = vdwg.mxu0
  %v3455 = vadd.f32 %v3384, %v3452
  %v3456 = vld [vmem:[#allocation4] sm:$0xff]
  %v3457 = vld [vmem:[#allocation4 + $0x8] sm:$0xff]
  %v3458 = vld [vmem:[#allocation4 + $0x10] sm:$0xff]
  %v3459 = vld [vmem:[#allocation4 + $0x18] sm:$0xff]
  %3460 = vmatprep.subr.mxu0 %v2942
  %3461 = vmatpush1.msra.mxu0 %v2941
  %3462 = vmatprep.subr.mxu0 %v2938
  %3463 = vmatpush1.msra.mxu0 %v2937
  %3464 = vmatprep.subr.mxu0 %v2934
  %3465 = vmatpush1.msra.mxu0 %v2933
  %3466 = vmatprep.subr.mxu0 %v2930
  %3467 = vmatpush1.msra.mxu0 %v2929
  %3468 = vmatprep.subr.mxu0 %v2926
  %3469 = vmatpush1.msra.mxu0 %v2925
  %3470 = vmatprep.subr.mxu0 %v2922
  %3471 = vmatpush1.msra.mxu0 %v2921
  %3472 = vmatprep.subr.mxu0 %v2918
  %3473 = vmatpush1.msra.mxu0 %v2917
  %3474 = vmatprep.subr.mxu0 %v2914
  %3475 = vmatpush1.msra.mxu0 %v2913
  %3476 = vmatprep.subr.mxu0 %v2910
  %3477 = vmatpush1.msra.mxu0 %v2909
  %3478 = vmatprep.subr.mxu0 %v2906
  %3479 = vmatpush1.msra.mxu0 %v2905
  %3480 = vmatprep.subr.mxu0 %v2902
  %3481 = vmatpush1.msra.mxu0 %v2901
  %3482 = vmatprep.subr.mxu0 %v2898
  %3483 = vmatpush1.msra.mxu0 %v2897
  %3484 = vmatprep.subr.mxu0 %v2894
  %3485 = vmatpush1.msra.mxu0 %v2893
  %3486 = vmatprep.subr.mxu0 %v2890
  %3487 = vmatpush1.msra.mxu0 %v2889
  %3488 = vmatprep.subr.mxu0 %v2886
  %3489 = vmatpush1.msra.mxu0 %v2885
  %3490 = vmatprep.subr.mxu0 %v2882
  %3491 = vmatpush1.msra.mxu0 %v2881
  %3492 = vmatprep.subr.mxu0 0.0
  %3493 = vmatpush2.msra.mxu0 0.0
  %3494 = vmatprep.subr.mxu0 0.0
  %3495 = vmatpush2.msra.mxu0 0.0
  %3496 = vmatprep.subr.mxu0 0.0
  %3497 = vmatpush2.msra.mxu0 0.0
  %3498 = vmatprep.subr.mxu0 0.0
  %3499 = vmatpush2.msra.mxu0 0.0
  %3500 = vmatprep.subr.mxu0 0.0
  %3501 = vmatpush2.msra.mxu0 0.0
  %3502 = vmatprep.subr.mxu0 0.0
  %3503 = vmatpush2.msra.mxu0 0.0
  %3504 = vmatprep.subr.mxu0 0.0
  %3505 = vmatpush2.msra.mxu0 0.0
  %3506 = vmatprep.subr.mxu0 0.0
  %3507 = vmatpush2.msra.mxu0 0.0
  %3508 = vmatprep.subr.mxu0 0.0
  %3509 = vmatpush2.msra.mxu0 0.0
  %3510 = vmatprep.subr.mxu0 0.0
  %3511 = vmatpush2.msra.mxu0 0.0
  %3512 = vmatprep.subr.mxu0 0.0
  %3513 = vmatpush2.msra.mxu0 0.0
  %3514 = vmatprep.subr.mxu0 0.0
  %3515 = vmatpush2.msra.mxu0 0.0
  %3516 = vmatprep.subr.mxu0 0.0
  %3517 = vmatpush2.msra.mxu0 0.0
  %3518 = vmatprep.subr.mxu0 0.0
  %3519 = vmatpush2.msra.mxu0 0.0
  %3520 = vmatprep.subr.mxu0 0.0
  %3521 = vmatpush2.msra.mxu0 0.0
  %3522 = vmatprep.subr.mxu0 0.0
  %3523 = vmatpush2.msra.mxu0 0.0
  %3524 = vmatprep.mubr.f32.mxu0 0.0
  %3525 = vmatmul.mubr.f32.gmra.mxu0 0.0
  %v3526 = vpop.f32.mrf.mxu0
  %v3527 = vadd.f32 0.0, %v3526
  %v3528 = vpop.f32.mrf.mxu0
  %v3529 = vadd.f32 0.0, %v3528
  %3530 = vdwg.mxu0
  %3531 = vmatprep.subr.mxu0 %v2944
  %3532 = vmatpush1.msra.mxu0 %v2943
  %3533 = vmatprep.subr.mxu0 %v2940
  %3534 = vmatpush1.msra.mxu0 %v2939
  %3535 = vmatprep.subr.mxu0 %v2936
  %3536 = vmatpush1.msra.mxu0 %v2935
  %3537 = vmatprep.subr.mxu0 %v2932
  %3538 = vmatpush1.msra.mxu0 %v2931
  %3539 = vmatprep.subr.mxu0 %v2928
  %3540 = vmatpush1.msra.mxu0 %v2927
  %3541 = vmatprep.subr.mxu0 %v2924
  %3542 = vmatpush1.msra.mxu0 %v2923
  %3543 = vmatprep.subr.mxu0 %v2920
  %3544 = vmatpush1.msra.mxu0 %v2919
  %3545 = vmatprep.subr.mxu0 %v2916
  %3546 = vmatpush1.msra.mxu0 %v2915
  %3547 = vmatprep.subr.mxu0 %v2912
  %3548 = vmatpush1.msra.mxu0 %v2911
  %3549 = vmatprep.subr.mxu0 %v2908
  %3550 = vmatpush1.msra.mxu0 %v2907
  %3551 = vmatprep.subr.mxu0 %v2904
  %3552 = vmatpush1.msra.mxu0 %v2903
  %3553 = vmatprep.subr.mxu0 %v2900
  %3554 = vmatpush1.msra.mxu0 %v2899
  %3555 = vmatprep.subr.mxu0 %v2896
  %3556 = vmatpush1.msra.mxu0 %v2895
  %3557 = vmatprep.subr.mxu0 %v2892
  %3558 = vmatpush1.msra.mxu0 %v2891
  %3559 = vmatprep.subr.mxu0 %v2888
  %3560 = vmatpush1.msra.mxu0 %v2887
  %3561 = vmatprep.subr.mxu0 %v2884
  %3562 = vmatpush1.msra.mxu0 %v2883
  %3563 = vmatprep.subr.mxu0 0.0
  %3564 = vmatpush2.msra.mxu0 0.0
  %3565 = vmatprep.subr.mxu0 0.0
  %3566 = vmatpush2.msra.mxu0 0.0
  %3567 = vmatprep.subr.mxu0 0.0
  %3568 = vmatpush2.msra.mxu0 0.0
  %3569 = vmatprep.subr.mxu0 0.0
  %3570 = vmatpush2.msra.mxu0 0.0
  %3571 = vmatprep.subr.mxu0 0.0
  %3572 = vmatpush2.msra.mxu0 0.0
  %3573 = vmatprep.subr.mxu0 0.0
  %3574 = vmatpush2.msra.mxu0 0.0
  %3575 = vmatprep.subr.mxu0 0.0
  %3576 = vmatpush2.msra.mxu0 0.0
  %3577 = vmatprep.subr.mxu0 0.0
  %3578 = vmatpush2.msra.mxu0 0.0
  %3579 = vmatprep.subr.mxu0 0.0
  %3580 = vmatpush2.msra.mxu0 0.0
  %3581 = vmatprep.subr.mxu0 0.0
  %3582 = vmatpush2.msra.mxu0 0.0
  %3583 = vmatprep.subr.mxu0 0.0
  %3584 = vmatpush2.msra.mxu0 0.0
  %3585 = vmatprep.subr.mxu0 0.0
  %3586 = vmatpush2.msra.mxu0 0.0
  %3587 = vmatprep.subr.mxu0 0.0
  %3588 = vmatpush2.msra.mxu0 0.0
  %3589 = vmatprep.subr.mxu0 0.0
  %3590 = vmatpush2.msra.mxu0 0.0
  %3591 = vmatprep.subr.mxu0 0.0
  %3592 = vmatpush2.msra.mxu0 0.0
  %3593 = vmatprep.subr.mxu0 0.0
  %3594 = vmatpush2.msra.mxu0 0.0
  %3595 = vmatprep.mubr.f32.mxu0 0.0
  %3596 = vmatmul.mubr.f32.gmra.mxu0 0.0
  %v3597 = vpop.f32.mrf.mxu0
  %v3598 = vadd.f32 0.0, %v3597
  %v3599 = vpop.f32.mrf.mxu0
  %v3600 = vadd.f32 0.0, %v3599
  %3601 = vdwg.mxu0
  %v3602 = vadd.f32 %v3456, %v3527
  %v3603 = vadd.f32 %v3457, %v3529
  %v3604 = vadd.f32 %v3458, %v3598
  %v3605 = vadd.f32 %v3459, %v3600
  %v3606 = vxor.u32 %v3455, 2147483648
  %v3607 = vmul.f32 %v3606, 1.442695
  %v3608 = vpow.pop %v3607
  %v3609 = vadd.f32 %v3608, 1.0
  %v3610 = vrcp.pop %v3609
  %v3611 = vmul.f32 1.0, %v3610
  %v3612 = vtanh.pop %v3455
  %v3613 = vmul.f32 %v3611, 0.0
  %3615 = vrot.lane.b32.xlu0 %v3612, 64
  %v3616 = vpop.permute.xlu0 %3615
  %v3618 = vmul.f32 %v3611, %v3616
  %3620 = vrot.lane.b32.xlu0 %v3618, 32
  %v3621 = vpop.permute.xlu0 %3620
  %v3623 = vadd.f32 %v3613, %v3621
  %v3624 = vtanh.pop %v3623
  %3626 = vrot.lane.b32.xlu0 %v3624, 64
  %v3627 = vpop.permute.xlu0 %3626
  %v3629 = vmul.f32 %v3611, %v3627
  %v3630 = vxor.u32 %v3602, 2147483648
  %v3631 = vxor.u32 %v3603, 2147483648
  %v3632 = vmul.f32 %v3630, 1.442695
  %v3633 = vpow.pop %v3632
  %v3634 = vmul.f32 %v3631, 1.442695
  %v3635 = vpow.pop %v3634
  %v3636 = vadd.f32 %v3633, 1.0
  %v3637 = vadd.f32 %v3635, 1.0
  %v3638 = vrcp.pop %v3636
  %v3639 = vmul.f32 1.0, %v3638
  %v3640 = vrcp.pop %v3637
  %v3641 = vmul.f32 1.0, %v3640
  %v3642 = vtanh.pop %v3604
  %v3643 = vxor.u32 %v3605, 2147483648
  %v3644 = vmul.f32 %v3643, 1.442695
  %v3645 = vpow.pop %v3644
  %v3646 = vadd.f32 %v3645, 1.0
  %v3647 = vrcp.pop %v3646
  %v3648 = vmul.f32 1.0, %v3647
  %v3649 = vmul.f32 %v3641, 0.0
  %v3650 = vmul.f32 %v3639, %v3642
  %v3651 = vadd.f32 %v3649, %v3650
  %v3652 = vtanh.pop %v3651
  %v3653 = vmul.f32 %v3648, %v3652
  %3655 = vrot.lane.b32.xlu0 %v3629, 32
  %v3656 = vpop.permute.xlu0 %3655
  %3658 = vst.msk [vmem:[#allocation3] sm:$0xff] %vm575, %v3656
  %3659 = vst [vmem:[#allocation5] sm:$0xff] %v3653
  %v3660 = vld [vmem:[#allocation2 + $0x8] sm:$0xff]
  %v3661 = vsel %vm575, %v3656, 0
  %3663 = vmatprep.subr.mxu0 0.0
  %3664 = vmatpush1.msra.mxu0 0.0
  %3665 = vmatprep.subr.mxu0 0.0
  %3666 = vmatpush1.msra.mxu0 0.0
  %3667 = vmatprep.subr.mxu0 0.0
  %3668 = vmatpush1.msra.mxu0 0.0
  %3669 = vmatprep.subr.mxu0 0.0
  %3670 = vmatpush1.msra.mxu0 0.0
  %3671 = vmatprep.subr.mxu0 0.0
  %3672 = vmatpush1.msra.mxu0 0.0
  %3673 = vmatprep.subr.mxu0 0.0
  %3674 = vmatpush1.msra.mxu0 0.0
  %3675 = vmatprep.subr.mxu0 0.0
  %3676 = vmatpush1.msra.mxu0 0.0
  %3677 = vmatprep.subr.mxu0 0.0
  %3678 = vmatpush1.msra.mxu0 0.0
  %3679 = vmatprep.subr.mxu0 0.0
  %3680 = vmatpush1.msra.mxu0 0.0
  %3681 = vmatprep.subr.mxu0 0.0
  %3682 = vmatpush1.msra.mxu0 0.0
  %3683 = vmatprep.subr.mxu0 0.0
  %3684 = vmatpush1.msra.mxu0 0.0
  %3685 = vmatprep.subr.mxu0 0.0
  %3686 = vmatpush1.msra.mxu0 0.0
  %3687 = vmatprep.subr.mxu0 0.0
  %3688 = vmatpush1.msra.mxu0 %v2815
  %3689 = vmatprep.subr.mxu0 0.0
  %3690 = vmatpush1.msra.mxu0 %v2814
  %3691 = vmatprep.subr.mxu0 0.0
  %3692 = vmatpush1.msra.mxu0 %v2813
  %3693 = vmatprep.subr.mxu0 0.0
  %3694 = vmatpush1.msra.mxu0 %v2812
  %3695 = vmatprep.subr.mxu0 0.0
  %3696 = vmatpush2.msra.mxu0 0.0
  %3697 = vmatprep.subr.mxu0 0.0
  %3698 = vmatpush2.msra.mxu0 0.0
  %3699 = vmatprep.subr.mxu0 0.0
  %3700 = vmatpush2.msra.mxu0 0.0
  %3701 = vmatprep.subr.mxu0 0.0
  %3702 = vmatpush2.msra.mxu0 0.0
  %3703 = vmatprep.subr.mxu0 0.0
  %3704 = vmatpush2.msra.mxu0 0.0
  %3705 = vmatprep.subr.mxu0 0.0
  %3706 = vmatpush2.msra.mxu0 0.0
  %3707 = vmatprep.subr.mxu0 0.0
  %3708 = vmatpush2.msra.mxu0 0.0
  %3709 = vmatprep.subr.mxu0 0.0
  %3710 = vmatpush2.msra.mxu0 0.0
  %3711 = vmatprep.subr.mxu0 0.0
  %3712 = vmatpush2.msra.mxu0 0.0
  %3713 = vmatprep.subr.mxu0 0.0
  %3714 = vmatpush2.msra.mxu0 0.0
  %3715 = vmatprep.subr.mxu0 0.0
  %3716 = vmatpush2.msra.mxu0 0.0
  %3717 = vmatprep.subr.mxu0 0.0
  %3718 = vmatpush2.msra.mxu0 0.0
  %3719 = vmatprep.subr.mxu0 0.0
  %3720 = vmatpush2.msra.mxu0 0.0
  %3721 = vmatprep.subr.mxu0 0.0
  %3722 = vmatpush2.msra.mxu0 0.0
  %3723 = vmatprep.subr.mxu0 0.0
  %3724 = vmatpush2.msra.mxu0 0.0
  %3725 = vmatprep.subr.mxu0 0.0
  %3726 = vmatpush2.msra.mxu0 0.0
  %3727 = vmatprep.mubr.f32.mxu0 0.0
  %3728 = vmatmul.mubr.f32.gmra.mxu0 %v3661
  %v3729 = vpop.f32.mrf.mxu0
  %v3730 = vadd.f32 0.0, %v3729
  %v3731 = vpop.f32.mrf.mxu0
  %3732 = vdwg.mxu0
  %v3733 = vadd.f32 %v3660, %v3730
  %v3734 = vld [vmem:[#allocation4 + $0x20] sm:$0xff]
  %v3735 = vld [vmem:[#allocation4 + $0x28] sm:$0xff]
  %v3736 = vld [vmem:[#allocation4 + $0x30] sm:$0xff]
  %v3737 = vld [vmem:[#allocation4 + $0x38] sm:$0xff]
  %3738 = vmatprep.subr.mxu0 %v2942
  %3739 = vmatpush1.msra.mxu0 %v2941
  %3740 = vmatprep.subr.mxu0 %v2938
  %3741 = vmatpush1.msra.mxu0 %v2937
  %3742 = vmatprep.subr.mxu0 %v2934
  %3743 = vmatpush1.msra.mxu0 %v2933
  %3744 = vmatprep.subr.mxu0 %v2930
  %3745 = vmatpush1.msra.mxu0 %v2929
  %3746 = vmatprep.subr.mxu0 %v2926
  %3747 = vmatpush1.msra.mxu0 %v2925
  %3748 = vmatprep.subr.mxu0 %v2922
  %3749 = vmatpush1.msra.mxu0 %v2921
  %3750 = vmatprep.subr.mxu0 %v2918
  %3751 = vmatpush1.msra.mxu0 %v2917
  %3752 = vmatprep.subr.mxu0 %v2914
  %3753 = vmatpush1.msra.mxu0 %v2913
  %3754 = vmatprep.subr.mxu0 %v2910
  %3755 = vmatpush1.msra.mxu0 %v2909
  %3756 = vmatprep.subr.mxu0 %v2906
  %3757 = vmatpush1.msra.mxu0 %v2905
  %3758 = vmatprep.subr.mxu0 %v2902
  %3759 = vmatpush1.msra.mxu0 %v2901
  %3760 = vmatprep.subr.mxu0 %v2898
  %3761 = vmatpush1.msra.mxu0 %v2897
  %3762 = vmatprep.subr.mxu0 %v2894
  %3763 = vmatpush1.msra.mxu0 %v2893
  %3764 = vmatprep.subr.mxu0 %v2890
  %3765 = vmatpush1.msra.mxu0 %v2889
  %3766 = vmatprep.subr.mxu0 %v2886
  %3767 = vmatpush1.msra.mxu0 %v2885
  %3768 = vmatprep.subr.mxu0 %v2882
  %3769 = vmatpush1.msra.mxu0 %v2881
  %3770 = vmatprep.subr.mxu0 0.0
  %3771 = vmatpush2.msra.mxu0 0.0
  %3772 = vmatprep.subr.mxu0 0.0
  %3773 = vmatpush2.msra.mxu0 0.0
  %3774 = vmatprep.subr.mxu0 0.0
  %3775 = vmatpush2.msra.mxu0 0.0
  %3776 = vmatprep.subr.mxu0 0.0
  %3777 = vmatpush2.msra.mxu0 0.0
  %3778 = vmatprep.subr.mxu0 0.0
  %3779 = vmatpush2.msra.mxu0 0.0
  %3780 = vmatprep.subr.mxu0 0.0
  %3781 = vmatpush2.msra.mxu0 0.0
  %3782 = vmatprep.subr.mxu0 0.0
  %3783 = vmatpush2.msra.mxu0 0.0
  %3784 = vmatprep.subr.mxu0 0.0
  %3785 = vmatpush2.msra.mxu0 0.0
  %3786 = vmatprep.subr.mxu0 0.0
  %3787 = vmatpush2.msra.mxu0 0.0
  %3788 = vmatprep.subr.mxu0 0.0
  %3789 = vmatpush2.msra.mxu0 0.0
  %3790 = vmatprep.subr.mxu0 0.0
  %3791 = vmatpush2.msra.mxu0 0.0
  %3792 = vmatprep.subr.mxu0 0.0
  %3793 = vmatpush2.msra.mxu0 0.0
  %3794 = vmatprep.subr.mxu0 0.0
  %3795 = vmatpush2.msra.mxu0 0.0
  %3796 = vmatprep.subr.mxu0 0.0
  %3797 = vmatpush2.msra.mxu0 0.0
  %3798 = vmatprep.subr.mxu0 0.0
  %3799 = vmatpush2.msra.mxu0 0.0
  %3800 = vmatprep.subr.mxu0 0.0
  %3801 = vmatpush2.msra.mxu0 0.0
  %3802 = vmatprep.mubr.f32.mxu0 0.0
  %3803 = vmatmul.mubr.f32.gmra.mxu0 %v3653
  %v3804 = vpop.f32.mrf.mxu0
  %v3805 = vadd.f32 0.0, %v3804
  %v3806 = vpop.f32.mrf.mxu0
  %v3807 = vadd.f32 0.0, %v3806
  %3808 = vdwg.mxu0
  %3809 = vmatprep.subr.mxu0 %v2944
  %3810 = vmatpush1.msra.mxu0 %v2943
  %3811 = vmatprep.subr.mxu0 %v2940
  %3812 = vmatpush1.msra.mxu0 %v2939
  %3813 = vmatprep.subr.mxu0 %v2936
  %3814 = vmatpush1.msra.mxu0 %v2935
  %3815 = vmatprep.subr.mxu0 %v2932
  %3816 = vmatpush1.msra.mxu0 %v2931
  %3817 = vmatprep.subr.mxu0 %v2928
  %3818 = vmatpush1.msra.mxu0 %v2927
  %3819 = vmatprep.subr.mxu0 %v2924
  %3820 = vmatpush1.msra.mxu0 %v2923
  %3821 = vmatprep.subr.mxu0 %v2920
  %3822 = vmatpush1.msra.mxu0 %v2919
  %3823 = vmatprep.subr.mxu0 %v2916
  %3824 = vmatpush1.msra.mxu0 %v2915
  %3825 = vmatprep.subr.mxu0 %v2912
  %3826 = vmatpush1.msra.mxu0 %v2911
  %3827 = vmatprep.subr.mxu0 %v2908
  %3828 = vmatpush1.msra.mxu0 %v2907
  %3829 = vmatprep.subr.mxu0 %v2904
  %3830 = vmatpush1.msra.mxu0 %v2903
  %3831 = vmatprep.subr.mxu0 %v2900
  %3832 = vmatpush1.msra.mxu0 %v2899
  %3833 = vmatprep.subr.mxu0 %v2896
  %3834 = vmatpush1.msra.mxu0 %v2895
  %3835 = vmatprep.subr.mxu0 %v2892
  %3836 = vmatpush1.msra.mxu0 %v2891
  %3837 = vmatprep.subr.mxu0 %v2888
  %3838 = vmatpush1.msra.mxu0 %v2887
  %3839 = vmatprep.subr.mxu0 %v2884
  %3840 = vmatpush1.msra.mxu0 %v2883
  %3841 = vmatprep.subr.mxu0 0.0
  %3842 = vmatpush2.msra.mxu0 0.0
  %3843 = vmatprep.subr.mxu0 0.0
  %3844 = vmatpush2.msra.mxu0 0.0
  %3845 = vmatprep.subr.mxu0 0.0
  %3846 = vmatpush2.msra.mxu0 0.0
  %3847 = vmatprep.subr.mxu0 0.0
  %3848 = vmatpush2.msra.mxu0 0.0
  %3849 = vmatprep.subr.mxu0 0.0
  %3850 = vmatpush2.msra.mxu0 0.0
  %3851 = vmatprep.subr.mxu0 0.0
  %3852 = vmatpush2.msra.mxu0 0.0
  %3853 = vmatprep.subr.mxu0 0.0
  %3854 = vmatpush2.msra.mxu0 0.0
  %3855 = vmatprep.subr.mxu0 0.0
  %3856 = vmatpush2.msra.mxu0 0.0
  %3857 = vmatprep.subr.mxu0 0.0
  %3858 = vmatpush2.msra.mxu0 0.0
  %3859 = vmatprep.subr.mxu0 0.0
  %3860 = vmatpush2.msra.mxu0 0.0
  %3861 = vmatprep.subr.mxu0 0.0
  %3862 = vmatpush2.msra.mxu0 0.0
  %3863 = vmatprep.subr.mxu0 0.0
  %3864 = vmatpush2.msra.mxu0 0.0
  %3865 = vmatprep.subr.mxu0 0.0
  %3866 = vmatpush2.msra.mxu0 0.0
  %3867 = vmatprep.subr.mxu0 0.0
  %3868 = vmatpush2.msra.mxu0 0.0
  %3869 = vmatprep.subr.mxu0 0.0
  %3870 = vmatpush2.msra.mxu0 0.0
  %3871 = vmatprep.subr.mxu0 0.0
  %3872 = vmatpush2.msra.mxu0 0.0
  %3873 = vmatprep.mubr.f32.mxu0 0.0
  %3874 = vmatmul.mubr.f32.gmra.mxu0 %v3653
  %v3875 = vpop.f32.mrf.mxu0
  %v3876 = vadd.f32 0.0, %v3875
  %v3877 = vpop.f32.mrf.mxu0
  %v3878 = vadd.f32 0.0, %v3877
  %3879 = vdwg.mxu0
  %v3880 = vadd.f32 %v3734, %v3805
  %v3881 = vadd.f32 %v3735, %v3807
  %v3882 = vadd.f32 %v3736, %v3876
  %v3883 = vadd.f32 %v3737, %v3878
  %v3884 = vxor.u32 %v3733, 2147483648
  %v3885 = vmul.f32 %v3884, 1.442695
  %v3886 = vpow.pop %v3885
  %v3887 = vadd.f32 %v3886, 1.0
  %v3888 = vrcp.pop %v3887
  %v3889 = vmul.f32 1.0, %v3888
  %v3890 = vtanh.pop %v3733
  %v3891 = vmul.f32 %v3889, %v3623
  %3893 = vrot.lane.b32.xlu0 %v3890, 64
  %v3894 = vpop.permute.xlu0 %3893
  %v3896 = vmul.f32 %v3889, %v3894
  %3898 = vrot.lane.b32.xlu0 %v3896, 32
  %v3899 = vpop.permute.xlu0 %3898
  %v3901 = vadd.f32 %v3891, %v3899
  %v3902 = vtanh.pop %v3901
  %3904 = vrot.lane.b32.xlu0 %v3902, 64
  %v3905 = vpop.permute.xlu0 %3904
  %v3907 = vmul.f32 %v3889, %v3905
  %v3908 = vxor.u32 %v3880, 2147483648
  %v3909 = vxor.u32 %v3881, 2147483648
  %v3910 = vmul.f32 %v3908, 1.442695
  %v3911 = vpow.pop %v3910
  %v3912 = vmul.f32 %v3909, 1.442695
  %v3913 = vpow.pop %v3912
  %v3914 = vadd.f32 %v3911, 1.0
  %v3915 = vadd.f32 %v3913, 1.0
  %v3916 = vrcp.pop %v3914
  %v3917 = vmul.f32 1.0, %v3916
  %v3918 = vrcp.pop %v3915
  %v3919 = vmul.f32 1.0, %v3918
  %v3920 = vtanh.pop %v3882
  %v3921 = vxor.u32 %v3883, 2147483648
  %v3922 = vmul.f32 %v3921, 1.442695
  %v3923 = vpow.pop %v3922
  %v3924 = vadd.f32 %v3923, 1.0
  %v3925 = vrcp.pop %v3924
  %v3926 = vmul.f32 1.0, %v3925
  %v3927 = vmul.f32 %v3919, %v3651
  %v3928 = vmul.f32 %v3917, %v3920
  %v3929 = vadd.f32 %v3927, %v3928
  %v3930 = vtanh.pop %v3929
  %v3931 = vmul.f32 %v3926, %v3930
  %3933 = vrot.lane.b32.xlu0 %v3907, 32
  %v3934 = vpop.permute.xlu0 %3933
  %3936 = vst.msk [vmem:[#allocation3 + $0x8] sm:$0xff] %vm575, %v3934
  %3937 = vst [vmem:[#allocation5 + $0x8] sm:$0xff] %v3931
  %v3938 = vld [vmem:[#allocation2 + $0x10] sm:$0xff]
  %v3939 = vsel %vm575, %v3934, 0
  %3941 = vmatprep.subr.mxu0 0.0
  %3942 = vmatpush1.msra.mxu0 0.0
  %3943 = vmatprep.subr.mxu0 0.0
  %3944 = vmatpush1.msra.mxu0 0.0
  %3945 = vmatprep.subr.mxu0 0.0
  %3946 = vmatpush1.msra.mxu0 0.0
  %3947 = vmatprep.subr.mxu0 0.0
  %3948 = vmatpush1.msra.mxu0 0.0
  %3949 = vmatprep.subr.mxu0 0.0
  %3950 = vmatpush1.msra.mxu0 0.0
  %3951 = vmatprep.subr.mxu0 0.0
  %3952 = vmatpush1.msra.mxu0 0.0
  %3953 = vmatprep.subr.mxu0 0.0
  %3954 = vmatpush1.msra.mxu0 0.0
  %3955 = vmatprep.subr.mxu0 0.0
  %3956 = vmatpush1.msra.mxu0 0.0
  %3957 = vmatprep.subr.mxu0 0.0
  %3958 = vmatpush1.msra.mxu0 0.0
  %3959 = vmatprep.subr.mxu0 0.0
  %3960 = vmatpush1.msra.mxu0 0.0
  %3961 = vmatprep.subr.mxu0 0.0
  %3962 = vmatpush1.msra.mxu0 0.0
  %3963 = vmatprep.subr.mxu0 0.0
  %3964 = vmatpush1.msra.mxu0 0.0
  %3965 = vmatprep.subr.mxu0 0.0
  %3966 = vmatpush1.msra.mxu0 %v2815
  %3967 = vmatprep.subr.mxu0 0.0
  %3968 = vmatpush1.msra.mxu0 %v2814
  %3969 = vmatprep.subr.mxu0 0.0
  %3970 = vmatpush1.msra.mxu0 %v2813
  %3971 = vmatprep.subr.mxu0 0.0
  %3972 = vmatpush1.msra.mxu0 %v2812
  %3973 = vmatprep.subr.mxu0 0.0
  %3974 = vmatpush2.msra.mxu0 0.0
  %3975 = vmatprep.subr.mxu0 0.0
  %3976 = vmatpush2.msra.mxu0 0.0
  %3977 = vmatprep.subr.mxu0 0.0
  %3978 = vmatpush2.msra.mxu0 0.0
  %3979 = vmatprep.subr.mxu0 0.0
  %3980 = vmatpush2.msra.mxu0 0.0
  %3981 = vmatprep.subr.mxu0 0.0
  %3982 = vmatpush2.msra.mxu0 0.0
  %3983 = vmatprep.subr.mxu0 0.0
  %3984 = vmatpush2.msra.mxu0 0.0
  %3985 = vmatprep.subr.mxu0 0.0
  %3986 = vmatpush2.msra.mxu0 0.0
  %3987 = vmatprep.subr.mxu0 0.0
  %3988 = vmatpush2.msra.mxu0 0.0
  %3989 = vmatprep.subr.mxu0 0.0
  %3990 = vmatpush2.msra.mxu0 0.0
  %3991 = vmatprep.subr.mxu0 0.0
  %3992 = vmatpush2.msra.mxu0 0.0
  %3993 = vmatprep.subr.mxu0 0.0
  %3994 = vmatpush2.msra.mxu0 0.0
  %3995 = vmatprep.subr.mxu0 0.0
  %3996 = vmatpush2.msra.mxu0 0.0
  %3997 = vmatprep.subr.mxu0 0.0
  %3998 = vmatpush2.msra.mxu0 0.0
  %3999 = vmatprep.subr.mxu0 0.0
  %4000 = vmatpush2.msra.mxu0 0.0
  %4001 = vmatprep.subr.mxu0 0.0
  %4002 = vmatpush2.msra.mxu0 0.0
  %4003 = vmatprep.subr.mxu0 0.0
  %4004 = vmatpush2.msra.mxu0 0.0
  %4005 = vmatprep.mubr.f32.mxu0 0.0
  %4006 = vmatmul.mubr.f32.gmra.mxu0 %v3939
  %v4007 = vpop.f32.mrf.mxu0
  %v4008 = vadd.f32 0.0, %v4007
  %v4009 = vpop.f32.mrf.mxu0
  %4010 = vdwg.mxu0
  %v4011 = vadd.f32 %v3938, %v4008
  %v4012 = vld [vmem:[#allocation4 + $0x40] sm:$0xff]
  %v4013 = vld [vmem:[#allocation4 + $0x48] sm:$0xff]
  %v4014 = vld [vmem:[#allocation4 + $0x50] sm:$0xff]
  %v4015 = vld [vmem:[#allocation4 + $0x58] sm:$0xff]
  %4016 = vmatprep.subr.mxu0 %v2942
  %4017 = vmatpush1.msra.mxu0 %v2941
  %4018 = vmatprep.subr.mxu0 %v2938
  %4019 = vmatpush1.msra.mxu0 %v2937
  %4020 = vmatprep.subr.mxu0 %v2934
  %4021 = vmatpush1.msra.mxu0 %v2933
  %4022 = vmatprep.subr.mxu0 %v2930
  %4023 = vmatpush1.msra.mxu0 %v2929
  %4024 = vmatprep.subr.mxu0 %v2926
  %4025 = vmatpush1.msra.mxu0 %v2925
  %4026 = vmatprep.subr.mxu0 %v2922
  %4027 = vmatpush1.msra.mxu0 %v2921
  %4028 = vmatprep.subr.mxu0 %v2918
  %4029 = vmatpush1.msra.mxu0 %v2917
  %4030 = vmatprep.subr.mxu0 %v2914
  %4031 = vmatpush1.msra.mxu0 %v2913
  %4032 = vmatprep.subr.mxu0 %v2910
  %4033 = vmatpush1.msra.mxu0 %v2909
  %4034 = vmatprep.subr.mxu0 %v2906
  %4035 = vmatpush1.msra.mxu0 %v2905
  %4036 = vmatprep.subr.mxu0 %v2902
  %4037 = vmatpush1.msra.mxu0 %v2901
  %4038 = vmatprep.subr.mxu0 %v2898
  %4039 = vmatpush1.msra.mxu0 %v2897
  %4040 = vmatprep.subr.mxu0 %v2894
  %4041 = vmatpush1.msra.mxu0 %v2893
  %4042 = vmatprep.subr.mxu0 %v2890
  %4043 = vmatpush1.msra.mxu0 %v2889
  %4044 = vmatprep.subr.mxu0 %v2886
  %4045 = vmatpush1.msra.mxu0 %v2885
  %4046 = vmatprep.subr.mxu0 %v2882
  %4047 = vmatpush1.msra.mxu0 %v2881
  %4048 = vmatprep.subr.mxu0 0.0
  %4049 = vmatpush2.msra.mxu0 0.0
  %4050 = vmatprep.subr.mxu0 0.0
  %4051 = vmatpush2.msra.mxu0 0.0
  %4052 = vmatprep.subr.mxu0 0.0
  %4053 = vmatpush2.msra.mxu0 0.0
  %4054 = vmatprep.subr.mxu0 0.0
  %4055 = vmatpush2.msra.mxu0 0.0
  %4056 = vmatprep.subr.mxu0 0.0
  %4057 = vmatpush2.msra.mxu0 0.0
  %4058 = vmatprep.subr.mxu0 0.0
  %4059 = vmatpush2.msra.mxu0 0.0
  %4060 = vmatprep.subr.mxu0 0.0
  %4061 = vmatpush2.msra.mxu0 0.0
  %4062 = vmatprep.subr.mxu0 0.0
  %4063 = vmatpush2.msra.mxu0 0.0
  %4064 = vmatprep.subr.mxu0 0.0
  %4065 = vmatpush2.msra.mxu0 0.0
  %4066 = vmatprep.subr.mxu0 0.0
  %4067 = vmatpush2.msra.mxu0 0.0
  %4068 = vmatprep.subr.mxu0 0.0
  %4069 = vmatpush2.msra.mxu0 0.0
  %4070 = vmatprep.subr.mxu0 0.0
  %4071 = vmatpush2.msra.mxu0 0.0
  %4072 = vmatprep.subr.mxu0 0.0
  %4073 = vmatpush2.msra.mxu0 0.0
  %4074 = vmatprep.subr.mxu0 0.0
  %4075 = vmatpush2.msra.mxu0 0.0
  %4076 = vmatprep.subr.mxu0 0.0
  %4077 = vmatpush2.msra.mxu0 0.0
  %4078 = vmatprep.subr.mxu0 0.0
  %4079 = vmatpush2.msra.mxu0 0.0
  %4080 = vmatprep.mubr.f32.mxu0 0.0
  %4081 = vmatmul.mubr.f32.gmra.mxu0 %v3931
  %v4082 = vpop.f32.mrf.mxu0
  %v4083 = vadd.f32 0.0, %v4082
  %v4084 = vpop.f32.mrf.mxu0
  %v4085 = vadd.f32 0.0, %v4084
  %4086 = vdwg.mxu0
  %4087 = vmatprep.subr.mxu0 %v2944
  %4088 = vmatpush1.msra.mxu0 %v2943
  %4089 = vmatprep.subr.mxu0 %v2940
  %4090 = vmatpush1.msra.mxu0 %v2939
  %4091 = vmatprep.subr.mxu0 %v2936
  %4092 = vmatpush1.msra.mxu0 %v2935
  %4093 = vmatprep.subr.mxu0 %v2932
  %4094 = vmatpush1.msra.mxu0 %v2931
  %4095 = vmatprep.subr.mxu0 %v2928
  %4096 = vmatpush1.msra.mxu0 %v2927
  %4097 = vmatprep.subr.mxu0 %v2924
  %4098 = vmatpush1.msra.mxu0 %v2923
  %4099 = vmatprep.subr.mxu0 %v2920
  %4100 = vmatpush1.msra.mxu0 %v2919
  %4101 = vmatprep.subr.mxu0 %v2916
  %4102 = vmatpush1.msra.mxu0 %v2915
  %4103 = vmatprep.subr.mxu0 %v2912
  %4104 = vmatpush1.msra.mxu0 %v2911
  %4105 = vmatprep.subr.mxu0 %v2908
  %4106 = vmatpush1.msra.mxu0 %v2907
  %4107 = vmatprep.subr.mxu0 %v2904
  %4108 = vmatpush1.msra.mxu0 %v2903
  %4109 = vmatprep.subr.mxu0 %v2900
  %4110 = vmatpush1.msra.mxu0 %v2899
  %4111 = vmatprep.subr.mxu0 %v2896
  %4112 = vmatpush1.msra.mxu0 %v2895
  %4113 = vmatprep.subr.mxu0 %v2892
  %4114 = vmatpush1.msra.mxu0 %v2891
  %4115 = vmatprep.subr.mxu0 %v2888
  %4116 = vmatpush1.msra.mxu0 %v2887
  %4117 = vmatprep.subr.mxu0 %v2884
  %4118 = vmatpush1.msra.mxu0 %v2883
  %4119 = vmatprep.subr.mxu0 0.0
  %4120 = vmatpush2.msra.mxu0 0.0
  %4121 = vmatprep.subr.mxu0 0.0
  %4122 = vmatpush2.msra.mxu0 0.0
  %4123 = vmatprep.subr.mxu0 0.0
  %4124 = vmatpush2.msra.mxu0 0.0
  %4125 = vmatprep.subr.mxu0 0.0
  %4126 = vmatpush2.msra.mxu0 0.0
  %4127 = vmatprep.subr.mxu0 0.0
  %4128 = vmatpush2.msra.mxu0 0.0
  %4129 = vmatprep.subr.mxu0 0.0
  %4130 = vmatpush2.msra.mxu0 0.0
  %4131 = vmatprep.subr.mxu0 0.0
  %4132 = vmatpush2.msra.mxu0 0.0
  %4133 = vmatprep.subr.mxu0 0.0
  %4134 = vmatpush2.msra.mxu0 0.0
  %4135 = vmatprep.subr.mxu0 0.0
  %4136 = vmatpush2.msra.mxu0 0.0
  %4137 = vmatprep.subr.mxu0 0.0
  %4138 = vmatpush2.msra.mxu0 0.0
  %4139 = vmatprep.subr.mxu0 0.0
  %4140 = vmatpush2.msra.mxu0 0.0
  %4141 = vmatprep.subr.mxu0 0.0
  %4142 = vmatpush2.msra.mxu0 0.0
  %4143 = vmatprep.subr.mxu0 0.0
  %4144 = vmatpush2.msra.mxu0 0.0
  %4145 = vmatprep.subr.mxu0 0.0
  %4146 = vmatpush2.msra.mxu0 0.0
  %4147 = vmatprep.subr.mxu0 0.0
  %4148 = vmatpush2.msra.mxu0 0.0
  %4149 = vmatprep.subr.mxu0 0.0
  %4150 = vmatpush2.msra.mxu0 0.0
  %4151 = vmatprep.mubr.f32.mxu0 0.0
  %4152 = vmatmul.mubr.f32.gmra.mxu0 %v3931
  %v4153 = vpop.f32.mrf.mxu0
  %v4154 = vadd.f32 0.0, %v4153
  %v4155 = vpop.f32.mrf.mxu0
  %v4156 = vadd.f32 0.0, %v4155
  %4157 = vdwg.mxu0
  %v4158 = vadd.f32 %v4012, %v4083
  %v4159 = vadd.f32 %v4013, %v4085
  %v4160 = vadd.f32 %v4014, %v4154
  %v4161 = vadd.f32 %v4015, %v4156
  %v4162 = vxor.u32 %v4011, 2147483648
  %v4163 = vmul.f32 %v4162, 1.442695
  %v4164 = vpow.pop %v4163
  %v4165 = vadd.f32 %v4164, 1.0
  %v4166 = vrcp.pop %v4165
  %v4167 = vmul.f32 1.0, %v4166
  %v4168 = vtanh.pop %v4011
  %v4169 = vmul.f32 %v4167, %v3901
  %4171 = vrot.lane.b32.xlu0 %v4168, 64
  %v4172 = vpop.permute.xlu0 %4171
  %v4174 = vmul.f32 %v4167, %v4172
  %4176 = vrot.lane.b32.xlu0 %v4174, 32
  %v4177 = vpop.permute.xlu0 %4176
  %v4179 = vadd.f32 %v4169, %v4177
  %v4180 = vtanh.pop %v4179
  %4182 = vrot.lane.b32.xlu0 %v4180, 64
  %v4183 = vpop.permute.xlu0 %4182
  %v4185 = vmul.f32 %v4167, %v4183
  %v4186 = vxor.u32 %v4158, 2147483648
  %v4187 = vxor.u32 %v4159, 2147483648
  %v4188 = vmul.f32 %v4186, 1.442695
  %v4189 = vpow.pop %v4188
  %v4190 = vmul.f32 %v4187, 1.442695
  %v4191 = vpow.pop %v4190
  %v4192 = vadd.f32 %v4189, 1.0
  %v4193 = vadd.f32 %v4191, 1.0
  %v4194 = vrcp.pop %v4192
  %v4195 = vmul.f32 1.0, %v4194
  %v4196 = vrcp.pop %v4193
  %v4197 = vmul.f32 1.0, %v4196
  %v4198 = vtanh.pop %v4160
  %v4199 = vxor.u32 %v4161, 2147483648
  %v4200 = vmul.f32 %v4199, 1.442695
  %v4201 = vpow.pop %v4200
  %v4202 = vadd.f32 %v4201, 1.0
  %v4203 = vrcp.pop %v4202
  %v4204 = vmul.f32 1.0, %v4203
  %v4205 = vmul.f32 %v4197, %v3929
  %v4206 = vmul.f32 %v4195, %v4198
  %v4207 = vadd.f32 %v4205, %v4206
  %v4208 = vtanh.pop %v4207
  %v4209 = vmul.f32 %v4204, %v4208
  %4211 = vrot.lane.b32.xlu0 %v4185, 32
  %v4212 = vpop.permute.xlu0 %4211
  %4214 = vst.msk [vmem:[#allocation3 + $0x10] sm:$0xff] %vm575, %v4212
  %4215 = vst [vmem:[#allocation5 + $0x10] sm:$0xff] %v4209
  %v4216 = vld [vmem:[#allocation2 + $0x18] sm:$0xff]
  %v4217 = vsel %vm575, %v4212, 0
  %4219 = vmatprep.subr.mxu0 0.0
  %4220 = vmatpush1.msra.mxu0 0.0
  %4221 = vmatprep.subr.mxu0 0.0
  %4222 = vmatpush1.msra.mxu0 0.0
  %4223 = vmatprep.subr.mxu0 0.0
  %4224 = vmatpush1.msra.mxu0 0.0
  %4225 = vmatprep.subr.mxu0 0.0
  %4226 = vmatpush1.msra.mxu0 0.0
  %4227 = vmatprep.subr.mxu0 0.0
  %4228 = vmatpush1.msra.mxu0 0.0
  %4229 = vmatprep.subr.mxu0 0.0
  %4230 = vmatpush1.msra.mxu0 0.0
  %4231 = vmatprep.subr.mxu0 0.0
  %4232 = vmatpush1.msra.mxu0 0.0
  %4233 = vmatprep.subr.mxu0 0.0
  %4234 = vmatpush1.msra.mxu0 0.0
  %4235 = vmatprep.subr.mxu0 0.0
  %4236 = vmatpush1.msra.mxu0 0.0
  %4237 = vmatprep.subr.mxu0 0.0
  %4238 = vmatpush1.msra.mxu0 0.0
  %4239 = vmatprep.subr.mxu0 0.0
  %4240 = vmatpush1.msra.mxu0 0.0
  %4241 = vmatprep.subr.mxu0 0.0
  %4242 = vmatpush1.msra.mxu0 0.0
  %4243 = vmatprep.subr.mxu0 0.0
  %4244 = vmatpush1.msra.mxu0 %v2815
  %4245 = vmatprep.subr.mxu0 0.0
  %4246 = vmatpush1.msra.mxu0 %v2814
  %4247 = vmatprep.subr.mxu0 0.0
  %4248 = vmatpush1.msra.mxu0 %v2813
  %4249 = vmatprep.subr.mxu0 0.0
  %4250 = vmatpush1.msra.mxu0 %v2812
  %4251 = vmatprep.subr.mxu0 0.0
  %4252 = vmatpush2.msra.mxu0 0.0
  %4253 = vmatprep.subr.mxu0 0.0
  %4254 = vmatpush2.msra.mxu0 0.0
  %4255 = vmatprep.subr.mxu0 0.0
  %4256 = vmatpush2.msra.mxu0 0.0
  %4257 = vmatprep.subr.mxu0 0.0
  %4258 = vmatpush2.msra.mxu0 0.0
  %4259 = vmatprep.subr.mxu0 0.0
  %4260 = vmatpush2.msra.mxu0 0.0
  %4261 = vmatprep.subr.mxu0 0.0
  %4262 = vmatpush2.msra.mxu0 0.0
  %4263 = vmatprep.subr.mxu0 0.0
  %4264 = vmatpush2.msra.mxu0 0.0
  %4265 = vmatprep.subr.mxu0 0.0
  %4266 = vmatpush2.msra.mxu0 0.0
  %4267 = vmatprep.subr.mxu0 0.0
  %4268 = vmatpush2.msra.mxu0 0.0
  %4269 = vmatprep.subr.mxu0 0.0
  %4270 = vmatpush2.msra.mxu0 0.0
  %4271 = vmatprep.subr.mxu0 0.0
  %4272 = vmatpush2.msra.mxu0 0.0
  %4273 = vmatprep.subr.mxu0 0.0
  %4274 = vmatpush2.msra.mxu0 0.0
  %4275 = vmatprep.subr.mxu0 0.0
  %4276 = vmatpush2.msra.mxu0 0.0
  %4277 = vmatprep.subr.mxu0 0.0
  %4278 = vmatpush2.msra.mxu0 0.0
  %4279 = vmatprep.subr.mxu0 0.0
  %4280 = vmatpush2.msra.mxu0 0.0
  %4281 = vmatprep.subr.mxu0 0.0
  %4282 = vmatpush2.msra.mxu0 0.0
  %4283 = vmatprep.mubr.f32.mxu0 0.0
  %4284 = vmatmul.mubr.f32.gmra.mxu0 %v4217
  %v4285 = vpop.f32.mrf.mxu0
  %v4286 = vadd.f32 0.0, %v4285
  %v4287 = vpop.f32.mrf.mxu0
  %4288 = vdwg.mxu0
  %v4289 = vadd.f32 %v4216, %v4286
  %v4290 = vld [vmem:[#allocation4 + $0x60] sm:$0xff]
  %v4291 = vld [vmem:[#allocation4 + $0x68] sm:$0xff]
  %v4292 = vld [vmem:[#allocation4 + $0x70] sm:$0xff]
  %v4293 = vld [vmem:[#allocation4 + $0x78] sm:$0xff]
  %4294 = vmatprep.subr.mxu0 %v2942
  %4295 = vmatpush1.msra.mxu0 %v2941
  %4296 = vmatprep.subr.mxu0 %v2938
  %4297 = vmatpush1.msra.mxu0 %v2937
  %4298 = vmatprep.subr.mxu0 %v2934
  %4299 = vmatpush1.msra.mxu0 %v2933
  %4300 = vmatprep.subr.mxu0 %v2930
  %4301 = vmatpush1.msra.mxu0 %v2929
  %4302 = vmatprep.subr.mxu0 %v2926
  %4303 = vmatpush1.msra.mxu0 %v2925
  %4304 = vmatprep.subr.mxu0 %v2922
  %4305 = vmatpush1.msra.mxu0 %v2921
  %4306 = vmatprep.subr.mxu0 %v2918
  %4307 = vmatpush1.msra.mxu0 %v2917
  %4308 = vmatprep.subr.mxu0 %v2914
  %4309 = vmatpush1.msra.mxu0 %v2913
  %4310 = vmatprep.subr.mxu0 %v2910
  %4311 = vmatpush1.msra.mxu0 %v2909
  %4312 = vmatprep.subr.mxu0 %v2906
  %4313 = vmatpush1.msra.mxu0 %v2905
  %4314 = vmatprep.subr.mxu0 %v2902
  %4315 = vmatpush1.msra.mxu0 %v2901
  %4316 = vmatprep.subr.mxu0 %v2898
  %4317 = vmatpush1.msra.mxu0 %v2897
  %4318 = vmatprep.subr.mxu0 %v2894
  %4319 = vmatpush1.msra.mxu0 %v2893
  %4320 = vmatprep.subr.mxu0 %v2890
  %4321 = vmatpush1.msra.mxu0 %v2889
  %4322 = vmatprep.subr.mxu0 %v2886
  %4323 = vmatpush1.msra.mxu0 %v2885
  %4324 = vmatprep.subr.mxu0 %v2882
  %4325 = vmatpush1.msra.mxu0 %v2881
  %4326 = vmatprep.subr.mxu0 0.0
  %4327 = vmatpush2.msra.mxu0 0.0
  %4328 = vmatprep.subr.mxu0 0.0
  %4329 = vmatpush2.msra.mxu0 0.0
  %4330 = vmatprep.subr.mxu0 0.0
  %4331 = vmatpush2.msra.mxu0 0.0
  %4332 = vmatprep.subr.mxu0 0.0
  %4333 = vmatpush2.msra.mxu0 0.0
  %4334 = vmatprep.subr.mxu0 0.0
  %4335 = vmatpush2.msra.mxu0 0.0
  %4336 = vmatprep.subr.mxu0 0.0
  %4337 = vmatpush2.msra.mxu0 0.0
  %4338 = vmatprep.subr.mxu0 0.0
  %4339 = vmatpush2.msra.mxu0 0.0
  %4340 = vmatprep.subr.mxu0 0.0
  %4341 = vmatpush2.msra.mxu0 0.0
  %4342 = vmatprep.subr.mxu0 0.0
  %4343 = vmatpush2.msra.mxu0 0.0
  %4344 = vmatprep.subr.mxu0 0.0
  %4345 = vmatpush2.msra.mxu0 0.0
  %4346 = vmatprep.subr.mxu0 0.0
  %4347 = vmatpush2.msra.mxu0 0.0
  %4348 = vmatprep.subr.mxu0 0.0
  %4349 = vmatpush2.msra.mxu0 0.0
  %4350 = vmatprep.subr.mxu0 0.0
  %4351 = vmatpush2.msra.mxu0 0.0
  %4352 = vmatprep.subr.mxu0 0.0
  %4353 = vmatpush2.msra.mxu0 0.0
  %4354 = vmatprep.subr.mxu0 0.0
  %4355 = vmatpush2.msra.mxu0 0.0
  %4356 = vmatprep.subr.mxu0 0.0
  %4357 = vmatpush2.msra.mxu0 0.0
  %4358 = vmatprep.mubr.f32.mxu0 0.0
  %4359 = vmatmul.mubr.f32.gmra.mxu0 %v4209
  %v4360 = vpop.f32.mrf.mxu0
  %v4361 = vadd.f32 0.0, %v4360
  %v4362 = vpop.f32.mrf.mxu0
  %v4363 = vadd.f32 0.0, %v4362
  %4364 = vdwg.mxu0
  %4365 = vmatprep.subr.mxu0 %v2944
  %4366 = vmatpush1.msra.mxu0 %v2943
  %4367 = vmatprep.subr.mxu0 %v2940
  %4368 = vmatpush1.msra.mxu0 %v2939
  %4369 = vmatprep.subr.mxu0 %v2936
  %4370 = vmatpush1.msra.mxu0 %v2935
  %4371 = vmatprep.subr.mxu0 %v2932
  %4372 = vmatpush1.msra.mxu0 %v2931
  %4373 = vmatprep.subr.mxu0 %v2928
  %4374 = vmatpush1.msra.mxu0 %v2927
  %4375 = vmatprep.subr.mxu0 %v2924
  %4376 = vmatpush1.msra.mxu0 %v2923
  %4377 = vmatprep.subr.mxu0 %v2920
  %4378 = vmatpush1.msra.mxu0 %v2919
  %4379 = vmatprep.subr.mxu0 %v2916
  %4380 = vmatpush1.msra.mxu0 %v2915
  %4381 = vmatprep.subr.mxu0 %v2912
  %4382 = vmatpush1.msra.mxu0 %v2911
  %4383 = vmatprep.subr.mxu0 %v2908
  %4384 = vmatpush1.msra.mxu0 %v2907
  %4385 = vmatprep.subr.mxu0 %v2904
  %4386 = vmatpush1.msra.mxu0 %v2903
  %4387 = vmatprep.subr.mxu0 %v2900
  %4388 = vmatpush1.msra.mxu0 %v2899
  %4389 = vmatprep.subr.mxu0 %v2896
  %4390 = vmatpush1.msra.mxu0 %v2895
  %4391 = vmatprep.subr.mxu0 %v2892
  %4392 = vmatpush1.msra.mxu0 %v2891
  %4393 = vmatprep.subr.mxu0 %v2888
  %4394 = vmatpush1.msra.mxu0 %v2887
  %4395 = vmatprep.subr.mxu0 %v2884
  %4396 = vmatpush1.msra.mxu0 %v2883
  %4397 = vmatprep.subr.mxu0 0.0
  %4398 = vmatpush2.msra.mxu0 0.0
  %4399 = vmatprep.subr.mxu0 0.0
  %4400 = vmatpush2.msra.mxu0 0.0
  %4401 = vmatprep.subr.mxu0 0.0
  %4402 = vmatpush2.msra.mxu0 0.0
  %4403 = vmatprep.subr.mxu0 0.0
  %4404 = vmatpush2.msra.mxu0 0.0
  %4405 = vmatprep.subr.mxu0 0.0
  %4406 = vmatpush2.msra.mxu0 0.0
  %4407 = vmatprep.subr.mxu0 0.0
  %4408 = vmatpush2.msra.mxu0 0.0
  %4409 = vmatprep.subr.mxu0 0.0
  %4410 = vmatpush2.msra.mxu0 0.0
  %4411 = vmatprep.subr.mxu0 0.0
  %4412 = vmatpush2.msra.mxu0 0.0
  %4413 = vmatprep.subr.mxu0 0.0
  %4414 = vmatpush2.msra.mxu0 0.0
  %4415 = vmatprep.subr.mxu0 0.0
  %4416 = vmatpush2.msra.mxu0 0.0
  %4417 = vmatprep.subr.mxu0 0.0
  %4418 = vmatpush2.msra.mxu0 0.0
  %4419 = vmatprep.subr.mxu0 0.0
  %4420 = vmatpush2.msra.mxu0 0.0
  %4421 = vmatprep.subr.mxu0 0.0
  %4422 = vmatpush2.msra.mxu0 0.0
  %4423 = vmatprep.subr.mxu0 0.0
  %4424 = vmatpush2.msra.mxu0 0.0
  %4425 = vmatprep.subr.mxu0 0.0
  %4426 = vmatpush2.msra.mxu0 0.0
  %4427 = vmatprep.subr.mxu0 0.0
  %4428 = vmatpush2.msra.mxu0 0.0
  %4429 = vmatprep.mubr.f32.mxu0 0.0
  %4430 = vmatmul.mubr.f32.gmra.mxu0 %v4209
  %v4431 = vpop.f32.mrf.mxu0
  %v4432 = vadd.f32 0.0, %v4431
  %v4433 = vpop.f32.mrf.mxu0
  %v4434 = vadd.f32 0.0, %v4433
  %4435 = vdwg.mxu0
  %v4436 = vadd.f32 %v4290, %v4361
  %v4437 = vadd.f32 %v4291, %v4363
  %v4438 = vadd.f32 %v4292, %v4432
  %v4439 = vadd.f32 %v4293, %v4434
  %v4440 = vxor.u32 %v4289, 2147483648
  %v4441 = vmul.f32 %v4440, 1.442695
  %v4442 = vpow.pop %v4441
  %v4443 = vadd.f32 %v4442, 1.0
  %v4444 = vrcp.pop %v4443
  %v4445 = vmul.f32 1.0, %v4444
  %v4446 = vtanh.pop %v4289
  %v4447 = vmul.f32 %v4445, %v4179
  %4449 = vrot.lane.b32.xlu0 %v4446, 64
  %v4450 = vpop.permute.xlu0 %4449
  %v4452 = vmul.f32 %v4445, %v4450
  %4454 = vrot.lane.b32.xlu0 %v4452, 32
  %v4455 = vpop.permute.xlu0 %4454
  %v4457 = vadd.f32 %v4447, %v4455
  %v4458 = vtanh.pop %v4457
  %4460 = vrot.lane.b32.xlu0 %v4458, 64
  %v4461 = vpop.permute.xlu0 %4460
  %v4463 = vmul.f32 %v4445, %v4461
  %v4464 = vxor.u32 %v4436, 2147483648
  %v4465 = vxor.u32 %v4437, 2147483648
  %v4466 = vmul.f32 %v4464, 1.442695
  %v4467 = vpow.pop %v4466
  %v4468 = vmul.f32 %v4465, 1.442695
  %v4469 = vpow.pop %v4468
  %v4470 = vadd.f32 %v4467, 1.0
  %v4471 = vadd.f32 %v4469, 1.0
  %v4472 = vrcp.pop %v4470
  %v4473 = vmul.f32 1.0, %v4472
  %v4474 = vrcp.pop %v4471
  %v4475 = vmul.f32 1.0, %v4474
  %v4476 = vtanh.pop %v4438
  %v4477 = vxor.u32 %v4439, 2147483648
  %v4478 = vmul.f32 %v4477, 1.442695
  %v4479 = vpow.pop %v4478
  %v4480 = vadd.f32 %v4479, 1.0
  %v4481 = vrcp.pop %v4480
  %v4482 = vmul.f32 1.0, %v4481
  %v4483 = vmul.f32 %v4475, %v4207
  %v4484 = vmul.f32 %v4473, %v4476
  %v4485 = vadd.f32 %v4483, %v4484
  %v4486 = vtanh.pop %v4485
  %v4487 = vmul.f32 %v4482, %v4486
  %4489 = vrot.lane.b32.xlu0 %v4463, 32
  %v4490 = vpop.permute.xlu0 %4489
  %4492 = vst.msk [vmem:[#allocation3 + $0x18] sm:$0xff] %vm575, %v4490
  %4493 = vst [vmem:[#allocation5 + $0x18] sm:$0xff] %v4487
  %v4494 = vld [vmem:[#allocation2 + $0x20] sm:$0xff]
  %v4495 = vsel %vm575, %v4490, 0
  %4497 = vmatprep.subr.mxu0 0.0
  %4498 = vmatpush1.msra.mxu0 0.0
  %4499 = vmatprep.subr.mxu0 0.0
  %4500 = vmatpush1.msra.mxu0 0.0
  %4501 = vmatprep.subr.mxu0 0.0
  %4502 = vmatpush1.msra.mxu0 0.0
  %4503 = vmatprep.subr.mxu0 0.0
  %4504 = vmatpush1.msra.mxu0 0.0
  %4505 = vmatprep.subr.mxu0 0.0
  %4506 = vmatpush1.msra.mxu0 0.0
  %4507 = vmatprep.subr.mxu0 0.0
  %4508 = vmatpush1.msra.mxu0 0.0
  %4509 = vmatprep.subr.mxu0 0.0
  %4510 = vmatpush1.msra.mxu0 0.0
  %4511 = vmatprep.subr.mxu0 0.0
  %4512 = vmatpush1.msra.mxu0 0.0
  %4513 = vmatprep.subr.mxu0 0.0
  %4514 = vmatpush1.msra.mxu0 0.0
  %4515 = vmatprep.subr.mxu0 0.0
  %4516 = vmatpush1.msra.mxu0 0.0
  %4517 = vmatprep.subr.mxu0 0.0
  %4518 = vmatpush1.msra.mxu0 0.0
  %4519 = vmatprep.subr.mxu0 0.0
  %4520 = vmatpush1.msra.mxu0 0.0
  %4521 = vmatprep.subr.mxu0 0.0
  %4522 = vmatpush1.msra.mxu0 %v2815
  %4523 = vmatprep.subr.mxu0 0.0
  %4524 = vmatpush1.msra.mxu0 %v2814
  %4525 = vmatprep.subr.mxu0 0.0
  %4526 = vmatpush1.msra.mxu0 %v2813
  %4527 = vmatprep.subr.mxu0 0.0
  %4528 = vmatpush1.msra.mxu0 %v2812
  %4529 = vmatprep.subr.mxu0 0.0
  %4530 = vmatpush2.msra.mxu0 0.0
  %4531 = vmatprep.subr.mxu0 0.0
  %4532 = vmatpush2.msra.mxu0 0.0
  %4533 = vmatprep.subr.mxu0 0.0
  %4534 = vmatpush2.msra.mxu0 0.0
  %4535 = vmatprep.subr.mxu0 0.0
  %4536 = vmatpush2.msra.mxu0 0.0
  %4537 = vmatprep.subr.mxu0 0.0
  %4538 = vmatpush2.msra.mxu0 0.0
  %4539 = vmatprep.subr.mxu0 0.0
  %4540 = vmatpush2.msra.mxu0 0.0
  %4541 = vmatprep.subr.mxu0 0.0
  %4542 = vmatpush2.msra.mxu0 0.0
  %4543 = vmatprep.subr.mxu0 0.0
  %4544 = vmatpush2.msra.mxu0 0.0
  %4545 = vmatprep.subr.mxu0 0.0
  %4546 = vmatpush2.msra.mxu0 0.0
  %4547 = vmatprep.subr.mxu0 0.0
  %4548 = vmatpush2.msra.mxu0 0.0
  %4549 = vmatprep.subr.mxu0 0.0
  %4550 = vmatpush2.msra.mxu0 0.0
  %4551 = vmatprep.subr.mxu0 0.0
  %4552 = vmatpush2.msra.mxu0 0.0
  %4553 = vmatprep.subr.mxu0 0.0
  %4554 = vmatpush2.msra.mxu0 0.0
  %4555 = vmatprep.subr.mxu0 0.0
  %4556 = vmatpush2.msra.mxu0 0.0
  %4557 = vmatprep.subr.mxu0 0.0
  %4558 = vmatpush2.msra.mxu0 0.0
  %4559 = vmatprep.subr.mxu0 0.0
  %4560 = vmatpush2.msra.mxu0 0.0
  %4561 = vmatprep.mubr.f32.mxu0 0.0
  %4562 = vmatmul.mubr.f32.gmra.mxu0 %v4495
  %v4563 = vpop.f32.mrf.mxu0
  %v4564 = vadd.f32 0.0, %v4563
  %v4565 = vpop.f32.mrf.mxu0
  %4566 = vdwg.mxu0
  %v4567 = vadd.f32 %v4494, %v4564
  %v4568 = vld [vmem:[#allocation4 + $0x80] sm:$0xff]
  %v4569 = vld [vmem:[#allocation4 + $0x88] sm:$0xff]
  %v4570 = vld [vmem:[#allocation4 + $0x90] sm:$0xff]
  %v4571 = vld [vmem:[#allocation4 + $0x98] sm:$0xff]
  %4572 = vmatprep.subr.mxu0 %v2942
  %4573 = vmatpush1.msra.mxu0 %v2941
  %4574 = vmatprep.subr.mxu0 %v2938
  %4575 = vmatpush1.msra.mxu0 %v2937
  %4576 = vmatprep.subr.mxu0 %v2934
  %4577 = vmatpush1.msra.mxu0 %v2933
  %4578 = vmatprep.subr.mxu0 %v2930
  %4579 = vmatpush1.msra.mxu0 %v2929
  %4580 = vmatprep.subr.mxu0 %v2926
  %4581 = vmatpush1.msra.mxu0 %v2925
  %4582 = vmatprep.subr.mxu0 %v2922
  %4583 = vmatpush1.msra.mxu0 %v2921
  %4584 = vmatprep.subr.mxu0 %v2918
  %4585 = vmatpush1.msra.mxu0 %v2917
  %4586 = vmatprep.subr.mxu0 %v2914
  %4587 = vmatpush1.msra.mxu0 %v2913
  %4588 = vmatprep.subr.mxu0 %v2910
  %4589 = vmatpush1.msra.mxu0 %v2909
  %4590 = vmatprep.subr.mxu0 %v2906
  %4591 = vmatpush1.msra.mxu0 %v2905
  %4592 = vmatprep.subr.mxu0 %v2902
  %4593 = vmatpush1.msra.mxu0 %v2901
  %4594 = vmatprep.subr.mxu0 %v2898
  %4595 = vmatpush1.msra.mxu0 %v2897
  %4596 = vmatprep.subr.mxu0 %v2894
  %4597 = vmatpush1.msra.mxu0 %v2893
  %4598 = vmatprep.subr.mxu0 %v2890
  %4599 = vmatpush1.msra.mxu0 %v2889
  %4600 = vmatprep.subr.mxu0 %v2886
  %4601 = vmatpush1.msra.mxu0 %v2885
  %4602 = vmatprep.subr.mxu0 %v2882
  %4603 = vmatpush1.msra.mxu0 %v2881
  %4604 = vmatprep.subr.mxu0 0.0
  %4605 = vmatpush2.msra.mxu0 0.0
  %4606 = vmatprep.subr.mxu0 0.0
  %4607 = vmatpush2.msra.mxu0 0.0
  %4608 = vmatprep.subr.mxu0 0.0
  %4609 = vmatpush2.msra.mxu0 0.0
  %4610 = vmatprep.subr.mxu0 0.0
  %4611 = vmatpush2.msra.mxu0 0.0
  %4612 = vmatprep.subr.mxu0 0.0
  %4613 = vmatpush2.msra.mxu0 0.0
  %4614 = vmatprep.subr.mxu0 0.0
  %4615 = vmatpush2.msra.mxu0 0.0
  %4616 = vmatprep.subr.mxu0 0.0
  %4617 = vmatpush2.msra.mxu0 0.0
  %4618 = vmatprep.subr.mxu0 0.0
  %4619 = vmatpush2.msra.mxu0 0.0
  %4620 = vmatprep.subr.mxu0 0.0
  %4621 = vmatpush2.msra.mxu0 0.0
  %4622 = vmatprep.subr.mxu0 0.0
  %4623 = vmatpush2.msra.mxu0 0.0
  %4624 = vmatprep.subr.mxu0 0.0
  %4625 = vmatpush2.msra.mxu0 0.0
  %4626 = vmatprep.subr.mxu0 0.0
  %4627 = vmatpush2.msra.mxu0 0.0
  %4628 = vmatprep.subr.mxu0 0.0
  %4629 = vmatpush2.msra.mxu0 0.0
  %4630 = vmatprep.subr.mxu0 0.0
  %4631 = vmatpush2.msra.mxu0 0.0
  %4632 = vmatprep.subr.mxu0 0.0
  %4633 = vmatpush2.msra.mxu0 0.0
  %4634 = vmatprep.subr.mxu0 0.0
  %4635 = vmatpush2.msra.mxu0 0.0
  %4636 = vmatprep.mubr.f32.mxu0 0.0
  %4637 = vmatmul.mubr.f32.gmra.mxu0 %v4487
  %v4638 = vpop.f32.mrf.mxu0
  %v4639 = vadd.f32 0.0, %v4638
  %v4640 = vpop.f32.mrf.mxu0
  %v4641 = vadd.f32 0.0, %v4640
  %4642 = vdwg.mxu0
  %4643 = vmatprep.subr.mxu0 %v2944
  %4644 = vmatpush1.msra.mxu0 %v2943
  %4645 = vmatprep.subr.mxu0 %v2940
  %4646 = vmatpush1.msra.mxu0 %v2939
  %4647 = vmatprep.subr.mxu0 %v2936
  %4648 = vmatpush1.msra.mxu0 %v2935
  %4649 = vmatprep.subr.mxu0 %v2932
  %4650 = vmatpush1.msra.mxu0 %v2931
  %4651 = vmatprep.subr.mxu0 %v2928
  %4652 = vmatpush1.msra.mxu0 %v2927
  %4653 = vmatprep.subr.mxu0 %v2924
  %4654 = vmatpush1.msra.mxu0 %v2923
  %4655 = vmatprep.subr.mxu0 %v2920
  %4656 = vmatpush1.msra.mxu0 %v2919
  %4657 = vmatprep.subr.mxu0 %v2916
  %4658 = vmatpush1.msra.mxu0 %v2915
  %4659 = vmatprep.subr.mxu0 %v2912
  %4660 = vmatpush1.msra.mxu0 %v2911
  %4661 = vmatprep.subr.mxu0 %v2908
  %4662 = vmatpush1.msra.mxu0 %v2907
  %4663 = vmatprep.subr.mxu0 %v2904
  %4664 = vmatpush1.msra.mxu0 %v2903
  %4665 = vmatprep.subr.mxu0 %v2900
  %4666 = vmatpush1.msra.mxu0 %v2899
  %4667 = vmatprep.subr.mxu0 %v2896
  %4668 = vmatpush1.msra.mxu0 %v2895
  %4669 = vmatprep.subr.mxu0 %v2892
  %4670 = vmatpush1.msra.mxu0 %v2891
  %4671 = vmatprep.subr.mxu0 %v2888
  %4672 = vmatpush1.msra.mxu0 %v2887
  %4673 = vmatprep.subr.mxu0 %v2884
  %4674 = vmatpush1.msra.mxu0 %v2883
  %4675 = vmatprep.subr.mxu0 0.0
  %4676 = vmatpush2.msra.mxu0 0.0
  %4677 = vmatprep.subr.mxu0 0.0
  %4678 = vmatpush2.msra.mxu0 0.0
  %4679 = vmatprep.subr.mxu0 0.0
  %4680 = vmatpush2.msra.mxu0 0.0
  %4681 = vmatprep.subr.mxu0 0.0
  %4682 = vmatpush2.msra.mxu0 0.0
  %4683 = vmatprep.subr.mxu0 0.0
  %4684 = vmatpush2.msra.mxu0 0.0
  %4685 = vmatprep.subr.mxu0 0.0
  %4686 = vmatpush2.msra.mxu0 0.0
  %4687 = vmatprep.subr.mxu0 0.0
  %4688 = vmatpush2.msra.mxu0 0.0
  %4689 = vmatprep.subr.mxu0 0.0
  %4690 = vmatpush2.msra.mxu0 0.0
  %4691 = vmatprep.subr.mxu0 0.0
  %4692 = vmatpush2.msra.mxu0 0.0
  %4693 = vmatprep.subr.mxu0 0.0
  %4694 = vmatpush2.msra.mxu0 0.0
  %4695 = vmatprep.subr.mxu0 0.0
  %4696 = vmatpush2.msra.mxu0 0.0
  %4697 = vmatprep.subr.mxu0 0.0
  %4698 = vmatpush2.msra.mxu0 0.0
  %4699 = vmatprep.subr.mxu0 0.0
  %4700 = vmatpush2.msra.mxu0 0.0
  %4701 = vmatprep.subr.mxu0 0.0
  %4702 = vmatpush2.msra.mxu0 0.0
  %4703 = vmatprep.subr.mxu0 0.0
  %4704 = vmatpush2.msra.mxu0 0.0
  %4705 = vmatprep.subr.mxu0 0.0
  %4706 = vmatpush2.msra.mxu0 0.0
  %4707 = vmatprep.mubr.f32.mxu0 0.0
  %4708 = vmatmul.mubr.f32.gmra.mxu0 %v4487
  %v4709 = vpop.f32.mrf.mxu0
  %v4710 = vadd.f32 0.0, %v4709
  %v4711 = vpop.f32.mrf.mxu0
  %v4712 = vadd.f32 0.0, %v4711
  %4713 = vdwg.mxu0
  %v4714 = vadd.f32 %v4568, %v4639
  %v4715 = vadd.f32 %v4569, %v4641
  %v4716 = vadd.f32 %v4570, %v4710
  %v4717 = vadd.f32 %v4571, %v4712
  %v4718 = vxor.u32 %v4567, 2147483648
  %v4719 = vmul.f32 %v4718, 1.442695
  %v4720 = vpow.pop %v4719
  %v4721 = vadd.f32 %v4720, 1.0
  %v4722 = vrcp.pop %v4721
  %v4723 = vmul.f32 1.0, %v4722
  %v4724 = vtanh.pop %v4567
  %v4725 = vmul.f32 %v4723, %v4457
  %4727 = vrot.lane.b32.xlu0 %v4724, 64
  %v4728 = vpop.permute.xlu0 %4727
  %v4730 = vmul.f32 %v4723, %v4728
  %4732 = vrot.lane.b32.xlu0 %v4730, 32
  %v4733 = vpop.permute.xlu0 %4732
  %v4735 = vadd.f32 %v4725, %v4733
  %v4736 = vtanh.pop %v4735
  %4738 = vrot.lane.b32.xlu0 %v4736, 64
  %v4739 = vpop.permute.xlu0 %4738
  %v4741 = vmul.f32 %v4723, %v4739
  %v4742 = vxor.u32 %v4714, 2147483648
  %v4743 = vxor.u32 %v4715, 2147483648
  %v4744 = vmul.f32 %v4742, 1.442695
  %v4745 = vpow.pop %v4744
  %v4746 = vmul.f32 %v4743, 1.442695
  %v4747 = vpow.pop %v4746
  %v4748 = vadd.f32 %v4745, 1.0
  %v4749 = vadd.f32 %v4747, 1.0
  %v4750 = vrcp.pop %v4748
  %v4751 = vmul.f32 1.0, %v4750
  %v4752 = vrcp.pop %v4749
  %v4753 = vmul.f32 1.0, %v4752
  %v4754 = vtanh.pop %v4716
  %v4755 = vxor.u32 %v4717, 2147483648
  %v4756 = vmul.f32 %v4755, 1.442695
  %v4757 = vpow.pop %v4756
  %v4758 = vadd.f32 %v4757, 1.0
  %v4759 = vrcp.pop %v4758
  %v4760 = vmul.f32 1.0, %v4759
  %v4761 = vmul.f32 %v4753, %v4485
  %v4762 = vmul.f32 %v4751, %v4754
  %v4763 = vadd.f32 %v4761, %v4762
  %v4764 = vtanh.pop %v4763
  %v4765 = vmul.f32 %v4760, %v4764
  %4767 = vrot.lane.b32.xlu0 %v4741, 32
  %v4768 = vpop.permute.xlu0 %4767
  %4770 = vst.msk [vmem:[#allocation3 + $0x20] sm:$0xff] %vm575, %v4768
  %4771 = vst [vmem:[#allocation5 + $0x20] sm:$0xff] %v4765
  %v4772 = vld [vmem:[#allocation2 + $0x28] sm:$0xff]
  %v4773 = vsel %vm575, %v4768, 0
  %4775 = vmatprep.subr.mxu0 0.0
  %4776 = vmatpush1.msra.mxu0 0.0
  %4777 = vmatprep.subr.mxu0 0.0
  %4778 = vmatpush1.msra.mxu0 0.0
  %4779 = vmatprep.subr.mxu0 0.0
  %4780 = vmatpush1.msra.mxu0 0.0
  %4781 = vmatprep.subr.mxu0 0.0
  %4782 = vmatpush1.msra.mxu0 0.0
  %4783 = vmatprep.subr.mxu0 0.0
  %4784 = vmatpush1.msra.mxu0 0.0
  %4785 = vmatprep.subr.mxu0 0.0
  %4786 = vmatpush1.msra.mxu0 0.0
  %4787 = vmatprep.subr.mxu0 0.0
  %4788 = vmatpush1.msra.mxu0 0.0
  %4789 = vmatprep.subr.mxu0 0.0
  %4790 = vmatpush1.msra.mxu0 0.0
  %4791 = vmatprep.subr.mxu0 0.0
  %4792 = vmatpush1.msra.mxu0 0.0
  %4793 = vmatprep.subr.mxu0 0.0
  %4794 = vmatpush1.msra.mxu0 0.0
  %4795 = vmatprep.subr.mxu0 0.0
  %4796 = vmatpush1.msra.mxu0 0.0
  %4797 = vmatprep.subr.mxu0 0.0
  %4798 = vmatpush1.msra.mxu0 0.0
  %4799 = vmatprep.subr.mxu0 0.0
  %4800 = vmatpush1.msra.mxu0 %v2815
  %4801 = vmatprep.subr.mxu0 0.0
  %4802 = vmatpush1.msra.mxu0 %v2814
  %4803 = vmatprep.subr.mxu0 0.0
  %4804 = vmatpush1.msra.mxu0 %v2813
  %4805 = vmatprep.subr.mxu0 0.0
  %4806 = vmatpush1.msra.mxu0 %v2812
  %4807 = vmatprep.subr.mxu0 0.0
  %4808 = vmatpush2.msra.mxu0 0.0
  %4809 = vmatprep.subr.mxu0 0.0
  %4810 = vmatpush2.msra.mxu0 0.0
  %4811 = vmatprep.subr.mxu0 0.0
  %4812 = vmatpush2.msra.mxu0 0.0
  %4813 = vmatprep.subr.mxu0 0.0
  %4814 = vmatpush2.msra.mxu0 0.0
  %4815 = vmatprep.subr.mxu0 0.0
  %4816 = vmatpush2.msra.mxu0 0.0
  %4817 = vmatprep.subr.mxu0 0.0
  %4818 = vmatpush2.msra.mxu0 0.0
  %4819 = vmatprep.subr.mxu0 0.0
  %4820 = vmatpush2.msra.mxu0 0.0
  %4821 = vmatprep.subr.mxu0 0.0
  %4822 = vmatpush2.msra.mxu0 0.0
  %4823 = vmatprep.subr.mxu0 0.0
  %4824 = vmatpush2.msra.mxu0 0.0
  %4825 = vmatprep.subr.mxu0 0.0
  %4826 = vmatpush2.msra.mxu0 0.0
  %4827 = vmatprep.subr.mxu0 0.0
  %4828 = vmatpush2.msra.mxu0 0.0
  %4829 = vmatprep.subr.mxu0 0.0
  %4830 = vmatpush2.msra.mxu0 0.0
  %4831 = vmatprep.subr.mxu0 0.0
  %4832 = vmatpush2.msra.mxu0 0.0
  %4833 = vmatprep.subr.mxu0 0.0
  %4834 = vmatpush2.msra.mxu0 0.0
  %4835 = vmatprep.subr.mxu0 0.0
  %4836 = vmatpush2.msra.mxu0 0.0
  %4837 = vmatprep.subr.mxu0 0.0
  %4838 = vmatpush2.msra.mxu0 0.0
  %4839 = vmatprep.mubr.f32.mxu0 0.0
  %4840 = vmatmul.mubr.f32.gmra.mxu0 %v4773
  %v4841 = vpop.f32.mrf.mxu0
  %v4842 = vadd.f32 0.0, %v4841
  %v4843 = vpop.f32.mrf.mxu0
  %4844 = vdwg.mxu0
  %v4845 = vadd.f32 %v4772, %v4842
  %v4846 = vld [vmem:[#allocation4 + $0xa0] sm:$0xff]
  %v4847 = vld [vmem:[#allocation4 + $0xa8] sm:$0xff]
  %v4848 = vld [vmem:[#allocation4 + $0xb0] sm:$0xff]
  %v4849 = vld [vmem:[#allocation4 + $0xb8] sm:$0xff]
  %4850 = vmatprep.subr.mxu0 %v2942
  %4851 = vmatpush1.msra.mxu0 %v2941
  %4852 = vmatprep.subr.mxu0 %v2938
  %4853 = vmatpush1.msra.mxu0 %v2937
  %4854 = vmatprep.subr.mxu0 %v2934
  %4855 = vmatpush1.msra.mxu0 %v2933
  %4856 = vmatprep.subr.mxu0 %v2930
  %4857 = vmatpush1.msra.mxu0 %v2929
  %4858 = vmatprep.subr.mxu0 %v2926
  %4859 = vmatpush1.msra.mxu0 %v2925
  %4860 = vmatprep.subr.mxu0 %v2922
  %4861 = vmatpush1.msra.mxu0 %v2921
  %4862 = vmatprep.subr.mxu0 %v2918
  %4863 = vmatpush1.msra.mxu0 %v2917
  %4864 = vmatprep.subr.mxu0 %v2914
  %4865 = vmatpush1.msra.mxu0 %v2913
  %4866 = vmatprep.subr.mxu0 %v2910
  %4867 = vmatpush1.msra.mxu0 %v2909
  %4868 = vmatprep.subr.mxu0 %v2906
  %4869 = vmatpush1.msra.mxu0 %v2905
  %4870 = vmatprep.subr.mxu0 %v2902
  %4871 = vmatpush1.msra.mxu0 %v2901
  %4872 = vmatprep.subr.mxu0 %v2898
  %4873 = vmatpush1.msra.mxu0 %v2897
  %4874 = vmatprep.subr.mxu0 %v2894
  %4875 = vmatpush1.msra.mxu0 %v2893
  %4876 = vmatprep.subr.mxu0 %v2890
  %4877 = vmatpush1.msra.mxu0 %v2889
  %4878 = vmatprep.subr.mxu0 %v2886
  %4879 = vmatpush1.msra.mxu0 %v2885
  %4880 = vmatprep.subr.mxu0 %v2882
  %4881 = vmatpush1.msra.mxu0 %v2881
  %4882 = vmatprep.subr.mxu0 0.0
  %4883 = vmatpush2.msra.mxu0 0.0
  %4884 = vmatprep.subr.mxu0 0.0
  %4885 = vmatpush2.msra.mxu0 0.0
  %4886 = vmatprep.subr.mxu0 0.0
  %4887 = vmatpush2.msra.mxu0 0.0
  %4888 = vmatprep.subr.mxu0 0.0
  %4889 = vmatpush2.msra.mxu0 0.0
  %4890 = vmatprep.subr.mxu0 0.0
  %4891 = vmatpush2.msra.mxu0 0.0
  %4892 = vmatprep.subr.mxu0 0.0
  %4893 = vmatpush2.msra.mxu0 0.0
  %4894 = vmatprep.subr.mxu0 0.0
  %4895 = vmatpush2.msra.mxu0 0.0
  %4896 = vmatprep.subr.mxu0 0.0
  %4897 = vmatpush2.msra.mxu0 0.0
  %4898 = vmatprep.subr.mxu0 0.0
  %4899 = vmatpush2.msra.mxu0 0.0
  %4900 = vmatprep.subr.mxu0 0.0
  %4901 = vmatpush2.msra.mxu0 0.0
  %4902 = vmatprep.subr.mxu0 0.0
  %4903 = vmatpush2.msra.mxu0 0.0
  %4904 = vmatprep.subr.mxu0 0.0
  %4905 = vmatpush2.msra.mxu0 0.0
  %4906 = vmatprep.subr.mxu0 0.0
  %4907 = vmatpush2.msra.mxu0 0.0
  %4908 = vmatprep.subr.mxu0 0.0
  %4909 = vmatpush2.msra.mxu0 0.0
  %4910 = vmatprep.subr.mxu0 0.0
  %4911 = vmatpush2.msra.mxu0 0.0
  %4912 = vmatprep.subr.mxu0 0.0
  %4913 = vmatpush2.msra.mxu0 0.0
  %4914 = vmatprep.mubr.f32.mxu0 0.0
  %4915 = vmatmul.mubr.f32.gmra.mxu0 %v4765
  %v4916 = vpop.f32.mrf.mxu0
  %v4917 = vadd.f32 0.0, %v4916
  %v4918 = vpop.f32.mrf.mxu0
  %v4919 = vadd.f32 0.0, %v4918
  %4920 = vdwg.mxu0
  %4921 = vmatprep.subr.mxu0 %v2944
  %4922 = vmatpush1.msra.mxu0 %v2943
  %4923 = vmatprep.subr.mxu0 %v2940
  %4924 = vmatpush1.msra.mxu0 %v2939
  %4925 = vmatprep.subr.mxu0 %v2936
  %4926 = vmatpush1.msra.mxu0 %v2935
  %4927 = vmatprep.subr.mxu0 %v2932
  %4928 = vmatpush1.msra.mxu0 %v2931
  %4929 = vmatprep.subr.mxu0 %v2928
  %4930 = vmatpush1.msra.mxu0 %v2927
  %4931 = vmatprep.subr.mxu0 %v2924
  %4932 = vmatpush1.msra.mxu0 %v2923
  %4933 = vmatprep.subr.mxu0 %v2920
  %4934 = vmatpush1.msra.mxu0 %v2919
  %4935 = vmatprep.subr.mxu0 %v2916
  %4936 = vmatpush1.msra.mxu0 %v2915
  %4937 = vmatprep.subr.mxu0 %v2912
  %4938 = vmatpush1.msra.mxu0 %v2911
  %4939 = vmatprep.subr.mxu0 %v2908
  %4940 = vmatpush1.msra.mxu0 %v2907
  %4941 = vmatprep.subr.mxu0 %v2904
  %4942 = vmatpush1.msra.mxu0 %v2903
  %4943 = vmatprep.subr.mxu0 %v2900
  %4944 = vmatpush1.msra.mxu0 %v2899
  %4945 = vmatprep.subr.mxu0 %v2896
  %4946 = vmatpush1.msra.mxu0 %v2895
  %4947 = vmatprep.subr.mxu0 %v2892
  %4948 = vmatpush1.msra.mxu0 %v2891
  %4949 = vmatprep.subr.mxu0 %v2888
  %4950 = vmatpush1.msra.mxu0 %v2887
  %4951 = vmatprep.subr.mxu0 %v2884
  %4952 = vmatpush1.msra.mxu0 %v2883
  %4953 = vmatprep.subr.mxu0 0.0
  %4954 = vmatpush2.msra.mxu0 0.0
  %4955 = vmatprep.subr.mxu0 0.0
  %4956 = vmatpush2.msra.mxu0 0.0
  %4957 = vmatprep.subr.mxu0 0.0
  %4958 = vmatpush2.msra.mxu0 0.0
  %4959 = vmatprep.subr.mxu0 0.0
  %4960 = vmatpush2.msra.mxu0 0.0
  %4961 = vmatprep.subr.mxu0 0.0
  %4962 = vmatpush2.msra.mxu0 0.0
  %4963 = vmatprep.subr.mxu0 0.0
  %4964 = vmatpush2.msra.mxu0 0.0
  %4965 = vmatprep.subr.mxu0 0.0
  %4966 = vmatpush2.msra.mxu0 0.0
  %4967 = vmatprep.subr.mxu0 0.0
  %4968 = vmatpush2.msra.mxu0 0.0
  %4969 = vmatprep.subr.mxu0 0.0
  %4970 = vmatpush2.msra.mxu0 0.0
  %4971 = vmatprep.subr.mxu0 0.0
  %4972 = vmatpush2.msra.mxu0 0.0
  %4973 = vmatprep.subr.mxu0 0.0
  %4974 = vmatpush2.msra.mxu0 0.0
  %4975 = vmatprep.subr.mxu0 0.0
  %4976 = vmatpush2.msra.mxu0 0.0
  %4977 = vmatprep.subr.mxu0 0.0
  %4978 = vmatpush2.msra.mxu0 0.0
  %4979 = vmatprep.subr.mxu0 0.0
  %4980 = vmatpush2.msra.mxu0 0.0
  %4981 = vmatprep.subr.mxu0 0.0
  %4982 = vmatpush2.msra.mxu0 0.0
  %4983 = vmatprep.subr.mxu0 0.0
  %4984 = vmatpush2.msra.mxu0 0.0
  %4985 = vmatprep.mubr.f32.mxu0 0.0
  %4986 = vmatmul.mubr.f32.gmra.mxu0 %v4765
  %v4987 = vpop.f32.mrf.mxu0
  %v4988 = vadd.f32 0.0, %v4987
  %v4989 = vpop.f32.mrf.mxu0
  %v4990 = vadd.f32 0.0, %v4989
  %4991 = vdwg.mxu0
  %v4992 = vadd.f32 %v4846, %v4917
  %v4993 = vadd.f32 %v4847, %v4919
  %v4994 = vadd.f32 %v4848, %v4988
  %v4995 = vadd.f32 %v4849, %v4990
  %v4996 = vxor.u32 %v4845, 2147483648
  %v4997 = vmul.f32 %v4996, 1.442695
  %v4998 = vpow.pop %v4997
  %v4999 = vadd.f32 %v4998, 1.0
  %v5000 = vrcp.pop %v4999
  %v5001 = vmul.f32 1.0, %v5000
  %v5002 = vtanh.pop %v4845
  %v5003 = vmul.f32 %v5001, %v4735
  %5005 = vrot.lane.b32.xlu0 %v5002, 64
  %v5006 = vpop.permute.xlu0 %5005
  %v5008 = vmul.f32 %v5001, %v5006
  %5010 = vrot.lane.b32.xlu0 %v5008, 32
  %v5011 = vpop.permute.xlu0 %5010
  %v5013 = vadd.f32 %v5003, %v5011
  %v5014 = vtanh.pop %v5013
  %5016 = vrot.lane.b32.xlu0 %v5014, 64
  %v5017 = vpop.permute.xlu0 %5016
  %v5019 = vmul.f32 %v5001, %v5017
  %v5020 = vxor.u32 %v4992, 2147483648
  %v5021 = vxor.u32 %v4993, 2147483648
  %v5022 = vmul.f32 %v5020, 1.442695
  %v5023 = vpow.pop %v5022
  %v5024 = vmul.f32 %v5021, 1.442695
  %v5025 = vpow.pop %v5024
  %v5026 = vadd.f32 %v5023, 1.0
  %v5027 = vadd.f32 %v5025, 1.0
  %v5028 = vrcp.pop %v5026
  %v5029 = vmul.f32 1.0, %v5028
  %v5030 = vrcp.pop %v5027
  %v5031 = vmul.f32 1.0, %v5030
  %v5032 = vtanh.pop %v4994
  %v5033 = vxor.u32 %v4995, 2147483648
  %v5034 = vmul.f32 %v5033, 1.442695
  %v5035 = vpow.pop %v5034
  %v5036 = vadd.f32 %v5035, 1.0
  %v5037 = vrcp.pop %v5036
  %v5038 = vmul.f32 1.0, %v5037
  %v5039 = vmul.f32 %v5031, %v4763
  %v5040 = vmul.f32 %v5029, %v5032
  %v5041 = vadd.f32 %v5039, %v5040
  %v5042 = vtanh.pop %v5041
  %v5043 = vmul.f32 %v5038, %v5042
  %5045 = vrot.lane.b32.xlu0 %v5019, 32
  %v5046 = vpop.permute.xlu0 %5045
  %5048 = vst.msk [vmem:[#allocation3 + $0x28] sm:$0xff] %vm575, %v5046
  %5049 = vst [vmem:[#allocation5 + $0x28] sm:$0xff] %v5043
  %v5050 = vld [vmem:[#allocation2 + $0x30] sm:$0xff]
  %v5051 = vsel %vm575, %v5046, 0
  %5053 = vmatprep.subr.mxu0 0.0
  %5054 = vmatpush1.msra.mxu0 0.0
  %5055 = vmatprep.subr.mxu0 0.0
  %5056 = vmatpush1.msra.mxu0 0.0
  %5057 = vmatprep.subr.mxu0 0.0
  %5058 = vmatpush1.msra.mxu0 0.0
  %5059 = vmatprep.subr.mxu0 0.0
  %5060 = vmatpush1.msra.mxu0 0.0
  %5061 = vmatprep.subr.mxu0 0.0
  %5062 = vmatpush1.msra.mxu0 0.0
  %5063 = vmatprep.subr.mxu0 0.0
  %5064 = vmatpush1.msra.mxu0 0.0
  %5065 = vmatprep.subr.mxu0 0.0
  %5066 = vmatpush1.msra.mxu0 0.0
  %5067 = vmatprep.subr.mxu0 0.0
  %5068 = vmatpush1.msra.mxu0 0.0
  %5069 = vmatprep.subr.mxu0 0.0
  %5070 = vmatpush1.msra.mxu0 0.0
  %5071 = vmatprep.subr.mxu0 0.0
  %5072 = vmatpush1.msra.mxu0 0.0
  %5073 = vmatprep.subr.mxu0 0.0
  %5074 = vmatpush1.msra.mxu0 0.0
  %5075 = vmatprep.subr.mxu0 0.0
  %5076 = vmatpush1.msra.mxu0 0.0
  %5077 = vmatprep.subr.mxu0 0.0
  %5078 = vmatpush1.msra.mxu0 %v2815
  %5079 = vmatprep.subr.mxu0 0.0
  %5080 = vmatpush1.msra.mxu0 %v2814
  %5081 = vmatprep.subr.mxu0 0.0
  %5082 = vmatpush1.msra.mxu0 %v2813
  %5083 = vmatprep.subr.mxu0 0.0
  %5084 = vmatpush1.msra.mxu0 %v2812
  %5085 = vmatprep.subr.mxu0 0.0
  %5086 = vmatpush2.msra.mxu0 0.0
  %5087 = vmatprep.subr.mxu0 0.0
  %5088 = vmatpush2.msra.mxu0 0.0
  %5089 = vmatprep.subr.mxu0 0.0
  %5090 = vmatpush2.msra.mxu0 0.0
  %5091 = vmatprep.subr.mxu0 0.0
  %5092 = vmatpush2.msra.mxu0 0.0
  %5093 = vmatprep.subr.mxu0 0.0
  %5094 = vmatpush2.msra.mxu0 0.0
  %5095 = vmatprep.subr.mxu0 0.0
  %5096 = vmatpush2.msra.mxu0 0.0
  %5097 = vmatprep.subr.mxu0 0.0
  %5098 = vmatpush2.msra.mxu0 0.0
  %5099 = vmatprep.subr.mxu0 0.0
  %5100 = vmatpush2.msra.mxu0 0.0
  %5101 = vmatprep.subr.mxu0 0.0
  %5102 = vmatpush2.msra.mxu0 0.0
  %5103 = vmatprep.subr.mxu0 0.0
  %5104 = vmatpush2.msra.mxu0 0.0
  %5105 = vmatprep.subr.mxu0 0.0
  %5106 = vmatpush2.msra.mxu0 0.0
  %5107 = vmatprep.subr.mxu0 0.0
  %5108 = vmatpush2.msra.mxu0 0.0
  %5109 = vmatprep.subr.mxu0 0.0
  %5110 = vmatpush2.msra.mxu0 0.0
  %5111 = vmatprep.subr.mxu0 0.0
  %5112 = vmatpush2.msra.mxu0 0.0
  %5113 = vmatprep.subr.mxu0 0.0
  %5114 = vmatpush2.msra.mxu0 0.0
  %5115 = vmatprep.subr.mxu0 0.0
  %5116 = vmatpush2.msra.mxu0 0.0
  %5117 = vmatprep.mubr.f32.mxu0 0.0
  %5118 = vmatmul.mubr.f32.gmra.mxu0 %v5051
  %v5119 = vpop.f32.mrf.mxu0
  %v5120 = vadd.f32 0.0, %v5119
  %v5121 = vpop.f32.mrf.mxu0
  %5122 = vdwg.mxu0
  %v5123 = vadd.f32 %v5050, %v5120
  %v5124 = vld [vmem:[#allocation4 + $0xc0] sm:$0xff]
  %v5125 = vld [vmem:[#allocation4 + $0xc8] sm:$0xff]
  %v5126 = vld [vmem:[#allocation4 + $0xd0] sm:$0xff]
  %v5127 = vld [vmem:[#allocation4 + $0xd8] sm:$0xff]
  %5128 = vmatprep.subr.mxu0 %v2942
  %5129 = vmatpush1.msra.mxu0 %v2941
  %5130 = vmatprep.subr.mxu0 %v2938
  %5131 = vmatpush1.msra.mxu0 %v2937
  %5132 = vmatprep.subr.mxu0 %v2934
  %5133 = vmatpush1.msra.mxu0 %v2933
  %5134 = vmatprep.subr.mxu0 %v2930
  %5135 = vmatpush1.msra.mxu0 %v2929
  %5136 = vmatprep.subr.mxu0 %v2926
  %5137 = vmatpush1.msra.mxu0 %v2925
  %5138 = vmatprep.subr.mxu0 %v2922
  %5139 = vmatpush1.msra.mxu0 %v2921
  %5140 = vmatprep.subr.mxu0 %v2918
  %5141 = vmatpush1.msra.mxu0 %v2917
  %5142 = vmatprep.subr.mxu0 %v2914
  %5143 = vmatpush1.msra.mxu0 %v2913
  %5144 = vmatprep.subr.mxu0 %v2910
  %5145 = vmatpush1.msra.mxu0 %v2909
  %5146 = vmatprep.subr.mxu0 %v2906
  %5147 = vmatpush1.msra.mxu0 %v2905
  %5148 = vmatprep.subr.mxu0 %v2902
  %5149 = vmatpush1.msra.mxu0 %v2901
  %5150 = vmatprep.subr.mxu0 %v2898
  %5151 = vmatpush1.msra.mxu0 %v2897
  %5152 = vmatprep.subr.mxu0 %v2894
  %5153 = vmatpush1.msra.mxu0 %v2893
  %5154 = vmatprep.subr.mxu0 %v2890
  %5155 = vmatpush1.msra.mxu0 %v2889
  %5156 = vmatprep.subr.mxu0 %v2886
  %5157 = vmatpush1.msra.mxu0 %v2885
  %5158 = vmatprep.subr.mxu0 %v2882
  %5159 = vmatpush1.msra.mxu0 %v2881
  %5160 = vmatprep.subr.mxu0 0.0
  %5161 = vmatpush2.msra.mxu0 0.0
  %5162 = vmatprep.subr.mxu0 0.0
  %5163 = vmatpush2.msra.mxu0 0.0
  %5164 = vmatprep.subr.mxu0 0.0
  %5165 = vmatpush2.msra.mxu0 0.0
  %5166 = vmatprep.subr.mxu0 0.0
  %5167 = vmatpush2.msra.mxu0 0.0
  %5168 = vmatprep.subr.mxu0 0.0
  %5169 = vmatpush2.msra.mxu0 0.0
  %5170 = vmatprep.subr.mxu0 0.0
  %5171 = vmatpush2.msra.mxu0 0.0
  %5172 = vmatprep.subr.mxu0 0.0
  %5173 = vmatpush2.msra.mxu0 0.0
  %5174 = vmatprep.subr.mxu0 0.0
  %5175 = vmatpush2.msra.mxu0 0.0
  %5176 = vmatprep.subr.mxu0 0.0
  %5177 = vmatpush2.msra.mxu0 0.0
  %5178 = vmatprep.subr.mxu0 0.0
  %5179 = vmatpush2.msra.mxu0 0.0
  %5180 = vmatprep.subr.mxu0 0.0
  %5181 = vmatpush2.msra.mxu0 0.0
  %5182 = vmatprep.subr.mxu0 0.0
  %5183 = vmatpush2.msra.mxu0 0.0
  %5184 = vmatprep.subr.mxu0 0.0
  %5185 = vmatpush2.msra.mxu0 0.0
  %5186 = vmatprep.subr.mxu0 0.0
  %5187 = vmatpush2.msra.mxu0 0.0
  %5188 = vmatprep.subr.mxu0 0.0
  %5189 = vmatpush2.msra.mxu0 0.0
  %5190 = vmatprep.subr.mxu0 0.0
  %5191 = vmatpush2.msra.mxu0 0.0
  %5192 = vmatprep.mubr.f32.mxu0 0.0
  %5193 = vmatmul.mubr.f32.gmra.mxu0 %v5043
  %v5194 = vpop.f32.mrf.mxu0
  %v5195 = vadd.f32 0.0, %v5194
  %v5196 = vpop.f32.mrf.mxu0
  %v5197 = vadd.f32 0.0, %v5196
  %5198 = vdwg.mxu0
  %5199 = vmatprep.subr.mxu0 %v2944
  %5200 = vmatpush1.msra.mxu0 %v2943
  %5201 = vmatprep.subr.mxu0 %v2940
  %5202 = vmatpush1.msra.mxu0 %v2939
  %5203 = vmatprep.subr.mxu0 %v2936
  %5204 = vmatpush1.msra.mxu0 %v2935
  %5205 = vmatprep.subr.mxu0 %v2932
  %5206 = vmatpush1.msra.mxu0 %v2931
  %5207 = vmatprep.subr.mxu0 %v2928
  %5208 = vmatpush1.msra.mxu0 %v2927
  %5209 = vmatprep.subr.mxu0 %v2924
  %5210 = vmatpush1.msra.mxu0 %v2923
  %5211 = vmatprep.subr.mxu0 %v2920
  %5212 = vmatpush1.msra.mxu0 %v2919
  %5213 = vmatprep.subr.mxu0 %v2916
  %5214 = vmatpush1.msra.mxu0 %v2915
  %5215 = vmatprep.subr.mxu0 %v2912
  %5216 = vmatpush1.msra.mxu0 %v2911
  %5217 = vmatprep.subr.mxu0 %v2908
  %5218 = vmatpush1.msra.mxu0 %v2907
  %5219 = vmatprep.subr.mxu0 %v2904
  %5220 = vmatpush1.msra.mxu0 %v2903
  %5221 = vmatprep.subr.mxu0 %v2900
  %5222 = vmatpush1.msra.mxu0 %v2899
  %5223 = vmatprep.subr.mxu0 %v2896
  %5224 = vmatpush1.msra.mxu0 %v2895
  %5225 = vmatprep.subr.mxu0 %v2892
  %5226 = vmatpush1.msra.mxu0 %v2891
  %5227 = vmatprep.subr.mxu0 %v2888
  %5228 = vmatpush1.msra.mxu0 %v2887
  %5229 = vmatprep.subr.mxu0 %v2884
  %5230 = vmatpush1.msra.mxu0 %v2883
  %5231 = vmatprep.subr.mxu0 0.0
  %5232 = vmatpush2.msra.mxu0 0.0
  %5233 = vmatprep.subr.mxu0 0.0
  %5234 = vmatpush2.msra.mxu0 0.0
  %5235 = vmatprep.subr.mxu0 0.0
  %5236 = vmatpush2.msra.mxu0 0.0
  %5237 = vmatprep.subr.mxu0 0.0
  %5238 = vmatpush2.msra.mxu0 0.0
  %5239 = vmatprep.subr.mxu0 0.0
  %5240 = vmatpush2.msra.mxu0 0.0
  %5241 = vmatprep.subr.mxu0 0.0
  %5242 = vmatpush2.msra.mxu0 0.0
  %5243 = vmatprep.subr.mxu0 0.0
  %5244 = vmatpush2.msra.mxu0 0.0
  %5245 = vmatprep.subr.mxu0 0.0
  %5246 = vmatpush2.msra.mxu0 0.0
  %5247 = vmatprep.subr.mxu0 0.0
  %5248 = vmatpush2.msra.mxu0 0.0
  %5249 = vmatprep.subr.mxu0 0.0
  %5250 = vmatpush2.msra.mxu0 0.0
  %5251 = vmatprep.subr.mxu0 0.0
  %5252 = vmatpush2.msra.mxu0 0.0
  %5253 = vmatprep.subr.mxu0 0.0
  %5254 = vmatpush2.msra.mxu0 0.0
  %5255 = vmatprep.subr.mxu0 0.0
  %5256 = vmatpush2.msra.mxu0 0.0
  %5257 = vmatprep.subr.mxu0 0.0
  %5258 = vmatpush2.msra.mxu0 0.0
  %5259 = vmatprep.subr.mxu0 0.0
  %5260 = vmatpush2.msra.mxu0 0.0
  %5261 = vmatprep.subr.mxu0 0.0
  %5262 = vmatpush2.msra.mxu0 0.0
  %5263 = vmatprep.mubr.f32.mxu0 0.0
  %5264 = vmatmul.mubr.f32.gmra.mxu0 %v5043
  %v5265 = vpop.f32.mrf.mxu0
  %v5266 = vadd.f32 0.0, %v5265
  %v5267 = vpop.f32.mrf.mxu0
  %v5268 = vadd.f32 0.0, %v5267
  %5269 = vdwg.mxu0
  %v5270 = vadd.f32 %v5124, %v5195
  %v5271 = vadd.f32 %v5125, %v5197
  %v5272 = vadd.f32 %v5126, %v5266
  %v5273 = vadd.f32 %v5127, %v5268
  %v5274 = vxor.u32 %v5123, 2147483648
  %v5275 = vmul.f32 %v5274, 1.442695
  %v5276 = vpow.pop %v5275
  %v5277 = vadd.f32 %v5276, 1.0
  %v5278 = vrcp.pop %v5277
  %v5279 = vmul.f32 1.0, %v5278
  %v5280 = vtanh.pop %v5123
  %v5281 = vmul.f32 %v5279, %v5013
  %5283 = vrot.lane.b32.xlu0 %v5280, 64
  %v5284 = vpop.permute.xlu0 %5283
  %v5286 = vmul.f32 %v5279, %v5284
  %5288 = vrot.lane.b32.xlu0 %v5286, 32
  %v5289 = vpop.permute.xlu0 %5288
  %v5291 = vadd.f32 %v5281, %v5289
  %v5292 = vtanh.pop %v5291
  %5294 = vrot.lane.b32.xlu0 %v5292, 64
  %v5295 = vpop.permute.xlu0 %5294
  %v5297 = vmul.f32 %v5279, %v5295
  %v5298 = vxor.u32 %v5270, 2147483648
  %v5299 = vxor.u32 %v5271, 2147483648
  %v5300 = vmul.f32 %v5298, 1.442695
  %v5301 = vpow.pop %v5300
  %v5302 = vmul.f32 %v5299, 1.442695
  %v5303 = vpow.pop %v5302
  %v5304 = vadd.f32 %v5301, 1.0
  %v5305 = vadd.f32 %v5303, 1.0
  %v5306 = vrcp.pop %v5304
  %v5307 = vmul.f32 1.0, %v5306
  %v5308 = vrcp.pop %v5305
  %v5309 = vmul.f32 1.0, %v5308
  %v5310 = vtanh.pop %v5272
  %v5311 = vxor.u32 %v5273, 2147483648
  %v5312 = vmul.f32 %v5311, 1.442695
  %v5313 = vpow.pop %v5312
  %v5314 = vadd.f32 %v5313, 1.0
  %v5315 = vrcp.pop %v5314
  %v5316 = vmul.f32 1.0, %v5315
  %v5317 = vmul.f32 %v5309, %v5041
  %v5318 = vmul.f32 %v5307, %v5310
  %v5319 = vadd.f32 %v5317, %v5318
  %v5320 = vtanh.pop %v5319
  %v5321 = vmul.f32 %v5316, %v5320
  %5323 = vrot.lane.b32.xlu0 %v5297, 32
  %v5324 = vpop.permute.xlu0 %5323
  %5326 = vst.msk [vmem:[#allocation3 + $0x30] sm:$0xff] %vm575, %v5324
  %5327 = vst [vmem:[#allocation5 + $0x30] sm:$0xff] %v5321
  %v5328 = vld [vmem:[#allocation2 + $0x38] sm:$0xff]
  %v5329 = vsel %vm575, %v5324, 0
  %5331 = vmatprep.subr.mxu0 0.0
  %5332 = vmatpush1.msra.mxu0 0.0
  %5333 = vmatprep.subr.mxu0 0.0
  %5334 = vmatpush1.msra.mxu0 0.0
  %5335 = vmatprep.subr.mxu0 0.0
  %5336 = vmatpush1.msra.mxu0 0.0
  %5337 = vmatprep.subr.mxu0 0.0
  %5338 = vmatpush1.msra.mxu0 0.0
  %5339 = vmatprep.subr.mxu0 0.0
  %5340 = vmatpush1.msra.mxu0 0.0
  %5341 = vmatprep.subr.mxu0 0.0
  %5342 = vmatpush1.msra.mxu0 0.0
  %5343 = vmatprep.subr.mxu0 0.0
  %5344 = vmatpush1.msra.mxu0 0.0
  %5345 = vmatprep.subr.mxu0 0.0
  %5346 = vmatpush1.msra.mxu0 0.0
  %5347 = vmatprep.subr.mxu0 0.0
  %5348 = vmatpush1.msra.mxu0 0.0
  %5349 = vmatprep.subr.mxu0 0.0
  %5350 = vmatpush1.msra.mxu0 0.0
  %5351 = vmatprep.subr.mxu0 0.0
  %5352 = vmatpush1.msra.mxu0 0.0
  %5353 = vmatprep.subr.mxu0 0.0
  %5354 = vmatpush1.msra.mxu0 0.0
  %5355 = vmatprep.subr.mxu0 0.0
  %5356 = vmatpush1.msra.mxu0 %v2815
  %5357 = vmatprep.subr.mxu0 0.0
  %5358 = vmatpush1.msra.mxu0 %v2814
  %5359 = vmatprep.subr.mxu0 0.0
  %5360 = vmatpush1.msra.mxu0 %v2813
  %5361 = vmatprep.subr.mxu0 0.0
  %5362 = vmatpush1.msra.mxu0 %v2812
  %5363 = vmatprep.subr.mxu0 0.0
  %5364 = vmatpush2.msra.mxu0 0.0
  %5365 = vmatprep.subr.mxu0 0.0
  %5366 = vmatpush2.msra.mxu0 0.0
  %5367 = vmatprep.subr.mxu0 0.0
  %5368 = vmatpush2.msra.mxu0 0.0
  %5369 = vmatprep.subr.mxu0 0.0
  %5370 = vmatpush2.msra.mxu0 0.0
  %5371 = vmatprep.subr.mxu0 0.0
  %5372 = vmatpush2.msra.mxu0 0.0
  %5373 = vmatprep.subr.mxu0 0.0
  %5374 = vmatpush2.msra.mxu0 0.0
  %5375 = vmatprep.subr.mxu0 0.0
  %5376 = vmatpush2.msra.mxu0 0.0
  %5377 = vmatprep.subr.mxu0 0.0
  %5378 = vmatpush2.msra.mxu0 0.0
  %5379 = vmatprep.subr.mxu0 0.0
  %5380 = vmatpush2.msra.mxu0 0.0
  %5381 = vmatprep.subr.mxu0 0.0
  %5382 = vmatpush2.msra.mxu0 0.0
  %5383 = vmatprep.subr.mxu0 0.0
  %5384 = vmatpush2.msra.mxu0 0.0
  %5385 = vmatprep.subr.mxu0 0.0
  %5386 = vmatpush2.msra.mxu0 0.0
  %5387 = vmatprep.subr.mxu0 0.0
  %5388 = vmatpush2.msra.mxu0 0.0
  %5389 = vmatprep.subr.mxu0 0.0
  %5390 = vmatpush2.msra.mxu0 0.0
  %5391 = vmatprep.subr.mxu0 0.0
  %5392 = vmatpush2.msra.mxu0 0.0
  %5393 = vmatprep.subr.mxu0 0.0
  %5394 = vmatpush2.msra.mxu0 0.0
  %5395 = vmatprep.mubr.f32.mxu0 0.0
  %5396 = vmatmul.mubr.f32.gmra.mxu0 %v5329
  %v5397 = vpop.f32.mrf.mxu0
  %v5398 = vadd.f32 0.0, %v5397
  %v5399 = vpop.f32.mrf.mxu0
  %5400 = vdwg.mxu0
  %v5401 = vadd.f32 %v5328, %v5398
  %v5402 = vld [vmem:[#allocation4 + $0xe0] sm:$0xff]
  %v5403 = vld [vmem:[#allocation4 + $0xe8] sm:$0xff]
  %v5404 = vld [vmem:[#allocation4 + $0xf0] sm:$0xff]
  %v5405 = vld [vmem:[#allocation4 + $0xf8] sm:$0xff]
  %5406 = vmatprep.subr.mxu0 %v2942
  %5407 = vmatpush1.msra.mxu0 %v2941
  %5408 = vmatprep.subr.mxu0 %v2938
  %5409 = vmatpush1.msra.mxu0 %v2937
  %5410 = vmatprep.subr.mxu0 %v2934
  %5411 = vmatpush1.msra.mxu0 %v2933
  %5412 = vmatprep.subr.mxu0 %v2930
  %5413 = vmatpush1.msra.mxu0 %v2929
  %5414 = vmatprep.subr.mxu0 %v2926
  %5415 = vmatpush1.msra.mxu0 %v2925
  %5416 = vmatprep.subr.mxu0 %v2922
  %5417 = vmatpush1.msra.mxu0 %v2921
  %5418 = vmatprep.subr.mxu0 %v2918
  %5419 = vmatpush1.msra.mxu0 %v2917
  %5420 = vmatprep.subr.mxu0 %v2914
  %5421 = vmatpush1.msra.mxu0 %v2913
  %5422 = vmatprep.subr.mxu0 %v2910
  %5423 = vmatpush1.msra.mxu0 %v2909
  %5424 = vmatprep.subr.mxu0 %v2906
  %5425 = vmatpush1.msra.mxu0 %v2905
  %5426 = vmatprep.subr.mxu0 %v2902
  %5427 = vmatpush1.msra.mxu0 %v2901
  %5428 = vmatprep.subr.mxu0 %v2898
  %5429 = vmatpush1.msra.mxu0 %v2897
  %5430 = vmatprep.subr.mxu0 %v2894
  %5431 = vmatpush1.msra.mxu0 %v2893
  %5432 = vmatprep.subr.mxu0 %v2890
  %5433 = vmatpush1.msra.mxu0 %v2889
  %5434 = vmatprep.subr.mxu0 %v2886
  %5435 = vmatpush1.msra.mxu0 %v2885
  %5436 = vmatprep.subr.mxu0 %v2882
  %5437 = vmatpush1.msra.mxu0 %v2881
  %5438 = vmatprep.subr.mxu0 0.0
  %5439 = vmatpush2.msra.mxu0 0.0
  %5440 = vmatprep.subr.mxu0 0.0
  %5441 = vmatpush2.msra.mxu0 0.0
  %5442 = vmatprep.subr.mxu0 0.0
  %5443 = vmatpush2.msra.mxu0 0.0
  %5444 = vmatprep.subr.mxu0 0.0
  %5445 = vmatpush2.msra.mxu0 0.0
  %5446 = vmatprep.subr.mxu0 0.0
  %5447 = vmatpush2.msra.mxu0 0.0
  %5448 = vmatprep.subr.mxu0 0.0
  %5449 = vmatpush2.msra.mxu0 0.0
  %5450 = vmatprep.subr.mxu0 0.0
  %5451 = vmatpush2.msra.mxu0 0.0
  %5452 = vmatprep.subr.mxu0 0.0
  %5453 = vmatpush2.msra.mxu0 0.0
  %5454 = vmatprep.subr.mxu0 0.0
  %5455 = vmatpush2.msra.mxu0 0.0
  %5456 = vmatprep.subr.mxu0 0.0
  %5457 = vmatpush2.msra.mxu0 0.0
  %5458 = vmatprep.subr.mxu0 0.0
  %5459 = vmatpush2.msra.mxu0 0.0
  %5460 = vmatprep.subr.mxu0 0.0
  %5461 = vmatpush2.msra.mxu0 0.0
  %5462 = vmatprep.subr.mxu0 0.0
  %5463 = vmatpush2.msra.mxu0 0.0
  %5464 = vmatprep.subr.mxu0 0.0
  %5465 = vmatpush2.msra.mxu0 0.0
  %5466 = vmatprep.subr.mxu0 0.0
  %5467 = vmatpush2.msra.mxu0 0.0
  %5468 = vmatprep.subr.mxu0 0.0
  %5469 = vmatpush2.msra.mxu0 0.0
  %5470 = vmatprep.mubr.f32.mxu0 0.0
  %5471 = vmatmul.mubr.f32.gmra.mxu0 %v5321
  %v5472 = vpop.f32.mrf.mxu0
  %v5473 = vadd.f32 0.0, %v5472
  %v5474 = vpop.f32.mrf.mxu0
  %v5475 = vadd.f32 0.0, %v5474
  %5476 = vdwg.mxu0
  %5477 = vmatprep.subr.mxu0 %v2944
  %5478 = vmatpush1.msra.mxu0 %v2943
  %5479 = vmatprep.subr.mxu0 %v2940
  %5480 = vmatpush1.msra.mxu0 %v2939
  %5481 = vmatprep.subr.mxu0 %v2936
  %5482 = vmatpush1.msra.mxu0 %v2935
  %5483 = vmatprep.subr.mxu0 %v2932
  %5484 = vmatpush1.msra.mxu0 %v2931
  %5485 = vmatprep.subr.mxu0 %v2928
  %5486 = vmatpush1.msra.mxu0 %v2927
  %5487 = vmatprep.subr.mxu0 %v2924
  %5488 = vmatpush1.msra.mxu0 %v2923
  %5489 = vmatprep.subr.mxu0 %v2920
  %5490 = vmatpush1.msra.mxu0 %v2919
  %5491 = vmatprep.subr.mxu0 %v2916
  %5492 = vmatpush1.msra.mxu0 %v2915
  %5493 = vmatprep.subr.mxu0 %v2912
  %5494 = vmatpush1.msra.mxu0 %v2911
  %5495 = vmatprep.subr.mxu0 %v2908
  %5496 = vmatpush1.msra.mxu0 %v2907
  %5497 = vmatprep.subr.mxu0 %v2904
  %5498 = vmatpush1.msra.mxu0 %v2903
  %5499 = vmatprep.subr.mxu0 %v2900
  %5500 = vmatpush1.msra.mxu0 %v2899
  %5501 = vmatprep.subr.mxu0 %v2896
  %5502 = vmatpush1.msra.mxu0 %v2895
  %5503 = vmatprep.subr.mxu0 %v2892
  %5504 = vmatpush1.msra.mxu0 %v2891
  %5505 = vmatprep.subr.mxu0 %v2888
  %5506 = vmatpush1.msra.mxu0 %v2887
  %5507 = vmatprep.subr.mxu0 %v2884
  %5508 = vmatpush1.msra.mxu0 %v2883
  %5509 = vmatprep.subr.mxu0 0.0
  %5510 = vmatpush2.msra.mxu0 0.0
  %5511 = vmatprep.subr.mxu0 0.0
  %5512 = vmatpush2.msra.mxu0 0.0
  %5513 = vmatprep.subr.mxu0 0.0
  %5514 = vmatpush2.msra.mxu0 0.0
  %5515 = vmatprep.subr.mxu0 0.0
  %5516 = vmatpush2.msra.mxu0 0.0
  %5517 = vmatprep.subr.mxu0 0.0
  %5518 = vmatpush2.msra.mxu0 0.0
  %5519 = vmatprep.subr.mxu0 0.0
  %5520 = vmatpush2.msra.mxu0 0.0
  %5521 = vmatprep.subr.mxu0 0.0
  %5522 = vmatpush2.msra.mxu0 0.0
  %5523 = vmatprep.subr.mxu0 0.0
  %5524 = vmatpush2.msra.mxu0 0.0
  %5525 = vmatprep.subr.mxu0 0.0
  %5526 = vmatpush2.msra.mxu0 0.0
  %5527 = vmatprep.subr.mxu0 0.0
  %5528 = vmatpush2.msra.mxu0 0.0
  %5529 = vmatprep.subr.mxu0 0.0
  %5530 = vmatpush2.msra.mxu0 0.0
  %5531 = vmatprep.subr.mxu0 0.0
  %5532 = vmatpush2.msra.mxu0 0.0
  %5533 = vmatprep.subr.mxu0 0.0
  %5534 = vmatpush2.msra.mxu0 0.0
  %5535 = vmatprep.subr.mxu0 0.0
  %5536 = vmatpush2.msra.mxu0 0.0
  %5537 = vmatprep.subr.mxu0 0.0
  %5538 = vmatpush2.msra.mxu0 0.0
  %5539 = vmatprep.subr.mxu0 0.0
  %5540 = vmatpush2.msra.mxu0 0.0
  %5541 = vmatprep.mubr.f32.mxu0 0.0
  %5542 = vmatmul.mubr.f32.gmra.mxu0 %v5321
  %v5543 = vpop.f32.mrf.mxu0
  %v5544 = vadd.f32 0.0, %v5543
  %v5545 = vpop.f32.mrf.mxu0
  %v5546 = vadd.f32 0.0, %v5545
  %5547 = vdwg.mxu0
  %v5548 = vadd.f32 %v5402, %v5473
  %v5549 = vadd.f32 %v5403, %v5475
  %v5550 = vadd.f32 %v5404, %v5544
  %v5551 = vadd.f32 %v5405, %v5546
  %v5552 = vxor.u32 %v5401, 2147483648
  %v5553 = vmul.f32 %v5552, 1.442695
  %v5554 = vpow.pop %v5553
  %v5555 = vadd.f32 %v5554, 1.0
  %v5556 = vrcp.pop %v5555
  %v5557 = vmul.f32 1.0, %v5556
  %v5558 = vtanh.pop %v5401
  %v5559 = vmul.f32 %v5557, %v5291
  %5561 = vrot.lane.b32.xlu0 %v5558, 64
  %v5562 = vpop.permute.xlu0 %5561
  %v5564 = vmul.f32 %v5557, %v5562
  %5566 = vrot.lane.b32.xlu0 %v5564, 32
  %v5567 = vpop.permute.xlu0 %5566
  %v5569 = vadd.f32 %v5559, %v5567
  %v5570 = vtanh.pop %v5569
  %5572 = vrot.lane.b32.xlu0 %v5570, 64
  %v5573 = vpop.permute.xlu0 %5572
  %v5575 = vmul.f32 %v5557, %v5573
  %v5576 = vxor.u32 %v5548, 2147483648
  %v5577 = vxor.u32 %v5549, 2147483648
  %v5578 = vmul.f32 %v5576, 1.442695
  %v5579 = vpow.pop %v5578
  %v5580 = vmul.f32 %v5577, 1.442695
  %v5581 = vpow.pop %v5580
  %v5582 = vadd.f32 %v5579, 1.0
  %v5583 = vadd.f32 %v5581, 1.0
  %v5584 = vrcp.pop %v5582
  %v5585 = vmul.f32 1.0, %v5584
  %v5586 = vrcp.pop %v5583
  %v5587 = vmul.f32 1.0, %v5586
  %v5588 = vtanh.pop %v5550
  %v5589 = vxor.u32 %v5551, 2147483648
  %v5590 = vmul.f32 %v5589, 1.442695
  %v5591 = vpow.pop %v5590
  %v5592 = vadd.f32 %v5591, 1.0
  %v5593 = vrcp.pop %v5592
  %v5594 = vmul.f32 1.0, %v5593
  %v5595 = vmul.f32 %v5587, %v5319
  %v5596 = vmul.f32 %v5585, %v5588
  %v5597 = vadd.f32 %v5595, %v5596
  %v5598 = vtanh.pop %v5597
  %v5599 = vmul.f32 %v5594, %v5598
  %5601 = vrot.lane.b32.xlu0 %v5575, 32
  %v5602 = vpop.permute.xlu0 %5601
  %5604 = vst.msk [vmem:[#allocation3 + $0x38] sm:$0xff] %vm575, %v5602
  %5605 = vst [vmem:[#allocation5 + $0x38] sm:$0xff] %v5599
  %s5606 = scalar_lea.vmem %s18, 8
  %5607 = vst.msk [vmem:[%s5606] sm:$0xff] %vm575, %v5602
  %5609 = vrot.lane.b32.xlu0 %v5569, 96
  %v5610 = vpop.permute.xlu0 %5609
  %s5612 = scalar_lea.vmem %s19, 8
  %5613 = vst.msk [vmem:[%s5612] sm:$0xff] %vm575, %v5610
  %s5614 = scalar_lea.vmem %s20, 8
  %5615 = vst [vmem:[%s5614] sm:$0xff] %v5599
  %s5616 = scalar_lea.vmem %s21, 8
  %5617 = vst [vmem:[%s5616] sm:$0xff] %v5597
  %v5618 = vld [vmem:[#allocation3] sm:$0xff]
  %v5619 = vld [vmem:[#allocation3 + $0x8] sm:$0xff]
  %v5620 = vld [vmem:[#allocation3 + $0x10] sm:$0xff]
  %v5621 = vld [vmem:[#allocation3 + $0x18] sm:$0xff]
  %v5622 = vld [vmem:[#allocation3 + $0x20] sm:$0xff]
  %v5623 = vld [vmem:[#allocation3 + $0x28] sm:$0xff]
  %v5624 = vld [vmem:[#allocation3 + $0x30] sm:$0xff]
  %v5625 = vld [vmem:[#allocation3 + $0x38] sm:$0xff]
  %v5626 = vld [vmem:[%s7] sm:$0xff]
  %v5627 = vld [vmem:[%s7 + $0x8] sm:$0xff]
  %v5628 = vld [vmem:[%s7 + $0x10] sm:$0xff]
  %v5629 = vld [vmem:[%s7 + $0x18] sm:$0xff]
  %v5630 = vld [vmem:[#allocation5] sm:$0xff]
  %v5631 = vld [vmem:[#allocation5 + $0x8] sm:$0xff]
  %v5632 = vld [vmem:[#allocation5 + $0x10] sm:$0xff]
  %v5633 = vld [vmem:[#allocation5 + $0x18] sm:$0xff]
  %v5634 = vld [vmem:[#allocation5 + $0x20] sm:$0xff]
  %v5635 = vld [vmem:[#allocation5 + $0x28] sm:$0xff]
  %v5636 = vld [vmem:[#allocation5 + $0x30] sm:$0xff]
  %v5637 = vld [vmem:[#allocation5 + $0x38] sm:$0xff]
  %v5638 = vld [vmem:[%s15] sm:$0xff]
  %v5639 = vld [vmem:[%s15 + $0x8] sm:$0xff]
  %v5640 = vld [vmem:[%s15 + $0x10] sm:$0xff]
  %v5641 = vld [vmem:[%s15 + $0x18] sm:$0xff]
  %v5642 = vld [vmem:[%s15 + $0x20] sm:$0xff]
  %v5643 = vld [vmem:[%s15 + $0x28] sm:$0xff]
  %v5644 = vld [vmem:[%s15 + $0x30] sm:$0xff]
  %v5645 = vld [vmem:[%s15 + $0x38] sm:$0xff]
  %v5646 = vld [vmem:[%s15 + $0x40] sm:$0xff]
  %v5647 = vld [vmem:[%s15 + $0x48] sm:$0xff]
  %v5648 = vld [vmem:[%s15 + $0x50] sm:$0xff]
  %v5649 = vld [vmem:[%s15 + $0x58] sm:$0xff]
  %v5650 = vld [vmem:[%s15 + $0x60] sm:$0xff]
  %v5651 = vld [vmem:[%s15 + $0x68] sm:$0xff]
  %v5652 = vld [vmem:[%s15 + $0x70] sm:$0xff]
  %v5653 = vld [vmem:[%s15 + $0x78] sm:$0xff]
  %5654 = vmatprep.subr.mxu0 0.0
  %5655 = vmatpush1.msra.mxu0 %v5653
  %5656 = vmatprep.subr.mxu0 0.0
  %5657 = vmatpush1.msra.mxu0 %v5652
  %5658 = vmatprep.subr.mxu0 0.0
  %5659 = vmatpush1.msra.mxu0 %v5651
  %5660 = vmatprep.subr.mxu0 0.0
  %5661 = vmatpush1.msra.mxu0 %v5650
  %5662 = vmatprep.subr.mxu0 0.0
  %5663 = vmatpush1.msra.mxu0 %v5649
  %5664 = vmatprep.subr.mxu0 0.0
  %5665 = vmatpush1.msra.mxu0 %v5648
  %5666 = vmatprep.subr.mxu0 0.0
  %5667 = vmatpush1.msra.mxu0 %v5647
  %5668 = vmatprep.subr.mxu0 0.0
  %5669 = vmatpush1.msra.mxu0 %v5646
  %5670 = vmatprep.subr.mxu0 0.0
  %5671 = vmatpush1.msra.mxu0 %v5645
  %5672 = vmatprep.subr.mxu0 0.0
  %5673 = vmatpush1.msra.mxu0 %v5644
  %5674 = vmatprep.subr.mxu0 0.0
  %5675 = vmatpush1.msra.mxu0 %v5643
  %5676 = vmatprep.subr.mxu0 0.0
  %5677 = vmatpush1.msra.mxu0 %v5642
  %5678 = vmatprep.subr.mxu0 0.0
  %5679 = vmatpush1.msra.mxu0 %v5641
  %5680 = vmatprep.subr.mxu0 0.0
  %5681 = vmatpush1.msra.mxu0 %v5640
  %5682 = vmatprep.subr.mxu0 0.0
  %5683 = vmatpush1.msra.mxu0 %v5639
  %5684 = vmatprep.subr.mxu0 0.0
  %5685 = vmatpush1.msra.mxu0 %v5638
  %5686 = vmatprep.subr.mxu0 0.0
  %5687 = vmatpush2.msra.mxu0 0.0
  %5688 = vmatprep.subr.mxu0 0.0
  %5689 = vmatpush2.msra.mxu0 0.0
  %5690 = vmatprep.subr.mxu0 0.0
  %5691 = vmatpush2.msra.mxu0 0.0
  %5692 = vmatprep.subr.mxu0 0.0
  %5693 = vmatpush2.msra.mxu0 0.0
  %5694 = vmatprep.subr.mxu0 0.0
  %5695 = vmatpush2.msra.mxu0 0.0
  %5696 = vmatprep.subr.mxu0 0.0
  %5697 = vmatpush2.msra.mxu0 0.0
  %5698 = vmatprep.subr.mxu0 0.0
  %5699 = vmatpush2.msra.mxu0 0.0
  %5700 = vmatprep.subr.mxu0 0.0
  %5701 = vmatpush2.msra.mxu0 0.0
  %5702 = vmatprep.subr.mxu0 0.0
  %5703 = vmatpush2.msra.mxu0 0.0
  %5704 = vmatprep.subr.mxu0 0.0
  %5705 = vmatpush2.msra.mxu0 0.0
  %5706 = vmatprep.subr.mxu0 0.0
  %5707 = vmatpush2.msra.mxu0 0.0
  %5708 = vmatprep.subr.mxu0 0.0
  %5709 = vmatpush2.msra.mxu0 0.0
  %5710 = vmatprep.subr.mxu0 0.0
  %5711 = vmatpush2.msra.mxu0 0.0
  %5712 = vmatprep.subr.mxu0 0.0
  %5713 = vmatpush2.msra.mxu0 0.0
  %5714 = vmatprep.subr.mxu0 0.0
  %5715 = vmatpush2.msra.mxu0 0.0
  %5716 = vmatprep.subr.mxu0 0.0
  %5717 = vmatpush2.msra.mxu0 0.0
  %5718 = vmatprep.mubr.f32.mxu0 0.0
  %5719 = vmatmul.mubr.f32.gmra.mxu0 %v5630
  %v5720 = vpop.f32.mrf.mxu0
  %v5721 = vadd.f32 0.0, %v5720
  %v5722 = vpop.f32.mrf.mxu0
  %5723 = vmatprep.mubr.f32.mxu0 0.0
  %5724 = vmatmul.mubr.f32.gmra.mxu0 %v5631
  %v5725 = vpop.f32.mrf.mxu0
  %v5726 = vadd.f32 0.0, %v5725
  %v5727 = vpop.f32.mrf.mxu0
  %5728 = vmatprep.mubr.f32.mxu0 0.0
  %5729 = vmatmul.mubr.f32.gmra.mxu0 %v5632
  %v5730 = vpop.f32.mrf.mxu0
  %v5731 = vadd.f32 0.0, %v5730
  %v5732 = vpop.f32.mrf.mxu0
  %5733 = vmatprep.mubr.f32.mxu0 0.0
  %5734 = vmatmul.mubr.f32.gmra.mxu0 %v5633
  %v5735 = vpop.f32.mrf.mxu0
  %v5736 = vadd.f32 0.0, %v5735
  %v5737 = vpop.f32.mrf.mxu0
  %5738 = vmatprep.mubr.f32.mxu0 0.0
  %5739 = vmatmul.mubr.f32.gmra.mxu0 %v5634
  %v5740 = vpop.f32.mrf.mxu0
  %v5741 = vadd.f32 0.0, %v5740
  %v5742 = vpop.f32.mrf.mxu0
  %5743 = vmatprep.mubr.f32.mxu0 0.0
  %5744 = vmatmul.mubr.f32.gmra.mxu0 %v5635
  %v5745 = vpop.f32.mrf.mxu0
  %v5746 = vadd.f32 0.0, %v5745
  %v5747 = vpop.f32.mrf.mxu0
  %5748 = vmatprep.mubr.f32.mxu0 0.0
  %5749 = vmatmul.mubr.f32.gmra.mxu0 %v5636
  %v5750 = vpop.f32.mrf.mxu0
  %v5751 = vadd.f32 0.0, %v5750
  %v5752 = vpop.f32.mrf.mxu0
  %5753 = vmatprep.mubr.f32.mxu0 0.0
  %5754 = vmatmul.mubr.f32.gmra.mxu0 %v5637
  %v5755 = vpop.f32.mrf.mxu0
  %v5756 = vadd.f32 0.0, %v5755
  %v5757 = vpop.f32.mrf.mxu0
  %5758 = vdwg.mxu0
  %v5760 = vsel %vm575, %v5618, 0
  %v5763 = vsel %vm575, %v5619, 0
  %v5766 = vsel %vm575, %v5620, 0
  %v5769 = vsel %vm575, %v5621, 0
  %v5772 = vsel %vm575, %v5622, 0
  %v5775 = vsel %vm575, %v5623, 0
  %v5778 = vsel %vm575, %v5624, 0
  %v5781 = vsel %vm575, %v5625, 0
  %5783 = vmatprep.subr.mxu0 0.0
  %5784 = vmatpush1.msra.mxu0 0.0
  %5785 = vmatprep.subr.mxu0 0.0
  %5786 = vmatpush1.msra.mxu0 0.0
  %5787 = vmatprep.subr.mxu0 0.0
  %5788 = vmatpush1.msra.mxu0 0.0
  %5789 = vmatprep.subr.mxu0 0.0
  %5790 = vmatpush1.msra.mxu0 0.0
  %5791 = vmatprep.subr.mxu0 0.0
  %5792 = vmatpush1.msra.mxu0 0.0
  %5793 = vmatprep.subr.mxu0 0.0
  %5794 = vmatpush1.msra.mxu0 0.0
  %5795 = vmatprep.subr.mxu0 0.0
  %5796 = vmatpush1.msra.mxu0 0.0
  %5797 = vmatprep.subr.mxu0 0.0
  %5798 = vmatpush1.msra.mxu0 0.0
  %5799 = vmatprep.subr.mxu0 0.0
  %5800 = vmatpush1.msra.mxu0 0.0
  %5801 = vmatprep.subr.mxu0 0.0
  %5802 = vmatpush1.msra.mxu0 0.0
  %5803 = vmatprep.subr.mxu0 0.0
  %5804 = vmatpush1.msra.mxu0 0.0
  %5805 = vmatprep.subr.mxu0 0.0
  %5806 = vmatpush1.msra.mxu0 0.0
  %5807 = vmatprep.subr.mxu0 0.0
  %5808 = vmatpush1.msra.mxu0 %v5629
  %5809 = vmatprep.subr.mxu0 0.0
  %5810 = vmatpush1.msra.mxu0 %v5628
  %5811 = vmatprep.subr.mxu0 0.0
  %5812 = vmatpush1.msra.mxu0 %v5627
  %5813 = vmatprep.subr.mxu0 0.0
  %5814 = vmatpush1.msra.mxu0 %v5626
  %5815 = vmatprep.subr.mxu0 0.0
  %5816 = vmatpush2.msra.mxu0 0.0
  %5817 = vmatprep.subr.mxu0 0.0
  %5818 = vmatpush2.msra.mxu0 0.0
  %5819 = vmatprep.subr.mxu0 0.0
  %5820 = vmatpush2.msra.mxu0 0.0
  %5821 = vmatprep.subr.mxu0 0.0
  %5822 = vmatpush2.msra.mxu0 0.0
  %5823 = vmatprep.subr.mxu0 0.0
  %5824 = vmatpush2.msra.mxu0 0.0
  %5825 = vmatprep.subr.mxu0 0.0
  %5826 = vmatpush2.msra.mxu0 0.0
  %5827 = vmatprep.subr.mxu0 0.0
  %5828 = vmatpush2.msra.mxu0 0.0
  %5829 = vmatprep.subr.mxu0 0.0
  %5830 = vmatpush2.msra.mxu0 0.0
  %5831 = vmatprep.subr.mxu0 0.0
  %5832 = vmatpush2.msra.mxu0 0.0
  %5833 = vmatprep.subr.mxu0 0.0
  %5834 = vmatpush2.msra.mxu0 0.0
  %5835 = vmatprep.subr.mxu0 0.0
  %5836 = vmatpush2.msra.mxu0 0.0
  %5837 = vmatprep.subr.mxu0 0.0
  %5838 = vmatpush2.msra.mxu0 0.0
  %5839 = vmatprep.subr.mxu0 0.0
  %5840 = vmatpush2.msra.mxu0 0.0
  %5841 = vmatprep.subr.mxu0 0.0
  %5842 = vmatpush2.msra.mxu0 0.0
  %5843 = vmatprep.subr.mxu0 0.0
  %5844 = vmatpush2.msra.mxu0 0.0
  %5845 = vmatprep.subr.mxu0 0.0
  %5846 = vmatpush2.msra.mxu0 0.0
  %5847 = vmatprep.mubr.f32.mxu0 0.0
  %5848 = vmatmul.mubr.f32.gmra.mxu0 %v5760
  %v5849 = vpop.f32.mrf.mxu0
  %v5850 = vadd.f32 %v5721, %v5849
  %v5851 = vpop.f32.mrf.mxu0
  %5852 = vmatprep.mubr.f32.mxu0 0.0
  %5853 = vmatmul.mubr.f32.gmra.mxu0 %v5763
  %v5854 = vpop.f32.mrf.mxu0
  %v5855 = vadd.f32 %v5726, %v5854
  %v5856 = vpop.f32.mrf.mxu0
  %5857 = vmatprep.mubr.f32.mxu0 0.0
  %5858 = vmatmul.mubr.f32.gmra.mxu0 %v5766
  %v5859 = vpop.f32.mrf.mxu0
  %v5860 = vadd.f32 %v5731, %v5859
  %v5861 = vpop.f32.mrf.mxu0
  %5862 = vmatprep.mubr.f32.mxu0 0.0
  %5863 = vmatmul.mubr.f32.gmra.mxu0 %v5769
  %v5864 = vpop.f32.mrf.mxu0
  %v5865 = vadd.f32 %v5736, %v5864
  %v5866 = vpop.f32.mrf.mxu0
  %5867 = vmatprep.mubr.f32.mxu0 0.0
  %5868 = vmatmul.mubr.f32.gmra.mxu0 %v5772
  %v5869 = vpop.f32.mrf.mxu0
  %v5870 = vadd.f32 %v5741, %v5869
  %v5871 = vpop.f32.mrf.mxu0
  %5872 = vmatprep.mubr.f32.mxu0 0.0
  %5873 = vmatmul.mubr.f32.gmra.mxu0 %v5775
  %v5874 = vpop.f32.mrf.mxu0
  %v5875 = vadd.f32 %v5746, %v5874
  %v5876 = vpop.f32.mrf.mxu0
  %5877 = vmatprep.mubr.f32.mxu0 0.0
  %5878 = vmatmul.mubr.f32.gmra.mxu0 %v5778
  %v5879 = vpop.f32.mrf.mxu0
  %v5880 = vadd.f32 %v5751, %v5879
  %v5881 = vpop.f32.mrf.mxu0
  %5882 = vmatprep.mubr.f32.mxu0 0.0
  %5883 = vmatmul.mubr.f32.gmra.mxu0 %v5781
  %v5884 = vpop.f32.mrf.mxu0
  %v5885 = vadd.f32 %v5756, %v5884
  %v5886 = vpop.f32.mrf.mxu0
  %5887 = vdwg.mxu0
  %v5888 = vld [vmem:[%s8] sm:$0x1]
  %v5890 = vlaneseq
  %v5891 = vshrl.u32 %v5890, 7
  %v5892 = vsub.s32 0, %v5891
  %v5893 = vrot.slane %v5888, %v5892
  %v5895 = vadd.f32 %v5850, %v5893
  %v5896 = vadd.f32 %v5855, %v5893
  %v5897 = vadd.f32 %v5860, %v5893
  %v5898 = vadd.f32 %v5865, %v5893
  %v5899 = vadd.f32 %v5870, %v5893
  %v5900 = vadd.f32 %v5875, %v5893
  %v5901 = vadd.f32 %v5880, %v5893
  %v5902 = vadd.f32 %v5885, %v5893
  %v5903 = vld [vmem:[#allocation6] sm:$0x1]
  %v5905 = vlaneseq
  %v5906 = vshrl.u32 %v5905, 7
  %v5907 = vsub.s32 0, %v5906
  %v5908 = vrot.slane %v5903, %v5907
  %5909 = vset.pattern.permute.xlu0 0
  %5910 = vperm.xlu0 %5909, %v5908
  %v5911 = vpop.permute.xlu0 %5910
  %v5913 = vadd.f32 %v5895, %v5911
  %v5914 = vadd.f32 %v5896, %v5911
  %v5915 = vadd.f32 %v5897, %v5911
  %v5916 = vadd.f32 %v5898, %v5911
  %v5917 = vadd.f32 %v5899, %v5911
  %v5918 = vadd.f32 %v5900, %v5911
  %v5919 = vadd.f32 %v5901, %v5911
  %v5920 = vadd.f32 %v5902, %v5911
  %5921 = vst.msk [vmem:[%s17] sm:$0xff] %vm157, %v5913
  %5922 = vst.msk [vmem:[%s17 + $0x8] sm:$0xff] %vm157, %v5914
  %5923 = vst.msk [vmem:[%s17 + $0x10] sm:$0xff] %vm157, %v5915
  %5924 = vst.msk [vmem:[%s17 + $0x18] sm:$0xff] %vm157, %v5916
  %5925 = vst.msk [vmem:[%s17 + $0x20] sm:$0xff] %vm157, %v5917
  %5926 = vst.msk [vmem:[%s17 + $0x28] sm:$0xff] %vm157, %v5918
  %5927 = vst.msk [vmem:[%s17 + $0x30] sm:$0xff] %vm157, %v5919
  %5928 = vst.msk [vmem:[%s17 + $0x38] sm:$0xff] %vm157, %v5920
  // Predicated region
  $region70: #{optimizer_opti_forward.1} parent=0 // pred_check
    _
  $region71: #{optimizer_opti_forward.1} parent=0 // pred_check_branch
    %5930 = sbr.rel (0) target = $region73
  $region72: #{optimizer_opti_forward.1} parent=0 // pred_region
    _
  $region73: #{optimizer_opti_forward.1} parent=0 // pred_fallthru
    _
  // Predicated region
  $region74: #{optimizer_opti_forward.1} parent=0 // pred_check
    _
  $region75: #{optimizer_opti_forward.1} parent=0 // pred_check_branch
    %5932 = sbr.rel (0) target = $region77
  $region76: #{optimizer_opti_forward.1} parent=0 // pred_region
    _
  $region77: #{optimizer_opti_forward.1} parent=0 // pred_fallthru
    _
  // Predicated region
  $region78: #{optimizer_opti_forward.1} parent=0 // pred_check
    _
  $region79: #{optimizer_opti_forward.1} parent=0 // pred_check_branch
    %5934 = sbr.rel (0) target = $region81
  $region80: #{optimizer_opti_forward.1} parent=0 // pred_region
    _
  $region81: #{optimizer_opti_forward.1} parent=0 // pred_fallthru
    _
  // Predicated region
  $region82: #{optimizer_opti_forward.1} parent=0 // pred_check
    _
  $region83: #{optimizer_opti_forward.1} parent=0 // pred_check_branch
    %5936 = sbr.rel (0) target = $region85
  $region84: #{optimizer_opti_forward.1} parent=0 // pred_region
    _
  $region85: #{optimizer_opti_forward.1} parent=0 // pred_fallthru
    _
  // Predicated region
  $region86: #{optimizer_opti_forward.1} parent=0 // pred_check
    _
  $region87: #{optimizer_opti_forward.1} parent=0 // pred_check_branch
    %5938 = sbr.rel (0) target = $region89
  $region88: #{optimizer_opti_forward.1} parent=0 // pred_region
    _
  $region89: #{optimizer_opti_forward.1} parent=0 // pred_fallthru
    _
  // Predicated region
  $region90: #{optimizer_opti_forward.1} parent=0 // pred_check
    _
  $region91: #{optimizer_opti_forward.1} parent=0 // pred_check_branch
    %5940 = sbr.rel (0) target = $region93
  $region92: #{optimizer_opti_forward.1} parent=0 // pred_region
    _
  $region93: #{optimizer_opti_forward.1} parent=0 // pred_fallthru
    _
  // Predicated region
  $region94: #{optimizer_opti_forward.1} parent=0 // pred_check
    _
  $region95: #{optimizer_opti_forward.1} parent=0 // pred_check_branch
    %5942 = sbr.rel (0) target = $region97
  $region96: #{optimizer_opti_forward.1} parent=0 // pred_region
    _
  $region97: #{optimizer_opti_forward.1} parent=0 // pred_fallthru
    _
  // Predicated region
  $region98: #{optimizer_opti_forward.1} parent=0 // pred_check
    _
  $region99: #{optimizer_opti_forward.1} parent=0 // pred_check_branch
    %5944 = sbr.rel (0) target = $region101
  $region100: #{optimizer_opti_forward.1} parent=0 // pred_region
    _
  $region101: #{optimizer_opti_forward.1} parent=0 // pred_fallthru
    _
  // Predicated region
  $region102: #{optimizer_opti_forward.1} parent=0 // pred_check
    _
  $region103: #{optimizer_opti_forward.1} parent=0 // pred_check_branch
    %5946 = sbr.rel (0) target = $region105
  $region104: #{optimizer_opti_forward.1} parent=0 // pred_region
    _
  $region105: #{optimizer_opti_forward.1} parent=0 // pred_fallthru
    _
  // Predicated region
  $region106: #{optimizer_opti_forward.1} parent=0 // pred_check
    _
  $region107: #{optimizer_opti_forward.1} parent=0 // pred_check_branch
    %5948 = sbr.rel (0) target = $region109
  $region108: #{optimizer_opti_forward.1} parent=0 // pred_region
    _
  $region109: #{optimizer_opti_forward.1} parent=0 // pred_fallthru
    _

</llo_original>
